<compile_context>
chip_gen: v6e
topology: v6e:2x2x1
jax: 0.10.0
libtpu: 0.0.40
codegen_flags: <defaults>
</compile_context>

<pallas_src>
import numpy as np
import jax
import jax.numpy as jnp
from jax.experimental import pallas as pl
from jax.experimental.pallas import tpu as pltpu


# ------------------------------ Pallas kernel ------------------------------

def make_cpkan_kernel(n_layer, TB, T, D):
    """Fused CPKAN forward (agg='sum') for one batch tile of TB rows."""
    assert n_layer >= 1
    L = n_layer
    G = 2 * L                       # groups: user layers 0..L-1, item layers L..2L-1
    NEG_SLOPE = 0.01                # nn.LeakyReLU default
    f32 = jnp.float32

    def _leaky(x):
        return jnp.where(x > 0, x, NEG_SLOPE * x)

    def _sig(x):
        # robust sigmoid: tanh formulation avoids exp overflow, runs on the EUP
        return 0.5 * (jnp.tanh(0.5 * x) + 1.0)

    def _dot(a, b):
        return jnp.dot(a, b, preferred_element_type=f32)

    def kernel(acts_ref, item_origin_ref,
               tw1_ref, tb1_ref, tw2_ref, tb2_ref,
               aw1_ref, ab1_ref, aw2_ref, ab2_ref, aw3_ref, ab3_ref,
               uw1_ref, ub1_ref, uw2_ref, ub2_ref,
               dw1_ref, db1_ref, dw2_ref, db2_ref,
               ew1_ref, eb1_ref, ew2_ref, eb2_ref,
               out_ref):
        # acts_ref: (3*G, TB, T, D) -- [h-groups | r-groups | t-groups],
        # group order = user layers 0..L-1 then item layers 0..L-1.
        hrt = acts_ref[...].astype(f32)                 # single read + upcast
        h_all = hrt[:G]                                 # (G, TB, T, D)
        r_all = hrt[G:2 * G]
        t_all = hrt[2 * G:]

        # ---- small params: (1,D)/(1,1) rows, broadcast implicitly over rows ----
        tb1 = tb1_ref[...]                              # (1, D)
        tw2 = tw2_ref[...].reshape(1, 1, D)             # (1, 1, D)
        tb2 = tb2_ref[...]                              # (1, 1)
        ab1 = ab1_ref[...]; ab2 = ab2_ref[...]
        aw3 = aw3_ref[...]; ab3 = ab3_ref[...]
        db1 = db1_ref[...]; db2 = db2_ref[...]
        eb1 = eb1_ref[...]; eb2 = eb2_ref[...]
        ub1 = ub1_ref[...]; ub2 = ub2_ref[...]
        # column-block structure of the torch concats -> split-accumulate matmuls
        tw1_hr = tw1_ref[pl.ds(0, D), :]
        tw1_t = tw1_ref[pl.ds(D, D), :]
        aw1_e = aw1_ref[pl.ds(0 * D, D), :]
        aw1_l = aw1_ref[pl.ds(1 * D, D), :]
        aw1_li = aw1_ref[pl.ds(2 * D, D), :]
        aw1_o = aw1_ref[pl.ds(3 * D, D), :]
        aw1_oi = aw1_ref[pl.ds(4 * D, D), :]

        # ---- knowledge attention, batched across both sides and all layers ----
        hr = (h_all * r_all).reshape(G * TB * T, D)
        tt = t_all.reshape(G * TB * T, D)
        z = _leaky(_dot(hr, tw1_hr) + _dot(tt, tw1_t) + tb1)          # (G*TB*T, D)
        # lane-dense logits (T on lanes) for the softmax
        logits = _sig(jnp.sum(z.reshape(G * TB, T, D) * tw2, axis=-1) + tb2)
        m = jnp.max(logits, axis=-1, keepdims=True)
        p = jnp.exp(logits - m)
        att = p / jnp.sum(p, axis=-1, keepdims=True)                  # softmax over T
        # weighted sum over T on the VPU (q=1 matvec is a poor MXU fit)
        emb_all = jnp.sum(att[:, :, None] * t_all.reshape(G * TB, T, D), axis=1)
        emb_all = emb_all.reshape(G, TB, D)

        def o_l_attention(emb_i, origin, last):
            oi = origin * emb_i
            li = last * emb_i
            zz = (_dot(emb_i, aw1_e) + _dot(last, aw1_l) + _dot(li, aw1_li)
                  + _dot(origin, aw1_o) + _dot(oi, aw1_oi))
            zz = _leaky(zz + ab1)
            zz = _leaky(_dot(zz, aw2_ref[...]) + ab2)
            a = _sig(jnp.sum(zz * aw3, axis=-1, keepdims=True) + ab3)  # (TB, 1)
            return a * emb_i

        def dig(x, w1_ref, b1, w2_ref, b2):
            hdn = _leaky(_dot(x, w1_ref[...]) + b1)
            return _leaky(_dot(hdn, w2_ref[...]) + b2)

        # ---- user_embeddings[0] = mean_T(User_0_attention(user h, layer 0)) ----
        u0 = h_all[0].reshape(TB * T, D)
        h1 = jnp.maximum(_dot(u0, uw1_ref[...]) + ub1, 0.0)
        h2 = _sig(_dot(h1, uw2_ref[...]) + ub2)
        user_origin = jnp.mean(h2.reshape(TB, T, D), axis=1)           # (TB, D)
        item_origin = item_origin_ref[...].astype(f32)                 # (TB, D)

        e_u, user_last = user_origin, user_origin
        e_v, item_last = item_origin, item_origin
        for i in range(L):
            # user side (serial in `last`)
            att_u = o_l_attention(emb_all[i], user_origin, user_last)
            du = dig(att_u, dw1_ref, db1, dw2_ref, db2)
            user_last = du
            e_u = e_u + du + du          # torch appends u_i_dig(att) twice
            # item side (serial in `last`, independent of user side)
            att_v = o_l_attention(emb_all[L + i], item_origin, item_last)
            dv = dig(att_v, ew1_ref, eb1, ew2_ref, eb2)
            item_last = dv
            e_v = e_v + dv + dv          # torch appends item_i_dig(att) twice

        # agg == 'sum': extra mean over T of item h (layer 0) appended
        e_v = e_v + jnp.mean(h_all[L], axis=1)

        # ---- predict (agg='sum') ----
        scores = jnp.sum(e_u * e_v, axis=-1)                           # (TB,)
        out_ref[...] = _sig(scores).reshape(1, 1, TB)                  # lane-dense row

    return kernel


# ------------------------------ tile / VMEM planning ------------------------

def _round_up(x, m):
    return ((x + m - 1) // m) * m


def _cdiv(a, b):
    return (a + b - 1) // b


def _vmem_capacity_bytes():
    """Per-core VMEM capacity (128 MiB v5e/v6e, 64 MiB v7x); safe fallback."""
    try:
        info = pltpu.get_tpu_info()
        cap = getattr(info, "vmem_capacity_bytes", None)
        if cap:
            return int(cap)
    except Exception:
        pass
    return 64 << 20     # conservative (v7x per-core)


def _plan_tiles(B, T, D, n_layer, act_dtype, max_tile_b=None):
    """Pick batch tile TB using *padded* VMEM footprints (lane 128 / sublane 8)."""
    G = 2 * n_layer
    cap = _vmem_capacity_bytes()
    budget = int(cap * 0.6)

    act_bytes = jnp.dtype(act_dtype).itemsize
    Dp = _round_up(D, 128)
    Tp_in = _round_up(T, 16 if act_bytes < 4 else 8)   # sublane packing of inputs
    Tp = _round_up(T, 8)

    # per-batch-row bytes: double-buffered inputs + f32 kernel temporaries
    in_row = (3 * G * Tp_in * Dp + Dp) * act_bytes * 2
    tmp_row = (8 * G * Tp * Dp + 24 * Dp) * 4
    weights_bytes = 2 * (16 * _round_up(D, 8) + 16 * 8) * Dp * 4
    avail = budget - weights_bytes - (2 << 20)

    tb = max(8, avail // max(1, (in_row + tmp_row)))
    tb = (tb // 128) * 128 if tb >= 128 else (tb // 8) * 8
    tb = max(8, tb)
    if max_tile_b is not None:
        tb = max(8, min(tb, _round_up(int(max_tile_b), 8)))
    # guarantee >=2 grid steps when the batch allows (v7x megacore sharding)
    if B > 8:
        tb = min(tb, max(8, _round_up(_cdiv(B, 2), 8)))
    tb = min(tb, _round_up(B, 8))
    n_tiles = _cdiv(B, tb)

    est = tb * (in_row + tmp_row) + weights_bytes + (2 << 20)
    vmem_limit = int(min(max(est, 32 << 20), int(cap * 0.9)))
    return int(tb), int(n_tiles), vmem_limit


# ------------------------------ wrapper --------------------------------------

def cpkan_forward_pallas(params, items, user_triple_set, item_triple_set,
                         n_layer, agg='sum', max_tile_b=None,
                         act_dtype=jnp.bfloat16):
    assert agg == 'sum'
    # TODO(synk): 'pool' / 'concat' aggregators not implemented in the kernel.
    assert n_layer >= 1
    ent = params['entity_emb']
    rel = params['relation_emb']
    D = int(ent.shape[1])
    B, T = (int(s) for s in user_triple_set[0][0].shape)
    L = n_layer
    G = 2 * L

    TB, n_tiles, vmem_limit = _plan_tiles(B, T, D, L, act_dtype, max_tile_b)
    B_pad = n_tiles * TB

    def pad_b(ix):
        if B_pad == B:
            return ix
        pad = jnp.zeros((B_pad - B,) + tuple(ix.shape[1:]), ix.dtype)
        return jnp.concatenate([ix, pad], axis=0)

    gE = lambda ix: jnp.take(ent, pad_b(ix), axis=0)
    gR = lambda ix: jnp.take(rel, pad_b(ix), axis=0)
    # TODO(synk): move these gathers in-kernel (scalar-prefetched indices +
    # HBM-resident tables + DMA gather) to avoid the XLA round trip.

    h_list = ([gE(user_triple_set[0][i]) for i in range(L)]
              + [gE(item_triple_set[0][i]) for i in range(L)])
    r_list = ([gR(user_triple_set[1][i]) for i in range(L)]
              + [gR(item_triple_set[1][i]) for i in range(L)])
    t_list = ([gE(user_triple_set[2][i]) for i in range(L)]
              + [gE(item_triple_set[2][i]) for i in range(L)])
    # single stacked activation array -> one DMA per batch tile
    acts = jnp.stack(h_list + r_list + t_list, axis=0).astype(act_dtype)   # (3G,B_pad,T,D)
    item_origin = gE(items).astype(act_dtype)                              # (B_pad, D)

    weights = [
        params['tw1'], params['tb1'], params['tw2'].reshape(1, D), params['tb2'],
        params['aw1'], params['ab1'], params['aw2'], params['ab2'],
        params['aw3'].reshape(1, D), params['ab3'],
        params['uw1'], params['ub1'], params['uw2'], params['ub2'],
        params['dw1'], params['db1'], params['dw2'], params['db2'],
        params['ew1'], params['eb1'], params['ew2'], params['eb2'],
    ]

    acts_spec = pl.BlockSpec((3 * G, TB, T, D), lambda b: (0, b, 0, 0))
    origin_spec = pl.BlockSpec((TB, D), lambda b: (b, 0))

    def const_spec(x):
        nd = x.ndim
        return pl.BlockSpec(tuple(x.shape), lambda b, _nd=nd: (0,) * _nd)

    in_specs = [acts_spec, origin_spec] + [const_spec(w) for w in weights]

    out = pl.pallas_call(
        make_cpkan_kernel(L, TB, T, D),
        grid=(n_tiles,),
        in_specs=in_specs,
        out_specs=pl.BlockSpec((1, 1, TB), lambda b: (b, 0, 0)),
        out_shape=jax.ShapeDtypeStruct((n_tiles, 1, TB), jnp.float32),
        compiler_params=pltpu.CompilerParams(
            dimension_semantics=("parallel",),
            vmem_limit_bytes=vmem_limit),
    )(acts, item_origin, *weights)
    return out.reshape(B_pad)[:B]


# --------------------------- pure-JAX reference ------------------------------

def cpkan_forward_ref(params, items, uts, its, n_layer, agg='sum'):
    ent, rel = params['entity_emb'], params['relation_emb']
    lin = lambda x, w, b: x @ w + b
    leaky = lambda x: jnp.where(x > 0, x, 0.01 * x)
    sig = jax.nn.sigmoid

    def triple_attention(x):
        z = leaky(lin(x, params['tw1'], params['tb1']))
        return sig(lin(z, params['tw2'], params['tb2']))

    def knowledge_attention(h, r, t):
        hr = h * r
        att_w = triple_attention(jnp.concatenate([hr, t], axis=-1))[..., 0]
        att = jax.nn.softmax(att_w, axis=-1)
        return jnp.sum(att[..., None] * t, axis=1)

    def emb_i_attention(x):
        z = leaky(lin(x, params['aw1'], params['ab1']))
        z = leaky(lin(z, params['aw2'], params['ab2']))
        return sig(lin(z, params['aw3'], params['ab3']))

    def o_l_attention(emb_i, origin, last):
        oi = origin * emb_i
        li = last * emb_i
        att = emb_i_attention(jnp.concatenate([emb_i, last, li, origin, oi], axis=-1))
        return att * emb_i

    def user0_att(x):
        z = jnp.maximum(lin(x, params['uw1'], params['ub1']), 0.0)
        return sig(lin(z, params['uw2'], params['ub2']))

    def dig(x, w1, b1, w2, b2):
        return leaky(lin(leaky(lin(x, w1, b1)), w2, b2))

    user_embs = [jnp.mean(user0_att(ent[uts[0][0]]), axis=1)]
    for i in range(n_layer):
        h, r, t = ent[uts[0][i]], rel[uts[1][i]], ent[uts[2][i]]
        emb_i = knowledge_attention(h, r, t)
        att = o_l_attention(emb_i, user_embs[0], user_embs[-1])
        d = dig(att, params['dw1'], params['db1'], params['dw2'], params['db2'])
        user_embs.append(d)
        user_embs.append(d)

    item_embs = [ent[items]]
    for i in range(n_layer):
        h, r, t = ent[its[0][i]], rel[its[1][i]], ent[its[2][i]]
        emb_i = knowledge_attention(h, r, t)
        att = o_l_attention(emb_i, item_embs[0], item_embs[-1])
        d = dig(att, params['ew1'], params['eb1'], params['ew2'], params['eb2'])
        item_embs.append(d)
        item_embs.append(d)
    if n_layer > 0 and agg in ('sum', 'pool'):
        item_embs.append(jnp.mean(ent[its[0][0]], axis=1))

    e_u = user_embs[0]
    for x in user_embs[1:]:
        e_u = e_u + x
    e_v = item_embs[0]
    for x in item_embs[1:]:
        e_v = e_v + x
    return sig(jnp.sum(e_u * e_v, axis=1))


# ------------------------------ param init -----------------------------------

def _xavier(key, shape):
    a = float(np.sqrt(6.0 / (shape[0] + shape[1])))
    return jax.random.uniform(key, shape, jnp.float32, -a, a)


def _bias(key, shape):
    return jax.random.uniform(key, shape, jnp.float32, -0.1, 0.1)


def init_params(key, n_entity, n_relation, dim):
    ks = iter(jax.random.split(key, 32))
    p = {}
    p['entity_emb'] = _xavier(next(ks), (n_entity, dim))
    p['relation_emb'] = _xavier(next(ks), (n_relation, dim))
    # triple_attention: Linear(2d,d) -> LeakyReLU -> Linear(d,1) -> Sigmoid
    p['tw1'] = _xavier(next(ks), (2 * dim, dim)); p['tb1'] = _bias(next(ks), (1, dim))
    p['tw2'] = _xavier(next(ks), (dim, 1));       p['tb2'] = _bias(next(ks), (1, 1))
    # emb_i_attention: Linear(5d,d), Linear(d,d), Linear(d,1)
    p['aw1'] = _xavier(next(ks), (5 * dim, dim)); p['ab1'] = _bias(next(ks), (1, dim))
    p['aw2'] = _xavier(next(ks), (dim, dim));     p['ab2'] = _bias(next(ks), (1, dim))
    p['aw3'] = _xavier(next(ks), (dim, 1));       p['ab3'] = _bias(next(ks), (1, 1))
    # User_0_attention: Linear(d,d) ReLU Linear(d,d) Sigmoid
    p['uw1'] = _xavier(next(ks), (dim, dim));     p['ub1'] = _bias(next(ks), (1, dim))
    p['uw2'] = _xavier(next(ks), (dim, dim));     p['ub2'] = _bias(next(ks), (1, dim))
    # u_i_dig
    p['dw1'] = _xavier(next(ks), (dim, dim));     p['db1'] = _bias(next(ks), (1, dim))
    p['dw2'] = _xavier(next(ks), (dim, dim));     p['db2'] = _bias(next(ks), (1, dim))
    # item_i_dig
    p['ew1'] = _xavier(next(ks), (dim, dim));     p['eb1'] = _bias(next(ks), (1, dim))
    p['ew2'] = _xavier(next(ks), (dim, dim));     p['eb2'] = _bias(next(ks), (1, dim))
    return p


# --------------------------------- main ---------------------------------------

if __name__ == "__main__":
    B, T, D = 16, 8, 32          # batch, triples per sample, embedding dim
    n_layer = 2
    n_entity, n_relation = 64, 16
    agg = 'sum'

    root = jax.random.PRNGKey(0)
    pkey, dkey = jax.random.split(root)
    params = init_params(pkey, n_entity, n_relation, D)

    dks = jax.random.split(dkey, 3)
    items = jax.random.randint(dks[0], (B,), 0, n_entity)

    def make_triple_set(key):
        ks = jax.random.split(key, 3 * n_layer)
        hs = [jax.random.randint(ks[3 * i + 0], (B, T), 0, n_entity) for i in range(n_layer)]
        rs = [jax.random.randint(ks[3 * i + 1], (B, T), 0, n_relation) for i in range(n_layer)]
        ts = [jax.random.randint(ks[3 * i + 2], (B, T), 0, n_entity) for i in range(n_layer)]
        return [hs, rs, ts]

    user_triple_set = make_triple_set(dks[1])
    item_triple_set = make_triple_set(dks[2])

    # --- bf16-activation path (default): validate against a reference whose
    #     embedding tables carry the identical bf16 quantization, so the f32
    #     compute path is checked at tight tolerance. max_tile_b=8 -> 2 grid
    #     steps (exercises pipelining / megacore sharding).
    scores = cpkan_forward_pallas(params, items, user_triple_set,
                                  item_triple_set, n_layer, agg,
                                  max_tile_b=8, act_dtype=jnp.bfloat16)
    scores = jax.block_until_ready(scores)

    params_q = dict(params)
    params_q['entity_emb'] = params['entity_emb'].astype(jnp.bfloat16).astype(jnp.float32)
    params_q['relation_emb'] = params['relation_emb'].astype(jnp.bfloat16).astype(jnp.float32)
    ref_q = jax.block_until_ready(
        cpkan_forward_ref(params_q, items, user_triple_set, item_triple_set,
                          n_layer, agg))
    assert scores.shape == (B,)
    np.testing.assert_allclose(np.asarray(scores), np.asarray(ref_q),
                               rtol=1e-3, atol=1e-3)

    # --- f32-activation path: exact semantic parity with the torch module.
    scores_f32 = cpkan_forward_pallas(params, items, user_triple_set,
                                      item_triple_set, n_layer, agg,
                                      max_tile_b=8, act_dtype=jnp.float32)
    scores_f32 = jax.block_until_ready(scores_f32)
    ref = jax.block_until_ready(
        cpkan_forward_ref(params, items, user_triple_set, item_triple_set,
                          n_layer, agg))
    np.testing.assert_allclose(np.asarray(scores_f32), np.asarray(ref),
                               rtol=1e-3, atol=1e-3)

    print("KERNEL_OK")
</pallas_src>

<mosaic_0001>
module attributes {stable_mosaic.version = 11 : i64} {
  func.func @kernel(%arg0: i32, %arg1: memref<12x8x8x32xbf16, #tpu.memory_space<vmem>>, %arg2: memref<8x32xbf16, #tpu.memory_space<vmem>>, %arg3: memref<64x32xf32, #tpu.memory_space<vmem>>, %arg4: memref<1x32xf32, #tpu.memory_space<vmem>>, %arg5: memref<1x32xf32, #tpu.memory_space<vmem>>, %arg6: memref<1x1xf32, #tpu.memory_space<vmem>>, %arg7: memref<160x32xf32, #tpu.memory_space<vmem>>, %arg8: memref<1x32xf32, #tpu.memory_space<vmem>>, %arg9: memref<32x32xf32, #tpu.memory_space<vmem>>, %arg10: memref<1x32xf32, #tpu.memory_space<vmem>>, %arg11: memref<1x32xf32, #tpu.memory_space<vmem>>, %arg12: memref<1x1xf32, #tpu.memory_space<vmem>>, %arg13: memref<32x32xf32, #tpu.memory_space<vmem>>, %arg14: memref<1x32xf32, #tpu.memory_space<vmem>>, %arg15: memref<32x32xf32, #tpu.memory_space<vmem>>, %arg16: memref<1x32xf32, #tpu.memory_space<vmem>>, %arg17: memref<32x32xf32, #tpu.memory_space<vmem>>, %arg18: memref<1x32xf32, #tpu.memory_space<vmem>>, %arg19: memref<32x32xf32, #tpu.memory_space<vmem>>, %arg20: memref<1x32xf32, #tpu.memory_space<vmem>>, %arg21: memref<32x32xf32, #tpu.memory_space<vmem>>, %arg22: memref<1x32xf32, #tpu.memory_space<vmem>>, %arg23: memref<32x32xf32, #tpu.memory_space<vmem>>, %arg24: memref<1x32xf32, #tpu.memory_space<vmem>>, %arg25: memref<1x1x8xf32, #tpu.memory_space<vmem>>) attributes {dimension_semantics = [#tpu.dimension_semantics<parallel>], iteration_bounds = array<i64: 2>, scalar_prefetch = 0 : i64, scratch_operands = 0 : i64, tpu.core_type = #tpu.core_type<tc>, window_params = [{transform_indices = @transform_0, window_bounds = array<i64: 12, 8, 8, 32>}, {transform_indices = @transform_1, window_bounds = array<i64: 8, 32>}, {pipeline_mode = #tpu.pipeline_mode<synchronous>, transform_indices = @transform_2, window_bounds = array<i64: 64, 32>}, {pipeline_mode = #tpu.pipeline_mode<synchronous>, transform_indices = @transform_3, window_bounds = array<i64: 1, 32>}, {pipeline_mode = #tpu.pipeline_mode<synchronous>, transform_indices = @transform_4, window_bounds = array<i64: 1, 32>}, {pipeline_mode = #tpu.pipeline_mode<synchronous>, transform_indices = @transform_5, window_bounds = array<i64: 1, 1>}, {pipeline_mode = #tpu.pipeline_mode<synchronous>, transform_indices = @transform_6, window_bounds = array<i64: 160, 32>}, {pipeline_mode = #tpu.pipeline_mode<synchronous>, transform_indices = @transform_7, window_bounds = array<i64: 1, 32>}, {pipeline_mode = #tpu.pipeline_mode<synchronous>, transform_indices = @transform_8, window_bounds = array<i64: 32, 32>}, {pipeline_mode = #tpu.pipeline_mode<synchronous>, transform_indices = @transform_9, window_bounds = array<i64: 1, 32>}, {pipeline_mode = #tpu.pipeline_mode<synchronous>, transform_indices = @transform_10, window_bounds = array<i64: 1, 32>}, {pipeline_mode = #tpu.pipeline_mode<synchronous>, transform_indices = @transform_11, window_bounds = array<i64: 1, 1>}, {pipeline_mode = #tpu.pipeline_mode<synchronous>, transform_indices = @transform_12, window_bounds = array<i64: 32, 32>}, {pipeline_mode = #tpu.pipeline_mode<synchronous>, transform_indices = @transform_13, window_bounds = array<i64: 1, 32>}, {pipeline_mode = #tpu.pipeline_mode<synchronous>, transform_indices = @transform_14, window_bounds = array<i64: 32, 32>}, {pipeline_mode = #tpu.pipeline_mode<synchronous>, transform_indices = @transform_15, window_bounds = array<i64: 1, 32>}, {pipeline_mode = #tpu.pipeline_mode<synchronous>, transform_indices = @transform_16, window_bounds = array<i64: 32, 32>}, {pipeline_mode = #tpu.pipeline_mode<synchronous>, transform_indices = @transform_17, window_bounds = array<i64: 1, 32>}, {pipeline_mode = #tpu.pipeline_mode<synchronous>, transform_indices = @transform_18, window_bounds = array<i64: 32, 32>}, {pipeline_mode = #tpu.pipeline_mode<synchronous>, transform_indices = @transform_19, window_bounds = array<i64: 1, 32>}, {pipeline_mode = #tpu.pipeline_mode<synchronous>, transform_indices = @transform_20, window_bounds = array<i64: 32, 32>}, {pipeline_mode = #tpu.pipeline_mode<synchronous>, transform_indices = @transform_21, window_bounds = array<i64: 1, 32>}, {pipeline_mode = #tpu.pipeline_mode<synchronous>, transform_indices = @transform_22, window_bounds = array<i64: 32, 32>}, {pipeline_mode = #tpu.pipeline_mode<synchronous>, transform_indices = @transform_23, window_bounds = array<i64: 1, 32>}, {transform_indices = @transform_24, window_bounds = array<i64: 1, 1, 8>}]} {
    %c0 = arith.constant 0 : index
    %c0_0 = arith.constant 0 : index
    %c0_1 = arith.constant 0 : index
    %c0_2 = arith.constant 0 : index
    %0 = vector.load %arg1[%c0, %c0_0, %c0_1, %c0_2] : memref<12x8x8x32xbf16, #tpu.memory_space<vmem>>, vector<12x8x8x32xbf16>
    %1 = arith.extf %0 : vector<12x8x8x32xbf16> to vector<12x8x8x32xf32>
    %2 = vector.extract_strided_slice %1 {offsets = [0, 0, 0, 0], sizes = [4, 8, 8, 32], strides = [1, 1, 1, 1]} : vector<12x8x8x32xf32> to vector<4x8x8x32xf32>
    %3 = vector.extract_strided_slice %1 {offsets = [4, 0, 0, 0], sizes = [4, 8, 8, 32], strides = [1, 1, 1, 1]} : vector<12x8x8x32xf32> to vector<4x8x8x32xf32>
    %4 = vector.extract_strided_slice %1 {offsets = [8, 0, 0, 0], sizes = [4, 8, 8, 32], strides = [1, 1, 1, 1]} : vector<12x8x8x32xf32> to vector<4x8x8x32xf32>
    %c0_3 = arith.constant 0 : index
    %c0_4 = arith.constant 0 : index
    %5 = vector.load %arg4[%c0_3, %c0_4] : memref<1x32xf32, #tpu.memory_space<vmem>>, vector<1x32xf32>
    %c0_5 = arith.constant 0 : index
    %c0_6 = arith.constant 0 : index
    %6 = vector.load %arg5[%c0_5, %c0_6] : memref<1x32xf32, #tpu.memory_space<vmem>>, vector<1x32xf32>
    %7 = vector.shape_cast %6 : vector<1x32xf32> to vector<1x1x32xf32>
    %c0_7 = arith.constant 0 : index
    %c0_8 = arith.constant 0 : index
    %8 = vector.load %arg6[%c0_7, %c0_8] : memref<1x1xf32, #tpu.memory_space<vmem>>, vector<1x1xf32>
    %c0_9 = arith.constant 0 : index
    %c0_10 = arith.constant 0 : index
    %9 = vector.load %arg8[%c0_9, %c0_10] : memref<1x32xf32, #tpu.memory_space<vmem>>, vector<1x32xf32>
    %c0_11 = arith.constant 0 : index
    %c0_12 = arith.constant 0 : index
    %10 = vector.load %arg10[%c0_11, %c0_12] : memref<1x32xf32, #tpu.memory_space<vmem>>, vector<1x32xf32>
    %c0_13 = arith.constant 0 : index
    %c0_14 = arith.constant 0 : index
    %11 = vector.load %arg11[%c0_13, %c0_14] : memref<1x32xf32, #tpu.memory_space<vmem>>, vector<1x32xf32>
    %c0_15 = arith.constant 0 : index
    %c0_16 = arith.constant 0 : index
    %12 = vector.load %arg12[%c0_15, %c0_16] : memref<1x1xf32, #tpu.memory_space<vmem>>, vector<1x1xf32>
    %c0_17 = arith.constant 0 : index
    %c0_18 = arith.constant 0 : index
    %13 = vector.load %arg18[%c0_17, %c0_18] : memref<1x32xf32, #tpu.memory_space<vmem>>, vector<1x32xf32>
    %c0_19 = arith.constant 0 : index
    %c0_20 = arith.constant 0 : index
    %14 = vector.load %arg20[%c0_19, %c0_20] : memref<1x32xf32, #tpu.memory_space<vmem>>, vector<1x32xf32>
    %c0_21 = arith.constant 0 : index
    %c0_22 = arith.constant 0 : index
    %15 = vector.load %arg22[%c0_21, %c0_22] : memref<1x32xf32, #tpu.memory_space<vmem>>, vector<1x32xf32>
    %c0_23 = arith.constant 0 : index
    %c0_24 = arith.constant 0 : index
    %16 = vector.load %arg24[%c0_23, %c0_24] : memref<1x32xf32, #tpu.memory_space<vmem>>, vector<1x32xf32>
    %c0_25 = arith.constant 0 : index
    %c0_26 = arith.constant 0 : index
    %17 = vector.load %arg14[%c0_25, %c0_26] : memref<1x32xf32, #tpu.memory_space<vmem>>, vector<1x32xf32>
    %c0_27 = arith.constant 0 : index
    %c0_28 = arith.constant 0 : index
    %18 = vector.load %arg16[%c0_27, %c0_28] : memref<1x32xf32, #tpu.memory_space<vmem>>, vector<1x32xf32>
    %c0_29 = arith.constant 0 : index
    %c0_30 = arith.constant 0 : index
    %19 = vector.load %arg3[%c0_29, %c0_30] : memref<64x32xf32, #tpu.memory_space<vmem>>, vector<32x32xf32>
    %c32 = arith.constant 32 : index
    %c0_31 = arith.constant 0 : index
    %20 = vector.load %arg3[%c32, %c0_31] : memref<64x32xf32, #tpu.memory_space<vmem>>, vector<32x32xf32>
    %c0_32 = arith.constant 0 : index
    %c0_33 = arith.constant 0 : index
    %21 = vector.load %arg7[%c0_32, %c0_33] : memref<160x32xf32, #tpu.memory_space<vmem>>, vector<32x32xf32>
    %c32_34 = arith.constant 32 : index
    %c0_35 = arith.constant 0 : index
    %22 = vector.load %arg7[%c32_34, %c0_35] : memref<160x32xf32, #tpu.memory_space<vmem>>, vector<32x32xf32>
    %c64 = arith.constant 64 : index
    %c0_36 = arith.constant 0 : index
    %23 = vector.load %arg7[%c64, %c0_36] : memref<160x32xf32, #tpu.memory_space<vmem>>, vector<32x32xf32>
    %c96 = arith.constant 96 : index
    %c0_37 = arith.constant 0 : index
    %24 = vector.load %arg7[%c96, %c0_37] : memref<160x32xf32, #tpu.memory_space<vmem>>, vector<32x32xf32>
    %c128 = arith.constant 128 : index
    %c0_38 = arith.constant 0 : index
    %25 = vector.load %arg7[%c128, %c0_38] : memref<160x32xf32, #tpu.memory_space<vmem>>, vector<32x32xf32>
    %26 = arith.mulf %2, %3 : vector<4x8x8x32xf32>
    %27 = vector.shape_cast %26 : vector<4x8x8x32xf32> to vector<256x32xf32>
    %28 = vector.shape_cast %4 : vector<4x8x8x32xf32> to vector<256x32xf32>
    %cst = arith.constant dense<0.000000e+00> : vector<256x32xf32>
    %29 = tpu.matmul %27, %19, %cst {dimension_numbers = #tpu.dot_dimension_numbers<[1], [0], [0], [1], [0, 0, 1, 1], [], []>} : vector<256x32xf32>, vector<32x32xf32>, vector<256x32xf32> -> vector<256x32xf32>
    %cst_39 = arith.constant dense<0.000000e+00> : vector<256x32xf32>
    %30 = tpu.matmul %28, %20, %cst_39 {dimension_numbers = #tpu.dot_dimension_numbers<[1], [0], [0], [1], [0, 0, 1, 1], [], []>} : vector<256x32xf32>, vector<32x32xf32>, vector<256x32xf32> -> vector<256x32xf32>
    %31 = arith.addf %29, %30 : vector<256x32xf32>
    %32 = vector.broadcast %5 : vector<1x32xf32> to vector<256x32xf32>
    %33 = arith.addf %31, %32 : vector<256x32xf32>
    %cst_40 = arith.constant 0.000000e+00 : f32
    %34 = vector.broadcast %cst_40 : f32 to vector<256x32xf32>
    %35 = arith.cmpf ogt, %33, %34 : vector<256x32xf32>
    %cst_41 = arith.constant 0.00999999977 : f32
    %36 = vector.broadcast %cst_41 : f32 to vector<256x32xf32>
    %37 = arith.mulf %36, %33 : vector<256x32xf32>
    %38 = arith.select %35, %33, %37 : vector<256x32xi1>, vector<256x32xf32>
    %39 = vector.shape_cast %38 : vector<256x32xf32> to vector<32x8x32xf32>
    %40 = vector.broadcast %7 : vector<1x1x32xf32> to vector<32x8x32xf32>
    %41 = arith.mulf %39, %40 : vector<32x8x32xf32>
    %cst_42 = arith.constant dense<0.000000e+00> : vector<32x8xf32>
    %42 = vector.multi_reduction <add>, %41, %cst_42 [2] : vector<32x8x32xf32> to vector<32x8xf32>
    %43 = vector.broadcast %8 : vector<1x1xf32> to vector<32x8xf32>
    %44 = arith.addf %42, %43 : vector<32x8xf32>
    %cst_43 = arith.constant 5.000000e-01 : f32
    %45 = vector.broadcast %cst_43 : f32 to vector<32x8xf32>
    %46 = arith.mulf %45, %44 : vector<32x8xf32>
    %47 = math.tanh %46 : vector<32x8xf32>
    %cst_44 = arith.constant 1.000000e+00 : f32
    %48 = vector.broadcast %cst_44 : f32 to vector<32x8xf32>
    %49 = arith.addf %47, %48 : vector<32x8xf32>
    %cst_45 = arith.constant 5.000000e-01 : f32
    %50 = vector.broadcast %cst_45 : f32 to vector<32x8xf32>
    %51 = arith.mulf %50, %49 : vector<32x8xf32>
    %cst_46 = arith.constant dense<0xFF800000> : vector<32xf32>
    %52 = vector.multi_reduction <maximumf>, %51, %cst_46 [1] : vector<32x8xf32> to vector<32xf32>
    %53 = vector.shape_cast %52 : vector<32xf32> to vector<32x1xf32>
    %54 = vector.broadcast %53 : vector<32x1xf32> to vector<32x8xf32>
    %55 = arith.subf %51, %54 : vector<32x8xf32>
    %56 = math.exp %55 : vector<32x8xf32>
    %cst_47 = arith.constant dense<0.000000e+00> : vector<32xf32>
    %57 = vector.multi_reduction <add>, %56, %cst_47 [1] : vector<32x8xf32> to vector<32xf32>
    %58 = vector.shape_cast %57 : vector<32xf32> to vector<32x1xf32>
    %59 = vector.broadcast %58 : vector<32x1xf32> to vector<32x8xf32>
    %60 = arith.divf %56, %59 : vector<32x8xf32>
    %61 = vector.shape_cast %60 : vector<32x8xf32> to vector<32x8x1xf32>
    %62 = vector.shape_cast %4 : vector<4x8x8x32xf32> to vector<32x8x32xf32>
    %63 = vector.broadcast %61 : vector<32x8x1xf32> to vector<32x8x32xf32>
    %64 = arith.mulf %63, %62 : vector<32x8x32xf32>
    %cst_48 = arith.constant dense<0.000000e+00> : vector<32x32xf32>
    %65 = vector.multi_reduction <add>, %64, %cst_48 [1] : vector<32x8x32xf32> to vector<32x32xf32>
    %66 = vector.shape_cast %65 : vector<32x32xf32> to vector<4x8x32xf32>
    %67 = vector.extract_strided_slice %2 {offsets = [0, 0, 0, 0], sizes = [1, 8, 8, 32], strides = [1, 1, 1, 1]} : vector<4x8x8x32xf32> to vector<1x8x8x32xf32>
    %68 = vector.shape_cast %67 : vector<1x8x8x32xf32> to vector<8x8x32xf32>
    %69 = vector.shape_cast %68 : vector<8x8x32xf32> to vector<64x32xf32>
    %c0_49 = arith.constant 0 : index
    %c0_50 = arith.constant 0 : index
    %70 = vector.load %arg13[%c0_49, %c0_50] : memref<32x32xf32, #tpu.memory_space<vmem>>, vector<32x32xf32>
    %cst_51 = arith.constant dense<0.000000e+00> : vector<64x32xf32>
    %71 = tpu.matmul %69, %70, %cst_51 {dimension_numbers = #tpu.dot_dimension_numbers<[1], [0], [0], [1], [0, 0, 1, 1], [], []>} : vector<64x32xf32>, vector<32x32xf32>, vector<64x32xf32> -> vector<64x32xf32>
    %72 = vector.broadcast %17 : vector<1x32xf32> to vector<64x32xf32>
    %73 = arith.addf %71, %72 : vector<64x32xf32>
    %cst_52 = arith.constant 0.000000e+00 : f32
    %74 = vector.broadcast %cst_52 : f32 to vector<64x32xf32>
    %75 = arith.maximumf %73, %74 : vector<64x32xf32>
    %c0_53 = arith.constant 0 : index
    %c0_54 = arith.constant 0 : index
    %76 = vector.load %arg15[%c0_53, %c0_54] : memref<32x32xf32, #tpu.memory_space<vmem>>, vector<32x32xf32>
    %cst_55 = arith.constant dense<0.000000e+00> : vector<64x32xf32>
    %77 = tpu.matmul %75, %76, %cst_55 {dimension_numbers = #tpu.dot_dimension_numbers<[1], [0], [0], [1], [0, 0, 1, 1], [], []>} : vector<64x32xf32>, vector<32x32xf32>, vector<64x32xf32> -> vector<64x32xf32>
    %78 = vector.broadcast %18 : vector<1x32xf32> to vector<64x32xf32>
    %79 = arith.addf %77, %78 : vector<64x32xf32>
    %cst_56 = arith.constant 5.000000e-01 : f32
    %80 = vector.broadcast %cst_56 : f32 to vector<64x32xf32>
    %81 = arith.mulf %80, %79 : vector<64x32xf32>
    %82 = math.tanh %81 : vector<64x32xf32>
    %cst_57 = arith.constant 1.000000e+00 : f32
    %83 = vector.broadcast %cst_57 : f32 to vector<64x32xf32>
    %84 = arith.addf %82, %83 : vector<64x32xf32>
    %cst_58 = arith.constant 5.000000e-01 : f32
    %85 = vector.broadcast %cst_58 : f32 to vector<64x32xf32>
    %86 = arith.mulf %85, %84 : vector<64x32xf32>
    %87 = vector.shape_cast %86 : vector<64x32xf32> to vector<8x8x32xf32>
    %cst_59 = arith.constant dense<0.000000e+00> : vector<8x32xf32>
    %88 = vector.multi_reduction <add>, %87, %cst_59 [1] : vector<8x8x32xf32> to vector<8x32xf32>
    %cst_60 = arith.constant 8.000000e+00 : f32
    %89 = vector.broadcast %cst_60 : f32 to vector<8x32xf32>
    %90 = arith.divf %88, %89 : vector<8x32xf32>
    %c0_61 = arith.constant 0 : index
    %c0_62 = arith.constant 0 : index
    %91 = vector.load %arg2[%c0_61, %c0_62] : memref<8x32xbf16, #tpu.memory_space<vmem>>, vector<8x32xbf16>
    %92 = arith.extf %91 : vector<8x32xbf16> to vector<8x32xf32>
    %93 = vector.extract_strided_slice %66 {offsets = [0, 0, 0], sizes = [1, 8, 32], strides = [1, 1, 1]} : vector<4x8x32xf32> to vector<1x8x32xf32>
    %94 = vector.shape_cast %93 : vector<1x8x32xf32> to vector<8x32xf32>
    %95 = arith.mulf %90, %94 : vector<8x32xf32>
    %96 = arith.mulf %90, %94 : vector<8x32xf32>
    %cst_63 = arith.constant dense<0.000000e+00> : vector<8x32xf32>
    %97 = tpu.matmul %94, %21, %cst_63 {dimension_numbers = #tpu.dot_dimension_numbers<[1], [0], [0], [1], [0, 0, 1, 1], [], []>} : vector<8x32xf32>, vector<32x32xf32>, vector<8x32xf32> -> vector<8x32xf32>
    %cst_64 = arith.constant dense<0.000000e+00> : vector<8x32xf32>
    %98 = tpu.matmul %90, %22, %cst_64 {dimension_numbers = #tpu.dot_dimension_numbers<[1], [0], [0], [1], [0, 0, 1, 1], [], []>} : vector<8x32xf32>, vector<32x32xf32>, vector<8x32xf32> -> vector<8x32xf32>
    %99 = arith.addf %97, %98 : vector<8x32xf32>
    %cst_65 = arith.constant dense<0.000000e+00> : vector<8x32xf32>
    %100 = tpu.matmul %96, %23, %cst_65 {dimension_numbers = #tpu.dot_dimension_numbers<[1], [0], [0], [1], [0, 0, 1, 1], [], []>} : vector<8x32xf32>, vector<32x32xf32>, vector<8x32xf32> -> vector<8x32xf32>
    %101 = arith.addf %99, %100 : vector<8x32xf32>
    %cst_66 = arith.constant dense<0.000000e+00> : vector<8x32xf32>
    %102 = tpu.matmul %90, %24, %cst_66 {dimension_numbers = #tpu.dot_dimension_numbers<[1], [0], [0], [1], [0, 0, 1, 1], [], []>} : vector<8x32xf32>, vector<32x32xf32>, vector<8x32xf32> -> vector<8x32xf32>
    %103 = arith.addf %101, %102 : vector<8x32xf32>
    %cst_67 = arith.constant dense<0.000000e+00> : vector<8x32xf32>
    %104 = tpu.matmul %95, %25, %cst_67 {dimension_numbers = #tpu.dot_dimension_numbers<[1], [0], [0], [1], [0, 0, 1, 1], [], []>} : vector<8x32xf32>, vector<32x32xf32>, vector<8x32xf32> -> vector<8x32xf32>
    %105 = arith.addf %103, %104 : vector<8x32xf32>
    %106 = vector.broadcast %9 : vector<1x32xf32> to vector<8x32xf32>
    %107 = arith.addf %105, %106 : vector<8x32xf32>
    %cst_68 = arith.constant 0.000000e+00 : f32
    %108 = vector.broadcast %cst_68 : f32 to vector<8x32xf32>
    %109 = arith.cmpf ogt, %107, %108 : vector<8x32xf32>
    %cst_69 = arith.constant 0.00999999977 : f32
    %110 = vector.broadcast %cst_69 : f32 to vector<8x32xf32>
    %111 = arith.mulf %110, %107 : vector<8x32xf32>
    %112 = arith.select %109, %107, %111 : vector<8x32xi1>, vector<8x32xf32>
    %c0_70 = arith.constant 0 : index
    %c0_71 = arith.constant 0 : index
    %113 = vector.load %arg9[%c0_70, %c0_71] : memref<32x32xf32, #tpu.memory_space<vmem>>, vector<32x32xf32>
    %cst_72 = arith.constant dense<0.000000e+00> : vector<8x32xf32>
    %114 = tpu.matmul %112, %113, %cst_72 {dimension_numbers = #tpu.dot_dimension_numbers<[1], [0], [0], [1], [0, 0, 1, 1], [], []>} : vector<8x32xf32>, vector<32x32xf32>, vector<8x32xf32> -> vector<8x32xf32>
    %115 = vector.broadcast %10 : vector<1x32xf32> to vector<8x32xf32>
    %116 = arith.addf %114, %115 : vector<8x32xf32>
    %cst_73 = arith.constant 0.000000e+00 : f32
    %117 = vector.broadcast %cst_73 : f32 to vector<8x32xf32>
    %118 = arith.cmpf ogt, %116, %117 : vector<8x32xf32>
    %cst_74 = arith.constant 0.00999999977 : f32
    %119 = vector.broadcast %cst_74 : f32 to vector<8x32xf32>
    %120 = arith.mulf %119, %116 : vector<8x32xf32>
    %121 = arith.select %118, %116, %120 : vector<8x32xi1>, vector<8x32xf32>
    %122 = vector.broadcast %11 : vector<1x32xf32> to vector<8x32xf32>
    %123 = arith.mulf %121, %122 : vector<8x32xf32>
    %cst_75 = arith.constant dense<0.000000e+00> : vector<8xf32>
    %124 = vector.multi_reduction <add>, %123, %cst_75 [1] : vector<8x32xf32> to vector<8xf32>
    %125 = vector.shape_cast %124 : vector<8xf32> to vector<8x1xf32>
    %126 = vector.broadcast %12 : vector<1x1xf32> to vector<8x1xf32>
    %127 = arith.addf %125, %126 : vector<8x1xf32>
    %cst_76 = arith.constant 5.000000e-01 : f32
    %128 = vector.broadcast %cst_76 : f32 to vector<8x1xf32>
    %129 = arith.mulf %128, %127 : vector<8x1xf32>
    %130 = math.tanh %129 : vector<8x1xf32>
    %cst_77 = arith.constant 1.000000e+00 : f32
    %131 = vector.broadcast %cst_77 : f32 to vector<8x1xf32>
    %132 = arith.addf %130, %131 : vector<8x1xf32>
    %cst_78 = arith.constant 5.000000e-01 : f32
    %133 = vector.broadcast %cst_78 : f32 to vector<8x1xf32>
    %134 = arith.mulf %133, %132 : vector<8x1xf32>
    %135 = vector.broadcast %134 : vector<8x1xf32> to vector<8x32xf32>
    %136 = arith.mulf %135, %94 : vector<8x32xf32>
    %c0_79 = arith.constant 0 : index
    %c0_80 = arith.constant 0 : index
    %137 = vector.load %arg17[%c0_79, %c0_80] : memref<32x32xf32, #tpu.memory_space<vmem>>, vector<32x32xf32>
    %cst_81 = arith.constant dense<0.000000e+00> : vector<8x32xf32>
    %138 = tpu.matmul %136, %137, %cst_81 {dimension_numbers = #tpu.dot_dimension_numbers<[1], [0], [0], [1], [0, 0, 1, 1], [], []>} : vector<8x32xf32>, vector<32x32xf32>, vector<8x32xf32> -> vector<8x32xf32>
    %139 = vector.broadcast %13 : vector<1x32xf32> to vector<8x32xf32>
    %140 = arith.addf %138, %139 : vector<8x32xf32>
    %cst_82 = arith.constant 0.000000e+00 : f32
    %141 = vector.broadcast %cst_82 : f32 to vector<8x32xf32>
    %142 = arith.cmpf ogt, %140, %141 : vector<8x32xf32>
    %cst_83 = arith.constant 0.00999999977 : f32
    %143 = vector.broadcast %cst_83 : f32 to vector<8x32xf32>
    %144 = arith.mulf %143, %140 : vector<8x32xf32>
    %145 = arith.select %142, %140, %144 : vector<8x32xi1>, vector<8x32xf32>
    %c0_84 = arith.constant 0 : index
    %c0_85 = arith.constant 0 : index
    %146 = vector.load %arg19[%c0_84, %c0_85] : memref<32x32xf32, #tpu.memory_space<vmem>>, vector<32x32xf32>
    %cst_86 = arith.constant dense<0.000000e+00> : vector<8x32xf32>
    %147 = tpu.matmul %145, %146, %cst_86 {dimension_numbers = #tpu.dot_dimension_numbers<[1], [0], [0], [1], [0, 0, 1, 1], [], []>} : vector<8x32xf32>, vector<32x32xf32>, vector<8x32xf32> -> vector<8x32xf32>
    %148 = vector.broadcast %14 : vector<1x32xf32> to vector<8x32xf32>
    %149 = arith.addf %147, %148 : vector<8x32xf32>
    %cst_87 = arith.constant 0.000000e+00 : f32
    %150 = vector.broadcast %cst_87 : f32 to vector<8x32xf32>
    %151 = arith.cmpf ogt, %149, %150 : vector<8x32xf32>
    %cst_88 = arith.constant 0.00999999977 : f32
    %152 = vector.broadcast %cst_88 : f32 to vector<8x32xf32>
    %153 = arith.mulf %152, %149 : vector<8x32xf32>
    %154 = arith.select %151, %149, %153 : vector<8x32xi1>, vector<8x32xf32>
    %155 = arith.addf %90, %154 : vector<8x32xf32>
    %156 = arith.addf %155, %154 : vector<8x32xf32>
    %157 = vector.extract_strided_slice %66 {offsets = [2, 0, 0], sizes = [1, 8, 32], strides = [1, 1, 1]} : vector<4x8x32xf32> to vector<1x8x32xf32>
    %158 = vector.shape_cast %157 : vector<1x8x32xf32> to vector<8x32xf32>
    %159 = arith.mulf %92, %158 : vector<8x32xf32>
    %160 = arith.mulf %92, %158 : vector<8x32xf32>
    %cst_89 = arith.constant dense<0.000000e+00> : vector<8x32xf32>
    %161 = tpu.matmul %158, %21, %cst_89 {dimension_numbers = #tpu.dot_dimension_numbers<[1], [0], [0], [1], [0, 0, 1, 1], [], []>} : vector<8x32xf32>, vector<32x32xf32>, vector<8x32xf32> -> vector<8x32xf32>
    %cst_90 = arith.constant dense<0.000000e+00> : vector<8x32xf32>
    %162 = tpu.matmul %92, %22, %cst_90 {dimension_numbers = #tpu.dot_dimension_numbers<[1], [0], [0], [1], [0, 0, 1, 1], [], []>} : vector<8x32xf32>, vector<32x32xf32>, vector<8x32xf32> -> vector<8x32xf32>
    %163 = arith.addf %161, %162 : vector<8x32xf32>
    %cst_91 = arith.constant dense<0.000000e+00> : vector<8x32xf32>
    %164 = tpu.matmul %160, %23, %cst_91 {dimension_numbers = #tpu.dot_dimension_numbers<[1], [0], [0], [1], [0, 0, 1, 1], [], []>} : vector<8x32xf32>, vector<32x32xf32>, vector<8x32xf32> -> vector<8x32xf32>
    %165 = arith.addf %163, %164 : vector<8x32xf32>
    %cst_92 = arith.constant dense<0.000000e+00> : vector<8x32xf32>
    %166 = tpu.matmul %92, %24, %cst_92 {dimension_numbers = #tpu.dot_dimension_numbers<[1], [0], [0], [1], [0, 0, 1, 1], [], []>} : vector<8x32xf32>, vector<32x32xf32>, vector<8x32xf32> -> vector<8x32xf32>
    %167 = arith.addf %165, %166 : vector<8x32xf32>
    %cst_93 = arith.constant dense<0.000000e+00> : vector<8x32xf32>
    %168 = tpu.matmul %159, %25, %cst_93 {dimension_numbers = #tpu.dot_dimension_numbers<[1], [0], [0], [1], [0, 0, 1, 1], [], []>} : vector<8x32xf32>, vector<32x32xf32>, vector<8x32xf32> -> vector<8x32xf32>
    %169 = arith.addf %167, %168 : vector<8x32xf32>
    %170 = vector.broadcast %9 : vector<1x32xf32> to vector<8x32xf32>
    %171 = arith.addf %169, %170 : vector<8x32xf32>
    %cst_94 = arith.constant 0.000000e+00 : f32
    %172 = vector.broadcast %cst_94 : f32 to vector<8x32xf32>
    %173 = arith.cmpf ogt, %171, %172 : vector<8x32xf32>
    %cst_95 = arith.constant 0.00999999977 : f32
    %174 = vector.broadcast %cst_95 : f32 to vector<8x32xf32>
    %175 = arith.mulf %174, %171 : vector<8x32xf32>
    %176 = arith.select %173, %171, %175 : vector<8x32xi1>, vector<8x32xf32>
    %c0_96 = arith.constant 0 : index
    %c0_97 = arith.constant 0 : index
    %177 = vector.load %arg9[%c0_96, %c0_97] : memref<32x32xf32, #tpu.memory_space<vmem>>, vector<32x32xf32>
    %cst_98 = arith.constant dense<0.000000e+00> : vector<8x32xf32>
    %178 = tpu.matmul %176, %177, %cst_98 {dimension_numbers = #tpu.dot_dimension_numbers<[1], [0], [0], [1], [0, 0, 1, 1], [], []>} : vector<8x32xf32>, vector<32x32xf32>, vector<8x32xf32> -> vector<8x32xf32>
    %179 = vector.broadcast %10 : vector<1x32xf32> to vector<8x32xf32>
    %180 = arith.addf %178, %179 : vector<8x32xf32>
    %cst_99 = arith.constant 0.000000e+00 : f32
    %181 = vector.broadcast %cst_99 : f32 to vector<8x32xf32>
    %182 = arith.cmpf ogt, %180, %181 : vector<8x32xf32>
    %cst_100 = arith.constant 0.00999999977 : f32
    %183 = vector.broadcast %cst_100 : f32 to vector<8x32xf32>
    %184 = arith.mulf %183, %180 : vector<8x32xf32>
    %185 = arith.select %182, %180, %184 : vector<8x32xi1>, vector<8x32xf32>
    %186 = vector.broadcast %11 : vector<1x32xf32> to vector<8x32xf32>
    %187 = arith.mulf %185, %186 : vector<8x32xf32>
    %cst_101 = arith.constant dense<0.000000e+00> : vector<8xf32>
    %188 = vector.multi_reduction <add>, %187, %cst_101 [1] : vector<8x32xf32> to vector<8xf32>
    %189 = vector.shape_cast %188 : vector<8xf32> to vector<8x1xf32>
    %190 = vector.broadcast %12 : vector<1x1xf32> to vector<8x1xf32>
    %191 = arith.addf %189, %190 : vector<8x1xf32>
    %cst_102 = arith.constant 5.000000e-01 : f32
    %192 = vector.broadcast %cst_102 : f32 to vector<8x1xf32>
    %193 = arith.mulf %192, %191 : vector<8x1xf32>
    %194 = math.tanh %193 : vector<8x1xf32>
    %cst_103 = arith.constant 1.000000e+00 : f32
    %195 = vector.broadcast %cst_103 : f32 to vector<8x1xf32>
    %196 = arith.addf %194, %195 : vector<8x1xf32>
    %cst_104 = arith.constant 5.000000e-01 : f32
    %197 = vector.broadcast %cst_104 : f32 to vector<8x1xf32>
    %198 = arith.mulf %197, %196 : vector<8x1xf32>
    %199 = vector.broadcast %198 : vector<8x1xf32> to vector<8x32xf32>
    %200 = arith.mulf %199, %158 : vector<8x32xf32>
    %c0_105 = arith.constant 0 : index
    %c0_106 = arith.constant 0 : index
    %201 = vector.load %arg21[%c0_105, %c0_106] : memref<32x32xf32, #tpu.memory_space<vmem>>, vector<32x32xf32>
    %cst_107 = arith.constant dense<0.000000e+00> : vector<8x32xf32>
    %202 = tpu.matmul %200, %201, %cst_107 {dimension_numbers = #tpu.dot_dimension_numbers<[1], [0], [0], [1], [0, 0, 1, 1], [], []>} : vector<8x32xf32>, vector<32x32xf32>, vector<8x32xf32> -> vector<8x32xf32>
    %203 = vector.broadcast %15 : vector<1x32xf32> to vector<8x32xf32>
    %204 = arith.addf %202, %203 : vector<8x32xf32>
    %cst_108 = arith.constant 0.000000e+00 : f32
    %205 = vector.broadcast %cst_108 : f32 to vector<8x32xf32>
    %206 = arith.cmpf ogt, %204, %205 : vector<8x32xf32>
    %cst_109 = arith.constant 0.00999999977 : f32
    %207 = vector.broadcast %cst_109 : f32 to vector<8x32xf32>
    %208 = arith.mulf %207, %204 : vector<8x32xf32>
    %209 = arith.select %206, %204, %208 : vector<8x32xi1>, vector<8x32xf32>
    %c0_110 = arith.constant 0 : index
    %c0_111 = arith.constant 0 : index
    %210 = vector.load %arg23[%c0_110, %c0_111] : memref<32x32xf32, #tpu.memory_space<vmem>>, vector<32x32xf32>
    %cst_112 = arith.constant dense<0.000000e+00> : vector<8x32xf32>
    %211 = tpu.matmul %209, %210, %cst_112 {dimension_numbers = #tpu.dot_dimension_numbers<[1], [0], [0], [1], [0, 0, 1, 1], [], []>} : vector<8x32xf32>, vector<32x32xf32>, vector<8x32xf32> -> vector<8x32xf32>
    %212 = vector.broadcast %16 : vector<1x32xf32> to vector<8x32xf32>
    %213 = arith.addf %211, %212 : vector<8x32xf32>
    %cst_113 = arith.constant 0.000000e+00 : f32
    %214 = vector.broadcast %cst_113 : f32 to vector<8x32xf32>
    %215 = arith.cmpf ogt, %213, %214 : vector<8x32xf32>
    %cst_114 = arith.constant 0.00999999977 : f32
    %216 = vector.broadcast %cst_114 : f32 to vector<8x32xf32>
    %217 = arith.mulf %216, %213 : vector<8x32xf32>
    %218 = arith.select %215, %213, %217 : vector<8x32xi1>, vector<8x32xf32>
    %219 = arith.addf %92, %218 : vector<8x32xf32>
    %220 = arith.addf %219, %218 : vector<8x32xf32>
    %221 = vector.extract_strided_slice %66 {offsets = [1, 0, 0], sizes = [1, 8, 32], strides = [1, 1, 1]} : vector<4x8x32xf32> to vector<1x8x32xf32>
    %222 = vector.shape_cast %221 : vector<1x8x32xf32> to vector<8x32xf32>
    %223 = arith.mulf %90, %222 : vector<8x32xf32>
    %224 = arith.mulf %154, %222 : vector<8x32xf32>
    %cst_115 = arith.constant dense<0.000000e+00> : vector<8x32xf32>
    %225 = tpu.matmul %222, %21, %cst_115 {dimension_numbers = #tpu.dot_dimension_numbers<[1], [0], [0], [1], [0, 0, 1, 1], [], []>} : vector<8x32xf32>, vector<32x32xf32>, vector<8x32xf32> -> vector<8x32xf32>
    %cst_116 = arith.constant dense<0.000000e+00> : vector<8x32xf32>
    %226 = tpu.matmul %154, %22, %cst_116 {dimension_numbers = #tpu.dot_dimension_numbers<[1], [0], [0], [1], [0, 0, 1, 1], [], []>} : vector<8x32xf32>, vector<32x32xf32>, vector<8x32xf32> -> vector<8x32xf32>
    %227 = arith.addf %225, %226 : vector<8x32xf32>
    %cst_117 = arith.constant dense<0.000000e+00> : vector<8x32xf32>
    %228 = tpu.matmul %224, %23, %cst_117 {dimension_numbers = #tpu.dot_dimension_numbers<[1], [0], [0], [1], [0, 0, 1, 1], [], []>} : vector<8x32xf32>, vector<32x32xf32>, vector<8x32xf32> -> vector<8x32xf32>
    %229 = arith.addf %227, %228 : vector<8x32xf32>
    %cst_118 = arith.constant dense<0.000000e+00> : vector<8x32xf32>
    %230 = tpu.matmul %90, %24, %cst_118 {dimension_numbers = #tpu.dot_dimension_numbers<[1], [0], [0], [1], [0, 0, 1, 1], [], []>} : vector<8x32xf32>, vector<32x32xf32>, vector<8x32xf32> -> vector<8x32xf32>
    %231 = arith.addf %229, %230 : vector<8x32xf32>
    %cst_119 = arith.constant dense<0.000000e+00> : vector<8x32xf32>
    %232 = tpu.matmul %223, %25, %cst_119 {dimension_numbers = #tpu.dot_dimension_numbers<[1], [0], [0], [1], [0, 0, 1, 1], [], []>} : vector<8x32xf32>, vector<32x32xf32>, vector<8x32xf32> -> vector<8x32xf32>
    %233 = arith.addf %231, %232 : vector<8x32xf32>
    %234 = vector.broadcast %9 : vector<1x32xf32> to vector<8x32xf32>
    %235 = arith.addf %233, %234 : vector<8x32xf32>
    %cst_120 = arith.constant 0.000000e+00 : f32
    %236 = vector.broadcast %cst_120 : f32 to vector<8x32xf32>
    %237 = arith.cmpf ogt, %235, %236 : vector<8x32xf32>
    %cst_121 = arith.constant 0.00999999977 : f32
    %238 = vector.broadcast %cst_121 : f32 to vector<8x32xf32>
    %239 = arith.mulf %238, %235 : vector<8x32xf32>
    %240 = arith.select %237, %235, %239 : vector<8x32xi1>, vector<8x32xf32>
    %c0_122 = arith.constant 0 : index
    %c0_123 = arith.constant 0 : index
    %241 = vector.load %arg9[%c0_122, %c0_123] : memref<32x32xf32, #tpu.memory_space<vmem>>, vector<32x32xf32>
    %cst_124 = arith.constant dense<0.000000e+00> : vector<8x32xf32>
    %242 = tpu.matmul %240, %241, %cst_124 {dimension_numbers = #tpu.dot_dimension_numbers<[1], [0], [0], [1], [0, 0, 1, 1], [], []>} : vector<8x32xf32>, vector<32x32xf32>, vector<8x32xf32> -> vector<8x32xf32>
    %243 = vector.broadcast %10 : vector<1x32xf32> to vector<8x32xf32>
    %244 = arith.addf %242, %243 : vector<8x32xf32>
    %cst_125 = arith.constant 0.000000e+00 : f32
    %245 = vector.broadcast %cst_125 : f32 to vector<8x32xf32>
    %246 = arith.cmpf ogt, %244, %245 : vector<8x32xf32>
    %cst_126 = arith.constant 0.00999999977 : f32
    %247 = vector.broadcast %cst_126 : f32 to vector<8x32xf32>
    %248 = arith.mulf %247, %244 : vector<8x32xf32>
    %249 = arith.select %246, %244, %248 : vector<8x32xi1>, vector<8x32xf32>
    %250 = vector.broadcast %11 : vector<1x32xf32> to vector<8x32xf32>
    %251 = arith.mulf %249, %250 : vector<8x32xf32>
    %cst_127 = arith.constant dense<0.000000e+00> : vector<8xf32>
    %252 = vector.multi_reduction <add>, %251, %cst_127 [1] : vector<8x32xf32> to vector<8xf32>
    %253 = vector.shape_cast %252 : vector<8xf32> to vector<8x1xf32>
    %254 = vector.broadcast %12 : vector<1x1xf32> to vector<8x1xf32>
    %255 = arith.addf %253, %254 : vector<8x1xf32>
    %cst_128 = arith.constant 5.000000e-01 : f32
    %256 = vector.broadcast %cst_128 : f32 to vector<8x1xf32>
    %257 = arith.mulf %256, %255 : vector<8x1xf32>
    %258 = math.tanh %257 : vector<8x1xf32>
    %cst_129 = arith.constant 1.000000e+00 : f32
    %259 = vector.broadcast %cst_129 : f32 to vector<8x1xf32>
    %260 = arith.addf %258, %259 : vector<8x1xf32>
    %cst_130 = arith.constant 5.000000e-01 : f32
    %261 = vector.broadcast %cst_130 : f32 to vector<8x1xf32>
    %262 = arith.mulf %261, %260 : vector<8x1xf32>
    %263 = vector.broadcast %262 : vector<8x1xf32> to vector<8x32xf32>
    %264 = arith.mulf %263, %222 : vector<8x32xf32>
    %c0_131 = arith.constant 0 : index
    %c0_132 = arith.constant 0 : index
    %265 = vector.load %arg17[%c0_131, %c0_132] : memref<32x32xf32, #tpu.memory_space<vmem>>, vector<32x32xf32>
    %cst_133 = arith.constant dense<0.000000e+00> : vector<8x32xf32>
    %266 = tpu.matmul %264, %265, %cst_133 {dimension_numbers = #tpu.dot_dimension_numbers<[1], [0], [0], [1], [0, 0, 1, 1], [], []>} : vector<8x32xf32>, vector<32x32xf32>, vector<8x32xf32> -> vector<8x32xf32>
    %267 = vector.broadcast %13 : vector<1x32xf32> to vector<8x32xf32>
    %268 = arith.addf %266, %267 : vector<8x32xf32>
    %cst_134 = arith.constant 0.000000e+00 : f32
    %269 = vector.broadcast %cst_134 : f32 to vector<8x32xf32>
    %270 = arith.cmpf ogt, %268, %269 : vector<8x32xf32>
    %cst_135 = arith.constant 0.00999999977 : f32
    %271 = vector.broadcast %cst_135 : f32 to vector<8x32xf32>
    %272 = arith.mulf %271, %268 : vector<8x32xf32>
    %273 = arith.select %270, %268, %272 : vector<8x32xi1>, vector<8x32xf32>
    %c0_136 = arith.constant 0 : index
    %c0_137 = arith.constant 0 : index
    %274 = vector.load %arg19[%c0_136, %c0_137] : memref<32x32xf32, #tpu.memory_space<vmem>>, vector<32x32xf32>
    %cst_138 = arith.constant dense<0.000000e+00> : vector<8x32xf32>
    %275 = tpu.matmul %273, %274, %cst_138 {dimension_numbers = #tpu.dot_dimension_numbers<[1], [0], [0], [1], [0, 0, 1, 1], [], []>} : vector<8x32xf32>, vector<32x32xf32>, vector<8x32xf32> -> vector<8x32xf32>
    %276 = vector.broadcast %14 : vector<1x32xf32> to vector<8x32xf32>
    %277 = arith.addf %275, %276 : vector<8x32xf32>
    %cst_139 = arith.constant 0.000000e+00 : f32
    %278 = vector.broadcast %cst_139 : f32 to vector<8x32xf32>
    %279 = arith.cmpf ogt, %277, %278 : vector<8x32xf32>
    %cst_140 = arith.constant 0.00999999977 : f32
    %280 = vector.broadcast %cst_140 : f32 to vector<8x32xf32>
    %281 = arith.mulf %280, %277 : vector<8x32xf32>
    %282 = arith.select %279, %277, %281 : vector<8x32xi1>, vector<8x32xf32>
    %283 = arith.addf %156, %282 : vector<8x32xf32>
    %284 = arith.addf %283, %282 : vector<8x32xf32>
    %285 = vector.extract_strided_slice %66 {offsets = [3, 0, 0], sizes = [1, 8, 32], strides = [1, 1, 1]} : vector<4x8x32xf32> to vector<1x8x32xf32>
    %286 = vector.shape_cast %285 : vector<1x8x32xf32> to vector<8x32xf32>
    %287 = arith.mulf %92, %286 : vector<8x32xf32>
    %288 = arith.mulf %218, %286 : vector<8x32xf32>
    %cst_141 = arith.constant dense<0.000000e+00> : vector<8x32xf32>
    %289 = tpu.matmul %286, %21, %cst_141 {dimension_numbers = #tpu.dot_dimension_numbers<[1], [0], [0], [1], [0, 0, 1, 1], [], []>} : vector<8x32xf32>, vector<32x32xf32>, vector<8x32xf32> -> vector<8x32xf32>
    %cst_142 = arith.constant dense<0.000000e+00> : vector<8x32xf32>
    %290 = tpu.matmul %218, %22, %cst_142 {dimension_numbers = #tpu.dot_dimension_numbers<[1], [0], [0], [1], [0, 0, 1, 1], [], []>} : vector<8x32xf32>, vector<32x32xf32>, vector<8x32xf32> -> vector<8x32xf32>
    %291 = arith.addf %289, %290 : vector<8x32xf32>
    %cst_143 = arith.constant dense<0.000000e+00> : vector<8x32xf32>
    %292 = tpu.matmul %288, %23, %cst_143 {dimension_numbers = #tpu.dot_dimension_numbers<[1], [0], [0], [1], [0, 0, 1, 1], [], []>} : vector<8x32xf32>, vector<32x32xf32>, vector<8x32xf32> -> vector<8x32xf32>
    %293 = arith.addf %291, %292 : vector<8x32xf32>
    %cst_144 = arith.constant dense<0.000000e+00> : vector<8x32xf32>
    %294 = tpu.matmul %92, %24, %cst_144 {dimension_numbers = #tpu.dot_dimension_numbers<[1], [0], [0], [1], [0, 0, 1, 1], [], []>} : vector<8x32xf32>, vector<32x32xf32>, vector<8x32xf32> -> vector<8x32xf32>
    %295 = arith.addf %293, %294 : vector<8x32xf32>
    %cst_145 = arith.constant dense<0.000000e+00> : vector<8x32xf32>
    %296 = tpu.matmul %287, %25, %cst_145 {dimension_numbers = #tpu.dot_dimension_numbers<[1], [0], [0], [1], [0, 0, 1, 1], [], []>} : vector<8x32xf32>, vector<32x32xf32>, vector<8x32xf32> -> vector<8x32xf32>
    %297 = arith.addf %295, %296 : vector<8x32xf32>
    %298 = vector.broadcast %9 : vector<1x32xf32> to vector<8x32xf32>
    %299 = arith.addf %297, %298 : vector<8x32xf32>
    %cst_146 = arith.constant 0.000000e+00 : f32
    %300 = vector.broadcast %cst_146 : f32 to vector<8x32xf32>
    %301 = arith.cmpf ogt, %299, %300 : vector<8x32xf32>
    %cst_147 = arith.constant 0.00999999977 : f32
    %302 = vector.broadcast %cst_147 : f32 to vector<8x32xf32>
    %303 = arith.mulf %302, %299 : vector<8x32xf32>
    %304 = arith.select %301, %299, %303 : vector<8x32xi1>, vector<8x32xf32>
    %c0_148 = arith.constant 0 : index
    %c0_149 = arith.constant 0 : index
    %305 = vector.load %arg9[%c0_148, %c0_149] : memref<32x32xf32, #tpu.memory_space<vmem>>, vector<32x32xf32>
    %cst_150 = arith.constant dense<0.000000e+00> : vector<8x32xf32>
    %306 = tpu.matmul %304, %305, %cst_150 {dimension_numbers = #tpu.dot_dimension_numbers<[1], [0], [0], [1], [0, 0, 1, 1], [], []>} : vector<8x32xf32>, vector<32x32xf32>, vector<8x32xf32> -> vector<8x32xf32>
    %307 = vector.broadcast %10 : vector<1x32xf32> to vector<8x32xf32>
    %308 = arith.addf %306, %307 : vector<8x32xf32>
    %cst_151 = arith.constant 0.000000e+00 : f32
    %309 = vector.broadcast %cst_151 : f32 to vector<8x32xf32>
    %310 = arith.cmpf ogt, %308, %309 : vector<8x32xf32>
    %cst_152 = arith.constant 0.00999999977 : f32
    %311 = vector.broadcast %cst_152 : f32 to vector<8x32xf32>
    %312 = arith.mulf %311, %308 : vector<8x32xf32>
    %313 = arith.select %310, %308, %312 : vector<8x32xi1>, vector<8x32xf32>
    %314 = vector.broadcast %11 : vector<1x32xf32> to vector<8x32xf32>
    %315 = arith.mulf %313, %314 : vector<8x32xf32>
    %cst_153 = arith.constant dense<0.000000e+00> : vector<8xf32>
    %316 = vector.multi_reduction <add>, %315, %cst_153 [1] : vector<8x32xf32> to vector<8xf32>
    %317 = vector.shape_cast %316 : vector<8xf32> to vector<8x1xf32>
    %318 = vector.broadcast %12 : vector<1x1xf32> to vector<8x1xf32>
    %319 = arith.addf %317, %318 : vector<8x1xf32>
    %cst_154 = arith.constant 5.000000e-01 : f32
    %320 = vector.broadcast %cst_154 : f32 to vector<8x1xf32>
    %321 = arith.mulf %320, %319 : vector<8x1xf32>
    %322 = math.tanh %321 : vector<8x1xf32>
    %cst_155 = arith.constant 1.000000e+00 : f32
    %323 = vector.broadcast %cst_155 : f32 to vector<8x1xf32>
    %324 = arith.addf %322, %323 : vector<8x1xf32>
    %cst_156 = arith.constant 5.000000e-01 : f32
    %325 = vector.broadcast %cst_156 : f32 to vector<8x1xf32>
    %326 = arith.mulf %325, %324 : vector<8x1xf32>
    %327 = vector.broadcast %326 : vector<8x1xf32> to vector<8x32xf32>
    %328 = arith.mulf %327, %286 : vector<8x32xf32>
    %c0_157 = arith.constant 0 : index
    %c0_158 = arith.constant 0 : index
    %329 = vector.load %arg21[%c0_157, %c0_158] : memref<32x32xf32, #tpu.memory_space<vmem>>, vector<32x32xf32>
    %cst_159 = arith.constant dense<0.000000e+00> : vector<8x32xf32>
    %330 = tpu.matmul %328, %329, %cst_159 {dimension_numbers = #tpu.dot_dimension_numbers<[1], [0], [0], [1], [0, 0, 1, 1], [], []>} : vector<8x32xf32>, vector<32x32xf32>, vector<8x32xf32> -> vector<8x32xf32>
    %331 = vector.broadcast %15 : vector<1x32xf32> to vector<8x32xf32>
    %332 = arith.addf %330, %331 : vector<8x32xf32>
    %cst_160 = arith.constant 0.000000e+00 : f32
    %333 = vector.broadcast %cst_160 : f32 to vector<8x32xf32>
    %334 = arith.cmpf ogt, %332, %333 : vector<8x32xf32>
    %cst_161 = arith.constant 0.00999999977 : f32
    %335 = vector.broadcast %cst_161 : f32 to vector<8x32xf32>
    %336 = arith.mulf %335, %332 : vector<8x32xf32>
    %337 = arith.select %334, %332, %336 : vector<8x32xi1>, vector<8x32xf32>
    %c0_162 = arith.constant 0 : index
    %c0_163 = arith.constant 0 : index
    %338 = vector.load %arg23[%c0_162, %c0_163] : memref<32x32xf32, #tpu.memory_space<vmem>>, vector<32x32xf32>
    %cst_164 = arith.constant dense<0.000000e+00> : vector<8x32xf32>
    %339 = tpu.matmul %337, %338, %cst_164 {dimension_numbers = #tpu.dot_dimension_numbers<[1], [0], [0], [1], [0, 0, 1, 1], [], []>} : vector<8x32xf32>, vector<32x32xf32>, vector<8x32xf32> -> vector<8x32xf32>
    %340 = vector.broadcast %16 : vector<1x32xf32> to vector<8x32xf32>
    %341 = arith.addf %339, %340 : vector<8x32xf32>
    %cst_165 = arith.constant 0.000000e+00 : f32
    %342 = vector.broadcast %cst_165 : f32 to vector<8x32xf32>
    %343 = arith.cmpf ogt, %341, %342 : vector<8x32xf32>
    %cst_166 = arith.constant 0.00999999977 : f32
    %344 = vector.broadcast %cst_166 : f32 to vector<8x32xf32>
    %345 = arith.mulf %344, %341 : vector<8x32xf32>
    %346 = arith.select %343, %341, %345 : vector<8x32xi1>, vector<8x32xf32>
    %347 = arith.addf %220, %346 : vector<8x32xf32>
    %348 = arith.addf %347, %346 : vector<8x32xf32>
    %349 = vector.extract_strided_slice %2 {offsets = [2, 0, 0, 0], sizes = [1, 8, 8, 32], strides = [1, 1, 1, 1]} : vector<4x8x8x32xf32> to vector<1x8x8x32xf32>
    %350 = vector.shape_cast %349 : vector<1x8x8x32xf32> to vector<8x8x32xf32>
    %cst_167 = arith.constant dense<0.000000e+00> : vector<8x32xf32>
    %351 = vector.multi_reduction <add>, %350, %cst_167 [1] : vector<8x8x32xf32> to vector<8x32xf32>
    %cst_168 = arith.constant 8.000000e+00 : f32
    %352 = vector.broadcast %cst_168 : f32 to vector<8x32xf32>
    %353 = arith.divf %351, %352 : vector<8x32xf32>
    %354 = arith.addf %348, %353 : vector<8x32xf32>
    %355 = arith.mulf %284, %354 : vector<8x32xf32>
    %cst_169 = arith.constant dense<0.000000e+00> : vector<8xf32>
    %356 = vector.multi_reduction <add>, %355, %cst_169 [1] : vector<8x32xf32> to vector<8xf32>
    %cst_170 = arith.constant 5.000000e-01 : f32
    %357 = vector.broadcast %cst_170 : f32 to vector<8xf32>
    %358 = arith.mulf %357, %356 : vector<8xf32>
    %359 = math.tanh %358 : vector<8xf32>
    %cst_171 = arith.constant 1.000000e+00 : f32
    %360 = vector.broadcast %cst_171 : f32 to vector<8xf32>
    %361 = arith.addf %359, %360 : vector<8xf32>
    %cst_172 = arith.constant 5.000000e-01 : f32
    %362 = vector.broadcast %cst_172 : f32 to vector<8xf32>
    %363 = arith.mulf %362, %361 : vector<8xf32>
    %364 = vector.shape_cast %363 : vector<8xf32> to vector<1x1x8xf32>
    %c0_173 = arith.constant 0 : index
    %c0_174 = arith.constant 0 : index
    %c0_175 = arith.constant 0 : index
    %365 = vector.load %arg25[%c0_173, %c0_174, %c0_175] : memref<1x1x8xf32, #tpu.memory_space<vmem>>, vector<1x1x8xf32>
    tpu.vector_store %arg25[%c0_173, %c0_174, %c0_175], %364 {strides = array<i32>} : memref<1x1x8xf32, #tpu.memory_space<vmem>>, vector<1x1x8xf32>,
    return
  }
  func.func @transform_0(%arg0: i32) -> (i32, i32, i32, i32) {
    %c0_i32 = arith.constant 0 : i32
    %c0_i32_0 = arith.constant 0 : i32
    %c0_i32_1 = arith.constant 0 : i32
    %c0_i32_2 = arith.constant 0 : i32
    return %c0_i32, %arg0, %c0_i32_0, %c0_i32_1 : i32, i32, i32, i32
  }
  func.func @transform_1(%arg0: i32) -> (i32, i32) {
    %c0_i32 = arith.constant 0 : i32
    %c0_i32_0 = arith.constant 0 : i32
    return %arg0, %c0_i32 : i32, i32
  }
  func.func @transform_2(%arg0: i32) -> (i32, i32) {
    %c0_i32 = arith.constant 0 : i32
    %c0_i32_0 = arith.constant 0 : i32
    %c0_i32_1 = arith.constant 0 : i32
    return %c0_i32, %c0_i32_0 : i32, i32
  }
  func.func @transform_3(%arg0: i32) -> (i32, i32) {
    %c0_i32 = arith.constant 0 : i32
    %c0_i32_0 = arith.constant 0 : i32
    %c0_i32_1 = arith.constant 0 : i32
    return %c0_i32, %c0_i32_0 : i32, i32
  }
  func.func @transform_4(%arg0: i32) -> (i32, i32) {
    %c0_i32 = arith.constant 0 : i32
    %c0_i32_0 = arith.constant 0 : i32
    %c0_i32_1 = arith.constant 0 : i32
    return %c0_i32, %c0_i32_0 : i32, i32
  }
  func.func @transform_5(%arg0: i32) -> (i32, i32) {
    %c0_i32 = arith.constant 0 : i32
    %c0_i32_0 = arith.constant 0 : i32
    %c0_i32_1 = arith.constant 0 : i32
    return %c0_i32, %c0_i32_0 : i32, i32
  }
  func.func @transform_6(%arg0: i32) -> (i32, i32) {
    %c0_i32 = arith.constant 0 : i32
    %c0_i32_0 = arith.constant 0 : i32
    %c0_i32_1 = arith.constant 0 : i32
    return %c0_i32, %c0_i32_0 : i32, i32
  }
  func.func @transform_7(%arg0: i32) -> (i32, i32) {
    %c0_i32 = arith.constant 0 : i32
    %c0_i32_0 = arith.constant 0 : i32
    %c0_i32_1 = arith.constant 0 : i32
    return %c0_i32, %c0_i32_0 : i32, i32
  }
  func.func @transform_8(%arg0: i32) -> (i32, i32) {
    %c0_i32 = arith.constant 0 : i32
    %c0_i32_0 = arith.constant 0 : i32
    %c0_i32_1 = arith.constant 0 : i32
    return %c0_i32, %c0_i32_0 : i32, i32
  }
  func.func @transform_9(%arg0: i32) -> (i32, i32) {
    %c0_i32 = arith.constant 0 : i32
    %c0_i32_0 = arith.constant 0 : i32
    %c0_i32_1 = arith.constant 0 : i32
    return %c0_i32, %c0_i32_0 : i32, i32
  }
  func.func @transform_10(%arg0: i32) -> (i32, i32) {
    %c0_i32 = arith.constant 0 : i32
    %c0_i32_0 = arith.constant 0 : i32
    %c0_i32_1 = arith.constant 0 : i32
    return %c0_i32, %c0_i32_0 : i32, i32
  }
  func.func @transform_11(%arg0: i32) -> (i32, i32) {
    %c0_i32 = arith.constant 0 : i32
    %c0_i32_0 = arith.constant 0 : i32
    %c0_i32_1 = arith.constant 0 : i32
    return %c0_i32, %c0_i32_0 : i32, i32
  }
  func.func @transform_12(%arg0: i32) -> (i32, i32) {
    %c0_i32 = arith.constant 0 : i32
    %c0_i32_0 = arith.constant 0 : i32
    %c0_i32_1 = arith.constant 0 : i32
    return %c0_i32, %c0_i32_0 : i32, i32
  }
  func.func @transform_13(%arg0: i32) -> (i32, i32) {
    %c0_i32 = arith.constant 0 : i32
    %c0_i32_0 = arith.constant 0 : i32
    %c0_i32_1 = arith.constant 0 : i32
    return %c0_i32, %c0_i32_0 : i32, i32
  }
  func.func @transform_14(%arg0: i32) -> (i32, i32) {
    %c0_i32 = arith.constant 0 : i32
    %c0_i32_0 = arith.constant 0 : i32
    %c0_i32_1 = arith.constant 0 : i32
    return %c0_i32, %c0_i32_0 : i32, i32
  }
  func.func @transform_15(%arg0: i32) -> (i32, i32) {
    %c0_i32 = arith.constant 0 : i32
    %c0_i32_0 = arith.constant 0 : i32
    %c0_i32_1 = arith.constant 0 : i32
    return %c0_i32, %c0_i32_0 : i32, i32
  }
  func.func @transform_16(%arg0: i32) -> (i32, i32) {
    %c0_i32 = arith.constant 0 : i32
    %c0_i32_0 = arith.constant 0 : i32
    %c0_i32_1 = arith.constant 0 : i32
    return %c0_i32, %c0_i32_0 : i32, i32
  }
  func.func @transform_17(%arg0: i32) -> (i32, i32) {
    %c0_i32 = arith.constant 0 : i32
    %c0_i32_0 = arith.constant 0 : i32
    %c0_i32_1 = arith.constant 0 : i32
    return %c0_i32, %c0_i32_0 : i32, i32
  }
  func.func @transform_18(%arg0: i32) -> (i32, i32) {
    %c0_i32 = arith.constant 0 : i32
    %c0_i32_0 = arith.constant 0 : i32
    %c0_i32_1 = arith.constant 0 : i32
    return %c0_i32, %c0_i32_0 : i32, i32
  }
  func.func @transform_19(%arg0: i32) -> (i32, i32) {
    %c0_i32 = arith.constant 0 : i32
    %c0_i32_0 = arith.constant 0 : i32
    %c0_i32_1 = arith.constant 0 : i32
    return %c0_i32, %c0_i32_0 : i32, i32
  }
  func.func @transform_20(%arg0: i32) -> (i32, i32) {
    %c0_i32 = arith.constant 0 : i32
    %c0_i32_0 = arith.constant 0 : i32
    %c0_i32_1 = arith.constant 0 : i32
    return %c0_i32, %c0_i32_0 : i32, i32
  }
  func.func @transform_21(%arg0: i32) -> (i32, i32) {
    %c0_i32 = arith.constant 0 : i32
    %c0_i32_0 = arith.constant 0 : i32
    %c0_i32_1 = arith.constant 0 : i32
    return %c0_i32, %c0_i32_0 : i32, i32
  }
  func.func @transform_22(%arg0: i32) -> (i32, i32) {
    %c0_i32 = arith.constant 0 : i32
    %c0_i32_0 = arith.constant 0 : i32
    %c0_i32_1 = arith.constant 0 : i32
    return %c0_i32, %c0_i32_0 : i32, i32
  }
  func.func @transform_23(%arg0: i32) -> (i32, i32) {
    %c0_i32 = arith.constant 0 : i32
    %c0_i32_0 = arith.constant 0 : i32
    %c0_i32_1 = arith.constant 0 : i32
    return %c0_i32, %c0_i32_0 : i32, i32
  }
  func.func @transform_24(%arg0: i32) -> (i32, i32, i32) {
    %c0_i32 = arith.constant 0 : i32
    %c0_i32_0 = arith.constant 0 : i32
    %c0_i32_1 = arith.constant 0 : i32
    return %arg0, %c0_i32, %c0_i32_0 : i32, i32, i32
  }
}

</mosaic_0001>

<llo_original>
// kernel: tpu_custom_call.1
$region0: #{tpu_custom_call.1}
  #allocation0 [shape = 'u32[]', space=smem, size = 0x4, offset = 0x4, fixed_abs, tag = 'smem constant byte address 0x4 - core index']
  #allocation1 [shape = 'u32[144,128]{1,0:T(1,128)}', space=vmem, size = 0x12000, scoped, tag = 'internal scratch']
  #allocation2 [shape = 'f32[1,1]{1,0:T(1,128)S(1)}', space=vmem, size = 0x200, scoped, tag = 'scoped memory for tpu_custom_call.1']
  #allocation3 [shape = 'f32[1,1]{1,0:T(1,128)S(1)}', space=vmem, size = 0x200, scoped, tag = 'scoped memory for tpu_custom_call.1']
  #allocation8 [shape = 's32[]', space=sflag, size = 0x4, offset = 0, fixed_abs, tag = 'sflag constant byte address 0x0 - dummy sync flag']
  %s0 = inlined_call_operand.hbm [shape: bf16[12,16,8,32], index: 0, kind: input, shape index: {}]
  %s1 = inlined_call_operand.vmem [shape: bf16[16,32], index: 1, kind: input, shape index: {}]
  %s2 = inlined_call_operand.vmem [shape: f32[64,32], index: 2, kind: input, shape index: {}]
  %s3 = inlined_call_operand.vmem [shape: f32[1,32], index: 3, kind: input, shape index: {}]
  %s4 = inlined_call_operand.vmem [shape: f32[1,32], index: 4, kind: input, shape index: {}]
  %s5 = inlined_call_operand.<no memory space> [shape: f32[1,1], index: 5, kind: input, shape index: {}]
  %s6 = inlined_call_operand.vmem [shape: f32[160,32], index: 6, kind: input, shape index: {}]
  %s7 = inlined_call_operand.vmem [shape: f32[1,32], index: 7, kind: input, shape index: {}]
  %s8 = inlined_call_operand.vmem [shape: f32[32,32], index: 8, kind: input, shape index: {}]
  %s9 = inlined_call_operand.vmem [shape: f32[1,32], index: 9, kind: input, shape index: {}]
  %s10 = inlined_call_operand.vmem [shape: f32[1,32], index: 10, kind: input, shape index: {}]
  %s11 = inlined_call_operand.<no memory space> [shape: f32[1,1], index: 11, kind: input, shape index: {}]
  %s12 = inlined_call_operand.vmem [shape: f32[32,32], index: 12, kind: input, shape index: {}]
  %s13 = inlined_call_operand.vmem [shape: f32[1,32], index: 13, kind: input, shape index: {}]
  %s14 = inlined_call_operand.vmem [shape: f32[32,32], index: 14, kind: input, shape index: {}]
  %s15 = inlined_call_operand.vmem [shape: f32[1,32], index: 15, kind: input, shape index: {}]
  %s16 = inlined_call_operand.vmem [shape: f32[32,32], index: 16, kind: input, shape index: {}]
  %s17 = inlined_call_operand.vmem [shape: f32[1,32], index: 17, kind: input, shape index: {}]
  %s18 = inlined_call_operand.vmem [shape: f32[32,32], index: 18, kind: input, shape index: {}]
  %s19 = inlined_call_operand.vmem [shape: f32[1,32], index: 19, kind: input, shape index: {}]
  %s20 = inlined_call_operand.vmem [shape: f32[32,32], index: 20, kind: input, shape index: {}]
  %s21 = inlined_call_operand.vmem [shape: f32[1,32], index: 21, kind: input, shape index: {}]
  %s22 = inlined_call_operand.vmem [shape: f32[32,32], index: 22, kind: input, shape index: {}]
  %s23 = inlined_call_operand.vmem [shape: f32[1,32], index: 23, kind: input, shape index: {}]
  %s24 = inlined_call_operand.hbm [shape: f32[2,1,8], index: 24, kind: output, shape index: {}]
  %s25 = sld [smem:[#allocation0]]
  $region133: #{tpu_custom_call.1} parent=0
    _
  %s27 = ssub.s32 1, %s25
  %s28 = scalar_select 0, %s27, %s25
  %v29 = vstv %s5
  %30 = vst [vmem:[#allocation2] sm:$0x1] %v29
  %v31 = vstv %s11
  %32 = vst [vmem:[#allocation3] sm:$0x1] %v31
  $region1: #{tpu_custom_call.1} parent=0
    #allocation4 [shape = 'u8[393216]{0}', space=vmem, size = 0x60000, scoped, tag = 'input window, operand 0']
    #allocation5 [shape = 's32[2]{0}', space=sflag, size = 0x8, scoped, tag = 'scoped memory for tpu_custom_call.1']
    #allocation6 [shape = 's32[2]{0}', space=sflag, size = 0x8, scoped, tag = 'scoped memory for tpu_custom_call.1']
    #allocation7 [shape = 'u8[1024]{0}', space=vmem, size = 0x400, scoped, tag = 'output window, operand 0']
    %33 = vsyncpa [#allocation5], 0
    %s34 = scalar_lea.sflag [#allocation5], 1
    %35 = vsyncpa %s34, 0
    %36 = vsyncpa [#allocation6], 0
    %s37 = scalar_lea.sflag [#allocation6], 1
    %38 = vsyncpa %s37, 0
    loop: start=0, step=1, limit=4
    $region2: #{tpu_custom_call.1} parent=1 // loop_pre_header
      _
    $region3: #{tpu_custom_call.1} parent=1 // loop_header
      %s40 = sphi 0, %s44
      %p41 = scmp.ge.s32.totalorder %s40, 4
      %s50 = sphi 0, %s52
      %s53 = sphi 0, %s50
      %s54 = sphi 0, %s53
      %s70 = sphi 0, %s54
      %s76 = sphi 0, %s78
      %s79 = sphi 0, %s76
      %s80 = sphi 0, %s79
      %s96 = sphi 0, %s80
      %s100 = sphi 0, %s100
      %s102 = sphi 0, %s100
      %s103 = sphi 0, %s102
      %s117 = sphi 0, %s103
      %s121 = sphi 0, %s121
      %s123 = sphi 0, %s121
      %s124 = sphi 0, %s123
      %s138 = sphi 0, %s124
      %s142 = sphi 0, %s142
      %s144 = sphi 0, %s142
      %s145 = sphi 0, %s144
      %s159 = sphi 0, %s145
      %s163 = sphi 0, %s163
      %s165 = sphi 0, %s163
      %s166 = sphi 0, %s165
      %s180 = sphi 0, %s166
      %s184 = sphi 0, %s184
      %s186 = sphi 0, %s184
      %s187 = sphi 0, %s186
      %s201 = sphi 0, %s187
      %s205 = sphi 0, %s205
      %s207 = sphi 0, %s205
      %s208 = sphi 0, %s207
      %s222 = sphi 0, %s208
      %s226 = sphi 0, %s226
      %s228 = sphi 0, %s226
      %s229 = sphi 0, %s228
      %s243 = sphi 0, %s229
      %s247 = sphi 0, %s247
      %s249 = sphi 0, %s247
      %s250 = sphi 0, %s249
      %s264 = sphi 0, %s250
      %s268 = sphi 0, %s268
      %s270 = sphi 0, %s268
      %s271 = sphi 0, %s270
      %s285 = sphi 0, %s271
      %s289 = sphi 0, %s289
      %s291 = sphi 0, %s289
      %s292 = sphi 0, %s291
      %s306 = sphi 0, %s292
      %s310 = sphi 0, %s310
      %s312 = sphi 0, %s310
      %s313 = sphi 0, %s312
      %s327 = sphi 0, %s313
      %s331 = sphi 0, %s331
      %s333 = sphi 0, %s331
      %s334 = sphi 0, %s333
      %s348 = sphi 0, %s334
      %s352 = sphi 0, %s352
      %s354 = sphi 0, %s352
      %s355 = sphi 0, %s354
      %s369 = sphi 0, %s355
      %s373 = sphi 0, %s373
      %s375 = sphi 0, %s373
      %s376 = sphi 0, %s375
      %s390 = sphi 0, %s376
      %s394 = sphi 0, %s394
      %s396 = sphi 0, %s394
      %s397 = sphi 0, %s396
      %s411 = sphi 0, %s397
      %s415 = sphi 0, %s415
      %s417 = sphi 0, %s415
      %s418 = sphi 0, %s417
      %s432 = sphi 0, %s418
      %s436 = sphi 0, %s436
      %s438 = sphi 0, %s436
      %s439 = sphi 0, %s438
      %s453 = sphi 0, %s439
      %s457 = sphi 0, %s457
      %s459 = sphi 0, %s457
      %s460 = sphi 0, %s459
      %s474 = sphi 0, %s460
      %s478 = sphi 0, %s478
      %s480 = sphi 0, %s478
      %s481 = sphi 0, %s480
      %s495 = sphi 0, %s481
      %s499 = sphi 0, %s499
      %s501 = sphi 0, %s499
      %s502 = sphi 0, %s501
      %s516 = sphi 0, %s502
      %s520 = sphi 0, %s520
      %s522 = sphi 0, %s520
      %s523 = sphi 0, %s522
      %s537 = sphi 0, %s523
      %s541 = sphi 0, %s541
      %s543 = sphi 0, %s541
      %s544 = sphi 0, %s543
      %s558 = sphi 0, %s544
      %s564 = sphi 0, %s566
      %s567 = sphi 0, %s564
      %s568 = sphi 0, %s567
      %s584 = sphi 0, %s568
    $region4: #{tpu_custom_call.1} parent=1 // loop_header_branch
      %43 = sbr.rel (%p41) target = $region8
    $region5: #{tpu_custom_call.1} parent=1 // loop_body
      %s45 = ssub.s32 %s40, 1
      %s46 = ssub.s32 %s40, 2
      %s47 = sadd.s32 %s40, 1
      %s48 = ssub.s32 %s40, %s47
      %p49 = scmp.eq.s32.totalorder %s48, 0
      %s51 = sadd.s32 %s50, 1
      %s52 = scalar_select %p49, %s50, %s51
      %p55 = pneg %p49
      %p56 = scmp.eq.s32.totalorder %s40, 1
      %p57 = por %p55, %p56
      %p58 = scmp.ne.s32.totalorder %s50, %s53
      %p59 = scmp.eq.s32.totalorder %s40, 0
      %p60 = por %p58, %p59
      %p61 = scmp.ne.s32.totalorder %s50, %s53
      %p62 = scmp.eq.s32.totalorder %s45, 1
      %p63 = por %p61, %p62
      %p64 = scmp.ne.s32.totalorder %s53, %s54
      %p65 = scmp.eq.s32.totalorder %s45, 0
      %p66 = por %p64, %p65
      %p67 = scmp.ne.s32.totalorder %s53, %s54
      %p68 = scmp.eq.s32.totalorder %s46, 1
      %p69 = por %p67, %p68
      %p71 = scmp.ne.s32.totalorder %s54, %s70
      %p72 = scmp.eq.s32.totalorder %s46, 0
      %p73 = por %p71, %p72
      %s74 = ssub.s32 %s40, %s47
      %p75 = scmp.eq.s32.totalorder %s74, 0
      %s77 = sadd.s32 %s76, 1
      %s78 = scalar_select %p75, %s76, %s77
      %p81 = pneg %p75
      %p82 = scmp.eq.s32.totalorder %s40, 1
      %p83 = por %p81, %p82
      %p84 = scmp.ne.s32.totalorder %s76, %s79
      %p85 = scmp.eq.s32.totalorder %s40, 0
      %p86 = por %p84, %p85
      %p87 = scmp.ne.s32.totalorder %s76, %s79
      %p88 = scmp.eq.s32.totalorder %s45, 1
      %p89 = por %p87, %p88
      %p90 = scmp.ne.s32.totalorder %s79, %s80
      %p91 = scmp.eq.s32.totalorder %s45, 0
      %p92 = por %p90, %p91
      %p93 = scmp.ne.s32.totalorder %s79, %s80
      %p94 = scmp.eq.s32.totalorder %s46, 1
      %p95 = por %p93, %p94
      %p97 = scmp.ne.s32.totalorder %s80, %s96
      %p98 = scmp.eq.s32.totalorder %s46, 0
      %p99 = por %p97, %p98
      %s101 = sadd.s32 %s100, 1
      %p104 = scmp.eq.s32.totalorder %s40, 1
      %p105 = scmp.ne.s32.totalorder %s100, %s102
      %p106 = scmp.eq.s32.totalorder %s40, 0
      %p107 = por %p105, %p106
      %p108 = scmp.ne.s32.totalorder %s100, %s102
      %p109 = scmp.eq.s32.totalorder %s45, 1
      %p110 = por %p108, %p109
      %p111 = scmp.ne.s32.totalorder %s102, %s103
      %p112 = scmp.eq.s32.totalorder %s45, 0
      %p113 = por %p111, %p112
      %p114 = scmp.ne.s32.totalorder %s102, %s103
      %p115 = scmp.eq.s32.totalorder %s46, 1
      %p116 = por %p114, %p115
      %p118 = scmp.ne.s32.totalorder %s103, %s117
      %p119 = scmp.eq.s32.totalorder %s46, 0
      %p120 = por %p118, %p119
      %s122 = sadd.s32 %s121, 1
      %p125 = scmp.eq.s32.totalorder %s40, 1
      %p126 = scmp.ne.s32.totalorder %s121, %s123
      %p127 = scmp.eq.s32.totalorder %s40, 0
      %p128 = por %p126, %p127
      %p129 = scmp.ne.s32.totalorder %s121, %s123
      %p130 = scmp.eq.s32.totalorder %s45, 1
      %p131 = por %p129, %p130
      %p132 = scmp.ne.s32.totalorder %s123, %s124
      %p133 = scmp.eq.s32.totalorder %s45, 0
      %p134 = por %p132, %p133
      %p135 = scmp.ne.s32.totalorder %s123, %s124
      %p136 = scmp.eq.s32.totalorder %s46, 1
      %p137 = por %p135, %p136
      %p139 = scmp.ne.s32.totalorder %s124, %s138
      %p140 = scmp.eq.s32.totalorder %s46, 0
      %p141 = por %p139, %p140
      %s143 = sadd.s32 %s142, 1
      %p146 = scmp.eq.s32.totalorder %s40, 1
      %p147 = scmp.ne.s32.totalorder %s142, %s144
      %p148 = scmp.eq.s32.totalorder %s40, 0
      %p149 = por %p147, %p148
      %p150 = scmp.ne.s32.totalorder %s142, %s144
      %p151 = scmp.eq.s32.totalorder %s45, 1
      %p152 = por %p150, %p151
      %p153 = scmp.ne.s32.totalorder %s144, %s145
      %p154 = scmp.eq.s32.totalorder %s45, 0
      %p155 = por %p153, %p154
      %p156 = scmp.ne.s32.totalorder %s144, %s145
      %p157 = scmp.eq.s32.totalorder %s46, 1
      %p158 = por %p156, %p157
      %p160 = scmp.ne.s32.totalorder %s145, %s159
      %p161 = scmp.eq.s32.totalorder %s46, 0
      %p162 = por %p160, %p161
      %s164 = sadd.s32 %s163, 1
      %p167 = scmp.eq.s32.totalorder %s40, 1
      %p168 = scmp.ne.s32.totalorder %s163, %s165
      %p169 = scmp.eq.s32.totalorder %s40, 0
      %p170 = por %p168, %p169
      %p171 = scmp.ne.s32.totalorder %s163, %s165
      %p172 = scmp.eq.s32.totalorder %s45, 1
      %p173 = por %p171, %p172
      %p174 = scmp.ne.s32.totalorder %s165, %s166
      %p175 = scmp.eq.s32.totalorder %s45, 0
      %p176 = por %p174, %p175
      %p177 = scmp.ne.s32.totalorder %s165, %s166
      %p178 = scmp.eq.s32.totalorder %s46, 1
      %p179 = por %p177, %p178
      %p181 = scmp.ne.s32.totalorder %s166, %s180
      %p182 = scmp.eq.s32.totalorder %s46, 0
      %p183 = por %p181, %p182
      %s185 = sadd.s32 %s184, 1
      %p188 = scmp.eq.s32.totalorder %s40, 1
      %p189 = scmp.ne.s32.totalorder %s184, %s186
      %p190 = scmp.eq.s32.totalorder %s40, 0
      %p191 = por %p189, %p190
      %p192 = scmp.ne.s32.totalorder %s184, %s186
      %p193 = scmp.eq.s32.totalorder %s45, 1
      %p194 = por %p192, %p193
      %p195 = scmp.ne.s32.totalorder %s186, %s187
      %p196 = scmp.eq.s32.totalorder %s45, 0
      %p197 = por %p195, %p196
      %p198 = scmp.ne.s32.totalorder %s186, %s187
      %p199 = scmp.eq.s32.totalorder %s46, 1
      %p200 = por %p198, %p199
      %p202 = scmp.ne.s32.totalorder %s187, %s201
      %p203 = scmp.eq.s32.totalorder %s46, 0
      %p204 = por %p202, %p203
      %s206 = sadd.s32 %s205, 1
      %p209 = scmp.eq.s32.totalorder %s40, 1
      %p210 = scmp.ne.s32.totalorder %s205, %s207
      %p211 = scmp.eq.s32.totalorder %s40, 0
      %p212 = por %p210, %p211
      %p213 = scmp.ne.s32.totalorder %s205, %s207
      %p214 = scmp.eq.s32.totalorder %s45, 1
      %p215 = por %p213, %p214
      %p216 = scmp.ne.s32.totalorder %s207, %s208
      %p217 = scmp.eq.s32.totalorder %s45, 0
      %p218 = por %p216, %p217
      %p219 = scmp.ne.s32.totalorder %s207, %s208
      %p220 = scmp.eq.s32.totalorder %s46, 1
      %p221 = por %p219, %p220
      %p223 = scmp.ne.s32.totalorder %s208, %s222
      %p224 = scmp.eq.s32.totalorder %s46, 0
      %p225 = por %p223, %p224
      %s227 = sadd.s32 %s226, 1
      %p230 = scmp.eq.s32.totalorder %s40, 1
      %p231 = scmp.ne.s32.totalorder %s226, %s228
      %p232 = scmp.eq.s32.totalorder %s40, 0
      %p233 = por %p231, %p232
      %p234 = scmp.ne.s32.totalorder %s226, %s228
      %p235 = scmp.eq.s32.totalorder %s45, 1
      %p236 = por %p234, %p235
      %p237 = scmp.ne.s32.totalorder %s228, %s229
      %p238 = scmp.eq.s32.totalorder %s45, 0
      %p239 = por %p237, %p238
      %p240 = scmp.ne.s32.totalorder %s228, %s229
      %p241 = scmp.eq.s32.totalorder %s46, 1
      %p242 = por %p240, %p241
      %p244 = scmp.ne.s32.totalorder %s229, %s243
      %p245 = scmp.eq.s32.totalorder %s46, 0
      %p246 = por %p244, %p245
      %s248 = sadd.s32 %s247, 1
      %p251 = scmp.eq.s32.totalorder %s40, 1
      %p252 = scmp.ne.s32.totalorder %s247, %s249
      %p253 = scmp.eq.s32.totalorder %s40, 0
      %p254 = por %p252, %p253
      %p255 = scmp.ne.s32.totalorder %s247, %s249
      %p256 = scmp.eq.s32.totalorder %s45, 1
      %p257 = por %p255, %p256
      %p258 = scmp.ne.s32.totalorder %s249, %s250
      %p259 = scmp.eq.s32.totalorder %s45, 0
      %p260 = por %p258, %p259
      %p261 = scmp.ne.s32.totalorder %s249, %s250
      %p262 = scmp.eq.s32.totalorder %s46, 1
      %p263 = por %p261, %p262
      %p265 = scmp.ne.s32.totalorder %s250, %s264
      %p266 = scmp.eq.s32.totalorder %s46, 0
      %p267 = por %p265, %p266
      %s269 = sadd.s32 %s268, 1
      %p272 = scmp.eq.s32.totalorder %s40, 1
      %p273 = scmp.ne.s32.totalorder %s268, %s270
      %p274 = scmp.eq.s32.totalorder %s40, 0
      %p275 = por %p273, %p274
      %p276 = scmp.ne.s32.totalorder %s268, %s270
      %p277 = scmp.eq.s32.totalorder %s45, 1
      %p278 = por %p276, %p277
      %p279 = scmp.ne.s32.totalorder %s270, %s271
      %p280 = scmp.eq.s32.totalorder %s45, 0
      %p281 = por %p279, %p280
      %p282 = scmp.ne.s32.totalorder %s270, %s271
      %p283 = scmp.eq.s32.totalorder %s46, 1
      %p284 = por %p282, %p283
      %p286 = scmp.ne.s32.totalorder %s271, %s285
      %p287 = scmp.eq.s32.totalorder %s46, 0
      %p288 = por %p286, %p287
      %s290 = sadd.s32 %s289, 1
      %p293 = scmp.eq.s32.totalorder %s40, 1
      %p294 = scmp.ne.s32.totalorder %s289, %s291
      %p295 = scmp.eq.s32.totalorder %s40, 0
      %p296 = por %p294, %p295
      %p297 = scmp.ne.s32.totalorder %s289, %s291
      %p298 = scmp.eq.s32.totalorder %s45, 1
      %p299 = por %p297, %p298
      %p300 = scmp.ne.s32.totalorder %s291, %s292
      %p301 = scmp.eq.s32.totalorder %s45, 0
      %p302 = por %p300, %p301
      %p303 = scmp.ne.s32.totalorder %s291, %s292
      %p304 = scmp.eq.s32.totalorder %s46, 1
      %p305 = por %p303, %p304
      %p307 = scmp.ne.s32.totalorder %s292, %s306
      %p308 = scmp.eq.s32.totalorder %s46, 0
      %p309 = por %p307, %p308
      %s311 = sadd.s32 %s310, 1
      %p314 = scmp.eq.s32.totalorder %s40, 1
      %p315 = scmp.ne.s32.totalorder %s310, %s312
      %p316 = scmp.eq.s32.totalorder %s40, 0
      %p317 = por %p315, %p316
      %p318 = scmp.ne.s32.totalorder %s310, %s312
      %p319 = scmp.eq.s32.totalorder %s45, 1
      %p320 = por %p318, %p319
      %p321 = scmp.ne.s32.totalorder %s312, %s313
      %p322 = scmp.eq.s32.totalorder %s45, 0
      %p323 = por %p321, %p322
      %p324 = scmp.ne.s32.totalorder %s312, %s313
      %p325 = scmp.eq.s32.totalorder %s46, 1
      %p326 = por %p324, %p325
      %p328 = scmp.ne.s32.totalorder %s313, %s327
      %p329 = scmp.eq.s32.totalorder %s46, 0
      %p330 = por %p328, %p329
      %s332 = sadd.s32 %s331, 1
      %p335 = scmp.eq.s32.totalorder %s40, 1
      %p336 = scmp.ne.s32.totalorder %s331, %s333
      %p337 = scmp.eq.s32.totalorder %s40, 0
      %p338 = por %p336, %p337
      %p339 = scmp.ne.s32.totalorder %s331, %s333
      %p340 = scmp.eq.s32.totalorder %s45, 1
      %p341 = por %p339, %p340
      %p342 = scmp.ne.s32.totalorder %s333, %s334
      %p343 = scmp.eq.s32.totalorder %s45, 0
      %p344 = por %p342, %p343
      %p345 = scmp.ne.s32.totalorder %s333, %s334
      %p346 = scmp.eq.s32.totalorder %s46, 1
      %p347 = por %p345, %p346
      %p349 = scmp.ne.s32.totalorder %s334, %s348
      %p350 = scmp.eq.s32.totalorder %s46, 0
      %p351 = por %p349, %p350
      %s353 = sadd.s32 %s352, 1
      %p356 = scmp.eq.s32.totalorder %s40, 1
      %p357 = scmp.ne.s32.totalorder %s352, %s354
      %p358 = scmp.eq.s32.totalorder %s40, 0
      %p359 = por %p357, %p358
      %p360 = scmp.ne.s32.totalorder %s352, %s354
      %p361 = scmp.eq.s32.totalorder %s45, 1
      %p362 = por %p360, %p361
      %p363 = scmp.ne.s32.totalorder %s354, %s355
      %p364 = scmp.eq.s32.totalorder %s45, 0
      %p365 = por %p363, %p364
      %p366 = scmp.ne.s32.totalorder %s354, %s355
      %p367 = scmp.eq.s32.totalorder %s46, 1
      %p368 = por %p366, %p367
      %p370 = scmp.ne.s32.totalorder %s355, %s369
      %p371 = scmp.eq.s32.totalorder %s46, 0
      %p372 = por %p370, %p371
      %s374 = sadd.s32 %s373, 1
      %p377 = scmp.eq.s32.totalorder %s40, 1
      %p378 = scmp.ne.s32.totalorder %s373, %s375
      %p379 = scmp.eq.s32.totalorder %s40, 0
      %p380 = por %p378, %p379
      %p381 = scmp.ne.s32.totalorder %s373, %s375
      %p382 = scmp.eq.s32.totalorder %s45, 1
      %p383 = por %p381, %p382
      %p384 = scmp.ne.s32.totalorder %s375, %s376
      %p385 = scmp.eq.s32.totalorder %s45, 0
      %p386 = por %p384, %p385
      %p387 = scmp.ne.s32.totalorder %s375, %s376
      %p388 = scmp.eq.s32.totalorder %s46, 1
      %p389 = por %p387, %p388
      %p391 = scmp.ne.s32.totalorder %s376, %s390
      %p392 = scmp.eq.s32.totalorder %s46, 0
      %p393 = por %p391, %p392
      %s395 = sadd.s32 %s394, 1
      %p398 = scmp.eq.s32.totalorder %s40, 1
      %p399 = scmp.ne.s32.totalorder %s394, %s396
      %p400 = scmp.eq.s32.totalorder %s40, 0
      %p401 = por %p399, %p400
      %p402 = scmp.ne.s32.totalorder %s394, %s396
      %p403 = scmp.eq.s32.totalorder %s45, 1
      %p404 = por %p402, %p403
      %p405 = scmp.ne.s32.totalorder %s396, %s397
      %p406 = scmp.eq.s32.totalorder %s45, 0
      %p407 = por %p405, %p406
      %p408 = scmp.ne.s32.totalorder %s396, %s397
      %p409 = scmp.eq.s32.totalorder %s46, 1
      %p410 = por %p408, %p409
      %p412 = scmp.ne.s32.totalorder %s397, %s411
      %p413 = scmp.eq.s32.totalorder %s46, 0
      %p414 = por %p412, %p413
      %s416 = sadd.s32 %s415, 1
      %p419 = scmp.eq.s32.totalorder %s40, 1
      %p420 = scmp.ne.s32.totalorder %s415, %s417
      %p421 = scmp.eq.s32.totalorder %s40, 0
      %p422 = por %p420, %p421
      %p423 = scmp.ne.s32.totalorder %s415, %s417
      %p424 = scmp.eq.s32.totalorder %s45, 1
      %p425 = por %p423, %p424
      %p426 = scmp.ne.s32.totalorder %s417, %s418
      %p427 = scmp.eq.s32.totalorder %s45, 0
      %p428 = por %p426, %p427
      %p429 = scmp.ne.s32.totalorder %s417, %s418
      %p430 = scmp.eq.s32.totalorder %s46, 1
      %p431 = por %p429, %p430
      %p433 = scmp.ne.s32.totalorder %s418, %s432
      %p434 = scmp.eq.s32.totalorder %s46, 0
      %p435 = por %p433, %p434
      %s437 = sadd.s32 %s436, 1
      %p440 = scmp.eq.s32.totalorder %s40, 1
      %p441 = scmp.ne.s32.totalorder %s436, %s438
      %p442 = scmp.eq.s32.totalorder %s40, 0
      %p443 = por %p441, %p442
      %p444 = scmp.ne.s32.totalorder %s436, %s438
      %p445 = scmp.eq.s32.totalorder %s45, 1
      %p446 = por %p444, %p445
      %p447 = scmp.ne.s32.totalorder %s438, %s439
      %p448 = scmp.eq.s32.totalorder %s45, 0
      %p449 = por %p447, %p448
      %p450 = scmp.ne.s32.totalorder %s438, %s439
      %p451 = scmp.eq.s32.totalorder %s46, 1
      %p452 = por %p450, %p451
      %p454 = scmp.ne.s32.totalorder %s439, %s453
      %p455 = scmp.eq.s32.totalorder %s46, 0
      %p456 = por %p454, %p455
      %s458 = sadd.s32 %s457, 1
      %p461 = scmp.eq.s32.totalorder %s40, 1
      %p462 = scmp.ne.s32.totalorder %s457, %s459
      %p463 = scmp.eq.s32.totalorder %s40, 0
      %p464 = por %p462, %p463
      %p465 = scmp.ne.s32.totalorder %s457, %s459
      %p466 = scmp.eq.s32.totalorder %s45, 1
      %p467 = por %p465, %p466
      %p468 = scmp.ne.s32.totalorder %s459, %s460
      %p469 = scmp.eq.s32.totalorder %s45, 0
      %p470 = por %p468, %p469
      %p471 = scmp.ne.s32.totalorder %s459, %s460
      %p472 = scmp.eq.s32.totalorder %s46, 1
      %p473 = por %p471, %p472
      %p475 = scmp.ne.s32.totalorder %s460, %s474
      %p476 = scmp.eq.s32.totalorder %s46, 0
      %p477 = por %p475, %p476
      %s479 = sadd.s32 %s478, 1
      %p482 = scmp.eq.s32.totalorder %s40, 1
      %p483 = scmp.ne.s32.totalorder %s478, %s480
      %p484 = scmp.eq.s32.totalorder %s40, 0
      %p485 = por %p483, %p484
      %p486 = scmp.ne.s32.totalorder %s478, %s480
      %p487 = scmp.eq.s32.totalorder %s45, 1
      %p488 = por %p486, %p487
      %p489 = scmp.ne.s32.totalorder %s480, %s481
      %p490 = scmp.eq.s32.totalorder %s45, 0
      %p491 = por %p489, %p490
      %p492 = scmp.ne.s32.totalorder %s480, %s481
      %p493 = scmp.eq.s32.totalorder %s46, 1
      %p494 = por %p492, %p493
      %p496 = scmp.ne.s32.totalorder %s481, %s495
      %p497 = scmp.eq.s32.totalorder %s46, 0
      %p498 = por %p496, %p497
      %s500 = sadd.s32 %s499, 1
      %p503 = scmp.eq.s32.totalorder %s40, 1
      %p504 = scmp.ne.s32.totalorder %s499, %s501
      %p505 = scmp.eq.s32.totalorder %s40, 0
      %p506 = por %p504, %p505
      %p507 = scmp.ne.s32.totalorder %s499, %s501
      %p508 = scmp.eq.s32.totalorder %s45, 1
      %p509 = por %p507, %p508
      %p510 = scmp.ne.s32.totalorder %s501, %s502
      %p511 = scmp.eq.s32.totalorder %s45, 0
      %p512 = por %p510, %p511
      %p513 = scmp.ne.s32.totalorder %s501, %s502
      %p514 = scmp.eq.s32.totalorder %s46, 1
      %p515 = por %p513, %p514
      %p517 = scmp.ne.s32.totalorder %s502, %s516
      %p518 = scmp.eq.s32.totalorder %s46, 0
      %p519 = por %p517, %p518
      %s521 = sadd.s32 %s520, 1
      %p524 = scmp.eq.s32.totalorder %s40, 1
      %p525 = scmp.ne.s32.totalorder %s520, %s522
      %p526 = scmp.eq.s32.totalorder %s40, 0
      %p527 = por %p525, %p526
      %p528 = scmp.ne.s32.totalorder %s520, %s522
      %p529 = scmp.eq.s32.totalorder %s45, 1
      %p530 = por %p528, %p529
      %p531 = scmp.ne.s32.totalorder %s522, %s523
      %p532 = scmp.eq.s32.totalorder %s45, 0
      %p533 = por %p531, %p532
      %p534 = scmp.ne.s32.totalorder %s522, %s523
      %p535 = scmp.eq.s32.totalorder %s46, 1
      %p536 = por %p534, %p535
      %p538 = scmp.ne.s32.totalorder %s523, %s537
      %p539 = scmp.eq.s32.totalorder %s46, 0
      %p540 = por %p538, %p539
      %s542 = sadd.s32 %s541, 1
      %p545 = scmp.eq.s32.totalorder %s40, 1
      %p546 = scmp.ne.s32.totalorder %s541, %s543
      %p547 = scmp.eq.s32.totalorder %s40, 0
      %p548 = por %p546, %p547
      %p549 = scmp.ne.s32.totalorder %s541, %s543
      %p550 = scmp.eq.s32.totalorder %s45, 1
      %p551 = por %p549, %p550
      %p552 = scmp.ne.s32.totalorder %s543, %s544
      %p553 = scmp.eq.s32.totalorder %s45, 0
      %p554 = por %p552, %p553
      %p555 = scmp.ne.s32.totalorder %s543, %s544
      %p556 = scmp.eq.s32.totalorder %s46, 1
      %p557 = por %p555, %p556
      %p559 = scmp.ne.s32.totalorder %s544, %s558
      %p560 = scmp.eq.s32.totalorder %s46, 0
      %p561 = por %p559, %p560
      %s562 = ssub.s32 %s40, %s47
      %p563 = scmp.eq.s32.totalorder %s562, 0
      %s565 = sadd.s32 %s564, 1
      %s566 = scalar_select %p563, %s564, %s565
      %p569 = pneg %p563
      %p570 = scmp.eq.s32.totalorder %s40, 1
      %p571 = por %p569, %p570
      %p572 = scmp.ne.s32.totalorder %s564, %s567
      %p573 = scmp.eq.s32.totalorder %s40, 0
      %p574 = por %p572, %p573
      %p575 = scmp.ne.s32.totalorder %s564, %s567
      %p576 = scmp.eq.s32.totalorder %s45, 1
      %p577 = por %p575, %p576
      %p578 = scmp.ne.s32.totalorder %s567, %s568
      %p579 = scmp.eq.s32.totalorder %s45, 0
      %p580 = por %p578, %p579
      %p581 = scmp.ne.s32.totalorder %s567, %s568
      %p582 = scmp.eq.s32.totalorder %s46, 1
      %p583 = por %p581, %p582
      %p585 = scmp.ne.s32.totalorder %s568, %s584
      %p586 = scmp.eq.s32.totalorder %s46, 0
      %p587 = por %p585, %p586
      %p588 = scmp.le.s32.totalorder 1, %s40
      %p589 = scmp.lt.s32.totalorder %s40, 3
      %p590 = pnand %p588, %p589
      %p591 = pneg %p590
      // Predicated region
      $region9: #{tpu_custom_call.1} parent=5 // pred_check
        _
      $region10: #{tpu_custom_call.1} parent=5 // pred_check_branch
        %593 = sbr.rel (%p590) target = $region12
      $region11: #{tpu_custom_call.1} parent=5 // pred_region
        %s594 = ssub.s32 %s40, 1
        // Predicated region
        $region13: #{tpu_custom_call.1} parent=11 // pred_check
          %p595 = pneg %p113
        $region14: #{tpu_custom_call.1} parent=11 // pred_check_branch
          %597 = sbr.rel (%p595) target = $region16
        $region15: #{tpu_custom_call.1} parent=11 // pred_region
          _
        $region16: #{tpu_custom_call.1} parent=11 // pred_fallthru
          _
        // Predicated region
        $region17: #{tpu_custom_call.1} parent=11 // pred_check
          %p598 = pneg %p134
        $region18: #{tpu_custom_call.1} parent=11 // pred_check_branch
          %600 = sbr.rel (%p598) target = $region20
        $region19: #{tpu_custom_call.1} parent=11 // pred_region
          _
        $region20: #{tpu_custom_call.1} parent=11 // pred_fallthru
          _
        // Predicated region
        $region21: #{tpu_custom_call.1} parent=11 // pred_check
          %p601 = pneg %p155
        $region22: #{tpu_custom_call.1} parent=11 // pred_check_branch
          %603 = sbr.rel (%p601) target = $region24
        $region23: #{tpu_custom_call.1} parent=11 // pred_region
          _
        $region24: #{tpu_custom_call.1} parent=11 // pred_fallthru
          _
        // Predicated region
        $region25: #{tpu_custom_call.1} parent=11 // pred_check
          %p604 = pneg %p176
        $region26: #{tpu_custom_call.1} parent=11 // pred_check_branch
          %606 = sbr.rel (%p604) target = $region28
        $region27: #{tpu_custom_call.1} parent=11 // pred_region
          _
        $region28: #{tpu_custom_call.1} parent=11 // pred_fallthru
          _
        // Predicated region
        $region29: #{tpu_custom_call.1} parent=11 // pred_check
          %p607 = pneg %p197
        $region30: #{tpu_custom_call.1} parent=11 // pred_check_branch
          %609 = sbr.rel (%p607) target = $region32
        $region31: #{tpu_custom_call.1} parent=11 // pred_region
          _
        $region32: #{tpu_custom_call.1} parent=11 // pred_fallthru
          _
        // Predicated region
        $region33: #{tpu_custom_call.1} parent=11 // pred_check
          %p610 = pneg %p218
        $region34: #{tpu_custom_call.1} parent=11 // pred_check_branch
          %612 = sbr.rel (%p610) target = $region36
        $region35: #{tpu_custom_call.1} parent=11 // pred_region
          _
        $region36: #{tpu_custom_call.1} parent=11 // pred_fallthru
          _
        // Predicated region
        $region37: #{tpu_custom_call.1} parent=11 // pred_check
          %p613 = pneg %p239
        $region38: #{tpu_custom_call.1} parent=11 // pred_check_branch
          %615 = sbr.rel (%p613) target = $region40
        $region39: #{tpu_custom_call.1} parent=11 // pred_region
          _
        $region40: #{tpu_custom_call.1} parent=11 // pred_fallthru
          _
        // Predicated region
        $region41: #{tpu_custom_call.1} parent=11 // pred_check
          %p616 = pneg %p260
        $region42: #{tpu_custom_call.1} parent=11 // pred_check_branch
          %618 = sbr.rel (%p616) target = $region44
        $region43: #{tpu_custom_call.1} parent=11 // pred_region
          _
        $region44: #{tpu_custom_call.1} parent=11 // pred_fallthru
          _
        // Predicated region
        $region45: #{tpu_custom_call.1} parent=11 // pred_check
          %p619 = pneg %p281
        $region46: #{tpu_custom_call.1} parent=11 // pred_check_branch
          %621 = sbr.rel (%p619) target = $region48
        $region47: #{tpu_custom_call.1} parent=11 // pred_region
          _
        $region48: #{tpu_custom_call.1} parent=11 // pred_fallthru
          _
        // Predicated region
        $region49: #{tpu_custom_call.1} parent=11 // pred_check
          %p622 = pneg %p302
        $region50: #{tpu_custom_call.1} parent=11 // pred_check_branch
          %624 = sbr.rel (%p622) target = $region52
        $region51: #{tpu_custom_call.1} parent=11 // pred_region
          _
        $region52: #{tpu_custom_call.1} parent=11 // pred_fallthru
          _
        // Predicated region
        $region53: #{tpu_custom_call.1} parent=11 // pred_check
          %p625 = pneg %p323
        $region54: #{tpu_custom_call.1} parent=11 // pred_check_branch
          %627 = sbr.rel (%p625) target = $region56
        $region55: #{tpu_custom_call.1} parent=11 // pred_region
          _
        $region56: #{tpu_custom_call.1} parent=11 // pred_fallthru
          _
        // Predicated region
        $region57: #{tpu_custom_call.1} parent=11 // pred_check
          %p628 = pneg %p344
        $region58: #{tpu_custom_call.1} parent=11 // pred_check_branch
          %630 = sbr.rel (%p628) target = $region60
        $region59: #{tpu_custom_call.1} parent=11 // pred_region
          _
        $region60: #{tpu_custom_call.1} parent=11 // pred_fallthru
          _
        // Predicated region
        $region61: #{tpu_custom_call.1} parent=11 // pred_check
          %p631 = pneg %p365
        $region62: #{tpu_custom_call.1} parent=11 // pred_check_branch
          %633 = sbr.rel (%p631) target = $region64
        $region63: #{tpu_custom_call.1} parent=11 // pred_region
          _
        $region64: #{tpu_custom_call.1} parent=11 // pred_fallthru
          _
        // Predicated region
        $region65: #{tpu_custom_call.1} parent=11 // pred_check
          %p634 = pneg %p386
        $region66: #{tpu_custom_call.1} parent=11 // pred_check_branch
          %636 = sbr.rel (%p634) target = $region68
        $region67: #{tpu_custom_call.1} parent=11 // pred_region
          _
        $region68: #{tpu_custom_call.1} parent=11 // pred_fallthru
          _
        // Predicated region
        $region69: #{tpu_custom_call.1} parent=11 // pred_check
          %p637 = pneg %p407
        $region70: #{tpu_custom_call.1} parent=11 // pred_check_branch
          %639 = sbr.rel (%p637) target = $region72
        $region71: #{tpu_custom_call.1} parent=11 // pred_region
          _
        $region72: #{tpu_custom_call.1} parent=11 // pred_fallthru
          _
        // Predicated region
        $region73: #{tpu_custom_call.1} parent=11 // pred_check
          %p640 = pneg %p428
        $region74: #{tpu_custom_call.1} parent=11 // pred_check_branch
          %642 = sbr.rel (%p640) target = $region76
        $region75: #{tpu_custom_call.1} parent=11 // pred_region
          _
        $region76: #{tpu_custom_call.1} parent=11 // pred_fallthru
          _
        // Predicated region
        $region77: #{tpu_custom_call.1} parent=11 // pred_check
          %p643 = pneg %p449
        $region78: #{tpu_custom_call.1} parent=11 // pred_check_branch
          %645 = sbr.rel (%p643) target = $region80
        $region79: #{tpu_custom_call.1} parent=11 // pred_region
          _
        $region80: #{tpu_custom_call.1} parent=11 // pred_fallthru
          _
        // Predicated region
        $region81: #{tpu_custom_call.1} parent=11 // pred_check
          %p646 = pneg %p470
        $region82: #{tpu_custom_call.1} parent=11 // pred_check_branch
          %648 = sbr.rel (%p646) target = $region84
        $region83: #{tpu_custom_call.1} parent=11 // pred_region
          _
        $region84: #{tpu_custom_call.1} parent=11 // pred_fallthru
          _
        // Predicated region
        $region85: #{tpu_custom_call.1} parent=11 // pred_check
          %p649 = pneg %p491
        $region86: #{tpu_custom_call.1} parent=11 // pred_check_branch
          %651 = sbr.rel (%p649) target = $region88
        $region87: #{tpu_custom_call.1} parent=11 // pred_region
          _
        $region88: #{tpu_custom_call.1} parent=11 // pred_fallthru
          _
        // Predicated region
        $region89: #{tpu_custom_call.1} parent=11 // pred_check
          %p652 = pneg %p512
        $region90: #{tpu_custom_call.1} parent=11 // pred_check_branch
          %654 = sbr.rel (%p652) target = $region92
        $region91: #{tpu_custom_call.1} parent=11 // pred_region
          _
        $region92: #{tpu_custom_call.1} parent=11 // pred_fallthru
          _
        // Predicated region
        $region93: #{tpu_custom_call.1} parent=11 // pred_check
          %p655 = pneg %p533
        $region94: #{tpu_custom_call.1} parent=11 // pred_check_branch
          %657 = sbr.rel (%p655) target = $region96
        $region95: #{tpu_custom_call.1} parent=11 // pred_region
          _
        $region96: #{tpu_custom_call.1} parent=11 // pred_fallthru
          _
        // Predicated region
        $region97: #{tpu_custom_call.1} parent=11 // pred_check
          %p658 = pneg %p554
        $region98: #{tpu_custom_call.1} parent=11 // pred_check_branch
          %660 = sbr.rel (%p658) target = $region100
        $region99: #{tpu_custom_call.1} parent=11 // pred_region
          _
        $region100: #{tpu_custom_call.1} parent=11 // pred_fallthru
          _
      $region12: #{tpu_custom_call.1} parent=5 // pred_fallthru
        _
      %p661 = scmp.lt.s32.totalorder %s40, 2
      // Predicated region
      $region101: #{tpu_custom_call.1} parent=5 // pred_check
        %p662 = pneg %p661
      $region102: #{tpu_custom_call.1} parent=5 // pred_check_branch
        %664 = sbr.rel (%p662) target = $region104
      $region103: #{tpu_custom_call.1} parent=5 // pred_region
        // Predicated region
        $region105: #{tpu_custom_call.1} parent=103 // pred_check
          %p665 = pneg %p60
        $region106: #{tpu_custom_call.1} parent=103 // pred_check_branch
          %667 = sbr.rel (%p665) target = $region108
        $region107: #{tpu_custom_call.1} parent=103 // pred_region
          #allocation9 [shape = 'u32[6]{0}', space=smem, size = 0x18, scoped, tag = 'DMA stride descriptor']
          %s668 = sand.u32 %s50, 1
          %s669 = scalar_lea.sflag [#allocation5], %s668
          %s670 = sand.u32 %s50, 1
          %s671 = smul.addr %s670, 384
          %s672 = scalar_lea.vmem [#allocation4], %s671
          %s673 = smul.u32 8, %s40
          %s675 = ssub.s32 6144, 6144
          %676 = vsyncadd %s669, %s675
          %s677 = smul.addr %s673, 64
          %s678 = scalar_lea.hbm %s0, %s677
          %s680 = sshll.u32 1, 14
          %s681 = sxor.u32 4294967295, %s680
          %s683 = sld [smem:[#allocation0]]
          %s684 = sadd.s32 2, %s683
          %s686 = sshll.u32 7, 26
          %s687 = sxor.u32 4294967295, %s686
          %s688 = sand.u32 0, %s687
          %s689 = sshll.u32 %s684, 26
          %s690 = sor.u32 %s688, %s689
          %s691 = sshll.u32 %s672, 4
          %s692 = int_to_ptr.vmem [resolvable:$true] %s691
          %698 = sst [smem:[#allocation9]] 1024
          %s699 = scalar_lea.smem [#allocation9], 1
          %700 = sst [smem:[%s699]] 512
          %s701 = scalar_lea.smem [#allocation9], 2
          %702 = sst [smem:[%s701]] 8
          %s703 = scalar_lea.smem [#allocation9], 3
          %704 = sst [smem:[%s703]] 64
          %s705 = scalar_lea.smem [#allocation9], 4
          %706 = sst [smem:[%s705]] 64
          %s707 = scalar_lea.smem [#allocation9], 5
          %708 = sst [smem:[%s707]] 4
          %710 = dma.general %s678, 6144, %s692, %s669, 131072, [#allocation9], %s690, 0
        $region108: #{tpu_custom_call.1} parent=103 // pred_fallthru
          _
        // Predicated region
        $region109: #{tpu_custom_call.1} parent=103 // pred_check
          %p711 = pneg %p86
        $region110: #{tpu_custom_call.1} parent=103 // pred_check_branch
          %713 = sbr.rel (%p711) target = $region112
        $region111: #{tpu_custom_call.1} parent=103 // pred_region
          %p714 = scmp.lt.s32.totalorder %s40, 1
          %s715 = scalar_select %p714, %s40, 1
          %s716 = smul.addr %s715, 4
          %s717 = scalar_lea.vmem %s1, %s716
        $region112: #{tpu_custom_call.1} parent=103 // pred_fallthru
          _
      $region104: #{tpu_custom_call.1} parent=5 // pred_fallthru
        _
      %p718 = scmp.le.s32.totalorder 1, %s40
      %p719 = scmp.lt.s32.totalorder %s40, 3
      %p720 = pnand %p718, %p719
      %p721 = pneg %p720
      // Predicated region
      $region113: #{tpu_custom_call.1} parent=5 // pred_check
        _
      $region114: #{tpu_custom_call.1} parent=5 // pred_check_branch
        %723 = sbr.rel (%p720) target = $region116
      $region115: #{tpu_custom_call.1} parent=5 // pred_region
        %s724 = ssub.s32 %s40, 1
        %s725 = sand.u32 %s53, 1
        %s726 = scalar_lea.sflag [#allocation5], %s725
        %s727 = sand.u32 %s53, 1
        %s728 = smul.addr %s727, 384
        %s729 = scalar_lea.vmem [#allocation4], %s728
        // Predicated region
        $region117: #{tpu_custom_call.1} parent=115 // pred_check
          %p730 = pneg %p66
        $region118: #{tpu_custom_call.1} parent=115 // pred_check_branch
          %732 = sbr.rel (%p730) target = $region120
        $region119: #{tpu_custom_call.1} parent=115 // pred_region
          %733 = dma.done %s726, 6144
        $region120: #{tpu_custom_call.1} parent=115 // pred_fallthru
          _
        %s734 = sand.u32 %s53, 1
        %s735 = scalar_lea.sflag [#allocation5], %s734
        %s736 = sand.u32 %s53, 1
        %s737 = smul.addr %s736, 384
        %s738 = scalar_lea.vmem [#allocation4], %s737
        %p739 = pneg %p66
        %p740 = pneg %p63
        %p741 = scmp.lt.s32.totalorder %s45, 1
        %s742 = scalar_select %p741, %s45, 1
        %s743 = smul.addr %s742, 4
        %s744 = scalar_lea.vmem %s1, %s743
        %p745 = pneg %p92
        %p746 = pneg %p89
        %p747 = pneg %p113
        %p748 = pneg %p110
        %p749 = pneg %p134
        %p750 = pneg %p131
        %p751 = pneg %p155
        %p752 = pneg %p152
        %p753 = pneg %p176
        %p754 = pneg %p173
        %p755 = pneg %p197
        %p756 = pneg %p194
        %p757 = pneg %p218
        %p758 = pneg %p215
        %p759 = pneg %p239
        %p760 = pneg %p236
        %p761 = pneg %p260
        %p762 = pneg %p257
        %p763 = pneg %p281
        %p764 = pneg %p278
        %p765 = pneg %p302
        %p766 = pneg %p299
        %p767 = pneg %p323
        %p768 = pneg %p320
        %p769 = pneg %p344
        %p770 = pneg %p341
        %p771 = pneg %p365
        %p772 = pneg %p362
        %p773 = pneg %p386
        %p774 = pneg %p383
        %p775 = pneg %p407
        %p776 = pneg %p404
        %p777 = pneg %p428
        %p778 = pneg %p425
        %p779 = pneg %p449
        %p780 = pneg %p446
        %p781 = pneg %p470
        %p782 = pneg %p467
        %p783 = pneg %p491
        %p784 = pneg %p488
        %p785 = pneg %p512
        %p786 = pneg %p509
        %p787 = pneg %p533
        %p788 = pneg %p530
        %p789 = pneg %p554
        %p790 = pneg %p551
        %p791 = pneg %p580
        %p792 = pneg %p577
        %s793 = sand.u32 %s567, 1
        %s794 = scalar_lea.sflag [#allocation6], %s793
        %s795 = sand.u32 %s567, 1
        %s796 = scalar_lea.vmem [#allocation7], %s795
        %s797 = smul.u32 8, %s45
        %p798 = scmp.lt.s32.totalorder %s45, 1
        %s799 = scalar_select %p798, %s45, 1
        %s800 = smul.addr %s799, 4
        %s801 = scalar_lea.vmem %s1, %s800
        %v802 = vld [vmem:[%s729] sm:$0xf]
        %v803 = vld [vmem:[%s729 + $0x4] sm:$0xf]
        %v804 = vld [vmem:[%s729 + $0x8] sm:$0xf]
        %v805 = vld [vmem:[%s729 + $0xc] sm:$0xf]
        %v806 = vld [vmem:[%s729 + $0x10] sm:$0xf]
        %v807 = vld [vmem:[%s729 + $0x14] sm:$0xf]
        %v808 = vld [vmem:[%s729 + $0x18] sm:$0xf]
        %v809 = vld [vmem:[%s729 + $0x1c] sm:$0xf]
        %v810 = vld [vmem:[%s729 + $0x20] sm:$0xf]
        %v811 = vld [vmem:[%s729 + $0x24] sm:$0xf]
        %v812 = vld [vmem:[%s729 + $0x28] sm:$0xf]
        %v813 = vld [vmem:[%s729 + $0x2c] sm:$0xf]
        %v814 = vld [vmem:[%s729 + $0x30] sm:$0xf]
        %v815 = vld [vmem:[%s729 + $0x34] sm:$0xf]
        %v816 = vld [vmem:[%s729 + $0x38] sm:$0xf]
        %v817 = vld [vmem:[%s729 + $0x3c] sm:$0xf]
        %v818 = vld [vmem:[%s729 + $0x40] sm:$0xf]
        %v819 = vld [vmem:[%s729 + $0x44] sm:$0xf]
        %v820 = vld [vmem:[%s729 + $0x48] sm:$0xf]
        %v821 = vld [vmem:[%s729 + $0x4c] sm:$0xf]
        %v822 = vld [vmem:[%s729 + $0x50] sm:$0xf]
        %v823 = vld [vmem:[%s729 + $0x54] sm:$0xf]
        %v824 = vld [vmem:[%s729 + $0x58] sm:$0xf]
        %v825 = vld [vmem:[%s729 + $0x5c] sm:$0xf]
        %v826 = vld [vmem:[%s729 + $0x60] sm:$0xf]
        %v827 = vld [vmem:[%s729 + $0x64] sm:$0xf]
        %v828 = vld [vmem:[%s729 + $0x68] sm:$0xf]
        %v829 = vld [vmem:[%s729 + $0x6c] sm:$0xf]
        %v830 = vld [vmem:[%s729 + $0x70] sm:$0xf]
        %v831 = vld [vmem:[%s729 + $0x74] sm:$0xf]
        %v832 = vld [vmem:[%s729 + $0x78] sm:$0xf]
        %v833 = vld [vmem:[%s729 + $0x7c] sm:$0xf]
        %v834 = vld [vmem:[%s729 + $0x80] sm:$0xf]
        %v835 = vld [vmem:[%s729 + $0x84] sm:$0xf]
        %v836 = vld [vmem:[%s729 + $0x88] sm:$0xf]
        %v837 = vld [vmem:[%s729 + $0x8c] sm:$0xf]
        %v838 = vld [vmem:[%s729 + $0x90] sm:$0xf]
        %v839 = vld [vmem:[%s729 + $0x94] sm:$0xf]
        %v840 = vld [vmem:[%s729 + $0x98] sm:$0xf]
        %v841 = vld [vmem:[%s729 + $0x9c] sm:$0xf]
        %v842 = vld [vmem:[%s729 + $0xa0] sm:$0xf]
        %v843 = vld [vmem:[%s729 + $0xa4] sm:$0xf]
        %v844 = vld [vmem:[%s729 + $0xa8] sm:$0xf]
        %v845 = vld [vmem:[%s729 + $0xac] sm:$0xf]
        %v846 = vld [vmem:[%s729 + $0xb0] sm:$0xf]
        %v847 = vld [vmem:[%s729 + $0xb4] sm:$0xf]
        %v848 = vld [vmem:[%s729 + $0xb8] sm:$0xf]
        %v849 = vld [vmem:[%s729 + $0xbc] sm:$0xf]
        %v850 = vld [vmem:[%s729 + $0xc0] sm:$0xf]
        %v851 = vld [vmem:[%s729 + $0xc4] sm:$0xf]
        %v852 = vld [vmem:[%s729 + $0xc8] sm:$0xf]
        %v853 = vld [vmem:[%s729 + $0xcc] sm:$0xf]
        %v854 = vld [vmem:[%s729 + $0xd0] sm:$0xf]
        %v855 = vld [vmem:[%s729 + $0xd4] sm:$0xf]
        %v856 = vld [vmem:[%s729 + $0xd8] sm:$0xf]
        %v857 = vld [vmem:[%s729 + $0xdc] sm:$0xf]
        %v858 = vld [vmem:[%s729 + $0xe0] sm:$0xf]
        %v859 = vld [vmem:[%s729 + $0xe4] sm:$0xf]
        %v860 = vld [vmem:[%s729 + $0xe8] sm:$0xf]
        %v861 = vld [vmem:[%s729 + $0xec] sm:$0xf]
        %v862 = vld [vmem:[%s729 + $0xf0] sm:$0xf]
        %v863 = vld [vmem:[%s729 + $0xf4] sm:$0xf]
        %v864 = vld [vmem:[%s729 + $0xf8] sm:$0xf]
        %v865 = vld [vmem:[%s729 + $0xfc] sm:$0xf]
        %v866 = vld [vmem:[%s729 + $0x100] sm:$0xf]
        %v867 = vld [vmem:[%s729 + $0x104] sm:$0xf]
        %v868 = vld [vmem:[%s729 + $0x108] sm:$0xf]
        %v869 = vld [vmem:[%s729 + $0x10c] sm:$0xf]
        %v870 = vld [vmem:[%s729 + $0x110] sm:$0xf]
        %v871 = vld [vmem:[%s729 + $0x114] sm:$0xf]
        %v872 = vld [vmem:[%s729 + $0x118] sm:$0xf]
        %v873 = vld [vmem:[%s729 + $0x11c] sm:$0xf]
        %v874 = vld [vmem:[%s729 + $0x120] sm:$0xf]
        %v875 = vld [vmem:[%s729 + $0x124] sm:$0xf]
        %v876 = vld [vmem:[%s729 + $0x128] sm:$0xf]
        %v877 = vld [vmem:[%s729 + $0x12c] sm:$0xf]
        %v878 = vld [vmem:[%s729 + $0x130] sm:$0xf]
        %v879 = vld [vmem:[%s729 + $0x134] sm:$0xf]
        %v880 = vld [vmem:[%s729 + $0x138] sm:$0xf]
        %v881 = vld [vmem:[%s729 + $0x13c] sm:$0xf]
        %v882 = vld [vmem:[%s729 + $0x140] sm:$0xf]
        %v883 = vld [vmem:[%s729 + $0x144] sm:$0xf]
        %v884 = vld [vmem:[%s729 + $0x148] sm:$0xf]
        %v885 = vld [vmem:[%s729 + $0x14c] sm:$0xf]
        %v886 = vld [vmem:[%s729 + $0x150] sm:$0xf]
        %v887 = vld [vmem:[%s729 + $0x154] sm:$0xf]
        %v888 = vld [vmem:[%s729 + $0x158] sm:$0xf]
        %v889 = vld [vmem:[%s729 + $0x15c] sm:$0xf]
        %v890 = vld [vmem:[%s729 + $0x160] sm:$0xf]
        %v891 = vld [vmem:[%s729 + $0x164] sm:$0xf]
        %v892 = vld [vmem:[%s729 + $0x168] sm:$0xf]
        %v893 = vld [vmem:[%s729 + $0x16c] sm:$0xf]
        %v894 = vld [vmem:[%s729 + $0x170] sm:$0xf]
        %v895 = vld [vmem:[%s729 + $0x174] sm:$0xf]
        %v896 = vld [vmem:[%s729 + $0x178] sm:$0xf]
        %v897 = vld [vmem:[%s729 + $0x17c] sm:$0xf]
        %v898 = vunpack.c.l.bf16 %v802
        %v899 = vunpack.c.l.bf16 %v803
        %v900 = vunpack.c.l.bf16 %v804
        %v901 = vunpack.c.l.bf16 %v805
        %v902 = vunpack.c.l.bf16 %v806
        %v903 = vunpack.c.l.bf16 %v807
        %v904 = vunpack.c.l.bf16 %v808
        %v905 = vunpack.c.l.bf16 %v809
        %v906 = vunpack.c.l.bf16 %v810
        %v907 = vunpack.c.l.bf16 %v811
        %v908 = vunpack.c.l.bf16 %v812
        %v909 = vunpack.c.l.bf16 %v813
        %v910 = vunpack.c.l.bf16 %v814
        %v911 = vunpack.c.l.bf16 %v815
        %v912 = vunpack.c.l.bf16 %v816
        %v913 = vunpack.c.l.bf16 %v817
        %v914 = vunpack.c.l.bf16 %v818
        %v915 = vunpack.c.l.bf16 %v819
        %v916 = vunpack.c.l.bf16 %v820
        %v917 = vunpack.c.l.bf16 %v821
        %v918 = vunpack.c.l.bf16 %v822
        %v919 = vunpack.c.l.bf16 %v823
        %v920 = vunpack.c.l.bf16 %v824
        %v921 = vunpack.c.l.bf16 %v825
        %v922 = vunpack.c.l.bf16 %v826
        %v923 = vunpack.c.l.bf16 %v827
        %v924 = vunpack.c.l.bf16 %v828
        %v925 = vunpack.c.l.bf16 %v829
        %v926 = vunpack.c.l.bf16 %v830
        %v927 = vunpack.c.l.bf16 %v831
        %v928 = vunpack.c.l.bf16 %v832
        %v929 = vunpack.c.l.bf16 %v833
        %v930 = vunpack.c.l.bf16 %v834
        %v931 = vunpack.c.l.bf16 %v835
        %v932 = vunpack.c.l.bf16 %v836
        %v933 = vunpack.c.l.bf16 %v837
        %v934 = vunpack.c.l.bf16 %v838
        %v935 = vunpack.c.l.bf16 %v839
        %v936 = vunpack.c.l.bf16 %v840
        %v937 = vunpack.c.l.bf16 %v841
        %v938 = vunpack.c.l.bf16 %v842
        %v939 = vunpack.c.l.bf16 %v843
        %v940 = vunpack.c.l.bf16 %v844
        %v941 = vunpack.c.l.bf16 %v845
        %v942 = vunpack.c.l.bf16 %v846
        %v943 = vunpack.c.l.bf16 %v847
        %v944 = vunpack.c.l.bf16 %v848
        %v945 = vunpack.c.l.bf16 %v849
        %v946 = vunpack.c.l.bf16 %v850
        %v947 = vunpack.c.l.bf16 %v851
        %v948 = vunpack.c.l.bf16 %v852
        %v949 = vunpack.c.l.bf16 %v853
        %v950 = vunpack.c.l.bf16 %v854
        %v951 = vunpack.c.l.bf16 %v855
        %v952 = vunpack.c.l.bf16 %v856
        %v953 = vunpack.c.l.bf16 %v857
        %v954 = vunpack.c.l.bf16 %v858
        %v955 = vunpack.c.l.bf16 %v859
        %v956 = vunpack.c.l.bf16 %v860
        %v957 = vunpack.c.l.bf16 %v861
        %v958 = vunpack.c.l.bf16 %v862
        %v959 = vunpack.c.l.bf16 %v863
        %v960 = vunpack.c.l.bf16 %v864
        %v961 = vunpack.c.l.bf16 %v865
        %v962 = vunpack.c.l.bf16 %v866
        %v963 = vunpack.c.l.bf16 %v867
        %v964 = vunpack.c.l.bf16 %v868
        %v965 = vunpack.c.l.bf16 %v869
        %v966 = vunpack.c.l.bf16 %v870
        %v967 = vunpack.c.l.bf16 %v871
        %v968 = vunpack.c.l.bf16 %v872
        %v969 = vunpack.c.l.bf16 %v873
        %v970 = vunpack.c.l.bf16 %v874
        %v971 = vunpack.c.l.bf16 %v875
        %v972 = vunpack.c.l.bf16 %v876
        %v973 = vunpack.c.l.bf16 %v877
        %v974 = vunpack.c.l.bf16 %v878
        %v975 = vunpack.c.l.bf16 %v879
        %v976 = vunpack.c.l.bf16 %v880
        %v977 = vunpack.c.l.bf16 %v881
        %v978 = vunpack.c.l.bf16 %v882
        %v979 = vunpack.c.l.bf16 %v883
        %v980 = vunpack.c.l.bf16 %v884
        %v981 = vunpack.c.l.bf16 %v885
        %v982 = vunpack.c.l.bf16 %v886
        %v983 = vunpack.c.l.bf16 %v887
        %v984 = vunpack.c.l.bf16 %v888
        %v985 = vunpack.c.l.bf16 %v889
        %v986 = vunpack.c.l.bf16 %v890
        %v987 = vunpack.c.l.bf16 %v891
        %v988 = vunpack.c.l.bf16 %v892
        %v989 = vunpack.c.l.bf16 %v893
        %v990 = vunpack.c.l.bf16 %v894
        %v991 = vunpack.c.l.bf16 %v895
        %v992 = vunpack.c.l.bf16 %v896
        %v993 = vunpack.c.l.bf16 %v897
        %v994 = vld [vmem:[%s3] sm:$0x1]
        %v995 = vld [vmem:[%s4] sm:$0x1]
        %v996 = vld [vmem:[#allocation2] sm:$0x1]
        %v997 = vld [vmem:[%s7] sm:$0x1]
        %v998 = vld [vmem:[%s9] sm:$0x1]
        %v999 = vld [vmem:[%s10] sm:$0x1]
        %v1000 = vld [vmem:[#allocation3] sm:$0x1]
        %v1001 = vld [vmem:[%s17] sm:$0x1]
        %v1002 = vld [vmem:[%s19] sm:$0x1]
        %v1003 = vld [vmem:[%s21] sm:$0x1]
        %v1004 = vld [vmem:[%s23] sm:$0x1]
        %v1005 = vld [vmem:[%s13] sm:$0x1]
        %v1006 = vld [vmem:[%s15] sm:$0x1]
        %v1007 = vld [vmem:[%s2] sm:$0xff]
        %v1008 = vld [vmem:[%s2 + $0x8] sm:$0xff]
        %v1009 = vld [vmem:[%s2 + $0x10] sm:$0xff]
        %v1010 = vld [vmem:[%s2 + $0x18] sm:$0xff]
        %v1011 = vld [vmem:[%s2 + $0x20] sm:$0xff]
        %v1012 = vld [vmem:[%s2 + $0x28] sm:$0xff]
        %v1013 = vld [vmem:[%s2 + $0x30] sm:$0xff]
        %v1014 = vld [vmem:[%s2 + $0x38] sm:$0xff]
        %v1015 = vld [vmem:[%s6] sm:$0xff]
        %v1016 = vld [vmem:[%s6 + $0x8] sm:$0xff]
        %v1017 = vld [vmem:[%s6 + $0x10] sm:$0xff]
        %v1018 = vld [vmem:[%s6 + $0x18] sm:$0xff]
        %v1019 = vld [vmem:[%s6 + $0x20] sm:$0xff]
        %v1020 = vld [vmem:[%s6 + $0x28] sm:$0xff]
        %v1021 = vld [vmem:[%s6 + $0x30] sm:$0xff]
        %v1022 = vld [vmem:[%s6 + $0x38] sm:$0xff]
        %v1023 = vld [vmem:[%s6 + $0x40] sm:$0xff]
        %v1024 = vld [vmem:[%s6 + $0x48] sm:$0xff]
        %v1025 = vld [vmem:[%s6 + $0x50] sm:$0xff]
        %v1026 = vld [vmem:[%s6 + $0x58] sm:$0xff]
        %v1027 = vld [vmem:[%s6 + $0x60] sm:$0xff]
        %v1028 = vld [vmem:[%s6 + $0x68] sm:$0xff]
        %v1029 = vld [vmem:[%s6 + $0x70] sm:$0xff]
        %v1030 = vld [vmem:[%s6 + $0x78] sm:$0xff]
        %v1031 = vld [vmem:[%s6 + $0x80] sm:$0xff]
        %v1032 = vld [vmem:[%s6 + $0x88] sm:$0xff]
        %v1033 = vld [vmem:[%s6 + $0x90] sm:$0xff]
        %v1034 = vld [vmem:[%s6 + $0x98] sm:$0xff]
        %v1035 = vmul.f32 %v898, %v930
        %v1036 = vmul.f32 %v899, %v931
        %v1037 = vmul.f32 %v900, %v932
        %v1038 = vmul.f32 %v901, %v933
        %v1039 = vmul.f32 %v902, %v934
        %v1040 = vmul.f32 %v903, %v935
        %v1041 = vmul.f32 %v904, %v936
        %v1042 = vmul.f32 %v905, %v937
        %v1043 = vmul.f32 %v906, %v938
        %v1044 = vmul.f32 %v907, %v939
        %v1045 = vmul.f32 %v908, %v940
        %v1046 = vmul.f32 %v909, %v941
        %v1047 = vmul.f32 %v910, %v942
        %v1048 = vmul.f32 %v911, %v943
        %v1049 = vmul.f32 %v912, %v944
        %v1050 = vmul.f32 %v913, %v945
        %v1051 = vmul.f32 %v914, %v946
        %v1052 = vmul.f32 %v915, %v947
        %v1053 = vmul.f32 %v916, %v948
        %v1054 = vmul.f32 %v917, %v949
        %v1055 = vmul.f32 %v918, %v950
        %v1056 = vmul.f32 %v919, %v951
        %v1057 = vmul.f32 %v920, %v952
        %v1058 = vmul.f32 %v921, %v953
        %v1059 = vmul.f32 %v922, %v954
        %v1060 = vmul.f32 %v923, %v955
        %v1061 = vmul.f32 %v924, %v956
        %v1062 = vmul.f32 %v925, %v957
        %v1063 = vmul.f32 %v926, %v958
        %v1064 = vmul.f32 %v927, %v959
        %v1065 = vmul.f32 %v928, %v960
        %v1066 = vmul.f32 %v929, %v961
        %vm1067 = vcmask 261120
        %v1069 = vsel %vm1067, %v962, 0
        %v1072 = vsel %vm1067, %v963, 0
        %v1075 = vsel %vm1067, %v964, 0
        %v1078 = vsel %vm1067, %v965, 0
        %v1081 = vsel %vm1067, %v966, 0
        %v1084 = vsel %vm1067, %v967, 0
        %v1087 = vsel %vm1067, %v968, 0
        %v1090 = vsel %vm1067, %v969, 0
        %v1093 = vsel %vm1067, %v970, 0
        %v1096 = vsel %vm1067, %v971, 0
        %v1099 = vsel %vm1067, %v972, 0
        %v1102 = vsel %vm1067, %v973, 0
        %v1105 = vsel %vm1067, %v974, 0
        %v1108 = vsel %vm1067, %v975, 0
        %v1111 = vsel %vm1067, %v976, 0
        %v1114 = vsel %vm1067, %v977, 0
        %v1117 = vsel %vm1067, %v978, 0
        %v1120 = vsel %vm1067, %v979, 0
        %v1123 = vsel %vm1067, %v980, 0
        %v1126 = vsel %vm1067, %v981, 0
        %v1129 = vsel %vm1067, %v982, 0
        %v1132 = vsel %vm1067, %v983, 0
        %v1135 = vsel %vm1067, %v984, 0
        %v1138 = vsel %vm1067, %v985, 0
        %v1141 = vsel %vm1067, %v986, 0
        %v1144 = vsel %vm1067, %v987, 0
        %v1147 = vsel %vm1067, %v988, 0
        %v1150 = vsel %vm1067, %v989, 0
        %v1153 = vsel %vm1067, %v990, 0
        %v1156 = vsel %vm1067, %v991, 0
        %v1159 = vsel %vm1067, %v992, 0
        %v1162 = vsel %vm1067, %v993, 0
        %1164 = vmatprep.subr.mxu0 0.0
        %1165 = vmatpush1.msra.mxu0 0.0
        %1166 = vmatprep.subr.mxu0 0.0
        %1167 = vmatpush1.msra.mxu0 0.0
        %1168 = vmatprep.subr.mxu0 0.0
        %1169 = vmatpush1.msra.mxu0 0.0
        %1170 = vmatprep.subr.mxu0 0.0
        %1171 = vmatpush1.msra.mxu0 0.0
        %1172 = vmatprep.subr.mxu0 0.0
        %1173 = vmatpush1.msra.mxu0 0.0
        %1174 = vmatprep.subr.mxu0 0.0
        %1175 = vmatpush1.msra.mxu0 0.0
        %1176 = vmatprep.subr.mxu0 0.0
        %1177 = vmatpush1.msra.mxu0 0.0
        %1178 = vmatprep.subr.mxu0 0.0
        %1179 = vmatpush1.msra.mxu0 0.0
        %1180 = vmatprep.subr.mxu0 0.0
        %1181 = vmatpush1.msra.mxu0 0.0
        %1182 = vmatprep.subr.mxu0 0.0
        %1183 = vmatpush1.msra.mxu0 0.0
        %1184 = vmatprep.subr.mxu0 0.0
        %1185 = vmatpush1.msra.mxu0 0.0
        %1186 = vmatprep.subr.mxu0 0.0
        %1187 = vmatpush1.msra.mxu0 0.0
        %1188 = vmatprep.subr.mxu0 0.0
        %1189 = vmatpush1.msra.mxu0 %v1014
        %1190 = vmatprep.subr.mxu0 0.0
        %1191 = vmatpush1.msra.mxu0 %v1013
        %1192 = vmatprep.subr.mxu0 0.0
        %1193 = vmatpush1.msra.mxu0 %v1012
        %1194 = vmatprep.subr.mxu0 0.0
        %1195 = vmatpush1.msra.mxu0 %v1011
        %1196 = vmatprep.subr.mxu0 0.0
        %1197 = vmatpush2.msra.mxu0 0.0
        %1198 = vmatprep.subr.mxu0 0.0
        %1199 = vmatpush2.msra.mxu0 0.0
        %1200 = vmatprep.subr.mxu0 0.0
        %1201 = vmatpush2.msra.mxu0 0.0
        %1202 = vmatprep.subr.mxu0 0.0
        %1203 = vmatpush2.msra.mxu0 0.0
        %1204 = vmatprep.subr.mxu0 0.0
        %1205 = vmatpush2.msra.mxu0 0.0
        %1206 = vmatprep.subr.mxu0 0.0
        %1207 = vmatpush2.msra.mxu0 0.0
        %1208 = vmatprep.subr.mxu0 0.0
        %1209 = vmatpush2.msra.mxu0 0.0
        %1210 = vmatprep.subr.mxu0 0.0
        %1211 = vmatpush2.msra.mxu0 0.0
        %1212 = vmatprep.subr.mxu0 0.0
        %1213 = vmatpush2.msra.mxu0 0.0
        %1214 = vmatprep.subr.mxu0 0.0
        %1215 = vmatpush2.msra.mxu0 0.0
        %1216 = vmatprep.subr.mxu0 0.0
        %1217 = vmatpush2.msra.mxu0 0.0
        %1218 = vmatprep.subr.mxu0 0.0
        %1219 = vmatpush2.msra.mxu0 0.0
        %1220 = vmatprep.subr.mxu0 0.0
        %1221 = vmatpush2.msra.mxu0 0.0
        %1222 = vmatprep.subr.mxu0 0.0
        %1223 = vmatpush2.msra.mxu0 0.0
        %1224 = vmatprep.subr.mxu0 0.0
        %1225 = vmatpush2.msra.mxu0 0.0
        %1226 = vmatprep.subr.mxu0 0.0
        %1227 = vmatpush2.msra.mxu0 0.0
        %1228 = vmatprep.mubr.f32.mxu0 0.0
        %1229 = vmatmul.mubr.f32.gmra.mxu0 %v1069
        %v1230 = vpop.f32.mrf.mxu0
        %v1231 = vadd.f32 0.0, %v1230
        %v1232 = vpop.f32.mrf.mxu0
        %1233 = vmatprep.mubr.f32.mxu0 0.0
        %1234 = vmatmul.mubr.f32.gmra.mxu0 %v1072
        %v1235 = vpop.f32.mrf.mxu0
        %v1236 = vadd.f32 0.0, %v1235
        %v1237 = vpop.f32.mrf.mxu0
        %1238 = vmatprep.mubr.f32.mxu0 0.0
        %1239 = vmatmul.mubr.f32.gmra.mxu0 %v1075
        %v1240 = vpop.f32.mrf.mxu0
        %v1241 = vadd.f32 0.0, %v1240
        %v1242 = vpop.f32.mrf.mxu0
        %1243 = vmatprep.mubr.f32.mxu0 0.0
        %1244 = vmatmul.mubr.f32.gmra.mxu0 %v1078
        %v1245 = vpop.f32.mrf.mxu0
        %v1246 = vadd.f32 0.0, %v1245
        %v1247 = vpop.f32.mrf.mxu0
        %1248 = vmatprep.mubr.f32.mxu0 0.0
        %1249 = vmatmul.mubr.f32.gmra.mxu0 %v1081
        %v1250 = vpop.f32.mrf.mxu0
        %v1251 = vadd.f32 0.0, %v1250
        %v1252 = vpop.f32.mrf.mxu0
        %1253 = vmatprep.mubr.f32.mxu0 0.0
        %1254 = vmatmul.mubr.f32.gmra.mxu0 %v1084
        %v1255 = vpop.f32.mrf.mxu0
        %v1256 = vadd.f32 0.0, %v1255
        %v1257 = vpop.f32.mrf.mxu0
        %1258 = vmatprep.mubr.f32.mxu0 0.0
        %1259 = vmatmul.mubr.f32.gmra.mxu0 %v1087
        %v1260 = vpop.f32.mrf.mxu0
        %v1261 = vadd.f32 0.0, %v1260
        %v1262 = vpop.f32.mrf.mxu0
        %1263 = vmatprep.mubr.f32.mxu0 0.0
        %1264 = vmatmul.mubr.f32.gmra.mxu0 %v1090
        %v1265 = vpop.f32.mrf.mxu0
        %v1266 = vadd.f32 0.0, %v1265
        %v1267 = vpop.f32.mrf.mxu0
        %1268 = vmatprep.mubr.f32.mxu0 0.0
        %1269 = vmatmul.mubr.f32.gmra.mxu0 %v1093
        %v1270 = vpop.f32.mrf.mxu0
        %v1271 = vadd.f32 0.0, %v1270
        %v1272 = vpop.f32.mrf.mxu0
        %1273 = vmatprep.mubr.f32.mxu0 0.0
        %1274 = vmatmul.mubr.f32.gmra.mxu0 %v1096
        %v1275 = vpop.f32.mrf.mxu0
        %v1276 = vadd.f32 0.0, %v1275
        %v1277 = vpop.f32.mrf.mxu0
        %1278 = vmatprep.mubr.f32.mxu0 0.0
        %1279 = vmatmul.mubr.f32.gmra.mxu0 %v1099
        %v1280 = vpop.f32.mrf.mxu0
        %v1281 = vadd.f32 0.0, %v1280
        %v1282 = vpop.f32.mrf.mxu0
        %1283 = vmatprep.mubr.f32.mxu0 0.0
        %1284 = vmatmul.mubr.f32.gmra.mxu0 %v1102
        %v1285 = vpop.f32.mrf.mxu0
        %v1286 = vadd.f32 0.0, %v1285
        %v1287 = vpop.f32.mrf.mxu0
        %1288 = vmatprep.mubr.f32.mxu0 0.0
        %1289 = vmatmul.mubr.f32.gmra.mxu0 %v1105
        %v1290 = vpop.f32.mrf.mxu0
        %v1291 = vadd.f32 0.0, %v1290
        %v1292 = vpop.f32.mrf.mxu0
        %1293 = vmatprep.mubr.f32.mxu0 0.0
        %1294 = vmatmul.mubr.f32.gmra.mxu0 %v1108
        %v1295 = vpop.f32.mrf.mxu0
        %v1296 = vadd.f32 0.0, %v1295
        %v1297 = vpop.f32.mrf.mxu0
        %1298 = vmatprep.mubr.f32.mxu0 0.0
        %1299 = vmatmul.mubr.f32.gmra.mxu0 %v1111
        %v1300 = vpop.f32.mrf.mxu0
        %v1301 = vadd.f32 0.0, %v1300
        %v1302 = vpop.f32.mrf.mxu0
        %1303 = vmatprep.mubr.f32.mxu0 0.0
        %1304 = vmatmul.mubr.f32.gmra.mxu0 %v1114
        %v1305 = vpop.f32.mrf.mxu0
        %v1306 = vadd.f32 0.0, %v1305
        %v1307 = vpop.f32.mrf.mxu0
        %1308 = vmatprep.mubr.f32.mxu0 0.0
        %1309 = vmatmul.mubr.f32.gmra.mxu0 %v1117
        %v1310 = vpop.f32.mrf.mxu0
        %v1311 = vadd.f32 0.0, %v1310
        %v1312 = vpop.f32.mrf.mxu0
        %1313 = vmatprep.mubr.f32.mxu0 0.0
        %1314 = vmatmul.mubr.f32.gmra.mxu0 %v1120
        %v1315 = vpop.f32.mrf.mxu0
        %v1316 = vadd.f32 0.0, %v1315
        %v1317 = vpop.f32.mrf.mxu0
        %1318 = vmatprep.mubr.f32.mxu0 0.0
        %1319 = vmatmul.mubr.f32.gmra.mxu0 %v1123
        %v1320 = vpop.f32.mrf.mxu0
        %v1321 = vadd.f32 0.0, %v1320
        %v1322 = vpop.f32.mrf.mxu0
        %1323 = vmatprep.mubr.f32.mxu0 0.0
        %1324 = vmatmul.mubr.f32.gmra.mxu0 %v1126
        %v1325 = vpop.f32.mrf.mxu0
        %v1326 = vadd.f32 0.0, %v1325
        %v1327 = vpop.f32.mrf.mxu0
        %1328 = vmatprep.mubr.f32.mxu0 0.0
        %1329 = vmatmul.mubr.f32.gmra.mxu0 %v1129
        %v1330 = vpop.f32.mrf.mxu0
        %v1331 = vadd.f32 0.0, %v1330
        %v1332 = vpop.f32.mrf.mxu0
        %1333 = vmatprep.mubr.f32.mxu0 0.0
        %1334 = vmatmul.mubr.f32.gmra.mxu0 %v1132
        %v1335 = vpop.f32.mrf.mxu0
        %v1336 = vadd.f32 0.0, %v1335
        %v1337 = vpop.f32.mrf.mxu0
        %1338 = vmatprep.mubr.f32.mxu0 0.0
        %1339 = vmatmul.mubr.f32.gmra.mxu0 %v1135
        %v1340 = vpop.f32.mrf.mxu0
        %v1341 = vadd.f32 0.0, %v1340
        %v1342 = vpop.f32.mrf.mxu0
        %1343 = vmatprep.mubr.f32.mxu0 0.0
        %1344 = vmatmul.mubr.f32.gmra.mxu0 %v1138
        %v1345 = vpop.f32.mrf.mxu0
        %v1346 = vadd.f32 0.0, %v1345
        %v1347 = vpop.f32.mrf.mxu0
        %1348 = vmatprep.mubr.f32.mxu0 0.0
        %1349 = vmatmul.mubr.f32.gmra.mxu0 %v1141
        %v1350 = vpop.f32.mrf.mxu0
        %v1351 = vadd.f32 0.0, %v1350
        %v1352 = vpop.f32.mrf.mxu0
        %1353 = vmatprep.mubr.f32.mxu0 0.0
        %1354 = vmatmul.mubr.f32.gmra.mxu0 %v1144
        %v1355 = vpop.f32.mrf.mxu0
        %v1356 = vadd.f32 0.0, %v1355
        %v1357 = vpop.f32.mrf.mxu0
        %1358 = vmatprep.mubr.f32.mxu0 0.0
        %1359 = vmatmul.mubr.f32.gmra.mxu0 %v1147
        %v1360 = vpop.f32.mrf.mxu0
        %v1361 = vadd.f32 0.0, %v1360
        %v1362 = vpop.f32.mrf.mxu0
        %1363 = vmatprep.mubr.f32.mxu0 0.0
        %1364 = vmatmul.mubr.f32.gmra.mxu0 %v1150
        %v1365 = vpop.f32.mrf.mxu0
        %v1366 = vadd.f32 0.0, %v1365
        %v1367 = vpop.f32.mrf.mxu0
        %1368 = vmatprep.mubr.f32.mxu0 0.0
        %1369 = vmatmul.mubr.f32.gmra.mxu0 %v1153
        %v1370 = vpop.f32.mrf.mxu0
        %v1371 = vadd.f32 0.0, %v1370
        %v1372 = vpop.f32.mrf.mxu0
        %1373 = vmatprep.mubr.f32.mxu0 0.0
        %1374 = vmatmul.mubr.f32.gmra.mxu0 %v1156
        %v1375 = vpop.f32.mrf.mxu0
        %v1376 = vadd.f32 0.0, %v1375
        %v1377 = vpop.f32.mrf.mxu0
        %1378 = vmatprep.mubr.f32.mxu0 0.0
        %1379 = vmatmul.mubr.f32.gmra.mxu0 %v1159
        %v1380 = vpop.f32.mrf.mxu0
        %v1381 = vadd.f32 0.0, %v1380
        %v1382 = vpop.f32.mrf.mxu0
        %1383 = vmatprep.mubr.f32.mxu0 0.0
        %1384 = vmatmul.mubr.f32.gmra.mxu0 %v1162
        %v1385 = vpop.f32.mrf.mxu0
        %v1386 = vadd.f32 0.0, %v1385
        %v1387 = vpop.f32.mrf.mxu0
        %1388 = vdwg.mxu0
        %v1390 = vsel %vm1067, %v1035, 0
        %v1393 = vsel %vm1067, %v1036, 0
        %v1396 = vsel %vm1067, %v1037, 0
        %v1399 = vsel %vm1067, %v1038, 0
        %v1402 = vsel %vm1067, %v1039, 0
        %v1405 = vsel %vm1067, %v1040, 0
        %v1408 = vsel %vm1067, %v1041, 0
        %v1411 = vsel %vm1067, %v1042, 0
        %v1414 = vsel %vm1067, %v1043, 0
        %v1417 = vsel %vm1067, %v1044, 0
        %v1420 = vsel %vm1067, %v1045, 0
        %v1423 = vsel %vm1067, %v1046, 0
        %v1426 = vsel %vm1067, %v1047, 0
        %v1429 = vsel %vm1067, %v1048, 0
        %v1432 = vsel %vm1067, %v1049, 0
        %v1435 = vsel %vm1067, %v1050, 0
        %v1438 = vsel %vm1067, %v1051, 0
        %v1441 = vsel %vm1067, %v1052, 0
        %v1444 = vsel %vm1067, %v1053, 0
        %v1447 = vsel %vm1067, %v1054, 0
        %v1450 = vsel %vm1067, %v1055, 0
        %v1453 = vsel %vm1067, %v1056, 0
        %v1456 = vsel %vm1067, %v1057, 0
        %v1459 = vsel %vm1067, %v1058, 0
        %v1462 = vsel %vm1067, %v1059, 0
        %v1465 = vsel %vm1067, %v1060, 0
        %v1468 = vsel %vm1067, %v1061, 0
        %v1471 = vsel %vm1067, %v1062, 0
        %v1474 = vsel %vm1067, %v1063, 0
        %v1477 = vsel %vm1067, %v1064, 0
        %v1480 = vsel %vm1067, %v1065, 0
        %v1483 = vsel %vm1067, %v1066, 0
        %1485 = vmatprep.subr.mxu0 0.0
        %1486 = vmatpush1.msra.mxu0 0.0
        %1487 = vmatprep.subr.mxu0 0.0
        %1488 = vmatpush1.msra.mxu0 0.0
        %1489 = vmatprep.subr.mxu0 0.0
        %1490 = vmatpush1.msra.mxu0 0.0
        %1491 = vmatprep.subr.mxu0 0.0
        %1492 = vmatpush1.msra.mxu0 0.0
        %1493 = vmatprep.subr.mxu0 0.0
        %1494 = vmatpush1.msra.mxu0 0.0
        %1495 = vmatprep.subr.mxu0 0.0
        %1496 = vmatpush1.msra.mxu0 0.0
        %1497 = vmatprep.subr.mxu0 0.0
        %1498 = vmatpush1.msra.mxu0 0.0
        %1499 = vmatprep.subr.mxu0 0.0
        %1500 = vmatpush1.msra.mxu0 0.0
        %1501 = vmatprep.subr.mxu0 0.0
        %1502 = vmatpush1.msra.mxu0 0.0
        %1503 = vmatprep.subr.mxu0 0.0
        %1504 = vmatpush1.msra.mxu0 0.0
        %1505 = vmatprep.subr.mxu0 0.0
        %1506 = vmatpush1.msra.mxu0 0.0
        %1507 = vmatprep.subr.mxu0 0.0
        %1508 = vmatpush1.msra.mxu0 0.0
        %1509 = vmatprep.subr.mxu0 0.0
        %1510 = vmatpush1.msra.mxu0 %v1010
        %1511 = vmatprep.subr.mxu0 0.0
        %1512 = vmatpush1.msra.mxu0 %v1009
        %1513 = vmatprep.subr.mxu0 0.0
        %1514 = vmatpush1.msra.mxu0 %v1008
        %1515 = vmatprep.subr.mxu0 0.0
        %1516 = vmatpush1.msra.mxu0 %v1007
        %1517 = vmatprep.subr.mxu0 0.0
        %1518 = vmatpush2.msra.mxu0 0.0
        %1519 = vmatprep.subr.mxu0 0.0
        %1520 = vmatpush2.msra.mxu0 0.0
        %1521 = vmatprep.subr.mxu0 0.0
        %1522 = vmatpush2.msra.mxu0 0.0
        %1523 = vmatprep.subr.mxu0 0.0
        %1524 = vmatpush2.msra.mxu0 0.0
        %1525 = vmatprep.subr.mxu0 0.0
        %1526 = vmatpush2.msra.mxu0 0.0
        %1527 = vmatprep.subr.mxu0 0.0
        %1528 = vmatpush2.msra.mxu0 0.0
        %1529 = vmatprep.subr.mxu0 0.0
        %1530 = vmatpush2.msra.mxu0 0.0
        %1531 = vmatprep.subr.mxu0 0.0
        %1532 = vmatpush2.msra.mxu0 0.0
        %1533 = vmatprep.subr.mxu0 0.0
        %1534 = vmatpush2.msra.mxu0 0.0
        %1535 = vmatprep.subr.mxu0 0.0
        %1536 = vmatpush2.msra.mxu0 0.0
        %1537 = vmatprep.subr.mxu0 0.0
        %1538 = vmatpush2.msra.mxu0 0.0
        %1539 = vmatprep.subr.mxu0 0.0
        %1540 = vmatpush2.msra.mxu0 0.0
        %1541 = vmatprep.subr.mxu0 0.0
        %1542 = vmatpush2.msra.mxu0 0.0
        %1543 = vmatprep.subr.mxu0 0.0
        %1544 = vmatpush2.msra.mxu0 0.0
        %1545 = vmatprep.subr.mxu0 0.0
        %1546 = vmatpush2.msra.mxu0 0.0
        %1547 = vmatprep.subr.mxu0 0.0
        %1548 = vmatpush2.msra.mxu0 0.0
        %1549 = vmatprep.mubr.f32.mxu0 0.0
        %1550 = vmatmul.mubr.f32.gmra.mxu0 %v1390
        %v1551 = vpop.f32.mrf.mxu0
        %v1552 = vadd.f32 %v1231, %v1551
        %v1553 = vpop.f32.mrf.mxu0
        %1554 = vmatprep.mubr.f32.mxu0 0.0
        %1555 = vmatmul.mubr.f32.gmra.mxu0 %v1393
        %v1556 = vpop.f32.mrf.mxu0
        %v1557 = vadd.f32 %v1236, %v1556
        %v1558 = vpop.f32.mrf.mxu0
        %1559 = vmatprep.mubr.f32.mxu0 0.0
        %1560 = vmatmul.mubr.f32.gmra.mxu0 %v1396
        %v1561 = vpop.f32.mrf.mxu0
        %v1562 = vadd.f32 %v1241, %v1561
        %v1563 = vpop.f32.mrf.mxu0
        %1564 = vmatprep.mubr.f32.mxu0 0.0
        %1565 = vmatmul.mubr.f32.gmra.mxu0 %v1399
        %v1566 = vpop.f32.mrf.mxu0
        %v1567 = vadd.f32 %v1246, %v1566
        %v1568 = vpop.f32.mrf.mxu0
        %1569 = vmatprep.mubr.f32.mxu0 0.0
        %1570 = vmatmul.mubr.f32.gmra.mxu0 %v1402
        %v1571 = vpop.f32.mrf.mxu0
        %v1572 = vadd.f32 %v1251, %v1571
        %v1573 = vpop.f32.mrf.mxu0
        %1574 = vmatprep.mubr.f32.mxu0 0.0
        %1575 = vmatmul.mubr.f32.gmra.mxu0 %v1405
        %v1576 = vpop.f32.mrf.mxu0
        %v1577 = vadd.f32 %v1256, %v1576
        %v1578 = vpop.f32.mrf.mxu0
        %1579 = vmatprep.mubr.f32.mxu0 0.0
        %1580 = vmatmul.mubr.f32.gmra.mxu0 %v1408
        %v1581 = vpop.f32.mrf.mxu0
        %v1582 = vadd.f32 %v1261, %v1581
        %v1583 = vpop.f32.mrf.mxu0
        %1584 = vmatprep.mubr.f32.mxu0 0.0
        %1585 = vmatmul.mubr.f32.gmra.mxu0 %v1411
        %v1586 = vpop.f32.mrf.mxu0
        %v1587 = vadd.f32 %v1266, %v1586
        %v1588 = vpop.f32.mrf.mxu0
        %1589 = vmatprep.mubr.f32.mxu0 0.0
        %1590 = vmatmul.mubr.f32.gmra.mxu0 %v1414
        %v1591 = vpop.f32.mrf.mxu0
        %v1592 = vadd.f32 %v1271, %v1591
        %v1593 = vpop.f32.mrf.mxu0
        %1594 = vmatprep.mubr.f32.mxu0 0.0
        %1595 = vmatmul.mubr.f32.gmra.mxu0 %v1417
        %v1596 = vpop.f32.mrf.mxu0
        %v1597 = vadd.f32 %v1276, %v1596
        %v1598 = vpop.f32.mrf.mxu0
        %1599 = vmatprep.mubr.f32.mxu0 0.0
        %1600 = vmatmul.mubr.f32.gmra.mxu0 %v1420
        %v1601 = vpop.f32.mrf.mxu0
        %v1602 = vadd.f32 %v1281, %v1601
        %v1603 = vpop.f32.mrf.mxu0
        %1604 = vmatprep.mubr.f32.mxu0 0.0
        %1605 = vmatmul.mubr.f32.gmra.mxu0 %v1423
        %v1606 = vpop.f32.mrf.mxu0
        %v1607 = vadd.f32 %v1286, %v1606
        %v1608 = vpop.f32.mrf.mxu0
        %1609 = vmatprep.mubr.f32.mxu0 0.0
        %1610 = vmatmul.mubr.f32.gmra.mxu0 %v1426
        %v1611 = vpop.f32.mrf.mxu0
        %v1612 = vadd.f32 %v1291, %v1611
        %v1613 = vpop.f32.mrf.mxu0
        %1614 = vmatprep.mubr.f32.mxu0 0.0
        %1615 = vmatmul.mubr.f32.gmra.mxu0 %v1429
        %v1616 = vpop.f32.mrf.mxu0
        %v1617 = vadd.f32 %v1296, %v1616
        %v1618 = vpop.f32.mrf.mxu0
        %1619 = vmatprep.mubr.f32.mxu0 0.0
        %1620 = vmatmul.mubr.f32.gmra.mxu0 %v1432
        %v1621 = vpop.f32.mrf.mxu0
        %v1622 = vadd.f32 %v1301, %v1621
        %v1623 = vpop.f32.mrf.mxu0
        %1624 = vmatprep.mubr.f32.mxu0 0.0
        %1625 = vmatmul.mubr.f32.gmra.mxu0 %v1435
        %v1626 = vpop.f32.mrf.mxu0
        %v1627 = vadd.f32 %v1306, %v1626
        %v1628 = vpop.f32.mrf.mxu0
        %1629 = vmatprep.mubr.f32.mxu0 0.0
        %1630 = vmatmul.mubr.f32.gmra.mxu0 %v1438
        %v1631 = vpop.f32.mrf.mxu0
        %v1632 = vadd.f32 %v1311, %v1631
        %v1633 = vpop.f32.mrf.mxu0
        %1634 = vmatprep.mubr.f32.mxu0 0.0
        %1635 = vmatmul.mubr.f32.gmra.mxu0 %v1441
        %v1636 = vpop.f32.mrf.mxu0
        %v1637 = vadd.f32 %v1316, %v1636
        %v1638 = vpop.f32.mrf.mxu0
        %1639 = vmatprep.mubr.f32.mxu0 0.0
        %1640 = vmatmul.mubr.f32.gmra.mxu0 %v1444
        %v1641 = vpop.f32.mrf.mxu0
        %v1642 = vadd.f32 %v1321, %v1641
        %v1643 = vpop.f32.mrf.mxu0
        %1644 = vmatprep.mubr.f32.mxu0 0.0
        %1645 = vmatmul.mubr.f32.gmra.mxu0 %v1447
        %v1646 = vpop.f32.mrf.mxu0
        %v1647 = vadd.f32 %v1326, %v1646
        %v1648 = vpop.f32.mrf.mxu0
        %1649 = vmatprep.mubr.f32.mxu0 0.0
        %1650 = vmatmul.mubr.f32.gmra.mxu0 %v1450
        %v1651 = vpop.f32.mrf.mxu0
        %v1652 = vadd.f32 %v1331, %v1651
        %v1653 = vpop.f32.mrf.mxu0
        %1654 = vmatprep.mubr.f32.mxu0 0.0
        %1655 = vmatmul.mubr.f32.gmra.mxu0 %v1453
        %v1656 = vpop.f32.mrf.mxu0
        %v1657 = vadd.f32 %v1336, %v1656
        %v1658 = vpop.f32.mrf.mxu0
        %1659 = vmatprep.mubr.f32.mxu0 0.0
        %1660 = vmatmul.mubr.f32.gmra.mxu0 %v1456
        %v1661 = vpop.f32.mrf.mxu0
        %v1662 = vadd.f32 %v1341, %v1661
        %v1663 = vpop.f32.mrf.mxu0
        %1664 = vmatprep.mubr.f32.mxu0 0.0
        %1665 = vmatmul.mubr.f32.gmra.mxu0 %v1459
        %v1666 = vpop.f32.mrf.mxu0
        %v1667 = vadd.f32 %v1346, %v1666
        %v1668 = vpop.f32.mrf.mxu0
        %1669 = vmatprep.mubr.f32.mxu0 0.0
        %1670 = vmatmul.mubr.f32.gmra.mxu0 %v1462
        %v1671 = vpop.f32.mrf.mxu0
        %v1672 = vadd.f32 %v1351, %v1671
        %v1673 = vpop.f32.mrf.mxu0
        %1674 = vmatprep.mubr.f32.mxu0 0.0
        %1675 = vmatmul.mubr.f32.gmra.mxu0 %v1465
        %v1676 = vpop.f32.mrf.mxu0
        %v1677 = vadd.f32 %v1356, %v1676
        %v1678 = vpop.f32.mrf.mxu0
        %1679 = vmatprep.mubr.f32.mxu0 0.0
        %1680 = vmatmul.mubr.f32.gmra.mxu0 %v1468
        %v1681 = vpop.f32.mrf.mxu0
        %v1682 = vadd.f32 %v1361, %v1681
        %v1683 = vpop.f32.mrf.mxu0
        %1684 = vmatprep.mubr.f32.mxu0 0.0
        %1685 = vmatmul.mubr.f32.gmra.mxu0 %v1471
        %v1686 = vpop.f32.mrf.mxu0
        %v1687 = vadd.f32 %v1366, %v1686
        %v1688 = vpop.f32.mrf.mxu0
        %1689 = vmatprep.mubr.f32.mxu0 0.0
        %1690 = vmatmul.mubr.f32.gmra.mxu0 %v1474
        %v1691 = vpop.f32.mrf.mxu0
        %v1692 = vadd.f32 %v1371, %v1691
        %v1693 = vpop.f32.mrf.mxu0
        %1694 = vmatprep.mubr.f32.mxu0 0.0
        %1695 = vmatmul.mubr.f32.gmra.mxu0 %v1477
        %v1696 = vpop.f32.mrf.mxu0
        %v1697 = vadd.f32 %v1376, %v1696
        %v1698 = vpop.f32.mrf.mxu0
        %1699 = vmatprep.mubr.f32.mxu0 0.0
        %1700 = vmatmul.mubr.f32.gmra.mxu0 %v1480
        %v1701 = vpop.f32.mrf.mxu0
        %v1702 = vadd.f32 %v1381, %v1701
        %v1703 = vpop.f32.mrf.mxu0
        %1704 = vmatprep.mubr.f32.mxu0 0.0
        %1705 = vmatmul.mubr.f32.gmra.mxu0 %v1483
        %v1706 = vpop.f32.mrf.mxu0
        %v1707 = vadd.f32 %v1386, %v1706
        %v1708 = vpop.f32.mrf.mxu0
        %1709 = vdwg.mxu0
        %v1711 = vlaneseq
        %v1712 = vshrl.u32 %v1711, 7
        %v1713 = vsub.s32 0, %v1712
        %v1714 = vrot.slane %v994, %v1713
        %v1716 = vadd.f32 %v1552, %v1714
        %v1717 = vadd.f32 %v1557, %v1714
        %v1718 = vadd.f32 %v1562, %v1714
        %v1719 = vadd.f32 %v1567, %v1714
        %v1720 = vadd.f32 %v1572, %v1714
        %v1721 = vadd.f32 %v1577, %v1714
        %v1722 = vadd.f32 %v1582, %v1714
        %v1723 = vadd.f32 %v1587, %v1714
        %v1724 = vadd.f32 %v1592, %v1714
        %v1725 = vadd.f32 %v1597, %v1714
        %v1726 = vadd.f32 %v1602, %v1714
        %v1727 = vadd.f32 %v1607, %v1714
        %v1728 = vadd.f32 %v1612, %v1714
        %v1729 = vadd.f32 %v1617, %v1714
        %v1730 = vadd.f32 %v1622, %v1714
        %v1731 = vadd.f32 %v1627, %v1714
        %v1732 = vadd.f32 %v1632, %v1714
        %v1733 = vadd.f32 %v1637, %v1714
        %v1734 = vadd.f32 %v1642, %v1714
        %v1735 = vadd.f32 %v1647, %v1714
        %v1736 = vadd.f32 %v1652, %v1714
        %v1737 = vadd.f32 %v1657, %v1714
        %v1738 = vadd.f32 %v1662, %v1714
        %v1739 = vadd.f32 %v1667, %v1714
        %v1740 = vadd.f32 %v1672, %v1714
        %v1741 = vadd.f32 %v1677, %v1714
        %v1742 = vadd.f32 %v1682, %v1714
        %v1743 = vadd.f32 %v1687, %v1714
        %v1744 = vadd.f32 %v1692, %v1714
        %v1745 = vadd.f32 %v1697, %v1714
        %v1746 = vadd.f32 %v1702, %v1714
        %v1747 = vadd.f32 %v1707, %v1714
        %vm1748 = vcmp.gt.f32.partialorder %v1716, 0.0
        %vm1749 = vcmp.gt.f32.partialorder %v1717, 0.0
        %vm1750 = vcmp.gt.f32.partialorder %v1718, 0.0
        %vm1751 = vcmp.gt.f32.partialorder %v1719, 0.0
        %vm1752 = vcmp.gt.f32.partialorder %v1720, 0.0
        %vm1753 = vcmp.gt.f32.partialorder %v1721, 0.0
        %vm1754 = vcmp.gt.f32.partialorder %v1722, 0.0
        %vm1755 = vcmp.gt.f32.partialorder %v1723, 0.0
        %vm1756 = vcmp.gt.f32.partialorder %v1724, 0.0
        %vm1757 = vcmp.gt.f32.partialorder %v1725, 0.0
        %vm1758 = vcmp.gt.f32.partialorder %v1726, 0.0
        %vm1759 = vcmp.gt.f32.partialorder %v1727, 0.0
        %vm1760 = vcmp.gt.f32.partialorder %v1728, 0.0
        %vm1761 = vcmp.gt.f32.partialorder %v1729, 0.0
        %vm1762 = vcmp.gt.f32.partialorder %v1730, 0.0
        %vm1763 = vcmp.gt.f32.partialorder %v1731, 0.0
        %vm1764 = vcmp.gt.f32.partialorder %v1732, 0.0
        %vm1765 = vcmp.gt.f32.partialorder %v1733, 0.0
        %vm1766 = vcmp.gt.f32.partialorder %v1734, 0.0
        %vm1767 = vcmp.gt.f32.partialorder %v1735, 0.0
        %vm1768 = vcmp.gt.f32.partialorder %v1736, 0.0
        %vm1769 = vcmp.gt.f32.partialorder %v1737, 0.0
        %vm1770 = vcmp.gt.f32.partialorder %v1738, 0.0
        %vm1771 = vcmp.gt.f32.partialorder %v1739, 0.0
        %vm1772 = vcmp.gt.f32.partialorder %v1740, 0.0
        %vm1773 = vcmp.gt.f32.partialorder %v1741, 0.0
        %vm1774 = vcmp.gt.f32.partialorder %v1742, 0.0
        %vm1775 = vcmp.gt.f32.partialorder %v1743, 0.0
        %vm1776 = vcmp.gt.f32.partialorder %v1744, 0.0
        %vm1777 = vcmp.gt.f32.partialorder %v1745, 0.0
        %vm1778 = vcmp.gt.f32.partialorder %v1746, 0.0
        %vm1779 = vcmp.gt.f32.partialorder %v1747, 0.0
        %v1780 = vmul.f32 %v1716, 0.01
        %v1781 = vmul.f32 %v1717, 0.01
        %v1782 = vmul.f32 %v1718, 0.01
        %v1783 = vmul.f32 %v1719, 0.01
        %v1784 = vmul.f32 %v1720, 0.01
        %v1785 = vmul.f32 %v1721, 0.01
        %v1786 = vmul.f32 %v1722, 0.01
        %v1787 = vmul.f32 %v1723, 0.01
        %v1788 = vmul.f32 %v1724, 0.01
        %v1789 = vmul.f32 %v1725, 0.01
        %v1790 = vmul.f32 %v1726, 0.01
        %v1791 = vmul.f32 %v1727, 0.01
        %v1792 = vmul.f32 %v1728, 0.01
        %v1793 = vmul.f32 %v1729, 0.01
        %v1794 = vmul.f32 %v1730, 0.01
        %v1795 = vmul.f32 %v1731, 0.01
        %v1796 = vmul.f32 %v1732, 0.01
        %v1797 = vmul.f32 %v1733, 0.01
        %v1798 = vmul.f32 %v1734, 0.01
        %v1799 = vmul.f32 %v1735, 0.01
        %v1800 = vmul.f32 %v1736, 0.01
        %v1801 = vmul.f32 %v1737, 0.01
        %v1802 = vmul.f32 %v1738, 0.01
        %v1803 = vmul.f32 %v1739, 0.01
        %v1804 = vmul.f32 %v1740, 0.01
        %v1805 = vmul.f32 %v1741, 0.01
        %v1806 = vmul.f32 %v1742, 0.01
        %v1807 = vmul.f32 %v1743, 0.01
        %v1808 = vmul.f32 %v1744, 0.01
        %v1809 = vmul.f32 %v1745, 0.01
        %v1810 = vmul.f32 %v1746, 0.01
        %v1811 = vmul.f32 %v1747, 0.01
        %v1812 = vsel %vm1748, %v1716, %v1780
        %v1813 = vsel %vm1749, %v1717, %v1781
        %v1814 = vsel %vm1750, %v1718, %v1782
        %v1815 = vsel %vm1751, %v1719, %v1783
        %v1816 = vsel %vm1752, %v1720, %v1784
        %v1817 = vsel %vm1753, %v1721, %v1785
        %v1818 = vsel %vm1754, %v1722, %v1786
        %v1819 = vsel %vm1755, %v1723, %v1787
        %v1820 = vsel %vm1756, %v1724, %v1788
        %v1821 = vsel %vm1757, %v1725, %v1789
        %v1822 = vsel %vm1758, %v1726, %v1790
        %v1823 = vsel %vm1759, %v1727, %v1791
        %v1824 = vsel %vm1760, %v1728, %v1792
        %v1825 = vsel %vm1761, %v1729, %v1793
        %v1826 = vsel %vm1762, %v1730, %v1794
        %v1827 = vsel %vm1763, %v1731, %v1795
        %v1828 = vsel %vm1764, %v1732, %v1796
        %v1829 = vsel %vm1765, %v1733, %v1797
        %v1830 = vsel %vm1766, %v1734, %v1798
        %v1831 = vsel %vm1767, %v1735, %v1799
        %v1832 = vsel %vm1768, %v1736, %v1800
        %v1833 = vsel %vm1769, %v1737, %v1801
        %v1834 = vsel %vm1770, %v1738, %v1802
        %v1835 = vsel %vm1771, %v1739, %v1803
        %v1836 = vsel %vm1772, %v1740, %v1804
        %v1837 = vsel %vm1773, %v1741, %v1805
        %v1838 = vsel %vm1774, %v1742, %v1806
        %v1839 = vsel %vm1775, %v1743, %v1807
        %v1840 = vsel %vm1776, %v1744, %v1808
        %v1841 = vsel %vm1777, %v1745, %v1809
        %v1842 = vsel %vm1778, %v1746, %v1810
        %v1843 = vsel %vm1779, %v1747, %v1811
        %v1845 = vlaneseq
        %v1846 = vshrl.u32 %v1845, 7
        %v1847 = vsub.s32 0, %v1846
        %v1848 = vrot.slane %v995, %v1847
        %v1850 = vmul.f32 %v1812, %v1848
        %v1851 = vmul.f32 %v1813, %v1848
        %v1852 = vmul.f32 %v1814, %v1848
        %v1853 = vmul.f32 %v1815, %v1848
        %v1854 = vmul.f32 %v1816, %v1848
        %v1855 = vmul.f32 %v1817, %v1848
        %v1856 = vmul.f32 %v1818, %v1848
        %v1857 = vmul.f32 %v1819, %v1848
        %v1858 = vmul.f32 %v1820, %v1848
        %v1859 = vmul.f32 %v1821, %v1848
        %v1860 = vmul.f32 %v1822, %v1848
        %v1861 = vmul.f32 %v1823, %v1848
        %v1862 = vmul.f32 %v1824, %v1848
        %v1863 = vmul.f32 %v1825, %v1848
        %v1864 = vmul.f32 %v1826, %v1848
        %v1865 = vmul.f32 %v1827, %v1848
        %v1866 = vmul.f32 %v1828, %v1848
        %v1867 = vmul.f32 %v1829, %v1848
        %v1868 = vmul.f32 %v1830, %v1848
        %v1869 = vmul.f32 %v1831, %v1848
        %v1870 = vmul.f32 %v1832, %v1848
        %v1871 = vmul.f32 %v1833, %v1848
        %v1872 = vmul.f32 %v1834, %v1848
        %v1873 = vmul.f32 %v1835, %v1848
        %v1874 = vmul.f32 %v1836, %v1848
        %v1875 = vmul.f32 %v1837, %v1848
        %v1876 = vmul.f32 %v1838, %v1848
        %v1877 = vmul.f32 %v1839, %v1848
        %v1878 = vmul.f32 %v1840, %v1848
        %v1879 = vmul.f32 %v1841, %v1848
        %v1880 = vmul.f32 %v1842, %v1848
        %v1881 = vmul.f32 %v1843, %v1848
        %v1882 = vsel %vm1067, %v1850, 0.0
        %1883 = vadd.xlane.f32.xlu0 %v1882
        %v1884 = vpop.xlane.xlu0 %1883
        %v1885 = vsel %vm1067, %v1851, 0.0
        %1886 = vadd.xlane.f32.xlu0 %v1885
        %v1887 = vpop.xlane.xlu0 %1886
        %v1888 = vsel %vm1067, %v1852, 0.0
        %1889 = vadd.xlane.f32.xlu0 %v1888
        %v1890 = vpop.xlane.xlu0 %1889
        %v1891 = vsel %vm1067, %v1853, 0.0
        %1892 = vadd.xlane.f32.xlu0 %v1891
        %v1893 = vpop.xlane.xlu0 %1892
        %v1894 = vsel %vm1067, %v1854, 0.0
        %1895 = vadd.xlane.f32.xlu0 %v1894
        %v1896 = vpop.xlane.xlu0 %1895
        %v1897 = vsel %vm1067, %v1855, 0.0
        %1898 = vadd.xlane.f32.xlu0 %v1897
        %v1899 = vpop.xlane.xlu0 %1898
        %v1900 = vsel %vm1067, %v1856, 0.0
        %1901 = vadd.xlane.f32.xlu0 %v1900
        %v1902 = vpop.xlane.xlu0 %1901
        %v1903 = vsel %vm1067, %v1857, 0.0
        %1904 = vadd.xlane.f32.xlu0 %v1903
        %v1905 = vpop.xlane.xlu0 %1904
        %v1906 = vsel %vm1067, %v1858, 0.0
        %1907 = vadd.xlane.f32.xlu0 %v1906
        %v1908 = vpop.xlane.xlu0 %1907
        %v1909 = vsel %vm1067, %v1859, 0.0
        %1910 = vadd.xlane.f32.xlu0 %v1909
        %v1911 = vpop.xlane.xlu0 %1910
        %v1912 = vsel %vm1067, %v1860, 0.0
        %1913 = vadd.xlane.f32.xlu0 %v1912
        %v1914 = vpop.xlane.xlu0 %1913
        %v1915 = vsel %vm1067, %v1861, 0.0
        %1916 = vadd.xlane.f32.xlu0 %v1915
        %v1917 = vpop.xlane.xlu0 %1916
        %v1918 = vsel %vm1067, %v1862, 0.0
        %1919 = vadd.xlane.f32.xlu0 %v1918
        %v1920 = vpop.xlane.xlu0 %1919
        %v1921 = vsel %vm1067, %v1863, 0.0
        %1922 = vadd.xlane.f32.xlu0 %v1921
        %v1923 = vpop.xlane.xlu0 %1922
        %v1924 = vsel %vm1067, %v1864, 0.0
        %1925 = vadd.xlane.f32.xlu0 %v1924
        %v1926 = vpop.xlane.xlu0 %1925
        %v1927 = vsel %vm1067, %v1865, 0.0
        %1928 = vadd.xlane.f32.xlu0 %v1927
        %v1929 = vpop.xlane.xlu0 %1928
        %v1930 = vsel %vm1067, %v1866, 0.0
        %1931 = vadd.xlane.f32.xlu0 %v1930
        %v1932 = vpop.xlane.xlu0 %1931
        %v1933 = vsel %vm1067, %v1867, 0.0
        %1934 = vadd.xlane.f32.xlu0 %v1933
        %v1935 = vpop.xlane.xlu0 %1934
        %v1936 = vsel %vm1067, %v1868, 0.0
        %1937 = vadd.xlane.f32.xlu0 %v1936
        %v1938 = vpop.xlane.xlu0 %1937
        %v1939 = vsel %vm1067, %v1869, 0.0
        %1940 = vadd.xlane.f32.xlu0 %v1939
        %v1941 = vpop.xlane.xlu0 %1940
        %v1942 = vsel %vm1067, %v1870, 0.0
        %1943 = vadd.xlane.f32.xlu0 %v1942
        %v1944 = vpop.xlane.xlu0 %1943
        %v1945 = vsel %vm1067, %v1871, 0.0
        %1946 = vadd.xlane.f32.xlu0 %v1945
        %v1947 = vpop.xlane.xlu0 %1946
        %v1948 = vsel %vm1067, %v1872, 0.0
        %1949 = vadd.xlane.f32.xlu0 %v1948
        %v1950 = vpop.xlane.xlu0 %1949
        %v1951 = vsel %vm1067, %v1873, 0.0
        %1952 = vadd.xlane.f32.xlu0 %v1951
        %v1953 = vpop.xlane.xlu0 %1952
        %v1954 = vsel %vm1067, %v1874, 0.0
        %1955 = vadd.xlane.f32.xlu0 %v1954
        %v1956 = vpop.xlane.xlu0 %1955
        %v1957 = vsel %vm1067, %v1875, 0.0
        %1958 = vadd.xlane.f32.xlu0 %v1957
        %v1959 = vpop.xlane.xlu0 %1958
        %v1960 = vsel %vm1067, %v1876, 0.0
        %1961 = vadd.xlane.f32.xlu0 %v1960
        %v1962 = vpop.xlane.xlu0 %1961
        %v1963 = vsel %vm1067, %v1877, 0.0
        %1964 = vadd.xlane.f32.xlu0 %v1963
        %v1965 = vpop.xlane.xlu0 %1964
        %v1966 = vsel %vm1067, %v1878, 0.0
        %1967 = vadd.xlane.f32.xlu0 %v1966
        %v1968 = vpop.xlane.xlu0 %1967
        %v1969 = vsel %vm1067, %v1879, 0.0
        %1970 = vadd.xlane.f32.xlu0 %v1969
        %v1971 = vpop.xlane.xlu0 %1970
        %v1972 = vsel %vm1067, %v1880, 0.0
        %1973 = vadd.xlane.f32.xlu0 %v1972
        %v1974 = vpop.xlane.xlu0 %1973
        %v1975 = vsel %vm1067, %v1881, 0.0
        %1976 = vadd.xlane.f32.xlu0 %v1975
        %v1977 = vpop.xlane.xlu0 %1976
        %v1979 = vlaneseq
        %v1980 = vshrl.u32 %v1979, 7
        %v1981 = vsub.s32 0, %v1980
        %v1982 = vrot.slane %v996, %v1981
        %1983 = vset.pattern.permute.xlu0 0
        %1984 = vperm.xlu0 %1983, %v1982
        %v1985 = vpop.permute.xlu0 %1984
        %v1987 = vadd.f32 %v1884, %v1985
        %v1988 = vadd.f32 %v1887, %v1985
        %v1989 = vadd.f32 %v1890, %v1985
        %v1990 = vadd.f32 %v1893, %v1985
        %v1991 = vadd.f32 %v1896, %v1985
        %v1992 = vadd.f32 %v1899, %v1985
        %v1993 = vadd.f32 %v1902, %v1985
        %v1994 = vadd.f32 %v1905, %v1985
        %v1995 = vadd.f32 %v1908, %v1985
        %v1996 = vadd.f32 %v1911, %v1985
        %v1997 = vadd.f32 %v1914, %v1985
        %v1998 = vadd.f32 %v1917, %v1985
        %v1999 = vadd.f32 %v1920, %v1985
        %v2000 = vadd.f32 %v1923, %v1985
        %v2001 = vadd.f32 %v1926, %v1985
        %v2002 = vadd.f32 %v1929, %v1985
        %v2003 = vadd.f32 %v1932, %v1985
        %v2004 = vadd.f32 %v1935, %v1985
        %v2005 = vadd.f32 %v1938, %v1985
        %v2006 = vadd.f32 %v1941, %v1985
        %v2007 = vadd.f32 %v1944, %v1985
        %v2008 = vadd.f32 %v1947, %v1985
        %v2009 = vadd.f32 %v1950, %v1985
        %v2010 = vadd.f32 %v1953, %v1985
        %v2011 = vadd.f32 %v1956, %v1985
        %v2012 = vadd.f32 %v1959, %v1985
        %v2013 = vadd.f32 %v1962, %v1985
        %v2014 = vadd.f32 %v1965, %v1985
        %v2015 = vadd.f32 %v1968, %v1985
        %v2016 = vadd.f32 %v1971, %v1985
        %v2017 = vadd.f32 %v1974, %v1985
        %v2018 = vadd.f32 %v1977, %v1985
        %v2019 = vmul.f32 %v1987, 0.5
        %v2020 = vmul.f32 %v1988, 0.5
        %v2021 = vmul.f32 %v1989, 0.5
        %v2022 = vmul.f32 %v1990, 0.5
        %v2023 = vmul.f32 %v1991, 0.5
        %v2024 = vmul.f32 %v1992, 0.5
        %v2025 = vmul.f32 %v1993, 0.5
        %v2026 = vmul.f32 %v1994, 0.5
        %v2027 = vmul.f32 %v1995, 0.5
        %v2028 = vmul.f32 %v1996, 0.5
        %v2029 = vmul.f32 %v1997, 0.5
        %v2030 = vmul.f32 %v1998, 0.5
        %v2031 = vmul.f32 %v1999, 0.5
        %v2032 = vmul.f32 %v2000, 0.5
        %v2033 = vmul.f32 %v2001, 0.5
        %v2034 = vmul.f32 %v2002, 0.5
        %v2035 = vmul.f32 %v2003, 0.5
        %v2036 = vmul.f32 %v2004, 0.5
        %v2037 = vmul.f32 %v2005, 0.5
        %v2038 = vmul.f32 %v2006, 0.5
        %v2039 = vmul.f32 %v2007, 0.5
        %v2040 = vmul.f32 %v2008, 0.5
        %v2041 = vmul.f32 %v2009, 0.5
        %v2042 = vmul.f32 %v2010, 0.5
        %v2043 = vmul.f32 %v2011, 0.5
        %v2044 = vmul.f32 %v2012, 0.5
        %v2045 = vmul.f32 %v2013, 0.5
        %v2046 = vmul.f32 %v2014, 0.5
        %v2047 = vmul.f32 %v2015, 0.5
        %v2048 = vmul.f32 %v2016, 0.5
        %v2049 = vmul.f32 %v2017, 0.5
        %v2050 = vmul.f32 %v2018, 0.5
        %v2051 = vtanh.pop %v2019
        %v2052 = vtanh.pop %v2020
        %v2053 = vtanh.pop %v2021
        %v2054 = vtanh.pop %v2022
        %v2055 = vtanh.pop %v2023
        %v2056 = vtanh.pop %v2024
        %v2057 = vtanh.pop %v2025
        %v2058 = vtanh.pop %v2026
        %v2059 = vtanh.pop %v2027
        %v2060 = vtanh.pop %v2028
        %v2061 = vtanh.pop %v2029
        %v2062 = vtanh.pop %v2030
        %v2063 = vtanh.pop %v2031
        %v2064 = vtanh.pop %v2032
        %v2065 = vtanh.pop %v2033
        %v2066 = vtanh.pop %v2034
        %v2067 = vtanh.pop %v2035
        %v2068 = vtanh.pop %v2036
        %v2069 = vtanh.pop %v2037
        %v2070 = vtanh.pop %v2038
        %v2071 = vtanh.pop %v2039
        %v2072 = vtanh.pop %v2040
        %v2073 = vtanh.pop %v2041
        %v2074 = vtanh.pop %v2042
        %v2075 = vtanh.pop %v2043
        %v2076 = vtanh.pop %v2044
        %v2077 = vtanh.pop %v2045
        %v2078 = vtanh.pop %v2046
        %v2079 = vtanh.pop %v2047
        %v2080 = vtanh.pop %v2048
        %v2081 = vtanh.pop %v2049
        %v2082 = vtanh.pop %v2050
        %v2083 = vadd.f32 %v2051, 1.0
        %v2084 = vadd.f32 %v2052, 1.0
        %v2085 = vadd.f32 %v2053, 1.0
        %v2086 = vadd.f32 %v2054, 1.0
        %v2087 = vadd.f32 %v2055, 1.0
        %v2088 = vadd.f32 %v2056, 1.0
        %v2089 = vadd.f32 %v2057, 1.0
        %v2090 = vadd.f32 %v2058, 1.0
        %v2091 = vadd.f32 %v2059, 1.0
        %v2092 = vadd.f32 %v2060, 1.0
        %v2093 = vadd.f32 %v2061, 1.0
        %v2094 = vadd.f32 %v2062, 1.0
        %v2095 = vadd.f32 %v2063, 1.0
        %v2096 = vadd.f32 %v2064, 1.0
        %v2097 = vadd.f32 %v2065, 1.0
        %v2098 = vadd.f32 %v2066, 1.0
        %v2099 = vadd.f32 %v2067, 1.0
        %v2100 = vadd.f32 %v2068, 1.0
        %v2101 = vadd.f32 %v2069, 1.0
        %v2102 = vadd.f32 %v2070, 1.0
        %v2103 = vadd.f32 %v2071, 1.0
        %v2104 = vadd.f32 %v2072, 1.0
        %v2105 = vadd.f32 %v2073, 1.0
        %v2106 = vadd.f32 %v2074, 1.0
        %v2107 = vadd.f32 %v2075, 1.0
        %v2108 = vadd.f32 %v2076, 1.0
        %v2109 = vadd.f32 %v2077, 1.0
        %v2110 = vadd.f32 %v2078, 1.0
        %v2111 = vadd.f32 %v2079, 1.0
        %v2112 = vadd.f32 %v2080, 1.0
        %v2113 = vadd.f32 %v2081, 1.0
        %v2114 = vadd.f32 %v2082, 1.0
        %v2115 = vmul.f32 %v2083, 0.5
        %v2116 = vmul.f32 %v2084, 0.5
        %v2117 = vmul.f32 %v2085, 0.5
        %v2118 = vmul.f32 %v2086, 0.5
        %v2119 = vmul.f32 %v2087, 0.5
        %v2120 = vmul.f32 %v2088, 0.5
        %v2121 = vmul.f32 %v2089, 0.5
        %v2122 = vmul.f32 %v2090, 0.5
        %v2123 = vmul.f32 %v2091, 0.5
        %v2124 = vmul.f32 %v2092, 0.5
        %v2125 = vmul.f32 %v2093, 0.5
        %v2126 = vmul.f32 %v2094, 0.5
        %v2127 = vmul.f32 %v2095, 0.5
        %v2128 = vmul.f32 %v2096, 0.5
        %v2129 = vmul.f32 %v2097, 0.5
        %v2130 = vmul.f32 %v2098, 0.5
        %v2131 = vmul.f32 %v2099, 0.5
        %v2132 = vmul.f32 %v2100, 0.5
        %v2133 = vmul.f32 %v2101, 0.5
        %v2134 = vmul.f32 %v2102, 0.5
        %v2135 = vmul.f32 %v2103, 0.5
        %v2136 = vmul.f32 %v2104, 0.5
        %v2137 = vmul.f32 %v2105, 0.5
        %v2138 = vmul.f32 %v2106, 0.5
        %v2139 = vmul.f32 %v2107, 0.5
        %v2140 = vmul.f32 %v2108, 0.5
        %v2141 = vmul.f32 %v2109, 0.5
        %v2142 = vmul.f32 %v2110, 0.5
        %v2143 = vmul.f32 %v2111, 0.5
        %v2144 = vmul.f32 %v2112, 0.5
        %v2145 = vmul.f32 %v2113, 0.5
        %v2146 = vmul.f32 %v2114, 0.5
        %v2179 = vlaneseq
        %v2180 = vand.u32 %v2179, 127
        %v2181 = vlaneseq
        %v2182 = vshrl.u32 %v2181, 7
        %v2183 = vsub.s32 %v2180, %v2182
        %v2184 = vrot.slane %v2115, %v2183
        %v2185 = vlaneseq
        %v2186 = vshrl.u32 %v2185, 7
        %v2187 = vsub.s32 %v2180, %v2186
        %v2188 = vrot.slane %v2116, %v2187
        %v2189 = vlaneseq
        %v2190 = vshrl.u32 %v2189, 7
        %v2191 = vsub.s32 %v2180, %v2190
        %v2192 = vrot.slane %v2117, %v2191
        %v2193 = vlaneseq
        %v2194 = vshrl.u32 %v2193, 7
        %v2195 = vsub.s32 %v2180, %v2194
        %v2196 = vrot.slane %v2118, %v2195
        %v2197 = vlaneseq
        %v2198 = vshrl.u32 %v2197, 7
        %v2199 = vsub.s32 %v2180, %v2198
        %v2200 = vrot.slane %v2119, %v2199
        %v2201 = vlaneseq
        %v2202 = vshrl.u32 %v2201, 7
        %v2203 = vsub.s32 %v2180, %v2202
        %v2204 = vrot.slane %v2120, %v2203
        %v2205 = vlaneseq
        %v2206 = vshrl.u32 %v2205, 7
        %v2207 = vsub.s32 %v2180, %v2206
        %v2208 = vrot.slane %v2121, %v2207
        %v2209 = vlaneseq
        %v2210 = vshrl.u32 %v2209, 7
        %v2211 = vsub.s32 %v2180, %v2210
        %v2212 = vrot.slane %v2122, %v2211
        %v2213 = vlaneseq
        %v2214 = vshrl.u32 %v2213, 7
        %v2215 = vsub.s32 %v2180, %v2214
        %v2216 = vrot.slane %v2123, %v2215
        %v2217 = vlaneseq
        %v2218 = vshrl.u32 %v2217, 7
        %v2219 = vsub.s32 %v2180, %v2218
        %v2220 = vrot.slane %v2124, %v2219
        %v2221 = vlaneseq
        %v2222 = vshrl.u32 %v2221, 7
        %v2223 = vsub.s32 %v2180, %v2222
        %v2224 = vrot.slane %v2125, %v2223
        %v2225 = vlaneseq
        %v2226 = vshrl.u32 %v2225, 7
        %v2227 = vsub.s32 %v2180, %v2226
        %v2228 = vrot.slane %v2126, %v2227
        %v2229 = vlaneseq
        %v2230 = vshrl.u32 %v2229, 7
        %v2231 = vsub.s32 %v2180, %v2230
        %v2232 = vrot.slane %v2127, %v2231
        %v2233 = vlaneseq
        %v2234 = vshrl.u32 %v2233, 7
        %v2235 = vsub.s32 %v2180, %v2234
        %v2236 = vrot.slane %v2128, %v2235
        %v2237 = vlaneseq
        %v2238 = vshrl.u32 %v2237, 7
        %v2239 = vsub.s32 %v2180, %v2238
        %v2240 = vrot.slane %v2129, %v2239
        %v2241 = vlaneseq
        %v2242 = vshrl.u32 %v2241, 7
        %v2243 = vsub.s32 %v2180, %v2242
        %v2244 = vrot.slane %v2130, %v2243
        %v2245 = vlaneseq
        %v2246 = vshrl.u32 %v2245, 7
        %v2247 = vsub.s32 %v2180, %v2246
        %v2248 = vrot.slane %v2131, %v2247
        %v2249 = vlaneseq
        %v2250 = vshrl.u32 %v2249, 7
        %v2251 = vsub.s32 %v2180, %v2250
        %v2252 = vrot.slane %v2132, %v2251
        %v2253 = vlaneseq
        %v2254 = vshrl.u32 %v2253, 7
        %v2255 = vsub.s32 %v2180, %v2254
        %v2256 = vrot.slane %v2133, %v2255
        %v2257 = vlaneseq
        %v2258 = vshrl.u32 %v2257, 7
        %v2259 = vsub.s32 %v2180, %v2258
        %v2260 = vrot.slane %v2134, %v2259
        %v2261 = vlaneseq
        %v2262 = vshrl.u32 %v2261, 7
        %v2263 = vsub.s32 %v2180, %v2262
        %v2264 = vrot.slane %v2135, %v2263
        %v2265 = vlaneseq
        %v2266 = vshrl.u32 %v2265, 7
        %v2267 = vsub.s32 %v2180, %v2266
        %v2268 = vrot.slane %v2136, %v2267
        %v2269 = vlaneseq
        %v2270 = vshrl.u32 %v2269, 7
        %v2271 = vsub.s32 %v2180, %v2270
        %v2272 = vrot.slane %v2137, %v2271
        %v2273 = vlaneseq
        %v2274 = vshrl.u32 %v2273, 7
        %v2275 = vsub.s32 %v2180, %v2274
        %v2276 = vrot.slane %v2138, %v2275
        %v2277 = vlaneseq
        %v2278 = vshrl.u32 %v2277, 7
        %v2279 = vsub.s32 %v2180, %v2278
        %v2280 = vrot.slane %v2139, %v2279
        %v2281 = vlaneseq
        %v2282 = vshrl.u32 %v2281, 7
        %v2283 = vsub.s32 %v2180, %v2282
        %v2284 = vrot.slane %v2140, %v2283
        %v2285 = vlaneseq
        %v2286 = vshrl.u32 %v2285, 7
        %v2287 = vsub.s32 %v2180, %v2286
        %v2288 = vrot.slane %v2141, %v2287
        %v2289 = vlaneseq
        %v2290 = vshrl.u32 %v2289, 7
        %v2291 = vsub.s32 %v2180, %v2290
        %v2292 = vrot.slane %v2142, %v2291
        %v2293 = vlaneseq
        %v2294 = vshrl.u32 %v2293, 7
        %v2295 = vsub.s32 %v2180, %v2294
        %v2296 = vrot.slane %v2143, %v2295
        %v2297 = vlaneseq
        %v2298 = vshrl.u32 %v2297, 7
        %v2299 = vsub.s32 %v2180, %v2298
        %v2300 = vrot.slane %v2144, %v2299
        %v2301 = vlaneseq
        %v2302 = vshrl.u32 %v2301, 7
        %v2303 = vsub.s32 %v2180, %v2302
        %v2304 = vrot.slane %v2145, %v2303
        %v2305 = vlaneseq
        %v2306 = vshrl.u32 %v2305, 7
        %v2307 = vsub.s32 %v2180, %v2306
        %v2308 = vrot.slane %v2146, %v2307
        %vm2309 = vcmask 1041409
        %v2310 = vsel %vm2309, %v2188, %v2184
        %vm2311 = vcmask 1042434
        %v2312 = vsel %vm2311, %v2192, %v2310
        %vm2313 = vcmask 1043459
        %v2314 = vsel %vm2313, %v2196, %v2312
        %vm2315 = vcmask 1044484
        %v2316 = vsel %vm2315, %v2200, %v2314
        %vm2317 = vcmask 1045509
        %v2318 = vsel %vm2317, %v2204, %v2316
        %vm2319 = vcmask 1046534
        %v2320 = vsel %vm2319, %v2208, %v2318
        %vm2321 = vcmask 1047559
        %v2322 = vsel %vm2321, %v2212, %v2320
        %v2323 = vsel %vm2309, %v2220, %v2216
        %v2324 = vsel %vm2311, %v2224, %v2323
        %v2325 = vsel %vm2313, %v2228, %v2324
        %v2326 = vsel %vm2315, %v2232, %v2325
        %v2327 = vsel %vm2317, %v2236, %v2326
        %v2328 = vsel %vm2319, %v2240, %v2327
        %v2329 = vsel %vm2321, %v2244, %v2328
        %v2330 = vsel %vm2309, %v2252, %v2248
        %v2331 = vsel %vm2311, %v2256, %v2330
        %v2332 = vsel %vm2313, %v2260, %v2331
        %v2333 = vsel %vm2315, %v2264, %v2332
        %v2334 = vsel %vm2317, %v2268, %v2333
        %v2335 = vsel %vm2319, %v2272, %v2334
        %v2336 = vsel %vm2321, %v2276, %v2335
        %v2337 = vsel %vm2309, %v2284, %v2280
        %v2338 = vsel %vm2311, %v2288, %v2337
        %v2339 = vsel %vm2313, %v2292, %v2338
        %v2340 = vsel %vm2315, %v2296, %v2339
        %v2341 = vsel %vm2317, %v2300, %v2340
        %v2342 = vsel %vm2319, %v2304, %v2341
        %v2343 = vsel %vm2321, %v2308, %v2342
        %vm2348 = vcmask 64512
        %v2349 = vsel %vm2348, %v2322, -inf
        %2350 = vmax.xlane.f32.xlu0 %v2349
        %v2351 = vpop.xlane.xlu0 %2350
        %v2352 = vsel %vm2348, %v2329, -inf
        %2353 = vmax.xlane.f32.xlu0 %v2352
        %v2354 = vpop.xlane.xlu0 %2353
        %v2355 = vsel %vm2348, %v2336, -inf
        %2356 = vmax.xlane.f32.xlu0 %v2355
        %v2357 = vpop.xlane.xlu0 %2356
        %v2358 = vsel %vm2348, %v2343, -inf
        %2359 = vmax.xlane.f32.xlu0 %v2358
        %v2360 = vpop.xlane.xlu0 %2359
        %v2365 = vlaneseq
        %v2366 = vshrl.u32 %v2365, 7
        %v2367 = vsub.s32 0, %v2366
        %v2368 = vrot.slane %v2351, %v2367
        %v2369 = vlaneseq
        %v2370 = vshrl.u32 %v2369, 7
        %v2371 = vsub.s32 1, %v2370
        %v2372 = vrot.slane %v2351, %v2371
        %v2373 = vlaneseq
        %v2374 = vshrl.u32 %v2373, 7
        %v2375 = vsub.s32 2, %v2374
        %v2376 = vrot.slane %v2351, %v2375
        %v2377 = vlaneseq
        %v2378 = vshrl.u32 %v2377, 7
        %v2379 = vsub.s32 3, %v2378
        %v2380 = vrot.slane %v2351, %v2379
        %v2381 = vlaneseq
        %v2382 = vshrl.u32 %v2381, 7
        %v2383 = vsub.s32 4, %v2382
        %v2384 = vrot.slane %v2351, %v2383
        %v2385 = vlaneseq
        %v2386 = vshrl.u32 %v2385, 7
        %v2387 = vsub.s32 5, %v2386
        %v2388 = vrot.slane %v2351, %v2387
        %v2389 = vlaneseq
        %v2390 = vshrl.u32 %v2389, 7
        %v2391 = vsub.s32 6, %v2390
        %v2392 = vrot.slane %v2351, %v2391
        %v2393 = vlaneseq
        %v2394 = vshrl.u32 %v2393, 7
        %v2395 = vsub.s32 7, %v2394
        %v2396 = vrot.slane %v2351, %v2395
        %v2397 = vlaneseq
        %v2398 = vshrl.u32 %v2397, 7
        %v2399 = vsub.s32 0, %v2398
        %v2400 = vrot.slane %v2354, %v2399
        %v2401 = vlaneseq
        %v2402 = vshrl.u32 %v2401, 7
        %v2403 = vsub.s32 1, %v2402
        %v2404 = vrot.slane %v2354, %v2403
        %v2405 = vlaneseq
        %v2406 = vshrl.u32 %v2405, 7
        %v2407 = vsub.s32 2, %v2406
        %v2408 = vrot.slane %v2354, %v2407
        %v2409 = vlaneseq
        %v2410 = vshrl.u32 %v2409, 7
        %v2411 = vsub.s32 3, %v2410
        %v2412 = vrot.slane %v2354, %v2411
        %v2413 = vlaneseq
        %v2414 = vshrl.u32 %v2413, 7
        %v2415 = vsub.s32 4, %v2414
        %v2416 = vrot.slane %v2354, %v2415
        %v2417 = vlaneseq
        %v2418 = vshrl.u32 %v2417, 7
        %v2419 = vsub.s32 5, %v2418
        %v2420 = vrot.slane %v2354, %v2419
        %v2421 = vlaneseq
        %v2422 = vshrl.u32 %v2421, 7
        %v2423 = vsub.s32 6, %v2422
        %v2424 = vrot.slane %v2354, %v2423
        %v2425 = vlaneseq
        %v2426 = vshrl.u32 %v2425, 7
        %v2427 = vsub.s32 7, %v2426
        %v2428 = vrot.slane %v2354, %v2427
        %v2429 = vlaneseq
        %v2430 = vshrl.u32 %v2429, 7
        %v2431 = vsub.s32 0, %v2430
        %v2432 = vrot.slane %v2357, %v2431
        %v2433 = vlaneseq
        %v2434 = vshrl.u32 %v2433, 7
        %v2435 = vsub.s32 1, %v2434
        %v2436 = vrot.slane %v2357, %v2435
        %v2437 = vlaneseq
        %v2438 = vshrl.u32 %v2437, 7
        %v2439 = vsub.s32 2, %v2438
        %v2440 = vrot.slane %v2357, %v2439
        %v2441 = vlaneseq
        %v2442 = vshrl.u32 %v2441, 7
        %v2443 = vsub.s32 3, %v2442
        %v2444 = vrot.slane %v2357, %v2443
        %v2445 = vlaneseq
        %v2446 = vshrl.u32 %v2445, 7
        %v2447 = vsub.s32 4, %v2446
        %v2448 = vrot.slane %v2357, %v2447
        %v2449 = vlaneseq
        %v2450 = vshrl.u32 %v2449, 7
        %v2451 = vsub.s32 5, %v2450
        %v2452 = vrot.slane %v2357, %v2451
        %v2453 = vlaneseq
        %v2454 = vshrl.u32 %v2453, 7
        %v2455 = vsub.s32 6, %v2454
        %v2456 = vrot.slane %v2357, %v2455
        %v2457 = vlaneseq
        %v2458 = vshrl.u32 %v2457, 7
        %v2459 = vsub.s32 7, %v2458
        %v2460 = vrot.slane %v2357, %v2459
        %v2461 = vlaneseq
        %v2462 = vshrl.u32 %v2461, 7
        %v2463 = vsub.s32 0, %v2462
        %v2464 = vrot.slane %v2360, %v2463
        %v2465 = vlaneseq
        %v2466 = vshrl.u32 %v2465, 7
        %v2467 = vsub.s32 1, %v2466
        %v2468 = vrot.slane %v2360, %v2467
        %v2469 = vlaneseq
        %v2470 = vshrl.u32 %v2469, 7
        %v2471 = vsub.s32 2, %v2470
        %v2472 = vrot.slane %v2360, %v2471
        %v2473 = vlaneseq
        %v2474 = vshrl.u32 %v2473, 7
        %v2475 = vsub.s32 3, %v2474
        %v2476 = vrot.slane %v2360, %v2475
        %v2477 = vlaneseq
        %v2478 = vshrl.u32 %v2477, 7
        %v2479 = vsub.s32 4, %v2478
        %v2480 = vrot.slane %v2360, %v2479
        %v2481 = vlaneseq
        %v2482 = vshrl.u32 %v2481, 7
        %v2483 = vsub.s32 5, %v2482
        %v2484 = vrot.slane %v2360, %v2483
        %v2485 = vlaneseq
        %v2486 = vshrl.u32 %v2485, 7
        %v2487 = vsub.s32 6, %v2486
        %v2488 = vrot.slane %v2360, %v2487
        %v2489 = vlaneseq
        %v2490 = vshrl.u32 %v2489, 7
        %v2491 = vsub.s32 7, %v2490
        %v2492 = vrot.slane %v2360, %v2491
        %v2525 = vsub.f32 %v2115, %v2368
        %v2526 = vsub.f32 %v2116, %v2372
        %v2527 = vsub.f32 %v2117, %v2376
        %v2528 = vsub.f32 %v2118, %v2380
        %v2529 = vsub.f32 %v2119, %v2384
        %v2530 = vsub.f32 %v2120, %v2388
        %v2531 = vsub.f32 %v2121, %v2392
        %v2532 = vsub.f32 %v2122, %v2396
        %v2533 = vsub.f32 %v2123, %v2400
        %v2534 = vsub.f32 %v2124, %v2404
        %v2535 = vsub.f32 %v2125, %v2408
        %v2536 = vsub.f32 %v2126, %v2412
        %v2537 = vsub.f32 %v2127, %v2416
        %v2538 = vsub.f32 %v2128, %v2420
        %v2539 = vsub.f32 %v2129, %v2424
        %v2540 = vsub.f32 %v2130, %v2428
        %v2541 = vsub.f32 %v2131, %v2432
        %v2542 = vsub.f32 %v2132, %v2436
        %v2543 = vsub.f32 %v2133, %v2440
        %v2544 = vsub.f32 %v2134, %v2444
        %v2545 = vsub.f32 %v2135, %v2448
        %v2546 = vsub.f32 %v2136, %v2452
        %v2547 = vsub.f32 %v2137, %v2456
        %v2548 = vsub.f32 %v2138, %v2460
        %v2549 = vsub.f32 %v2139, %v2464
        %v2550 = vsub.f32 %v2140, %v2468
        %v2551 = vsub.f32 %v2141, %v2472
        %v2552 = vsub.f32 %v2142, %v2476
        %v2553 = vsub.f32 %v2143, %v2480
        %v2554 = vsub.f32 %v2144, %v2484
        %v2555 = vsub.f32 %v2145, %v2488
        %v2556 = vsub.f32 %v2146, %v2492
        %v2557 = vmul.f32 %v2525, 1.442695
        %v2558 = vpow.pop %v2557
        %v2559 = vmul.f32 %v2526, 1.442695
        %v2560 = vpow.pop %v2559
        %v2561 = vmul.f32 %v2527, 1.442695
        %v2562 = vpow.pop %v2561
        %v2563 = vmul.f32 %v2528, 1.442695
        %v2564 = vpow.pop %v2563
        %v2565 = vmul.f32 %v2529, 1.442695
        %v2566 = vpow.pop %v2565
        %v2567 = vmul.f32 %v2530, 1.442695
        %v2568 = vpow.pop %v2567
        %v2569 = vmul.f32 %v2531, 1.442695
        %v2570 = vpow.pop %v2569
        %v2571 = vmul.f32 %v2532, 1.442695
        %v2572 = vpow.pop %v2571
        %v2573 = vmul.f32 %v2533, 1.442695
        %v2574 = vpow.pop %v2573
        %v2575 = vmul.f32 %v2534, 1.442695
        %v2576 = vpow.pop %v2575
        %v2577 = vmul.f32 %v2535, 1.442695
        %v2578 = vpow.pop %v2577
        %v2579 = vmul.f32 %v2536, 1.442695
        %v2580 = vpow.pop %v2579
        %v2581 = vmul.f32 %v2537, 1.442695
        %v2582 = vpow.pop %v2581
        %v2583 = vmul.f32 %v2538, 1.442695
        %v2584 = vpow.pop %v2583
        %v2585 = vmul.f32 %v2539, 1.442695
        %v2586 = vpow.pop %v2585
        %v2587 = vmul.f32 %v2540, 1.442695
        %v2588 = vpow.pop %v2587
        %v2589 = vmul.f32 %v2541, 1.442695
        %v2590 = vpow.pop %v2589
        %v2591 = vmul.f32 %v2542, 1.442695
        %v2592 = vpow.pop %v2591
        %v2593 = vmul.f32 %v2543, 1.442695
        %v2594 = vpow.pop %v2593
        %v2595 = vmul.f32 %v2544, 1.442695
        %v2596 = vpow.pop %v2595
        %v2597 = vmul.f32 %v2545, 1.442695
        %v2598 = vpow.pop %v2597
        %v2599 = vmul.f32 %v2546, 1.442695
        %v2600 = vpow.pop %v2599
        %v2601 = vmul.f32 %v2547, 1.442695
        %v2602 = vpow.pop %v2601
        %v2603 = vmul.f32 %v2548, 1.442695
        %v2604 = vpow.pop %v2603
        %v2605 = vmul.f32 %v2549, 1.442695
        %v2606 = vpow.pop %v2605
        %v2607 = vmul.f32 %v2550, 1.442695
        %v2608 = vpow.pop %v2607
        %v2609 = vmul.f32 %v2551, 1.442695
        %v2610 = vpow.pop %v2609
        %v2611 = vmul.f32 %v2552, 1.442695
        %v2612 = vpow.pop %v2611
        %v2613 = vmul.f32 %v2553, 1.442695
        %v2614 = vpow.pop %v2613
        %v2615 = vmul.f32 %v2554, 1.442695
        %v2616 = vpow.pop %v2615
        %v2617 = vmul.f32 %v2555, 1.442695
        %v2618 = vpow.pop %v2617
        %v2619 = vmul.f32 %v2556, 1.442695
        %v2620 = vpow.pop %v2619
        %2653 = vset.pattern.permute.xlu0 0
        %2654 = vperm.xlu0 %2653, %v2558
        %v2655 = vpop.permute.xlu0 %2654
        %2656 = vset.pattern.permute.xlu0 0
        %2657 = vperm.xlu0 %2656, %v2560
        %v2658 = vpop.permute.xlu0 %2657
        %2659 = vset.pattern.permute.xlu0 0
        %2660 = vperm.xlu0 %2659, %v2562
        %v2661 = vpop.permute.xlu0 %2660
        %2662 = vset.pattern.permute.xlu0 0
        %2663 = vperm.xlu0 %2662, %v2564
        %v2664 = vpop.permute.xlu0 %2663
        %2665 = vset.pattern.permute.xlu0 0
        %2666 = vperm.xlu0 %2665, %v2566
        %v2667 = vpop.permute.xlu0 %2666
        %2668 = vset.pattern.permute.xlu0 0
        %2669 = vperm.xlu0 %2668, %v2568
        %v2670 = vpop.permute.xlu0 %2669
        %2671 = vset.pattern.permute.xlu0 0
        %2672 = vperm.xlu0 %2671, %v2570
        %v2673 = vpop.permute.xlu0 %2672
        %2674 = vset.pattern.permute.xlu0 0
        %2675 = vperm.xlu0 %2674, %v2572
        %v2676 = vpop.permute.xlu0 %2675
        %2677 = vset.pattern.permute.xlu0 0
        %2678 = vperm.xlu0 %2677, %v2574
        %v2679 = vpop.permute.xlu0 %2678
        %2680 = vset.pattern.permute.xlu0 0
        %2681 = vperm.xlu0 %2680, %v2576
        %v2682 = vpop.permute.xlu0 %2681
        %2683 = vset.pattern.permute.xlu0 0
        %2684 = vperm.xlu0 %2683, %v2578
        %v2685 = vpop.permute.xlu0 %2684
        %2686 = vset.pattern.permute.xlu0 0
        %2687 = vperm.xlu0 %2686, %v2580
        %v2688 = vpop.permute.xlu0 %2687
        %2689 = vset.pattern.permute.xlu0 0
        %2690 = vperm.xlu0 %2689, %v2582
        %v2691 = vpop.permute.xlu0 %2690
        %2692 = vset.pattern.permute.xlu0 0
        %2693 = vperm.xlu0 %2692, %v2584
        %v2694 = vpop.permute.xlu0 %2693
        %2695 = vset.pattern.permute.xlu0 0
        %2696 = vperm.xlu0 %2695, %v2586
        %v2697 = vpop.permute.xlu0 %2696
        %2698 = vset.pattern.permute.xlu0 0
        %2699 = vperm.xlu0 %2698, %v2588
        %v2700 = vpop.permute.xlu0 %2699
        %2701 = vset.pattern.permute.xlu0 0
        %2702 = vperm.xlu0 %2701, %v2590
        %v2703 = vpop.permute.xlu0 %2702
        %2704 = vset.pattern.permute.xlu0 0
        %2705 = vperm.xlu0 %2704, %v2592
        %v2706 = vpop.permute.xlu0 %2705
        %2707 = vset.pattern.permute.xlu0 0
        %2708 = vperm.xlu0 %2707, %v2594
        %v2709 = vpop.permute.xlu0 %2708
        %2710 = vset.pattern.permute.xlu0 0
        %2711 = vperm.xlu0 %2710, %v2596
        %v2712 = vpop.permute.xlu0 %2711
        %2713 = vset.pattern.permute.xlu0 0
        %2714 = vperm.xlu0 %2713, %v2598
        %v2715 = vpop.permute.xlu0 %2714
        %2716 = vset.pattern.permute.xlu0 0
        %2717 = vperm.xlu0 %2716, %v2600
        %v2718 = vpop.permute.xlu0 %2717
        %2719 = vset.pattern.permute.xlu0 0
        %2720 = vperm.xlu0 %2719, %v2602
        %v2721 = vpop.permute.xlu0 %2720
        %2722 = vset.pattern.permute.xlu0 0
        %2723 = vperm.xlu0 %2722, %v2604
        %v2724 = vpop.permute.xlu0 %2723
        %2725 = vset.pattern.permute.xlu0 0
        %2726 = vperm.xlu0 %2725, %v2606
        %v2727 = vpop.permute.xlu0 %2726
        %2728 = vset.pattern.permute.xlu0 0
        %2729 = vperm.xlu0 %2728, %v2608
        %v2730 = vpop.permute.xlu0 %2729
        %2731 = vset.pattern.permute.xlu0 0
        %2732 = vperm.xlu0 %2731, %v2610
        %v2733 = vpop.permute.xlu0 %2732
        %2734 = vset.pattern.permute.xlu0 0
        %2735 = vperm.xlu0 %2734, %v2612
        %v2736 = vpop.permute.xlu0 %2735
        %2737 = vset.pattern.permute.xlu0 0
        %2738 = vperm.xlu0 %2737, %v2614
        %v2739 = vpop.permute.xlu0 %2738
        %2740 = vset.pattern.permute.xlu0 0
        %2741 = vperm.xlu0 %2740, %v2616
        %v2742 = vpop.permute.xlu0 %2741
        %2743 = vset.pattern.permute.xlu0 0
        %2744 = vperm.xlu0 %2743, %v2618
        %v2745 = vpop.permute.xlu0 %2744
        %2746 = vset.pattern.permute.xlu0 0
        %2747 = vperm.xlu0 %2746, %v2620
        %v2748 = vpop.permute.xlu0 %2747
        %v2749 = vlaneseq
        %v2750 = vshrl.u32 %v2749, 7
        %v2751 = vsub.s32 %v2180, %v2750
        %v2752 = vrot.slane %v2655, %v2751
        %v2753 = vlaneseq
        %v2754 = vshrl.u32 %v2753, 7
        %v2755 = vsub.s32 %v2180, %v2754
        %v2756 = vrot.slane %v2658, %v2755
        %v2757 = vlaneseq
        %v2758 = vshrl.u32 %v2757, 7
        %v2759 = vsub.s32 %v2180, %v2758
        %v2760 = vrot.slane %v2661, %v2759
        %v2761 = vlaneseq
        %v2762 = vshrl.u32 %v2761, 7
        %v2763 = vsub.s32 %v2180, %v2762
        %v2764 = vrot.slane %v2664, %v2763
        %v2765 = vlaneseq
        %v2766 = vshrl.u32 %v2765, 7
        %v2767 = vsub.s32 %v2180, %v2766
        %v2768 = vrot.slane %v2667, %v2767
        %v2769 = vlaneseq
        %v2770 = vshrl.u32 %v2769, 7
        %v2771 = vsub.s32 %v2180, %v2770
        %v2772 = vrot.slane %v2670, %v2771
        %v2773 = vlaneseq
        %v2774 = vshrl.u32 %v2773, 7
        %v2775 = vsub.s32 %v2180, %v2774
        %v2776 = vrot.slane %v2673, %v2775
        %v2777 = vlaneseq
        %v2778 = vshrl.u32 %v2777, 7
        %v2779 = vsub.s32 %v2180, %v2778
        %v2780 = vrot.slane %v2676, %v2779
        %v2781 = vlaneseq
        %v2782 = vshrl.u32 %v2781, 7
        %v2783 = vsub.s32 %v2180, %v2782
        %v2784 = vrot.slane %v2679, %v2783
        %v2785 = vlaneseq
        %v2786 = vshrl.u32 %v2785, 7
        %v2787 = vsub.s32 %v2180, %v2786
        %v2788 = vrot.slane %v2682, %v2787
        %v2789 = vlaneseq
        %v2790 = vshrl.u32 %v2789, 7
        %v2791 = vsub.s32 %v2180, %v2790
        %v2792 = vrot.slane %v2685, %v2791
        %v2793 = vlaneseq
        %v2794 = vshrl.u32 %v2793, 7
        %v2795 = vsub.s32 %v2180, %v2794
        %v2796 = vrot.slane %v2688, %v2795
        %v2797 = vlaneseq
        %v2798 = vshrl.u32 %v2797, 7
        %v2799 = vsub.s32 %v2180, %v2798
        %v2800 = vrot.slane %v2691, %v2799
        %v2801 = vlaneseq
        %v2802 = vshrl.u32 %v2801, 7
        %v2803 = vsub.s32 %v2180, %v2802
        %v2804 = vrot.slane %v2694, %v2803
        %v2805 = vlaneseq
        %v2806 = vshrl.u32 %v2805, 7
        %v2807 = vsub.s32 %v2180, %v2806
        %v2808 = vrot.slane %v2697, %v2807
        %v2809 = vlaneseq
        %v2810 = vshrl.u32 %v2809, 7
        %v2811 = vsub.s32 %v2180, %v2810
        %v2812 = vrot.slane %v2700, %v2811
        %v2813 = vlaneseq
        %v2814 = vshrl.u32 %v2813, 7
        %v2815 = vsub.s32 %v2180, %v2814
        %v2816 = vrot.slane %v2703, %v2815
        %v2817 = vlaneseq
        %v2818 = vshrl.u32 %v2817, 7
        %v2819 = vsub.s32 %v2180, %v2818
        %v2820 = vrot.slane %v2706, %v2819
        %v2821 = vlaneseq
        %v2822 = vshrl.u32 %v2821, 7
        %v2823 = vsub.s32 %v2180, %v2822
        %v2824 = vrot.slane %v2709, %v2823
        %v2825 = vlaneseq
        %v2826 = vshrl.u32 %v2825, 7
        %v2827 = vsub.s32 %v2180, %v2826
        %v2828 = vrot.slane %v2712, %v2827
        %v2829 = vlaneseq
        %v2830 = vshrl.u32 %v2829, 7
        %v2831 = vsub.s32 %v2180, %v2830
        %v2832 = vrot.slane %v2715, %v2831
        %v2833 = vlaneseq
        %v2834 = vshrl.u32 %v2833, 7
        %v2835 = vsub.s32 %v2180, %v2834
        %v2836 = vrot.slane %v2718, %v2835
        %v2837 = vlaneseq
        %v2838 = vshrl.u32 %v2837, 7
        %v2839 = vsub.s32 %v2180, %v2838
        %v2840 = vrot.slane %v2721, %v2839
        %v2841 = vlaneseq
        %v2842 = vshrl.u32 %v2841, 7
        %v2843 = vsub.s32 %v2180, %v2842
        %v2844 = vrot.slane %v2724, %v2843
        %v2845 = vlaneseq
        %v2846 = vshrl.u32 %v2845, 7
        %v2847 = vsub.s32 %v2180, %v2846
        %v2848 = vrot.slane %v2727, %v2847
        %v2849 = vlaneseq
        %v2850 = vshrl.u32 %v2849, 7
        %v2851 = vsub.s32 %v2180, %v2850
        %v2852 = vrot.slane %v2730, %v2851
        %v2853 = vlaneseq
        %v2854 = vshrl.u32 %v2853, 7
        %v2855 = vsub.s32 %v2180, %v2854
        %v2856 = vrot.slane %v2733, %v2855
        %v2857 = vlaneseq
        %v2858 = vshrl.u32 %v2857, 7
        %v2859 = vsub.s32 %v2180, %v2858
        %v2860 = vrot.slane %v2736, %v2859
        %v2861 = vlaneseq
        %v2862 = vshrl.u32 %v2861, 7
        %v2863 = vsub.s32 %v2180, %v2862
        %v2864 = vrot.slane %v2739, %v2863
        %v2865 = vlaneseq
        %v2866 = vshrl.u32 %v2865, 7
        %v2867 = vsub.s32 %v2180, %v2866
        %v2868 = vrot.slane %v2742, %v2867
        %v2869 = vlaneseq
        %v2870 = vshrl.u32 %v2869, 7
        %v2871 = vsub.s32 %v2180, %v2870
        %v2872 = vrot.slane %v2745, %v2871
        %v2873 = vlaneseq
        %v2874 = vshrl.u32 %v2873, 7
        %v2875 = vsub.s32 %v2180, %v2874
        %v2876 = vrot.slane %v2748, %v2875
        %v2877 = vsel %vm2309, %v2756, %v2752
        %v2878 = vsel %vm2311, %v2760, %v2877
        %v2879 = vsel %vm2313, %v2764, %v2878
        %v2880 = vsel %vm2315, %v2768, %v2879
        %v2881 = vsel %vm2317, %v2772, %v2880
        %v2882 = vsel %vm2319, %v2776, %v2881
        %v2883 = vsel %vm2321, %v2780, %v2882
        %v2884 = vsel %vm2309, %v2788, %v2784
        %v2885 = vsel %vm2311, %v2792, %v2884
        %v2886 = vsel %vm2313, %v2796, %v2885
        %v2887 = vsel %vm2315, %v2800, %v2886
        %v2888 = vsel %vm2317, %v2804, %v2887
        %v2889 = vsel %vm2319, %v2808, %v2888
        %v2890 = vsel %vm2321, %v2812, %v2889
        %v2891 = vsel %vm2309, %v2820, %v2816
        %v2892 = vsel %vm2311, %v2824, %v2891
        %v2893 = vsel %vm2313, %v2828, %v2892
        %v2894 = vsel %vm2315, %v2832, %v2893
        %v2895 = vsel %vm2317, %v2836, %v2894
        %v2896 = vsel %vm2319, %v2840, %v2895
        %v2897 = vsel %vm2321, %v2844, %v2896
        %v2898 = vsel %vm2309, %v2852, %v2848
        %v2899 = vsel %vm2311, %v2856, %v2898
        %v2900 = vsel %vm2313, %v2860, %v2899
        %v2901 = vsel %vm2315, %v2864, %v2900
        %v2902 = vsel %vm2317, %v2868, %v2901
        %v2903 = vsel %vm2319, %v2872, %v2902
        %v2904 = vsel %vm2321, %v2876, %v2903
        %v2909 = vsel %vm2348, %v2883, 0.0
        %2910 = vadd.xlane.f32.xlu0 %v2909
        %v2911 = vpop.xlane.xlu0 %2910
        %v2912 = vsel %vm2348, %v2890, 0.0
        %2913 = vadd.xlane.f32.xlu0 %v2912
        %v2914 = vpop.xlane.xlu0 %2913
        %v2915 = vsel %vm2348, %v2897, 0.0
        %2916 = vadd.xlane.f32.xlu0 %v2915
        %v2917 = vpop.xlane.xlu0 %2916
        %v2918 = vsel %vm2348, %v2904, 0.0
        %2919 = vadd.xlane.f32.xlu0 %v2918
        %v2920 = vpop.xlane.xlu0 %2919
        %v2925 = vlaneseq
        %v2926 = vshrl.u32 %v2925, 7
        %v2927 = vsub.s32 0, %v2926
        %v2928 = vrot.slane %v2911, %v2927
        %v2929 = vlaneseq
        %v2930 = vshrl.u32 %v2929, 7
        %v2931 = vsub.s32 1, %v2930
        %v2932 = vrot.slane %v2911, %v2931
        %v2933 = vlaneseq
        %v2934 = vshrl.u32 %v2933, 7
        %v2935 = vsub.s32 2, %v2934
        %v2936 = vrot.slane %v2911, %v2935
        %v2937 = vlaneseq
        %v2938 = vshrl.u32 %v2937, 7
        %v2939 = vsub.s32 3, %v2938
        %v2940 = vrot.slane %v2911, %v2939
        %v2941 = vlaneseq
        %v2942 = vshrl.u32 %v2941, 7
        %v2943 = vsub.s32 4, %v2942
        %v2944 = vrot.slane %v2911, %v2943
        %v2945 = vlaneseq
        %v2946 = vshrl.u32 %v2945, 7
        %v2947 = vsub.s32 5, %v2946
        %v2948 = vrot.slane %v2911, %v2947
        %v2949 = vlaneseq
        %v2950 = vshrl.u32 %v2949, 7
        %v2951 = vsub.s32 6, %v2950
        %v2952 = vrot.slane %v2911, %v2951
        %v2953 = vlaneseq
        %v2954 = vshrl.u32 %v2953, 7
        %v2955 = vsub.s32 7, %v2954
        %v2956 = vrot.slane %v2911, %v2955
        %v2957 = vlaneseq
        %v2958 = vshrl.u32 %v2957, 7
        %v2959 = vsub.s32 0, %v2958
        %v2960 = vrot.slane %v2914, %v2959
        %v2961 = vlaneseq
        %v2962 = vshrl.u32 %v2961, 7
        %v2963 = vsub.s32 1, %v2962
        %v2964 = vrot.slane %v2914, %v2963
        %v2965 = vlaneseq
        %v2966 = vshrl.u32 %v2965, 7
        %v2967 = vsub.s32 2, %v2966
        %v2968 = vrot.slane %v2914, %v2967
        %v2969 = vlaneseq
        %v2970 = vshrl.u32 %v2969, 7
        %v2971 = vsub.s32 3, %v2970
        %v2972 = vrot.slane %v2914, %v2971
        %v2973 = vlaneseq
        %v2974 = vshrl.u32 %v2973, 7
        %v2975 = vsub.s32 4, %v2974
        %v2976 = vrot.slane %v2914, %v2975
        %v2977 = vlaneseq
        %v2978 = vshrl.u32 %v2977, 7
        %v2979 = vsub.s32 5, %v2978
        %v2980 = vrot.slane %v2914, %v2979
        %v2981 = vlaneseq
        %v2982 = vshrl.u32 %v2981, 7
        %v2983 = vsub.s32 6, %v2982
        %v2984 = vrot.slane %v2914, %v2983
        %v2985 = vlaneseq
        %v2986 = vshrl.u32 %v2985, 7
        %v2987 = vsub.s32 7, %v2986
        %v2988 = vrot.slane %v2914, %v2987
        %v2989 = vlaneseq
        %v2990 = vshrl.u32 %v2989, 7
        %v2991 = vsub.s32 0, %v2990
        %v2992 = vrot.slane %v2917, %v2991
        %v2993 = vlaneseq
        %v2994 = vshrl.u32 %v2993, 7
        %v2995 = vsub.s32 1, %v2994
        %v2996 = vrot.slane %v2917, %v2995
        %v2997 = vlaneseq
        %v2998 = vshrl.u32 %v2997, 7
        %v2999 = vsub.s32 2, %v2998
        %v3000 = vrot.slane %v2917, %v2999
        %v3001 = vlaneseq
        %v3002 = vshrl.u32 %v3001, 7
        %v3003 = vsub.s32 3, %v3002
        %v3004 = vrot.slane %v2917, %v3003
        %v3005 = vlaneseq
        %v3006 = vshrl.u32 %v3005, 7
        %v3007 = vsub.s32 4, %v3006
        %v3008 = vrot.slane %v2917, %v3007
        %v3009 = vlaneseq
        %v3010 = vshrl.u32 %v3009, 7
        %v3011 = vsub.s32 5, %v3010
        %v3012 = vrot.slane %v2917, %v3011
        %v3013 = vlaneseq
        %v3014 = vshrl.u32 %v3013, 7
        %v3015 = vsub.s32 6, %v3014
        %v3016 = vrot.slane %v2917, %v3015
        %v3017 = vlaneseq
        %v3018 = vshrl.u32 %v3017, 7
        %v3019 = vsub.s32 7, %v3018
        %v3020 = vrot.slane %v2917, %v3019
        %v3021 = vlaneseq
        %v3022 = vshrl.u32 %v3021, 7
        %v3023 = vsub.s32 0, %v3022
        %v3024 = vrot.slane %v2920, %v3023
        %v3025 = vlaneseq
        %v3026 = vshrl.u32 %v3025, 7
        %v3027 = vsub.s32 1, %v3026
        %v3028 = vrot.slane %v2920, %v3027
        %v3029 = vlaneseq
        %v3030 = vshrl.u32 %v3029, 7
        %v3031 = vsub.s32 2, %v3030
        %v3032 = vrot.slane %v2920, %v3031
        %v3033 = vlaneseq
        %v3034 = vshrl.u32 %v3033, 7
        %v3035 = vsub.s32 3, %v3034
        %v3036 = vrot.slane %v2920, %v3035
        %v3037 = vlaneseq
        %v3038 = vshrl.u32 %v3037, 7
        %v3039 = vsub.s32 4, %v3038
        %v3040 = vrot.slane %v2920, %v3039
        %v3041 = vlaneseq
        %v3042 = vshrl.u32 %v3041, 7
        %v3043 = vsub.s32 5, %v3042
        %v3044 = vrot.slane %v2920, %v3043
        %v3045 = vlaneseq
        %v3046 = vshrl.u32 %v3045, 7
        %v3047 = vsub.s32 6, %v3046
        %v3048 = vrot.slane %v2920, %v3047
        %v3049 = vlaneseq
        %v3050 = vshrl.u32 %v3049, 7
        %v3051 = vsub.s32 7, %v3050
        %v3052 = vrot.slane %v2920, %v3051
        %v3085 = vrcp.pop %v2928
        %v3086 = vmul.f32 %v2558, %v3085
        %v3087 = vrcp.pop %v2932
        %v3088 = vmul.f32 %v2560, %v3087
        %v3089 = vrcp.pop %v2936
        %v3090 = vmul.f32 %v2562, %v3089
        %v3091 = vrcp.pop %v2940
        %v3092 = vmul.f32 %v2564, %v3091
        %v3093 = vrcp.pop %v2944
        %v3094 = vmul.f32 %v2566, %v3093
        %v3095 = vrcp.pop %v2948
        %v3096 = vmul.f32 %v2568, %v3095
        %v3097 = vrcp.pop %v2952
        %v3098 = vmul.f32 %v2570, %v3097
        %v3099 = vrcp.pop %v2956
        %v3100 = vmul.f32 %v2572, %v3099
        %v3101 = vrcp.pop %v2960
        %v3102 = vmul.f32 %v2574, %v3101
        %v3103 = vrcp.pop %v2964
        %v3104 = vmul.f32 %v2576, %v3103
        %v3105 = vrcp.pop %v2968
        %v3106 = vmul.f32 %v2578, %v3105
        %v3107 = vrcp.pop %v2972
        %v3108 = vmul.f32 %v2580, %v3107
        %v3109 = vrcp.pop %v2976
        %v3110 = vmul.f32 %v2582, %v3109
        %v3111 = vrcp.pop %v2980
        %v3112 = vmul.f32 %v2584, %v3111
        %v3113 = vrcp.pop %v2984
        %v3114 = vmul.f32 %v2586, %v3113
        %v3115 = vrcp.pop %v2988
        %v3116 = vmul.f32 %v2588, %v3115
        %v3117 = vrcp.pop %v2992
        %v3118 = vmul.f32 %v2590, %v3117
        %v3119 = vrcp.pop %v2996
        %v3120 = vmul.f32 %v2592, %v3119
        %v3121 = vrcp.pop %v3000
        %v3122 = vmul.f32 %v2594, %v3121
        %v3123 = vrcp.pop %v3004
        %v3124 = vmul.f32 %v2596, %v3123
        %v3125 = vrcp.pop %v3008
        %v3126 = vmul.f32 %v2598, %v3125
        %v3127 = vrcp.pop %v3012
        %v3128 = vmul.f32 %v2600, %v3127
        %v3129 = vrcp.pop %v3016
        %v3130 = vmul.f32 %v2602, %v3129
        %v3131 = vrcp.pop %v3020
        %v3132 = vmul.f32 %v2604, %v3131
        %v3133 = vrcp.pop %v3024
        %v3134 = vmul.f32 %v2606, %v3133
        %v3135 = vrcp.pop %v3028
        %v3136 = vmul.f32 %v2608, %v3135
        %v3137 = vrcp.pop %v3032
        %v3138 = vmul.f32 %v2610, %v3137
        %v3139 = vrcp.pop %v3036
        %v3140 = vmul.f32 %v2612, %v3139
        %v3141 = vrcp.pop %v3040
        %v3142 = vmul.f32 %v2614, %v3141
        %v3143 = vrcp.pop %v3044
        %v3144 = vmul.f32 %v2616, %v3143
        %v3145 = vrcp.pop %v3048
        %v3146 = vmul.f32 %v2618, %v3145
        %v3147 = vrcp.pop %v3052
        %v3148 = vmul.f32 %v2620, %v3147
        %3150 = vset.pattern.permute.xlu0 0
        %3151 = vperm.xlu0 %3150, %v3086
        %v3152 = vpop.permute.xlu0 %3151
        %3155 = vset.pattern.permute.xlu0 0
        %3156 = vperm.xlu0 %3155, %v3088
        %v3157 = vpop.permute.xlu0 %3156
        %3160 = vset.pattern.permute.xlu0 0
        %3161 = vperm.xlu0 %3160, %v3090
        %v3162 = vpop.permute.xlu0 %3161
        %3165 = vset.pattern.permute.xlu0 0
        %3166 = vperm.xlu0 %3165, %v3092
        %v3167 = vpop.permute.xlu0 %3166
        %3170 = vset.pattern.permute.xlu0 0
        %3171 = vperm.xlu0 %3170, %v3094
        %v3172 = vpop.permute.xlu0 %3171
        %3175 = vset.pattern.permute.xlu0 0
        %3176 = vperm.xlu0 %3175, %v3096
        %v3177 = vpop.permute.xlu0 %3176
        %3180 = vset.pattern.permute.xlu0 0
        %3181 = vperm.xlu0 %3180, %v3098
        %v3182 = vpop.permute.xlu0 %3181
        %3185 = vset.pattern.permute.xlu0 0
        %3186 = vperm.xlu0 %3185, %v3100
        %v3187 = vpop.permute.xlu0 %3186
        %3190 = vset.pattern.permute.xlu0 0
        %3191 = vperm.xlu0 %3190, %v3102
        %v3192 = vpop.permute.xlu0 %3191
        %3195 = vset.pattern.permute.xlu0 0
        %3196 = vperm.xlu0 %3195, %v3104
        %v3197 = vpop.permute.xlu0 %3196
        %3200 = vset.pattern.permute.xlu0 0
        %3201 = vperm.xlu0 %3200, %v3106
        %v3202 = vpop.permute.xlu0 %3201
        %3205 = vset.pattern.permute.xlu0 0
        %3206 = vperm.xlu0 %3205, %v3108
        %v3207 = vpop.permute.xlu0 %3206
        %3210 = vset.pattern.permute.xlu0 0
        %3211 = vperm.xlu0 %3210, %v3110
        %v3212 = vpop.permute.xlu0 %3211
        %3215 = vset.pattern.permute.xlu0 0
        %3216 = vperm.xlu0 %3215, %v3112
        %v3217 = vpop.permute.xlu0 %3216
        %3220 = vset.pattern.permute.xlu0 0
        %3221 = vperm.xlu0 %3220, %v3114
        %v3222 = vpop.permute.xlu0 %3221
        %3225 = vset.pattern.permute.xlu0 0
        %3226 = vperm.xlu0 %3225, %v3116
        %v3227 = vpop.permute.xlu0 %3226
        %3230 = vset.pattern.permute.xlu0 0
        %3231 = vperm.xlu0 %3230, %v3118
        %v3232 = vpop.permute.xlu0 %3231
        %3235 = vset.pattern.permute.xlu0 0
        %3236 = vperm.xlu0 %3235, %v3120
        %v3237 = vpop.permute.xlu0 %3236
        %3240 = vset.pattern.permute.xlu0 0
        %3241 = vperm.xlu0 %3240, %v3122
        %v3242 = vpop.permute.xlu0 %3241
        %3245 = vset.pattern.permute.xlu0 0
        %3246 = vperm.xlu0 %3245, %v3124
        %v3247 = vpop.permute.xlu0 %3246
        %3250 = vset.pattern.permute.xlu0 0
        %3251 = vperm.xlu0 %3250, %v3126
        %v3252 = vpop.permute.xlu0 %3251
        %3255 = vset.pattern.permute.xlu0 0
        %3256 = vperm.xlu0 %3255, %v3128
        %v3257 = vpop.permute.xlu0 %3256
        %3260 = vset.pattern.permute.xlu0 0
        %3261 = vperm.xlu0 %3260, %v3130
        %v3262 = vpop.permute.xlu0 %3261
        %3265 = vset.pattern.permute.xlu0 0
        %3266 = vperm.xlu0 %3265, %v3132
        %v3267 = vpop.permute.xlu0 %3266
        %3270 = vset.pattern.permute.xlu0 0
        %3271 = vperm.xlu0 %3270, %v3134
        %v3272 = vpop.permute.xlu0 %3271
        %3275 = vset.pattern.permute.xlu0 0
        %3276 = vperm.xlu0 %3275, %v3136
        %v3277 = vpop.permute.xlu0 %3276
        %3280 = vset.pattern.permute.xlu0 0
        %3281 = vperm.xlu0 %3280, %v3138
        %v3282 = vpop.permute.xlu0 %3281
        %3285 = vset.pattern.permute.xlu0 0
        %3286 = vperm.xlu0 %3285, %v3140
        %v3287 = vpop.permute.xlu0 %3286
        %3290 = vset.pattern.permute.xlu0 0
        %3291 = vperm.xlu0 %3290, %v3142
        %v3292 = vpop.permute.xlu0 %3291
        %3295 = vset.pattern.permute.xlu0 0
        %3296 = vperm.xlu0 %3295, %v3144
        %v3297 = vpop.permute.xlu0 %3296
        %3300 = vset.pattern.permute.xlu0 0
        %3301 = vperm.xlu0 %3300, %v3146
        %v3302 = vpop.permute.xlu0 %3301
        %3305 = vset.pattern.permute.xlu0 0
        %3306 = vperm.xlu0 %3305, %v3148
        %v3307 = vpop.permute.xlu0 %3306
        %v3309 = vmul.f32 %v3152, %v962
        %v3310 = vmul.f32 %v3157, %v963
        %v3311 = vmul.f32 %v3162, %v964
        %v3312 = vmul.f32 %v3167, %v965
        %v3313 = vmul.f32 %v3172, %v966
        %v3314 = vmul.f32 %v3177, %v967
        %v3315 = vmul.f32 %v3182, %v968
        %v3316 = vmul.f32 %v3187, %v969
        %v3317 = vmul.f32 %v3192, %v970
        %v3318 = vmul.f32 %v3197, %v971
        %v3319 = vmul.f32 %v3202, %v972
        %v3320 = vmul.f32 %v3207, %v973
        %v3321 = vmul.f32 %v3212, %v974
        %v3322 = vmul.f32 %v3217, %v975
        %v3323 = vmul.f32 %v3222, %v976
        %v3324 = vmul.f32 %v3227, %v977
        %v3325 = vmul.f32 %v3232, %v978
        %v3326 = vmul.f32 %v3237, %v979
        %v3327 = vmul.f32 %v3242, %v980
        %v3328 = vmul.f32 %v3247, %v981
        %v3329 = vmul.f32 %v3252, %v982
        %v3330 = vmul.f32 %v3257, %v983
        %v3331 = vmul.f32 %v3262, %v984
        %v3332 = vmul.f32 %v3267, %v985
        %v3333 = vmul.f32 %v3272, %v986
        %v3334 = vmul.f32 %v3277, %v987
        %v3335 = vmul.f32 %v3282, %v988
        %v3336 = vmul.f32 %v3287, %v989
        %v3337 = vmul.f32 %v3292, %v990
        %v3338 = vmul.f32 %v3297, %v991
        %v3339 = vmul.f32 %v3302, %v992
        %v3340 = vmul.f32 %v3307, %v993
        %v3341 = vsel %vm1067, %v3309, 0.0
        %v3342 = vrot.slane %v3341, 4
        %v3343 = vadd.f32 %v3341, %v3342
        %v3344 = vrot.slane %v3343, 2
        %v3345 = vadd.f32 %v3343, %v3344
        %v3346 = vrot.slane %v3345, 1
        %v3347 = vadd.f32 %v3345, %v3346
        %v3348 = vsel %vm1067, %v3310, 0.0
        %v3349 = vrot.slane %v3348, 4
        %v3350 = vadd.f32 %v3348, %v3349
        %v3351 = vrot.slane %v3350, 2
        %v3352 = vadd.f32 %v3350, %v3351
        %v3353 = vrot.slane %v3352, 1
        %v3354 = vadd.f32 %v3352, %v3353
        %v3355 = vsel %vm1067, %v3311, 0.0
        %v3356 = vrot.slane %v3355, 4
        %v3357 = vadd.f32 %v3355, %v3356
        %v3358 = vrot.slane %v3357, 2
        %v3359 = vadd.f32 %v3357, %v3358
        %v3360 = vrot.slane %v3359, 1
        %v3361 = vadd.f32 %v3359, %v3360
        %v3362 = vsel %vm1067, %v3312, 0.0
        %v3363 = vrot.slane %v3362, 4
        %v3364 = vadd.f32 %v3362, %v3363
        %v3365 = vrot.slane %v3364, 2
        %v3366 = vadd.f32 %v3364, %v3365
        %v3367 = vrot.slane %v3366, 1
        %v3368 = vadd.f32 %v3366, %v3367
        %v3369 = vsel %vm1067, %v3313, 0.0
        %v3370 = vrot.slane %v3369, 4
        %v3371 = vadd.f32 %v3369, %v3370
        %v3372 = vrot.slane %v3371, 2
        %v3373 = vadd.f32 %v3371, %v3372
        %v3374 = vrot.slane %v3373, 1
        %v3375 = vadd.f32 %v3373, %v3374
        %v3376 = vsel %vm1067, %v3314, 0.0
        %v3377 = vrot.slane %v3376, 4
        %v3378 = vadd.f32 %v3376, %v3377
        %v3379 = vrot.slane %v3378, 2
        %v3380 = vadd.f32 %v3378, %v3379
        %v3381 = vrot.slane %v3380, 1
        %v3382 = vadd.f32 %v3380, %v3381
        %v3383 = vsel %vm1067, %v3315, 0.0
        %v3384 = vrot.slane %v3383, 4
        %v3385 = vadd.f32 %v3383, %v3384
        %v3386 = vrot.slane %v3385, 2
        %v3387 = vadd.f32 %v3385, %v3386
        %v3388 = vrot.slane %v3387, 1
        %v3389 = vadd.f32 %v3387, %v3388
        %v3390 = vsel %vm1067, %v3316, 0.0
        %v3391 = vrot.slane %v3390, 4
        %v3392 = vadd.f32 %v3390, %v3391
        %v3393 = vrot.slane %v3392, 2
        %v3394 = vadd.f32 %v3392, %v3393
        %v3395 = vrot.slane %v3394, 1
        %v3396 = vadd.f32 %v3394, %v3395
        %v3397 = vsel %vm1067, %v3317, 0.0
        %v3398 = vrot.slane %v3397, 4
        %v3399 = vadd.f32 %v3397, %v3398
        %v3400 = vrot.slane %v3399, 2
        %v3401 = vadd.f32 %v3399, %v3400
        %v3402 = vrot.slane %v3401, 1
        %v3403 = vadd.f32 %v3401, %v3402
        %v3404 = vsel %vm1067, %v3318, 0.0
        %v3405 = vrot.slane %v3404, 4
        %v3406 = vadd.f32 %v3404, %v3405
        %v3407 = vrot.slane %v3406, 2
        %v3408 = vadd.f32 %v3406, %v3407
        %v3409 = vrot.slane %v3408, 1
        %v3410 = vadd.f32 %v3408, %v3409
        %v3411 = vsel %vm1067, %v3319, 0.0
        %v3412 = vrot.slane %v3411, 4
        %v3413 = vadd.f32 %v3411, %v3412
        %v3414 = vrot.slane %v3413, 2
        %v3415 = vadd.f32 %v3413, %v3414
        %v3416 = vrot.slane %v3415, 1
        %v3417 = vadd.f32 %v3415, %v3416
        %v3418 = vsel %vm1067, %v3320, 0.0
        %v3419 = vrot.slane %v3418, 4
        %v3420 = vadd.f32 %v3418, %v3419
        %v3421 = vrot.slane %v3420, 2
        %v3422 = vadd.f32 %v3420, %v3421
        %v3423 = vrot.slane %v3422, 1
        %v3424 = vadd.f32 %v3422, %v3423
        %v3425 = vsel %vm1067, %v3321, 0.0
        %v3426 = vrot.slane %v3425, 4
        %v3427 = vadd.f32 %v3425, %v3426
        %v3428 = vrot.slane %v3427, 2
        %v3429 = vadd.f32 %v3427, %v3428
        %v3430 = vrot.slane %v3429, 1
        %v3431 = vadd.f32 %v3429, %v3430
        %v3432 = vsel %vm1067, %v3322, 0.0
        %v3433 = vrot.slane %v3432, 4
        %v3434 = vadd.f32 %v3432, %v3433
        %v3435 = vrot.slane %v3434, 2
        %v3436 = vadd.f32 %v3434, %v3435
        %v3437 = vrot.slane %v3436, 1
        %v3438 = vadd.f32 %v3436, %v3437
        %v3439 = vsel %vm1067, %v3323, 0.0
        %v3440 = vrot.slane %v3439, 4
        %v3441 = vadd.f32 %v3439, %v3440
        %v3442 = vrot.slane %v3441, 2
        %v3443 = vadd.f32 %v3441, %v3442
        %v3444 = vrot.slane %v3443, 1
        %v3445 = vadd.f32 %v3443, %v3444
        %v3446 = vsel %vm1067, %v3324, 0.0
        %v3447 = vrot.slane %v3446, 4
        %v3448 = vadd.f32 %v3446, %v3447
        %v3449 = vrot.slane %v3448, 2
        %v3450 = vadd.f32 %v3448, %v3449
        %v3451 = vrot.slane %v3450, 1
        %v3452 = vadd.f32 %v3450, %v3451
        %v3453 = vsel %vm1067, %v3325, 0.0
        %v3454 = vrot.slane %v3453, 4
        %v3455 = vadd.f32 %v3453, %v3454
        %v3456 = vrot.slane %v3455, 2
        %v3457 = vadd.f32 %v3455, %v3456
        %v3458 = vrot.slane %v3457, 1
        %v3459 = vadd.f32 %v3457, %v3458
        %v3460 = vsel %vm1067, %v3326, 0.0
        %v3461 = vrot.slane %v3460, 4
        %v3462 = vadd.f32 %v3460, %v3461
        %v3463 = vrot.slane %v3462, 2
        %v3464 = vadd.f32 %v3462, %v3463
        %v3465 = vrot.slane %v3464, 1
        %v3466 = vadd.f32 %v3464, %v3465
        %v3467 = vsel %vm1067, %v3327, 0.0
        %v3468 = vrot.slane %v3467, 4
        %v3469 = vadd.f32 %v3467, %v3468
        %v3470 = vrot.slane %v3469, 2
        %v3471 = vadd.f32 %v3469, %v3470
        %v3472 = vrot.slane %v3471, 1
        %v3473 = vadd.f32 %v3471, %v3472
        %v3474 = vsel %vm1067, %v3328, 0.0
        %v3475 = vrot.slane %v3474, 4
        %v3476 = vadd.f32 %v3474, %v3475
        %v3477 = vrot.slane %v3476, 2
        %v3478 = vadd.f32 %v3476, %v3477
        %v3479 = vrot.slane %v3478, 1
        %v3480 = vadd.f32 %v3478, %v3479
        %v3481 = vsel %vm1067, %v3329, 0.0
        %v3482 = vrot.slane %v3481, 4
        %v3483 = vadd.f32 %v3481, %v3482
        %v3484 = vrot.slane %v3483, 2
        %v3485 = vadd.f32 %v3483, %v3484
        %v3486 = vrot.slane %v3485, 1
        %v3487 = vadd.f32 %v3485, %v3486
        %v3488 = vsel %vm1067, %v3330, 0.0
        %v3489 = vrot.slane %v3488, 4
        %v3490 = vadd.f32 %v3488, %v3489
        %v3491 = vrot.slane %v3490, 2
        %v3492 = vadd.f32 %v3490, %v3491
        %v3493 = vrot.slane %v3492, 1
        %v3494 = vadd.f32 %v3492, %v3493
        %v3495 = vsel %vm1067, %v3331, 0.0
        %v3496 = vrot.slane %v3495, 4
        %v3497 = vadd.f32 %v3495, %v3496
        %v3498 = vrot.slane %v3497, 2
        %v3499 = vadd.f32 %v3497, %v3498
        %v3500 = vrot.slane %v3499, 1
        %v3501 = vadd.f32 %v3499, %v3500
        %v3502 = vsel %vm1067, %v3332, 0.0
        %v3503 = vrot.slane %v3502, 4
        %v3504 = vadd.f32 %v3502, %v3503
        %v3505 = vrot.slane %v3504, 2
        %v3506 = vadd.f32 %v3504, %v3505
        %v3507 = vrot.slane %v3506, 1
        %v3508 = vadd.f32 %v3506, %v3507
        %v3509 = vsel %vm1067, %v3333, 0.0
        %v3510 = vrot.slane %v3509, 4
        %v3511 = vadd.f32 %v3509, %v3510
        %v3512 = vrot.slane %v3511, 2
        %v3513 = vadd.f32 %v3511, %v3512
        %v3514 = vrot.slane %v3513, 1
        %v3515 = vadd.f32 %v3513, %v3514
        %v3516 = vsel %vm1067, %v3334, 0.0
        %v3517 = vrot.slane %v3516, 4
        %v3518 = vadd.f32 %v3516, %v3517
        %v3519 = vrot.slane %v3518, 2
        %v3520 = vadd.f32 %v3518, %v3519
        %v3521 = vrot.slane %v3520, 1
        %v3522 = vadd.f32 %v3520, %v3521
        %v3523 = vsel %vm1067, %v3335, 0.0
        %v3524 = vrot.slane %v3523, 4
        %v3525 = vadd.f32 %v3523, %v3524
        %v3526 = vrot.slane %v3525, 2
        %v3527 = vadd.f32 %v3525, %v3526
        %v3528 = vrot.slane %v3527, 1
        %v3529 = vadd.f32 %v3527, %v3528
        %v3530 = vsel %vm1067, %v3336, 0.0
        %v3531 = vrot.slane %v3530, 4
        %v3532 = vadd.f32 %v3530, %v3531
        %v3533 = vrot.slane %v3532, 2
        %v3534 = vadd.f32 %v3532, %v3533
        %v3535 = vrot.slane %v3534, 1
        %v3536 = vadd.f32 %v3534, %v3535
        %v3537 = vsel %vm1067, %v3337, 0.0
        %v3538 = vrot.slane %v3537, 4
        %v3539 = vadd.f32 %v3537, %v3538
        %v3540 = vrot.slane %v3539, 2
        %v3541 = vadd.f32 %v3539, %v3540
        %v3542 = vrot.slane %v3541, 1
        %v3543 = vadd.f32 %v3541, %v3542
        %v3544 = vsel %vm1067, %v3338, 0.0
        %v3545 = vrot.slane %v3544, 4
        %v3546 = vadd.f32 %v3544, %v3545
        %v3547 = vrot.slane %v3546, 2
        %v3548 = vadd.f32 %v3546, %v3547
        %v3549 = vrot.slane %v3548, 1
        %v3550 = vadd.f32 %v3548, %v3549
        %v3551 = vsel %vm1067, %v3339, 0.0
        %v3552 = vrot.slane %v3551, 4
        %v3553 = vadd.f32 %v3551, %v3552
        %v3554 = vrot.slane %v3553, 2
        %v3555 = vadd.f32 %v3553, %v3554
        %v3556 = vrot.slane %v3555, 1
        %v3557 = vadd.f32 %v3555, %v3556
        %v3558 = vsel %vm1067, %v3340, 0.0
        %v3559 = vrot.slane %v3558, 4
        %v3560 = vadd.f32 %v3558, %v3559
        %v3561 = vrot.slane %v3560, 2
        %v3562 = vadd.f32 %v3560, %v3561
        %v3563 = vrot.slane %v3562, 1
        %v3564 = vadd.f32 %v3562, %v3563
        %v3565 = vld [vmem:[%s12] sm:$0xff]
        %v3566 = vld [vmem:[%s12 + $0x8] sm:$0xff]
        %v3567 = vld [vmem:[%s12 + $0x10] sm:$0xff]
        %v3568 = vld [vmem:[%s12 + $0x18] sm:$0xff]
        %v3570 = vlaneseq
        %v3571 = vshrl.u32 %v3570, 7
        %v3572 = vsub.s32 0, %v3571
        %v3573 = vrot.slane %v1005, %v3572
        %v3576 = vsel %vm1067, %v898, 0
        %v3579 = vsel %vm1067, %v899, 0
        %v3582 = vsel %vm1067, %v900, 0
        %v3585 = vsel %vm1067, %v901, 0
        %v3588 = vsel %vm1067, %v902, 0
        %v3591 = vsel %vm1067, %v903, 0
        %v3594 = vsel %vm1067, %v904, 0
        %v3597 = vsel %vm1067, %v905, 0
        %3599 = vmatprep.subr.mxu0 0.0
        %3600 = vmatpush1.msra.mxu0 0.0
        %3601 = vmatprep.subr.mxu0 0.0
        %3602 = vmatpush1.msra.mxu0 0.0
        %3603 = vmatprep.subr.mxu0 0.0
        %3604 = vmatpush1.msra.mxu0 0.0
        %3605 = vmatprep.subr.mxu0 0.0
        %3606 = vmatpush1.msra.mxu0 0.0
        %3607 = vmatprep.subr.mxu0 0.0
        %3608 = vmatpush1.msra.mxu0 0.0
        %3609 = vmatprep.subr.mxu0 0.0
        %3610 = vmatpush1.msra.mxu0 0.0
        %3611 = vmatprep.subr.mxu0 0.0
        %3612 = vmatpush1.msra.mxu0 0.0
        %3613 = vmatprep.subr.mxu0 0.0
        %3614 = vmatpush1.msra.mxu0 0.0
        %3615 = vmatprep.subr.mxu0 0.0
        %3616 = vmatpush1.msra.mxu0 0.0
        %3617 = vmatprep.subr.mxu0 0.0
        %3618 = vmatpush1.msra.mxu0 0.0
        %3619 = vmatprep.subr.mxu0 0.0
        %3620 = vmatpush1.msra.mxu0 0.0
        %3621 = vmatprep.subr.mxu0 0.0
        %3622 = vmatpush1.msra.mxu0 0.0
        %3623 = vmatprep.subr.mxu0 0.0
        %3624 = vmatpush1.msra.mxu0 %v3568
        %3625 = vmatprep.subr.mxu0 0.0
        %3626 = vmatpush1.msra.mxu0 %v3567
        %3627 = vmatprep.subr.mxu0 0.0
        %3628 = vmatpush1.msra.mxu0 %v3566
        %3629 = vmatprep.subr.mxu0 0.0
        %3630 = vmatpush1.msra.mxu0 %v3565
        %3631 = vmatprep.subr.mxu0 0.0
        %3632 = vmatpush2.msra.mxu0 0.0
        %3633 = vmatprep.subr.mxu0 0.0
        %3634 = vmatpush2.msra.mxu0 0.0
        %3635 = vmatprep.subr.mxu0 0.0
        %3636 = vmatpush2.msra.mxu0 0.0
        %3637 = vmatprep.subr.mxu0 0.0
        %3638 = vmatpush2.msra.mxu0 0.0
        %3639 = vmatprep.subr.mxu0 0.0
        %3640 = vmatpush2.msra.mxu0 0.0
        %3641 = vmatprep.subr.mxu0 0.0
        %3642 = vmatpush2.msra.mxu0 0.0
        %3643 = vmatprep.subr.mxu0 0.0
        %3644 = vmatpush2.msra.mxu0 0.0
        %3645 = vmatprep.subr.mxu0 0.0
        %3646 = vmatpush2.msra.mxu0 0.0
        %3647 = vmatprep.subr.mxu0 0.0
        %3648 = vmatpush2.msra.mxu0 0.0
        %3649 = vmatprep.subr.mxu0 0.0
        %3650 = vmatpush2.msra.mxu0 0.0
        %3651 = vmatprep.subr.mxu0 0.0
        %3652 = vmatpush2.msra.mxu0 0.0
        %3653 = vmatprep.subr.mxu0 0.0
        %3654 = vmatpush2.msra.mxu0 0.0
        %3655 = vmatprep.subr.mxu0 0.0
        %3656 = vmatpush2.msra.mxu0 0.0
        %3657 = vmatprep.subr.mxu0 0.0
        %3658 = vmatpush2.msra.mxu0 0.0
        %3659 = vmatprep.subr.mxu0 0.0
        %3660 = vmatpush2.msra.mxu0 0.0
        %3661 = vmatprep.subr.mxu0 0.0
        %3662 = vmatpush2.msra.mxu0 0.0
        %3663 = vmatprep.mubr.f32.mxu0 0.0
        %3664 = vmatmul.mubr.f32.gmra.mxu0 %v3576
        %v3665 = vpop.f32.mrf.mxu0
        %v3666 = vadd.f32 %v3573, %v3665
        %v3667 = vpop.f32.mrf.mxu0
        %3668 = vmatprep.mubr.f32.mxu0 0.0
        %3669 = vmatmul.mubr.f32.gmra.mxu0 %v3579
        %v3670 = vpop.f32.mrf.mxu0
        %v3671 = vadd.f32 %v3573, %v3670
        %v3672 = vpop.f32.mrf.mxu0
        %3673 = vmatprep.mubr.f32.mxu0 0.0
        %3674 = vmatmul.mubr.f32.gmra.mxu0 %v3582
        %v3675 = vpop.f32.mrf.mxu0
        %v3676 = vadd.f32 %v3573, %v3675
        %v3677 = vpop.f32.mrf.mxu0
        %3678 = vmatprep.mubr.f32.mxu0 0.0
        %3679 = vmatmul.mubr.f32.gmra.mxu0 %v3585
        %v3680 = vpop.f32.mrf.mxu0
        %v3681 = vadd.f32 %v3573, %v3680
        %v3682 = vpop.f32.mrf.mxu0
        %3683 = vmatprep.mubr.f32.mxu0 0.0
        %3684 = vmatmul.mubr.f32.gmra.mxu0 %v3588
        %v3685 = vpop.f32.mrf.mxu0
        %v3686 = vadd.f32 %v3573, %v3685
        %v3687 = vpop.f32.mrf.mxu0
        %3688 = vmatprep.mubr.f32.mxu0 0.0
        %3689 = vmatmul.mubr.f32.gmra.mxu0 %v3591
        %v3690 = vpop.f32.mrf.mxu0
        %v3691 = vadd.f32 %v3573, %v3690
        %v3692 = vpop.f32.mrf.mxu0
        %3693 = vmatprep.mubr.f32.mxu0 0.0
        %3694 = vmatmul.mubr.f32.gmra.mxu0 %v3594
        %v3695 = vpop.f32.mrf.mxu0
        %v3696 = vadd.f32 %v3573, %v3695
        %v3697 = vpop.f32.mrf.mxu0
        %3698 = vmatprep.mubr.f32.mxu0 0.0
        %3699 = vmatmul.mubr.f32.gmra.mxu0 %v3597
        %v3700 = vpop.f32.mrf.mxu0
        %v3701 = vadd.f32 %v3573, %v3700
        %v3702 = vpop.f32.mrf.mxu0
        %3703 = vdwg.mxu0
        %v3704 = vmax.f32 %v3666, 0.0
        %v3705 = vmax.f32 %v3671, 0.0
        %v3706 = vmax.f32 %v3676, 0.0
        %v3707 = vmax.f32 %v3681, 0.0
        %v3708 = vmax.f32 %v3686, 0.0
        %v3709 = vmax.f32 %v3691, 0.0
        %v3710 = vmax.f32 %v3696, 0.0
        %v3711 = vmax.f32 %v3701, 0.0
        %v3712 = vld [vmem:[%s14] sm:$0xff]
        %v3713 = vld [vmem:[%s14 + $0x8] sm:$0xff]
        %v3714 = vld [vmem:[%s14 + $0x10] sm:$0xff]
        %v3715 = vld [vmem:[%s14 + $0x18] sm:$0xff]
        %v3717 = vlaneseq
        %v3718 = vshrl.u32 %v3717, 7
        %v3719 = vsub.s32 0, %v3718
        %v3720 = vrot.slane %v1006, %v3719
        %v3723 = vsel %vm1067, %v3704, 0
        %v3726 = vsel %vm1067, %v3705, 0
        %v3729 = vsel %vm1067, %v3706, 0
        %v3732 = vsel %vm1067, %v3707, 0
        %v3735 = vsel %vm1067, %v3708, 0
        %v3738 = vsel %vm1067, %v3709, 0
        %v3741 = vsel %vm1067, %v3710, 0
        %v3744 = vsel %vm1067, %v3711, 0
        %3746 = vmatprep.subr.mxu0 0.0
        %3747 = vmatpush1.msra.mxu0 0.0
        %3748 = vmatprep.subr.mxu0 0.0
        %3749 = vmatpush1.msra.mxu0 0.0
        %3750 = vmatprep.subr.mxu0 0.0
        %3751 = vmatpush1.msra.mxu0 0.0
        %3752 = vmatprep.subr.mxu0 0.0
        %3753 = vmatpush1.msra.mxu0 0.0
        %3754 = vmatprep.subr.mxu0 0.0
        %3755 = vmatpush1.msra.mxu0 0.0
        %3756 = vmatprep.subr.mxu0 0.0
        %3757 = vmatpush1.msra.mxu0 0.0
        %3758 = vmatprep.subr.mxu0 0.0
        %3759 = vmatpush1.msra.mxu0 0.0
        %3760 = vmatprep.subr.mxu0 0.0
        %3761 = vmatpush1.msra.mxu0 0.0
        %3762 = vmatprep.subr.mxu0 0.0
        %3763 = vmatpush1.msra.mxu0 0.0
        %3764 = vmatprep.subr.mxu0 0.0
        %3765 = vmatpush1.msra.mxu0 0.0
        %3766 = vmatprep.subr.mxu0 0.0
        %3767 = vmatpush1.msra.mxu0 0.0
        %3768 = vmatprep.subr.mxu0 0.0
        %3769 = vmatpush1.msra.mxu0 0.0
        %3770 = vmatprep.subr.mxu0 0.0
        %3771 = vmatpush1.msra.mxu0 %v3715
        %3772 = vmatprep.subr.mxu0 0.0
        %3773 = vmatpush1.msra.mxu0 %v3714
        %3774 = vmatprep.subr.mxu0 0.0
        %3775 = vmatpush1.msra.mxu0 %v3713
        %3776 = vmatprep.subr.mxu0 0.0
        %3777 = vmatpush1.msra.mxu0 %v3712
        %3778 = vmatprep.subr.mxu0 0.0
        %3779 = vmatpush2.msra.mxu0 0.0
        %3780 = vmatprep.subr.mxu0 0.0
        %3781 = vmatpush2.msra.mxu0 0.0
        %3782 = vmatprep.subr.mxu0 0.0
        %3783 = vmatpush2.msra.mxu0 0.0
        %3784 = vmatprep.subr.mxu0 0.0
        %3785 = vmatpush2.msra.mxu0 0.0
        %3786 = vmatprep.subr.mxu0 0.0
        %3787 = vmatpush2.msra.mxu0 0.0
        %3788 = vmatprep.subr.mxu0 0.0
        %3789 = vmatpush2.msra.mxu0 0.0
        %3790 = vmatprep.subr.mxu0 0.0
        %3791 = vmatpush2.msra.mxu0 0.0
        %3792 = vmatprep.subr.mxu0 0.0
        %3793 = vmatpush2.msra.mxu0 0.0
        %3794 = vmatprep.subr.mxu0 0.0
        %3795 = vmatpush2.msra.mxu0 0.0
        %3796 = vmatprep.subr.mxu0 0.0
        %3797 = vmatpush2.msra.mxu0 0.0
        %3798 = vmatprep.subr.mxu0 0.0
        %3799 = vmatpush2.msra.mxu0 0.0
        %3800 = vmatprep.subr.mxu0 0.0
        %3801 = vmatpush2.msra.mxu0 0.0
        %3802 = vmatprep.subr.mxu0 0.0
        %3803 = vmatpush2.msra.mxu0 0.0
        %3804 = vmatprep.subr.mxu0 0.0
        %3805 = vmatpush2.msra.mxu0 0.0
        %3806 = vmatprep.subr.mxu0 0.0
        %3807 = vmatpush2.msra.mxu0 0.0
        %3808 = vmatprep.subr.mxu0 0.0
        %3809 = vmatpush2.msra.mxu0 0.0
        %3810 = vmatprep.mubr.f32.mxu0 0.0
        %3811 = vmatmul.mubr.f32.gmra.mxu0 %v3723
        %v3812 = vpop.f32.mrf.mxu0
        %v3813 = vadd.f32 %v3720, %v3812
        %v3814 = vpop.f32.mrf.mxu0
        %3815 = vmatprep.mubr.f32.mxu0 0.0
        %3816 = vmatmul.mubr.f32.gmra.mxu0 %v3726
        %v3817 = vpop.f32.mrf.mxu0
        %v3818 = vadd.f32 %v3720, %v3817
        %v3819 = vpop.f32.mrf.mxu0
        %3820 = vmatprep.mubr.f32.mxu0 0.0
        %3821 = vmatmul.mubr.f32.gmra.mxu0 %v3729
        %v3822 = vpop.f32.mrf.mxu0
        %v3823 = vadd.f32 %v3720, %v3822
        %v3824 = vpop.f32.mrf.mxu0
        %3825 = vmatprep.mubr.f32.mxu0 0.0
        %3826 = vmatmul.mubr.f32.gmra.mxu0 %v3732
        %v3827 = vpop.f32.mrf.mxu0
        %v3828 = vadd.f32 %v3720, %v3827
        %v3829 = vpop.f32.mrf.mxu0
        %3830 = vmatprep.mubr.f32.mxu0 0.0
        %3831 = vmatmul.mubr.f32.gmra.mxu0 %v3735
        %v3832 = vpop.f32.mrf.mxu0
        %v3833 = vadd.f32 %v3720, %v3832
        %v3834 = vpop.f32.mrf.mxu0
        %3835 = vmatprep.mubr.f32.mxu0 0.0
        %3836 = vmatmul.mubr.f32.gmra.mxu0 %v3738
        %v3837 = vpop.f32.mrf.mxu0
        %v3838 = vadd.f32 %v3720, %v3837
        %v3839 = vpop.f32.mrf.mxu0
        %3840 = vmatprep.mubr.f32.mxu0 0.0
        %3841 = vmatmul.mubr.f32.gmra.mxu0 %v3741
        %v3842 = vpop.f32.mrf.mxu0
        %v3843 = vadd.f32 %v3720, %v3842
        %v3844 = vpop.f32.mrf.mxu0
        %3845 = vmatprep.mubr.f32.mxu0 0.0
        %3846 = vmatmul.mubr.f32.gmra.mxu0 %v3744
        %v3847 = vpop.f32.mrf.mxu0
        %v3848 = vadd.f32 %v3720, %v3847
        %v3849 = vpop.f32.mrf.mxu0
        %3850 = vdwg.mxu0
        %v3851 = vmul.f32 %v3813, 0.5
        %v3852 = vmul.f32 %v3818, 0.5
        %v3853 = vmul.f32 %v3823, 0.5
        %v3854 = vmul.f32 %v3828, 0.5
        %v3855 = vmul.f32 %v3833, 0.5
        %v3856 = vmul.f32 %v3838, 0.5
        %v3857 = vmul.f32 %v3843, 0.5
        %v3858 = vmul.f32 %v3848, 0.5
        %v3859 = vtanh.pop %v3851
        %v3860 = vtanh.pop %v3852
        %v3861 = vtanh.pop %v3853
        %v3862 = vtanh.pop %v3854
        %v3863 = vtanh.pop %v3855
        %v3864 = vtanh.pop %v3856
        %v3865 = vtanh.pop %v3857
        %v3866 = vtanh.pop %v3858
        %v3867 = vadd.f32 %v3859, 1.0
        %v3868 = vadd.f32 %v3860, 1.0
        %v3869 = vadd.f32 %v3861, 1.0
        %v3870 = vadd.f32 %v3862, 1.0
        %v3871 = vadd.f32 %v3863, 1.0
        %v3872 = vadd.f32 %v3864, 1.0
        %v3873 = vadd.f32 %v3865, 1.0
        %v3874 = vadd.f32 %v3866, 1.0
        %v3875 = vmul.f32 %v3867, 0.5
        %v3876 = vmul.f32 %v3868, 0.5
        %v3877 = vmul.f32 %v3869, 0.5
        %v3878 = vmul.f32 %v3870, 0.5
        %v3879 = vmul.f32 %v3871, 0.5
        %v3880 = vmul.f32 %v3872, 0.5
        %v3881 = vmul.f32 %v3873, 0.5
        %v3882 = vmul.f32 %v3874, 0.5
        %v3883 = vsel %vm1067, %v3875, 0.0
        %v3884 = vrot.slane %v3883, 4
        %v3885 = vadd.f32 %v3883, %v3884
        %v3886 = vrot.slane %v3885, 2
        %v3887 = vadd.f32 %v3885, %v3886
        %v3888 = vrot.slane %v3887, 1
        %v3889 = vadd.f32 %v3887, %v3888
        %v3890 = vsel %vm1067, %v3876, 0.0
        %v3891 = vrot.slane %v3890, 4
        %v3892 = vadd.f32 %v3890, %v3891
        %v3893 = vrot.slane %v3892, 2
        %v3894 = vadd.f32 %v3892, %v3893
        %v3895 = vrot.slane %v3894, 1
        %v3896 = vadd.f32 %v3894, %v3895
        %v3897 = vsel %vm1067, %v3877, 0.0
        %v3898 = vrot.slane %v3897, 4
        %v3899 = vadd.f32 %v3897, %v3898
        %v3900 = vrot.slane %v3899, 2
        %v3901 = vadd.f32 %v3899, %v3900
        %v3902 = vrot.slane %v3901, 1
        %v3903 = vadd.f32 %v3901, %v3902
        %v3904 = vsel %vm1067, %v3878, 0.0
        %v3905 = vrot.slane %v3904, 4
        %v3906 = vadd.f32 %v3904, %v3905
        %v3907 = vrot.slane %v3906, 2
        %v3908 = vadd.f32 %v3906, %v3907
        %v3909 = vrot.slane %v3908, 1
        %v3910 = vadd.f32 %v3908, %v3909
        %v3911 = vsel %vm1067, %v3879, 0.0
        %v3912 = vrot.slane %v3911, 4
        %v3913 = vadd.f32 %v3911, %v3912
        %v3914 = vrot.slane %v3913, 2
        %v3915 = vadd.f32 %v3913, %v3914
        %v3916 = vrot.slane %v3915, 1
        %v3917 = vadd.f32 %v3915, %v3916
        %v3918 = vsel %vm1067, %v3880, 0.0
        %v3919 = vrot.slane %v3918, 4
        %v3920 = vadd.f32 %v3918, %v3919
        %v3921 = vrot.slane %v3920, 2
        %v3922 = vadd.f32 %v3920, %v3921
        %v3923 = vrot.slane %v3922, 1
        %v3924 = vadd.f32 %v3922, %v3923
        %v3925 = vsel %vm1067, %v3881, 0.0
        %v3926 = vrot.slane %v3925, 4
        %v3927 = vadd.f32 %v3925, %v3926
        %v3928 = vrot.slane %v3927, 2
        %v3929 = vadd.f32 %v3927, %v3928
        %v3930 = vrot.slane %v3929, 1
        %v3931 = vadd.f32 %v3929, %v3930
        %v3932 = vsel %vm1067, %v3882, 0.0
        %v3933 = vrot.slane %v3932, 4
        %v3934 = vadd.f32 %v3932, %v3933
        %v3935 = vrot.slane %v3934, 2
        %v3936 = vadd.f32 %v3934, %v3935
        %v3937 = vrot.slane %v3936, 1
        %v3938 = vadd.f32 %v3936, %v3937
        %v3939 = vrcp.pop 8.0
        %v3940 = vmul.f32 %v3889, %v3939
        %v3941 = vmul.f32 %v3896, %v3939
        %v3942 = vmul.f32 %v3903, %v3939
        %v3943 = vmul.f32 %v3910, %v3939
        %v3944 = vmul.f32 %v3917, %v3939
        %v3945 = vmul.f32 %v3924, %v3939
        %v3946 = vmul.f32 %v3931, %v3939
        %v3947 = vmul.f32 %v3938, %v3939
        %v3948 = vld [vmem:[%s801] sm:$0xf]
        %v3949 = vunpack.c.l.bf16 %v3948
        %v3950 = vmul.f32 %v3940, %v3347
        %v3951 = vmul.f32 %v3941, %v3354
        %v3952 = vmul.f32 %v3942, %v3361
        %v3953 = vmul.f32 %v3943, %v3368
        %v3954 = vmul.f32 %v3944, %v3375
        %v3955 = vmul.f32 %v3945, %v3382
        %v3956 = vmul.f32 %v3946, %v3389
        %v3957 = vmul.f32 %v3947, %v3396
        %v3966 = vsel %vm2309, %v3941, %v3940
        %v3967 = vsel %vm2311, %v3942, %v3966
        %v3968 = vsel %vm2313, %v3943, %v3967
        %v3969 = vsel %vm2315, %v3944, %v3968
        %v3970 = vsel %vm2317, %v3945, %v3969
        %v3971 = vsel %vm2319, %v3946, %v3970
        %v3972 = vsel %vm2321, %v3947, %v3971
        %v3973 = vsel %vm1067, %v3972, 0
        %3975 = vmatprep.subr.mxu0 0.0
        %3976 = vmatpush1.msra.mxu0 0.0
        %3977 = vmatprep.subr.mxu0 0.0
        %3978 = vmatpush1.msra.mxu0 0.0
        %3979 = vmatprep.subr.mxu0 0.0
        %3980 = vmatpush1.msra.mxu0 0.0
        %3981 = vmatprep.subr.mxu0 0.0
        %3982 = vmatpush1.msra.mxu0 0.0
        %3983 = vmatprep.subr.mxu0 0.0
        %3984 = vmatpush1.msra.mxu0 0.0
        %3985 = vmatprep.subr.mxu0 0.0
        %3986 = vmatpush1.msra.mxu0 0.0
        %3987 = vmatprep.subr.mxu0 0.0
        %3988 = vmatpush1.msra.mxu0 0.0
        %3989 = vmatprep.subr.mxu0 0.0
        %3990 = vmatpush1.msra.mxu0 0.0
        %3991 = vmatprep.subr.mxu0 0.0
        %3992 = vmatpush1.msra.mxu0 0.0
        %3993 = vmatprep.subr.mxu0 0.0
        %3994 = vmatpush1.msra.mxu0 0.0
        %3995 = vmatprep.subr.mxu0 0.0
        %3996 = vmatpush1.msra.mxu0 0.0
        %3997 = vmatprep.subr.mxu0 0.0
        %3998 = vmatpush1.msra.mxu0 0.0
        %3999 = vmatprep.subr.mxu0 0.0
        %4000 = vmatpush1.msra.mxu0 %v1022
        %4001 = vmatprep.subr.mxu0 0.0
        %4002 = vmatpush1.msra.mxu0 %v1021
        %4003 = vmatprep.subr.mxu0 0.0
        %4004 = vmatpush1.msra.mxu0 %v1020
        %4005 = vmatprep.subr.mxu0 0.0
        %4006 = vmatpush1.msra.mxu0 %v1019
        %4007 = vmatprep.subr.mxu0 0.0
        %4008 = vmatpush2.msra.mxu0 0.0
        %4009 = vmatprep.subr.mxu0 0.0
        %4010 = vmatpush2.msra.mxu0 0.0
        %4011 = vmatprep.subr.mxu0 0.0
        %4012 = vmatpush2.msra.mxu0 0.0
        %4013 = vmatprep.subr.mxu0 0.0
        %4014 = vmatpush2.msra.mxu0 0.0
        %4015 = vmatprep.subr.mxu0 0.0
        %4016 = vmatpush2.msra.mxu0 0.0
        %4017 = vmatprep.subr.mxu0 0.0
        %4018 = vmatpush2.msra.mxu0 0.0
        %4019 = vmatprep.subr.mxu0 0.0
        %4020 = vmatpush2.msra.mxu0 0.0
        %4021 = vmatprep.subr.mxu0 0.0
        %4022 = vmatpush2.msra.mxu0 0.0
        %4023 = vmatprep.subr.mxu0 0.0
        %4024 = vmatpush2.msra.mxu0 0.0
        %4025 = vmatprep.subr.mxu0 0.0
        %4026 = vmatpush2.msra.mxu0 0.0
        %4027 = vmatprep.subr.mxu0 0.0
        %4028 = vmatpush2.msra.mxu0 0.0
        %4029 = vmatprep.subr.mxu0 0.0
        %4030 = vmatpush2.msra.mxu0 0.0
        %4031 = vmatprep.subr.mxu0 0.0
        %4032 = vmatpush2.msra.mxu0 0.0
        %4033 = vmatprep.subr.mxu0 0.0
        %4034 = vmatpush2.msra.mxu0 0.0
        %4035 = vmatprep.subr.mxu0 0.0
        %4036 = vmatpush2.msra.mxu0 0.0
        %4037 = vmatprep.subr.mxu0 0.0
        %4038 = vmatpush2.msra.mxu0 0.0
        %4039 = vmatprep.mubr.f32.mxu0 0.0
        %4040 = vmatmul.mubr.f32.gmra.mxu0 %v3973
        %v4041 = vpop.f32.mrf.mxu0
        %v4042 = vadd.f32 0.0, %v4041
        %v4043 = vpop.f32.mrf.mxu0
        %4044 = vdwg.mxu0
        %v4053 = vsel %vm2309, %v3354, %v3347
        %v4054 = vsel %vm2311, %v3361, %v4053
        %v4055 = vsel %vm2313, %v3368, %v4054
        %v4056 = vsel %vm2315, %v3375, %v4055
        %v4057 = vsel %vm2317, %v3382, %v4056
        %v4058 = vsel %vm2319, %v3389, %v4057
        %v4059 = vsel %vm2321, %v3396, %v4058
        %v4060 = vsel %vm1067, %v4059, 0
        %4062 = vmatprep.subr.mxu0 0.0
        %4063 = vmatpush1.msra.mxu0 0.0
        %4064 = vmatprep.subr.mxu0 0.0
        %4065 = vmatpush1.msra.mxu0 0.0
        %4066 = vmatprep.subr.mxu0 0.0
        %4067 = vmatpush1.msra.mxu0 0.0
        %4068 = vmatprep.subr.mxu0 0.0
        %4069 = vmatpush1.msra.mxu0 0.0
        %4070 = vmatprep.subr.mxu0 0.0
        %4071 = vmatpush1.msra.mxu0 0.0
        %4072 = vmatprep.subr.mxu0 0.0
        %4073 = vmatpush1.msra.mxu0 0.0
        %4074 = vmatprep.subr.mxu0 0.0
        %4075 = vmatpush1.msra.mxu0 0.0
        %4076 = vmatprep.subr.mxu0 0.0
        %4077 = vmatpush1.msra.mxu0 0.0
        %4078 = vmatprep.subr.mxu0 0.0
        %4079 = vmatpush1.msra.mxu0 0.0
        %4080 = vmatprep.subr.mxu0 0.0
        %4081 = vmatpush1.msra.mxu0 0.0
        %4082 = vmatprep.subr.mxu0 0.0
        %4083 = vmatpush1.msra.mxu0 0.0
        %4084 = vmatprep.subr.mxu0 0.0
        %4085 = vmatpush1.msra.mxu0 0.0
        %4086 = vmatprep.subr.mxu0 0.0
        %4087 = vmatpush1.msra.mxu0 %v1018
        %4088 = vmatprep.subr.mxu0 0.0
        %4089 = vmatpush1.msra.mxu0 %v1017
        %4090 = vmatprep.subr.mxu0 0.0
        %4091 = vmatpush1.msra.mxu0 %v1016
        %4092 = vmatprep.subr.mxu0 0.0
        %4093 = vmatpush1.msra.mxu0 %v1015
        %4094 = vmatprep.subr.mxu0 0.0
        %4095 = vmatpush2.msra.mxu0 0.0
        %4096 = vmatprep.subr.mxu0 0.0
        %4097 = vmatpush2.msra.mxu0 0.0
        %4098 = vmatprep.subr.mxu0 0.0
        %4099 = vmatpush2.msra.mxu0 0.0
        %4100 = vmatprep.subr.mxu0 0.0
        %4101 = vmatpush2.msra.mxu0 0.0
        %4102 = vmatprep.subr.mxu0 0.0
        %4103 = vmatpush2.msra.mxu0 0.0
        %4104 = vmatprep.subr.mxu0 0.0
        %4105 = vmatpush2.msra.mxu0 0.0
        %4106 = vmatprep.subr.mxu0 0.0
        %4107 = vmatpush2.msra.mxu0 0.0
        %4108 = vmatprep.subr.mxu0 0.0
        %4109 = vmatpush2.msra.mxu0 0.0
        %4110 = vmatprep.subr.mxu0 0.0
        %4111 = vmatpush2.msra.mxu0 0.0
        %4112 = vmatprep.subr.mxu0 0.0
        %4113 = vmatpush2.msra.mxu0 0.0
        %4114 = vmatprep.subr.mxu0 0.0
        %4115 = vmatpush2.msra.mxu0 0.0
        %4116 = vmatprep.subr.mxu0 0.0
        %4117 = vmatpush2.msra.mxu0 0.0
        %4118 = vmatprep.subr.mxu0 0.0
        %4119 = vmatpush2.msra.mxu0 0.0
        %4120 = vmatprep.subr.mxu0 0.0
        %4121 = vmatpush2.msra.mxu0 0.0
        %4122 = vmatprep.subr.mxu0 0.0
        %4123 = vmatpush2.msra.mxu0 0.0
        %4124 = vmatprep.subr.mxu0 0.0
        %4125 = vmatpush2.msra.mxu0 0.0
        %4126 = vmatprep.mubr.f32.mxu0 0.0
        %4127 = vmatmul.mubr.f32.gmra.mxu0 %v4060
        %v4128 = vpop.f32.mrf.mxu0
        %v4129 = vadd.f32 %v4042, %v4128
        %v4130 = vpop.f32.mrf.mxu0
        %4131 = vdwg.mxu0
        %v4140 = vsel %vm2309, %v3951, %v3950
        %v4141 = vsel %vm2311, %v3952, %v4140
        %v4142 = vsel %vm2313, %v3953, %v4141
        %v4143 = vsel %vm2315, %v3954, %v4142
        %v4144 = vsel %vm2317, %v3955, %v4143
        %v4145 = vsel %vm2319, %v3956, %v4144
        %v4146 = vsel %vm2321, %v3957, %v4145
        %v4147 = vsel %vm1067, %v4146, 0
        %4149 = vmatprep.subr.mxu0 0.0
        %4150 = vmatpush1.msra.mxu0 0.0
        %4151 = vmatprep.subr.mxu0 0.0
        %4152 = vmatpush1.msra.mxu0 0.0
        %4153 = vmatprep.subr.mxu0 0.0
        %4154 = vmatpush1.msra.mxu0 0.0
        %4155 = vmatprep.subr.mxu0 0.0
        %4156 = vmatpush1.msra.mxu0 0.0
        %4157 = vmatprep.subr.mxu0 0.0
        %4158 = vmatpush1.msra.mxu0 0.0
        %4159 = vmatprep.subr.mxu0 0.0
        %4160 = vmatpush1.msra.mxu0 0.0
        %4161 = vmatprep.subr.mxu0 0.0
        %4162 = vmatpush1.msra.mxu0 0.0
        %4163 = vmatprep.subr.mxu0 0.0
        %4164 = vmatpush1.msra.mxu0 0.0
        %4165 = vmatprep.subr.mxu0 0.0
        %4166 = vmatpush1.msra.mxu0 0.0
        %4167 = vmatprep.subr.mxu0 0.0
        %4168 = vmatpush1.msra.mxu0 0.0
        %4169 = vmatprep.subr.mxu0 0.0
        %4170 = vmatpush1.msra.mxu0 0.0
        %4171 = vmatprep.subr.mxu0 0.0
        %4172 = vmatpush1.msra.mxu0 0.0
        %4173 = vmatprep.subr.mxu0 0.0
        %4174 = vmatpush1.msra.mxu0 %v1026
        %4175 = vmatprep.subr.mxu0 0.0
        %4176 = vmatpush1.msra.mxu0 %v1025
        %4177 = vmatprep.subr.mxu0 0.0
        %4178 = vmatpush1.msra.mxu0 %v1024
        %4179 = vmatprep.subr.mxu0 0.0
        %4180 = vmatpush1.msra.mxu0 %v1023
        %4181 = vmatprep.subr.mxu0 0.0
        %4182 = vmatpush2.msra.mxu0 0.0
        %4183 = vmatprep.subr.mxu0 0.0
        %4184 = vmatpush2.msra.mxu0 0.0
        %4185 = vmatprep.subr.mxu0 0.0
        %4186 = vmatpush2.msra.mxu0 0.0
        %4187 = vmatprep.subr.mxu0 0.0
        %4188 = vmatpush2.msra.mxu0 0.0
        %4189 = vmatprep.subr.mxu0 0.0
        %4190 = vmatpush2.msra.mxu0 0.0
        %4191 = vmatprep.subr.mxu0 0.0
        %4192 = vmatpush2.msra.mxu0 0.0
        %4193 = vmatprep.subr.mxu0 0.0
        %4194 = vmatpush2.msra.mxu0 0.0
        %4195 = vmatprep.subr.mxu0 0.0
        %4196 = vmatpush2.msra.mxu0 0.0
        %4197 = vmatprep.subr.mxu0 0.0
        %4198 = vmatpush2.msra.mxu0 0.0
        %4199 = vmatprep.subr.mxu0 0.0
        %4200 = vmatpush2.msra.mxu0 0.0
        %4201 = vmatprep.subr.mxu0 0.0
        %4202 = vmatpush2.msra.mxu0 0.0
        %4203 = vmatprep.subr.mxu0 0.0
        %4204 = vmatpush2.msra.mxu0 0.0
        %4205 = vmatprep.subr.mxu0 0.0
        %4206 = vmatpush2.msra.mxu0 0.0
        %4207 = vmatprep.subr.mxu0 0.0
        %4208 = vmatpush2.msra.mxu0 0.0
        %4209 = vmatprep.subr.mxu0 0.0
        %4210 = vmatpush2.msra.mxu0 0.0
        %4211 = vmatprep.subr.mxu0 0.0
        %4212 = vmatpush2.msra.mxu0 0.0
        %4213 = vmatprep.mubr.f32.mxu0 0.0
        %4214 = vmatmul.mubr.f32.gmra.mxu0 %v4147
        %v4215 = vpop.f32.mrf.mxu0
        %v4216 = vadd.f32 0.0, %v4215
        %v4217 = vpop.f32.mrf.mxu0
        %4218 = vdwg.mxu0
        %v4219 = vadd.f32 %v4129, %v4216
        %4220 = vmatprep.subr.mxu0 0.0
        %4221 = vmatpush1.msra.mxu0 0.0
        %4222 = vmatprep.subr.mxu0 0.0
        %4223 = vmatpush1.msra.mxu0 0.0
        %4224 = vmatprep.subr.mxu0 0.0
        %4225 = vmatpush1.msra.mxu0 0.0
        %4226 = vmatprep.subr.mxu0 0.0
        %4227 = vmatpush1.msra.mxu0 0.0
        %4228 = vmatprep.subr.mxu0 0.0
        %4229 = vmatpush1.msra.mxu0 0.0
        %4230 = vmatprep.subr.mxu0 0.0
        %4231 = vmatpush1.msra.mxu0 0.0
        %4232 = vmatprep.subr.mxu0 0.0
        %4233 = vmatpush1.msra.mxu0 0.0
        %4234 = vmatprep.subr.mxu0 0.0
        %4235 = vmatpush1.msra.mxu0 0.0
        %4236 = vmatprep.subr.mxu0 0.0
        %4237 = vmatpush1.msra.mxu0 0.0
        %4238 = vmatprep.subr.mxu0 0.0
        %4239 = vmatpush1.msra.mxu0 0.0
        %4240 = vmatprep.subr.mxu0 0.0
        %4241 = vmatpush1.msra.mxu0 0.0
        %4242 = vmatprep.subr.mxu0 0.0
        %4243 = vmatpush1.msra.mxu0 0.0
        %4244 = vmatprep.subr.mxu0 0.0
        %4245 = vmatpush1.msra.mxu0 %v1030
        %4246 = vmatprep.subr.mxu0 0.0
        %4247 = vmatpush1.msra.mxu0 %v1029
        %4248 = vmatprep.subr.mxu0 0.0
        %4249 = vmatpush1.msra.mxu0 %v1028
        %4250 = vmatprep.subr.mxu0 0.0
        %4251 = vmatpush1.msra.mxu0 %v1027
        %4252 = vmatprep.subr.mxu0 0.0
        %4253 = vmatpush2.msra.mxu0 0.0
        %4254 = vmatprep.subr.mxu0 0.0
        %4255 = vmatpush2.msra.mxu0 0.0
        %4256 = vmatprep.subr.mxu0 0.0
        %4257 = vmatpush2.msra.mxu0 0.0
        %4258 = vmatprep.subr.mxu0 0.0
        %4259 = vmatpush2.msra.mxu0 0.0
        %4260 = vmatprep.subr.mxu0 0.0
        %4261 = vmatpush2.msra.mxu0 0.0
        %4262 = vmatprep.subr.mxu0 0.0
        %4263 = vmatpush2.msra.mxu0 0.0
        %4264 = vmatprep.subr.mxu0 0.0
        %4265 = vmatpush2.msra.mxu0 0.0
        %4266 = vmatprep.subr.mxu0 0.0
        %4267 = vmatpush2.msra.mxu0 0.0
        %4268 = vmatprep.subr.mxu0 0.0
        %4269 = vmatpush2.msra.mxu0 0.0
        %4270 = vmatprep.subr.mxu0 0.0
        %4271 = vmatpush2.msra.mxu0 0.0
        %4272 = vmatprep.subr.mxu0 0.0
        %4273 = vmatpush2.msra.mxu0 0.0
        %4274 = vmatprep.subr.mxu0 0.0
        %4275 = vmatpush2.msra.mxu0 0.0
        %4276 = vmatprep.subr.mxu0 0.0
        %4277 = vmatpush2.msra.mxu0 0.0
        %4278 = vmatprep.subr.mxu0 0.0
        %4279 = vmatpush2.msra.mxu0 0.0
        %4280 = vmatprep.subr.mxu0 0.0
        %4281 = vmatpush2.msra.mxu0 0.0
        %4282 = vmatprep.subr.mxu0 0.0
        %4283 = vmatpush2.msra.mxu0 0.0
        %4284 = vmatprep.mubr.f32.mxu0 0.0
        %4285 = vmatmul.mubr.f32.gmra.mxu0 %v3973
        %v4286 = vpop.f32.mrf.mxu0
        %v4287 = vadd.f32 0.0, %v4286
        %v4288 = vpop.f32.mrf.mxu0
        %4289 = vdwg.mxu0
        %v4290 = vadd.f32 %v4219, %v4287
        %4291 = vmatprep.subr.mxu0 0.0
        %4292 = vmatpush1.msra.mxu0 0.0
        %4293 = vmatprep.subr.mxu0 0.0
        %4294 = vmatpush1.msra.mxu0 0.0
        %4295 = vmatprep.subr.mxu0 0.0
        %4296 = vmatpush1.msra.mxu0 0.0
        %4297 = vmatprep.subr.mxu0 0.0
        %4298 = vmatpush1.msra.mxu0 0.0
        %4299 = vmatprep.subr.mxu0 0.0
        %4300 = vmatpush1.msra.mxu0 0.0
        %4301 = vmatprep.subr.mxu0 0.0
        %4302 = vmatpush1.msra.mxu0 0.0
        %4303 = vmatprep.subr.mxu0 0.0
        %4304 = vmatpush1.msra.mxu0 0.0
        %4305 = vmatprep.subr.mxu0 0.0
        %4306 = vmatpush1.msra.mxu0 0.0
        %4307 = vmatprep.subr.mxu0 0.0
        %4308 = vmatpush1.msra.mxu0 0.0
        %4309 = vmatprep.subr.mxu0 0.0
        %4310 = vmatpush1.msra.mxu0 0.0
        %4311 = vmatprep.subr.mxu0 0.0
        %4312 = vmatpush1.msra.mxu0 0.0
        %4313 = vmatprep.subr.mxu0 0.0
        %4314 = vmatpush1.msra.mxu0 0.0
        %4315 = vmatprep.subr.mxu0 0.0
        %4316 = vmatpush1.msra.mxu0 %v1034
        %4317 = vmatprep.subr.mxu0 0.0
        %4318 = vmatpush1.msra.mxu0 %v1033
        %4319 = vmatprep.subr.mxu0 0.0
        %4320 = vmatpush1.msra.mxu0 %v1032
        %4321 = vmatprep.subr.mxu0 0.0
        %4322 = vmatpush1.msra.mxu0 %v1031
        %4323 = vmatprep.subr.mxu0 0.0
        %4324 = vmatpush2.msra.mxu0 0.0
        %4325 = vmatprep.subr.mxu0 0.0
        %4326 = vmatpush2.msra.mxu0 0.0
        %4327 = vmatprep.subr.mxu0 0.0
        %4328 = vmatpush2.msra.mxu0 0.0
        %4329 = vmatprep.subr.mxu0 0.0
        %4330 = vmatpush2.msra.mxu0 0.0
        %4331 = vmatprep.subr.mxu0 0.0
        %4332 = vmatpush2.msra.mxu0 0.0
        %4333 = vmatprep.subr.mxu0 0.0
        %4334 = vmatpush2.msra.mxu0 0.0
        %4335 = vmatprep.subr.mxu0 0.0
        %4336 = vmatpush2.msra.mxu0 0.0
        %4337 = vmatprep.subr.mxu0 0.0
        %4338 = vmatpush2.msra.mxu0 0.0
        %4339 = vmatprep.subr.mxu0 0.0
        %4340 = vmatpush2.msra.mxu0 0.0
        %4341 = vmatprep.subr.mxu0 0.0
        %4342 = vmatpush2.msra.mxu0 0.0
        %4343 = vmatprep.subr.mxu0 0.0
        %4344 = vmatpush2.msra.mxu0 0.0
        %4345 = vmatprep.subr.mxu0 0.0
        %4346 = vmatpush2.msra.mxu0 0.0
        %4347 = vmatprep.subr.mxu0 0.0
        %4348 = vmatpush2.msra.mxu0 0.0
        %4349 = vmatprep.subr.mxu0 0.0
        %4350 = vmatpush2.msra.mxu0 0.0
        %4351 = vmatprep.subr.mxu0 0.0
        %4352 = vmatpush2.msra.mxu0 0.0
        %4353 = vmatprep.subr.mxu0 0.0
        %4354 = vmatpush2.msra.mxu0 0.0
        %4355 = vmatprep.mubr.f32.mxu0 0.0
        %4356 = vmatmul.mubr.f32.gmra.mxu0 %v4147
        %v4357 = vpop.f32.mrf.mxu0
        %v4358 = vadd.f32 0.0, %v4357
        %v4359 = vpop.f32.mrf.mxu0
        %4360 = vdwg.mxu0
        %v4361 = vadd.f32 %v4290, %v4358
        %v4363 = vlaneseq
        %v4364 = vshrl.u32 %v4363, 7
        %v4365 = vsub.s32 0, %v4364
        %v4366 = vrot.slane %v997, %v4365
        %v4368 = vadd.f32 %v4361, %v4366
        %vm4369 = vcmp.gt.f32.partialorder %v4368, 0.0
        %v4370 = vmul.f32 %v4368, 0.01
        %v4371 = vsel %vm4369, %v4368, %v4370
        %v4372 = vld [vmem:[%s8] sm:$0xff]
        %v4373 = vld [vmem:[%s8 + $0x8] sm:$0xff]
        %v4374 = vld [vmem:[%s8 + $0x10] sm:$0xff]
        %v4375 = vld [vmem:[%s8 + $0x18] sm:$0xff]
        %v4377 = vlaneseq
        %v4378 = vshrl.u32 %v4377, 7
        %v4379 = vsub.s32 0, %v4378
        %v4380 = vrot.slane %v998, %v4379
        %v4383 = vsel %vm1067, %v4371, 0
        %4385 = vmatprep.subr.mxu0 0.0
        %4386 = vmatpush1.msra.mxu0 0.0
        %4387 = vmatprep.subr.mxu0 0.0
        %4388 = vmatpush1.msra.mxu0 0.0
        %4389 = vmatprep.subr.mxu0 0.0
        %4390 = vmatpush1.msra.mxu0 0.0
        %4391 = vmatprep.subr.mxu0 0.0
        %4392 = vmatpush1.msra.mxu0 0.0
        %4393 = vmatprep.subr.mxu0 0.0
        %4394 = vmatpush1.msra.mxu0 0.0
        %4395 = vmatprep.subr.mxu0 0.0
        %4396 = vmatpush1.msra.mxu0 0.0
        %4397 = vmatprep.subr.mxu0 0.0
        %4398 = vmatpush1.msra.mxu0 0.0
        %4399 = vmatprep.subr.mxu0 0.0
        %4400 = vmatpush1.msra.mxu0 0.0
        %4401 = vmatprep.subr.mxu0 0.0
        %4402 = vmatpush1.msra.mxu0 0.0
        %4403 = vmatprep.subr.mxu0 0.0
        %4404 = vmatpush1.msra.mxu0 0.0
        %4405 = vmatprep.subr.mxu0 0.0
        %4406 = vmatpush1.msra.mxu0 0.0
        %4407 = vmatprep.subr.mxu0 0.0
        %4408 = vmatpush1.msra.mxu0 0.0
        %4409 = vmatprep.subr.mxu0 0.0
        %4410 = vmatpush1.msra.mxu0 %v4375
        %4411 = vmatprep.subr.mxu0 0.0
        %4412 = vmatpush1.msra.mxu0 %v4374
        %4413 = vmatprep.subr.mxu0 0.0
        %4414 = vmatpush1.msra.mxu0 %v4373
        %4415 = vmatprep.subr.mxu0 0.0
        %4416 = vmatpush1.msra.mxu0 %v4372
        %4417 = vmatprep.subr.mxu0 0.0
        %4418 = vmatpush2.msra.mxu0 0.0
        %4419 = vmatprep.subr.mxu0 0.0
        %4420 = vmatpush2.msra.mxu0 0.0
        %4421 = vmatprep.subr.mxu0 0.0
        %4422 = vmatpush2.msra.mxu0 0.0
        %4423 = vmatprep.subr.mxu0 0.0
        %4424 = vmatpush2.msra.mxu0 0.0
        %4425 = vmatprep.subr.mxu0 0.0
        %4426 = vmatpush2.msra.mxu0 0.0
        %4427 = vmatprep.subr.mxu0 0.0
        %4428 = vmatpush2.msra.mxu0 0.0
        %4429 = vmatprep.subr.mxu0 0.0
        %4430 = vmatpush2.msra.mxu0 0.0
        %4431 = vmatprep.subr.mxu0 0.0
        %4432 = vmatpush2.msra.mxu0 0.0
        %4433 = vmatprep.subr.mxu0 0.0
        %4434 = vmatpush2.msra.mxu0 0.0
        %4435 = vmatprep.subr.mxu0 0.0
        %4436 = vmatpush2.msra.mxu0 0.0
        %4437 = vmatprep.subr.mxu0 0.0
        %4438 = vmatpush2.msra.mxu0 0.0
        %4439 = vmatprep.subr.mxu0 0.0
        %4440 = vmatpush2.msra.mxu0 0.0
        %4441 = vmatprep.subr.mxu0 0.0
        %4442 = vmatpush2.msra.mxu0 0.0
        %4443 = vmatprep.subr.mxu0 0.0
        %4444 = vmatpush2.msra.mxu0 0.0
        %4445 = vmatprep.subr.mxu0 0.0
        %4446 = vmatpush2.msra.mxu0 0.0
        %4447 = vmatprep.subr.mxu0 0.0
        %4448 = vmatpush2.msra.mxu0 0.0
        %4449 = vmatprep.mubr.f32.mxu0 0.0
        %4450 = vmatmul.mubr.f32.gmra.mxu0 %v4383
        %v4451 = vpop.f32.mrf.mxu0
        %v4452 = vadd.f32 %v4380, %v4451
        %v4453 = vpop.f32.mrf.mxu0
        %4454 = vdwg.mxu0
        %vm4455 = vcmp.gt.f32.partialorder %v4452, 0.0
        %v4456 = vmul.f32 %v4452, 0.01
        %v4457 = vsel %vm4455, %v4452, %v4456
        %v4459 = vlaneseq
        %v4460 = vshrl.u32 %v4459, 7
        %v4461 = vsub.s32 0, %v4460
        %v4462 = vrot.slane %v999, %v4461
        %v4464 = vmul.f32 %v4457, %v4462
        %v4465 = vsel %vm1067, %v4464, 0.0
        %4466 = vadd.xlane.f32.xlu0 %v4465
        %v4467 = vpop.xlane.xlu0 %4466
        %v4469 = vlaneseq
        %v4470 = vshrl.u32 %v4469, 7
        %v4471 = vsub.s32 0, %v4470
        %v4472 = vrot.slane %v1000, %v4471
        %v4474 = vadd.f32 %v4467, %v4472
        %v4475 = vmul.f32 %v4474, 0.5
        %v4476 = vtanh.pop %v4475
        %v4477 = vadd.f32 %v4476, 1.0
        %v4478 = vmul.f32 %v4477, 0.5
        %4480 = vset.pattern.permute.xlu0 0
        %4481 = vperm.xlu0 %4480, %v4478
        %v4482 = vpop.permute.xlu0 %4481
        %v4485 = vmul.f32 %v4482, %v4059
        %v4486 = vld [vmem:[%s16] sm:$0xff]
        %v4487 = vld [vmem:[%s16 + $0x8] sm:$0xff]
        %v4488 = vld [vmem:[%s16 + $0x10] sm:$0xff]
        %v4489 = vld [vmem:[%s16 + $0x18] sm:$0xff]
        %v4491 = vlaneseq
        %v4492 = vshrl.u32 %v4491, 7
        %v4493 = vsub.s32 0, %v4492
        %v4494 = vrot.slane %v1001, %v4493
        %v4497 = vsel %vm1067, %v4485, 0
        %4499 = vmatprep.subr.mxu0 0.0
        %4500 = vmatpush1.msra.mxu0 0.0
        %4501 = vmatprep.subr.mxu0 0.0
        %4502 = vmatpush1.msra.mxu0 0.0
        %4503 = vmatprep.subr.mxu0 0.0
        %4504 = vmatpush1.msra.mxu0 0.0
        %4505 = vmatprep.subr.mxu0 0.0
        %4506 = vmatpush1.msra.mxu0 0.0
        %4507 = vmatprep.subr.mxu0 0.0
        %4508 = vmatpush1.msra.mxu0 0.0
        %4509 = vmatprep.subr.mxu0 0.0
        %4510 = vmatpush1.msra.mxu0 0.0
        %4511 = vmatprep.subr.mxu0 0.0
        %4512 = vmatpush1.msra.mxu0 0.0
        %4513 = vmatprep.subr.mxu0 0.0
        %4514 = vmatpush1.msra.mxu0 0.0
        %4515 = vmatprep.subr.mxu0 0.0
        %4516 = vmatpush1.msra.mxu0 0.0
        %4517 = vmatprep.subr.mxu0 0.0
        %4518 = vmatpush1.msra.mxu0 0.0
        %4519 = vmatprep.subr.mxu0 0.0
        %4520 = vmatpush1.msra.mxu0 0.0
        %4521 = vmatprep.subr.mxu0 0.0
        %4522 = vmatpush1.msra.mxu0 0.0
        %4523 = vmatprep.subr.mxu0 0.0
        %4524 = vmatpush1.msra.mxu0 %v4489
        %4525 = vmatprep.subr.mxu0 0.0
        %4526 = vmatpush1.msra.mxu0 %v4488
        %4527 = vmatprep.subr.mxu0 0.0
        %4528 = vmatpush1.msra.mxu0 %v4487
        %4529 = vmatprep.subr.mxu0 0.0
        %4530 = vmatpush1.msra.mxu0 %v4486
        %4531 = vmatprep.subr.mxu0 0.0
        %4532 = vmatpush2.msra.mxu0 0.0
        %4533 = vmatprep.subr.mxu0 0.0
        %4534 = vmatpush2.msra.mxu0 0.0
        %4535 = vmatprep.subr.mxu0 0.0
        %4536 = vmatpush2.msra.mxu0 0.0
        %4537 = vmatprep.subr.mxu0 0.0
        %4538 = vmatpush2.msra.mxu0 0.0
        %4539 = vmatprep.subr.mxu0 0.0
        %4540 = vmatpush2.msra.mxu0 0.0
        %4541 = vmatprep.subr.mxu0 0.0
        %4542 = vmatpush2.msra.mxu0 0.0
        %4543 = vmatprep.subr.mxu0 0.0
        %4544 = vmatpush2.msra.mxu0 0.0
        %4545 = vmatprep.subr.mxu0 0.0
        %4546 = vmatpush2.msra.mxu0 0.0
        %4547 = vmatprep.subr.mxu0 0.0
        %4548 = vmatpush2.msra.mxu0 0.0
        %4549 = vmatprep.subr.mxu0 0.0
        %4550 = vmatpush2.msra.mxu0 0.0
        %4551 = vmatprep.subr.mxu0 0.0
        %4552 = vmatpush2.msra.mxu0 0.0
        %4553 = vmatprep.subr.mxu0 0.0
        %4554 = vmatpush2.msra.mxu0 0.0
        %4555 = vmatprep.subr.mxu0 0.0
        %4556 = vmatpush2.msra.mxu0 0.0
        %4557 = vmatprep.subr.mxu0 0.0
        %4558 = vmatpush2.msra.mxu0 0.0
        %4559 = vmatprep.subr.mxu0 0.0
        %4560 = vmatpush2.msra.mxu0 0.0
        %4561 = vmatprep.subr.mxu0 0.0
        %4562 = vmatpush2.msra.mxu0 0.0
        %4563 = vmatprep.mubr.f32.mxu0 0.0
        %4564 = vmatmul.mubr.f32.gmra.mxu0 %v4497
        %v4565 = vpop.f32.mrf.mxu0
        %v4566 = vadd.f32 %v4494, %v4565
        %v4567 = vpop.f32.mrf.mxu0
        %4568 = vdwg.mxu0
        %vm4569 = vcmp.gt.f32.partialorder %v4566, 0.0
        %v4570 = vmul.f32 %v4566, 0.01
        %v4571 = vsel %vm4569, %v4566, %v4570
        %v4572 = vld [vmem:[%s18] sm:$0xff]
        %v4573 = vld [vmem:[%s18 + $0x8] sm:$0xff]
        %v4574 = vld [vmem:[%s18 + $0x10] sm:$0xff]
        %v4575 = vld [vmem:[%s18 + $0x18] sm:$0xff]
        %v4577 = vlaneseq
        %v4578 = vshrl.u32 %v4577, 7
        %v4579 = vsub.s32 0, %v4578
        %v4580 = vrot.slane %v1002, %v4579
        %v4583 = vsel %vm1067, %v4571, 0
        %4585 = vmatprep.subr.mxu0 0.0
        %4586 = vmatpush1.msra.mxu0 0.0
        %4587 = vmatprep.subr.mxu0 0.0
        %4588 = vmatpush1.msra.mxu0 0.0
        %4589 = vmatprep.subr.mxu0 0.0
        %4590 = vmatpush1.msra.mxu0 0.0
        %4591 = vmatprep.subr.mxu0 0.0
        %4592 = vmatpush1.msra.mxu0 0.0
        %4593 = vmatprep.subr.mxu0 0.0
        %4594 = vmatpush1.msra.mxu0 0.0
        %4595 = vmatprep.subr.mxu0 0.0
        %4596 = vmatpush1.msra.mxu0 0.0
        %4597 = vmatprep.subr.mxu0 0.0
        %4598 = vmatpush1.msra.mxu0 0.0
        %4599 = vmatprep.subr.mxu0 0.0
        %4600 = vmatpush1.msra.mxu0 0.0
        %4601 = vmatprep.subr.mxu0 0.0
        %4602 = vmatpush1.msra.mxu0 0.0
        %4603 = vmatprep.subr.mxu0 0.0
        %4604 = vmatpush1.msra.mxu0 0.0
        %4605 = vmatprep.subr.mxu0 0.0
        %4606 = vmatpush1.msra.mxu0 0.0
        %4607 = vmatprep.subr.mxu0 0.0
        %4608 = vmatpush1.msra.mxu0 0.0
        %4609 = vmatprep.subr.mxu0 0.0
        %4610 = vmatpush1.msra.mxu0 %v4575
        %4611 = vmatprep.subr.mxu0 0.0
        %4612 = vmatpush1.msra.mxu0 %v4574
        %4613 = vmatprep.subr.mxu0 0.0
        %4614 = vmatpush1.msra.mxu0 %v4573
        %4615 = vmatprep.subr.mxu0 0.0
        %4616 = vmatpush1.msra.mxu0 %v4572
        %4617 = vmatprep.subr.mxu0 0.0
        %4618 = vmatpush2.msra.mxu0 0.0
        %4619 = vmatprep.subr.mxu0 0.0
        %4620 = vmatpush2.msra.mxu0 0.0
        %4621 = vmatprep.subr.mxu0 0.0
        %4622 = vmatpush2.msra.mxu0 0.0
        %4623 = vmatprep.subr.mxu0 0.0
        %4624 = vmatpush2.msra.mxu0 0.0
        %4625 = vmatprep.subr.mxu0 0.0
        %4626 = vmatpush2.msra.mxu0 0.0
        %4627 = vmatprep.subr.mxu0 0.0
        %4628 = vmatpush2.msra.mxu0 0.0
        %4629 = vmatprep.subr.mxu0 0.0
        %4630 = vmatpush2.msra.mxu0 0.0
        %4631 = vmatprep.subr.mxu0 0.0
        %4632 = vmatpush2.msra.mxu0 0.0
        %4633 = vmatprep.subr.mxu0 0.0
        %4634 = vmatpush2.msra.mxu0 0.0
        %4635 = vmatprep.subr.mxu0 0.0
        %4636 = vmatpush2.msra.mxu0 0.0
        %4637 = vmatprep.subr.mxu0 0.0
        %4638 = vmatpush2.msra.mxu0 0.0
        %4639 = vmatprep.subr.mxu0 0.0
        %4640 = vmatpush2.msra.mxu0 0.0
        %4641 = vmatprep.subr.mxu0 0.0
        %4642 = vmatpush2.msra.mxu0 0.0
        %4643 = vmatprep.subr.mxu0 0.0
        %4644 = vmatpush2.msra.mxu0 0.0
        %4645 = vmatprep.subr.mxu0 0.0
        %4646 = vmatpush2.msra.mxu0 0.0
        %4647 = vmatprep.subr.mxu0 0.0
        %4648 = vmatpush2.msra.mxu0 0.0
        %4649 = vmatprep.mubr.f32.mxu0 0.0
        %4650 = vmatmul.mubr.f32.gmra.mxu0 %v4583
        %v4651 = vpop.f32.mrf.mxu0
        %v4652 = vadd.f32 %v4580, %v4651
        %v4653 = vpop.f32.mrf.mxu0
        %4654 = vdwg.mxu0
        %vm4655 = vcmp.gt.f32.partialorder %v4652, 0.0
        %v4656 = vmul.f32 %v4652, 0.01
        %v4657 = vsel %vm4655, %v4652, %v4656
        %v4659 = vrot.slane %v4657, 1
        %v4660 = vrot.slane %v4657, 2
        %v4661 = vrot.slane %v4657, 3
        %v4662 = vrot.slane %v4657, 4
        %v4663 = vrot.slane %v4657, 5
        %v4664 = vrot.slane %v4657, 6
        %v4665 = vrot.slane %v4657, 7
        %v4674 = vadd.f32 %v3940, %v4657
        %v4675 = vadd.f32 %v3941, %v4659
        %v4676 = vadd.f32 %v3942, %v4660
        %v4677 = vadd.f32 %v3943, %v4661
        %v4678 = vadd.f32 %v3944, %v4662
        %v4679 = vadd.f32 %v3945, %v4663
        %v4680 = vadd.f32 %v3946, %v4664
        %v4681 = vadd.f32 %v3947, %v4665
        %v4682 = vadd.f32 %v4674, %v4657
        %v4683 = vadd.f32 %v4675, %v4659
        %v4684 = vadd.f32 %v4676, %v4660
        %v4685 = vadd.f32 %v4677, %v4661
        %v4686 = vadd.f32 %v4678, %v4662
        %v4687 = vadd.f32 %v4679, %v4663
        %v4688 = vadd.f32 %v4680, %v4664
        %v4689 = vadd.f32 %v4681, %v4665
        %v4698 = vsel %vm2309, %v3466, %v3459
        %v4699 = vsel %vm2311, %v3473, %v4698
        %v4700 = vsel %vm2313, %v3480, %v4699
        %v4701 = vsel %vm2315, %v3487, %v4700
        %v4702 = vsel %vm2317, %v3494, %v4701
        %v4703 = vsel %vm2319, %v3501, %v4702
        %v4704 = vsel %vm2321, %v3508, %v4703
        %v4706 = vmul.f32 %v3949, %v4704
        %v4708 = vsel %vm1067, %v3949, 0
        %4710 = vmatprep.subr.mxu0 0.0
        %4711 = vmatpush1.msra.mxu0 0.0
        %4712 = vmatprep.subr.mxu0 0.0
        %4713 = vmatpush1.msra.mxu0 0.0
        %4714 = vmatprep.subr.mxu0 0.0
        %4715 = vmatpush1.msra.mxu0 0.0
        %4716 = vmatprep.subr.mxu0 0.0
        %4717 = vmatpush1.msra.mxu0 0.0
        %4718 = vmatprep.subr.mxu0 0.0
        %4719 = vmatpush1.msra.mxu0 0.0
        %4720 = vmatprep.subr.mxu0 0.0
        %4721 = vmatpush1.msra.mxu0 0.0
        %4722 = vmatprep.subr.mxu0 0.0
        %4723 = vmatpush1.msra.mxu0 0.0
        %4724 = vmatprep.subr.mxu0 0.0
        %4725 = vmatpush1.msra.mxu0 0.0
        %4726 = vmatprep.subr.mxu0 0.0
        %4727 = vmatpush1.msra.mxu0 0.0
        %4728 = vmatprep.subr.mxu0 0.0
        %4729 = vmatpush1.msra.mxu0 0.0
        %4730 = vmatprep.subr.mxu0 0.0
        %4731 = vmatpush1.msra.mxu0 0.0
        %4732 = vmatprep.subr.mxu0 0.0
        %4733 = vmatpush1.msra.mxu0 0.0
        %4734 = vmatprep.subr.mxu0 0.0
        %4735 = vmatpush1.msra.mxu0 %v1022
        %4736 = vmatprep.subr.mxu0 0.0
        %4737 = vmatpush1.msra.mxu0 %v1021
        %4738 = vmatprep.subr.mxu0 0.0
        %4739 = vmatpush1.msra.mxu0 %v1020
        %4740 = vmatprep.subr.mxu0 0.0
        %4741 = vmatpush1.msra.mxu0 %v1019
        %4742 = vmatprep.subr.mxu0 0.0
        %4743 = vmatpush2.msra.mxu0 0.0
        %4744 = vmatprep.subr.mxu0 0.0
        %4745 = vmatpush2.msra.mxu0 0.0
        %4746 = vmatprep.subr.mxu0 0.0
        %4747 = vmatpush2.msra.mxu0 0.0
        %4748 = vmatprep.subr.mxu0 0.0
        %4749 = vmatpush2.msra.mxu0 0.0
        %4750 = vmatprep.subr.mxu0 0.0
        %4751 = vmatpush2.msra.mxu0 0.0
        %4752 = vmatprep.subr.mxu0 0.0
        %4753 = vmatpush2.msra.mxu0 0.0
        %4754 = vmatprep.subr.mxu0 0.0
        %4755 = vmatpush2.msra.mxu0 0.0
        %4756 = vmatprep.subr.mxu0 0.0
        %4757 = vmatpush2.msra.mxu0 0.0
        %4758 = vmatprep.subr.mxu0 0.0
        %4759 = vmatpush2.msra.mxu0 0.0
        %4760 = vmatprep.subr.mxu0 0.0
        %4761 = vmatpush2.msra.mxu0 0.0
        %4762 = vmatprep.subr.mxu0 0.0
        %4763 = vmatpush2.msra.mxu0 0.0
        %4764 = vmatprep.subr.mxu0 0.0
        %4765 = vmatpush2.msra.mxu0 0.0
        %4766 = vmatprep.subr.mxu0 0.0
        %4767 = vmatpush2.msra.mxu0 0.0
        %4768 = vmatprep.subr.mxu0 0.0
        %4769 = vmatpush2.msra.mxu0 0.0
        %4770 = vmatprep.subr.mxu0 0.0
        %4771 = vmatpush2.msra.mxu0 0.0
        %4772 = vmatprep.subr.mxu0 0.0
        %4773 = vmatpush2.msra.mxu0 0.0
        %4774 = vmatprep.mubr.f32.mxu0 0.0
        %4775 = vmatmul.mubr.f32.gmra.mxu0 %v4708
        %v4776 = vpop.f32.mrf.mxu0
        %v4777 = vadd.f32 0.0, %v4776
        %v4778 = vpop.f32.mrf.mxu0
        %4779 = vdwg.mxu0
        %v4780 = vsel %vm1067, %v4704, 0
        %4782 = vmatprep.subr.mxu0 0.0
        %4783 = vmatpush1.msra.mxu0 0.0
        %4784 = vmatprep.subr.mxu0 0.0
        %4785 = vmatpush1.msra.mxu0 0.0
        %4786 = vmatprep.subr.mxu0 0.0
        %4787 = vmatpush1.msra.mxu0 0.0
        %4788 = vmatprep.subr.mxu0 0.0
        %4789 = vmatpush1.msra.mxu0 0.0
        %4790 = vmatprep.subr.mxu0 0.0
        %4791 = vmatpush1.msra.mxu0 0.0
        %4792 = vmatprep.subr.mxu0 0.0
        %4793 = vmatpush1.msra.mxu0 0.0
        %4794 = vmatprep.subr.mxu0 0.0
        %4795 = vmatpush1.msra.mxu0 0.0
        %4796 = vmatprep.subr.mxu0 0.0
        %4797 = vmatpush1.msra.mxu0 0.0
        %4798 = vmatprep.subr.mxu0 0.0
        %4799 = vmatpush1.msra.mxu0 0.0
        %4800 = vmatprep.subr.mxu0 0.0
        %4801 = vmatpush1.msra.mxu0 0.0
        %4802 = vmatprep.subr.mxu0 0.0
        %4803 = vmatpush1.msra.mxu0 0.0
        %4804 = vmatprep.subr.mxu0 0.0
        %4805 = vmatpush1.msra.mxu0 0.0
        %4806 = vmatprep.subr.mxu0 0.0
        %4807 = vmatpush1.msra.mxu0 %v1018
        %4808 = vmatprep.subr.mxu0 0.0
        %4809 = vmatpush1.msra.mxu0 %v1017
        %4810 = vmatprep.subr.mxu0 0.0
        %4811 = vmatpush1.msra.mxu0 %v1016
        %4812 = vmatprep.subr.mxu0 0.0
        %4813 = vmatpush1.msra.mxu0 %v1015
        %4814 = vmatprep.subr.mxu0 0.0
        %4815 = vmatpush2.msra.mxu0 0.0
        %4816 = vmatprep.subr.mxu0 0.0
        %4817 = vmatpush2.msra.mxu0 0.0
        %4818 = vmatprep.subr.mxu0 0.0
        %4819 = vmatpush2.msra.mxu0 0.0
        %4820 = vmatprep.subr.mxu0 0.0
        %4821 = vmatpush2.msra.mxu0 0.0
        %4822 = vmatprep.subr.mxu0 0.0
        %4823 = vmatpush2.msra.mxu0 0.0
        %4824 = vmatprep.subr.mxu0 0.0
        %4825 = vmatpush2.msra.mxu0 0.0
        %4826 = vmatprep.subr.mxu0 0.0
        %4827 = vmatpush2.msra.mxu0 0.0
        %4828 = vmatprep.subr.mxu0 0.0
        %4829 = vmatpush2.msra.mxu0 0.0
        %4830 = vmatprep.subr.mxu0 0.0
        %4831 = vmatpush2.msra.mxu0 0.0
        %4832 = vmatprep.subr.mxu0 0.0
        %4833 = vmatpush2.msra.mxu0 0.0
        %4834 = vmatprep.subr.mxu0 0.0
        %4835 = vmatpush2.msra.mxu0 0.0
        %4836 = vmatprep.subr.mxu0 0.0
        %4837 = vmatpush2.msra.mxu0 0.0
        %4838 = vmatprep.subr.mxu0 0.0
        %4839 = vmatpush2.msra.mxu0 0.0
        %4840 = vmatprep.subr.mxu0 0.0
        %4841 = vmatpush2.msra.mxu0 0.0
        %4842 = vmatprep.subr.mxu0 0.0
        %4843 = vmatpush2.msra.mxu0 0.0
        %4844 = vmatprep.subr.mxu0 0.0
        %4845 = vmatpush2.msra.mxu0 0.0
        %4846 = vmatprep.mubr.f32.mxu0 0.0
        %4847 = vmatmul.mubr.f32.gmra.mxu0 %v4780
        %v4848 = vpop.f32.mrf.mxu0
        %v4849 = vadd.f32 %v4777, %v4848
        %v4850 = vpop.f32.mrf.mxu0
        %4851 = vdwg.mxu0
        %v4853 = vsel %vm1067, %v4706, 0
        %4855 = vmatprep.subr.mxu0 0.0
        %4856 = vmatpush1.msra.mxu0 0.0
        %4857 = vmatprep.subr.mxu0 0.0
        %4858 = vmatpush1.msra.mxu0 0.0
        %4859 = vmatprep.subr.mxu0 0.0
        %4860 = vmatpush1.msra.mxu0 0.0
        %4861 = vmatprep.subr.mxu0 0.0
        %4862 = vmatpush1.msra.mxu0 0.0
        %4863 = vmatprep.subr.mxu0 0.0
        %4864 = vmatpush1.msra.mxu0 0.0
        %4865 = vmatprep.subr.mxu0 0.0
        %4866 = vmatpush1.msra.mxu0 0.0
        %4867 = vmatprep.subr.mxu0 0.0
        %4868 = vmatpush1.msra.mxu0 0.0
        %4869 = vmatprep.subr.mxu0 0.0
        %4870 = vmatpush1.msra.mxu0 0.0
        %4871 = vmatprep.subr.mxu0 0.0
        %4872 = vmatpush1.msra.mxu0 0.0
        %4873 = vmatprep.subr.mxu0 0.0
        %4874 = vmatpush1.msra.mxu0 0.0
        %4875 = vmatprep.subr.mxu0 0.0
        %4876 = vmatpush1.msra.mxu0 0.0
        %4877 = vmatprep.subr.mxu0 0.0
        %4878 = vmatpush1.msra.mxu0 0.0
        %4879 = vmatprep.subr.mxu0 0.0
        %4880 = vmatpush1.msra.mxu0 %v1026
        %4881 = vmatprep.subr.mxu0 0.0
        %4882 = vmatpush1.msra.mxu0 %v1025
        %4883 = vmatprep.subr.mxu0 0.0
        %4884 = vmatpush1.msra.mxu0 %v1024
        %4885 = vmatprep.subr.mxu0 0.0
        %4886 = vmatpush1.msra.mxu0 %v1023
        %4887 = vmatprep.subr.mxu0 0.0
        %4888 = vmatpush2.msra.mxu0 0.0
        %4889 = vmatprep.subr.mxu0 0.0
        %4890 = vmatpush2.msra.mxu0 0.0
        %4891 = vmatprep.subr.mxu0 0.0
        %4892 = vmatpush2.msra.mxu0 0.0
        %4893 = vmatprep.subr.mxu0 0.0
        %4894 = vmatpush2.msra.mxu0 0.0
        %4895 = vmatprep.subr.mxu0 0.0
        %4896 = vmatpush2.msra.mxu0 0.0
        %4897 = vmatprep.subr.mxu0 0.0
        %4898 = vmatpush2.msra.mxu0 0.0
        %4899 = vmatprep.subr.mxu0 0.0
        %4900 = vmatpush2.msra.mxu0 0.0
        %4901 = vmatprep.subr.mxu0 0.0
        %4902 = vmatpush2.msra.mxu0 0.0
        %4903 = vmatprep.subr.mxu0 0.0
        %4904 = vmatpush2.msra.mxu0 0.0
        %4905 = vmatprep.subr.mxu0 0.0
        %4906 = vmatpush2.msra.mxu0 0.0
        %4907 = vmatprep.subr.mxu0 0.0
        %4908 = vmatpush2.msra.mxu0 0.0
        %4909 = vmatprep.subr.mxu0 0.0
        %4910 = vmatpush2.msra.mxu0 0.0
        %4911 = vmatprep.subr.mxu0 0.0
        %4912 = vmatpush2.msra.mxu0 0.0
        %4913 = vmatprep.subr.mxu0 0.0
        %4914 = vmatpush2.msra.mxu0 0.0
        %4915 = vmatprep.subr.mxu0 0.0
        %4916 = vmatpush2.msra.mxu0 0.0
        %4917 = vmatprep.subr.mxu0 0.0
        %4918 = vmatpush2.msra.mxu0 0.0
        %4919 = vmatprep.mubr.f32.mxu0 0.0
        %4920 = vmatmul.mubr.f32.gmra.mxu0 %v4853
        %v4921 = vpop.f32.mrf.mxu0
        %v4922 = vadd.f32 0.0, %v4921
        %v4923 = vpop.f32.mrf.mxu0
        %4924 = vdwg.mxu0
        %v4925 = vadd.f32 %v4849, %v4922
        %4926 = vmatprep.subr.mxu0 0.0
        %4927 = vmatpush1.msra.mxu0 0.0
        %4928 = vmatprep.subr.mxu0 0.0
        %4929 = vmatpush1.msra.mxu0 0.0
        %4930 = vmatprep.subr.mxu0 0.0
        %4931 = vmatpush1.msra.mxu0 0.0
        %4932 = vmatprep.subr.mxu0 0.0
        %4933 = vmatpush1.msra.mxu0 0.0
        %4934 = vmatprep.subr.mxu0 0.0
        %4935 = vmatpush1.msra.mxu0 0.0
        %4936 = vmatprep.subr.mxu0 0.0
        %4937 = vmatpush1.msra.mxu0 0.0
        %4938 = vmatprep.subr.mxu0 0.0
        %4939 = vmatpush1.msra.mxu0 0.0
        %4940 = vmatprep.subr.mxu0 0.0
        %4941 = vmatpush1.msra.mxu0 0.0
        %4942 = vmatprep.subr.mxu0 0.0
        %4943 = vmatpush1.msra.mxu0 0.0
        %4944 = vmatprep.subr.mxu0 0.0
        %4945 = vmatpush1.msra.mxu0 0.0
        %4946 = vmatprep.subr.mxu0 0.0
        %4947 = vmatpush1.msra.mxu0 0.0
        %4948 = vmatprep.subr.mxu0 0.0
        %4949 = vmatpush1.msra.mxu0 0.0
        %4950 = vmatprep.subr.mxu0 0.0
        %4951 = vmatpush1.msra.mxu0 %v1030
        %4952 = vmatprep.subr.mxu0 0.0
        %4953 = vmatpush1.msra.mxu0 %v1029
        %4954 = vmatprep.subr.mxu0 0.0
        %4955 = vmatpush1.msra.mxu0 %v1028
        %4956 = vmatprep.subr.mxu0 0.0
        %4957 = vmatpush1.msra.mxu0 %v1027
        %4958 = vmatprep.subr.mxu0 0.0
        %4959 = vmatpush2.msra.mxu0 0.0
        %4960 = vmatprep.subr.mxu0 0.0
        %4961 = vmatpush2.msra.mxu0 0.0
        %4962 = vmatprep.subr.mxu0 0.0
        %4963 = vmatpush2.msra.mxu0 0.0
        %4964 = vmatprep.subr.mxu0 0.0
        %4965 = vmatpush2.msra.mxu0 0.0
        %4966 = vmatprep.subr.mxu0 0.0
        %4967 = vmatpush2.msra.mxu0 0.0
        %4968 = vmatprep.subr.mxu0 0.0
        %4969 = vmatpush2.msra.mxu0 0.0
        %4970 = vmatprep.subr.mxu0 0.0
        %4971 = vmatpush2.msra.mxu0 0.0
        %4972 = vmatprep.subr.mxu0 0.0
        %4973 = vmatpush2.msra.mxu0 0.0
        %4974 = vmatprep.subr.mxu0 0.0
        %4975 = vmatpush2.msra.mxu0 0.0
        %4976 = vmatprep.subr.mxu0 0.0
        %4977 = vmatpush2.msra.mxu0 0.0
        %4978 = vmatprep.subr.mxu0 0.0
        %4979 = vmatpush2.msra.mxu0 0.0
        %4980 = vmatprep.subr.mxu0 0.0
        %4981 = vmatpush2.msra.mxu0 0.0
        %4982 = vmatprep.subr.mxu0 0.0
        %4983 = vmatpush2.msra.mxu0 0.0
        %4984 = vmatprep.subr.mxu0 0.0
        %4985 = vmatpush2.msra.mxu0 0.0
        %4986 = vmatprep.subr.mxu0 0.0
        %4987 = vmatpush2.msra.mxu0 0.0
        %4988 = vmatprep.subr.mxu0 0.0
        %4989 = vmatpush2.msra.mxu0 0.0
        %4990 = vmatprep.mubr.f32.mxu0 0.0
        %4991 = vmatmul.mubr.f32.gmra.mxu0 %v4708
        %v4992 = vpop.f32.mrf.mxu0
        %v4993 = vadd.f32 0.0, %v4992
        %v4994 = vpop.f32.mrf.mxu0
        %4995 = vdwg.mxu0
        %v4996 = vadd.f32 %v4925, %v4993
        %4997 = vmatprep.subr.mxu0 0.0
        %4998 = vmatpush1.msra.mxu0 0.0
        %4999 = vmatprep.subr.mxu0 0.0
        %5000 = vmatpush1.msra.mxu0 0.0
        %5001 = vmatprep.subr.mxu0 0.0
        %5002 = vmatpush1.msra.mxu0 0.0
        %5003 = vmatprep.subr.mxu0 0.0
        %5004 = vmatpush1.msra.mxu0 0.0
        %5005 = vmatprep.subr.mxu0 0.0
        %5006 = vmatpush1.msra.mxu0 0.0
        %5007 = vmatprep.subr.mxu0 0.0
        %5008 = vmatpush1.msra.mxu0 0.0
        %5009 = vmatprep.subr.mxu0 0.0
        %5010 = vmatpush1.msra.mxu0 0.0
        %5011 = vmatprep.subr.mxu0 0.0
        %5012 = vmatpush1.msra.mxu0 0.0
        %5013 = vmatprep.subr.mxu0 0.0
        %5014 = vmatpush1.msra.mxu0 0.0
        %5015 = vmatprep.subr.mxu0 0.0
        %5016 = vmatpush1.msra.mxu0 0.0
        %5017 = vmatprep.subr.mxu0 0.0
        %5018 = vmatpush1.msra.mxu0 0.0
        %5019 = vmatprep.subr.mxu0 0.0
        %5020 = vmatpush1.msra.mxu0 0.0
        %5021 = vmatprep.subr.mxu0 0.0
        %5022 = vmatpush1.msra.mxu0 %v1034
        %5023 = vmatprep.subr.mxu0 0.0
        %5024 = vmatpush1.msra.mxu0 %v1033
        %5025 = vmatprep.subr.mxu0 0.0
        %5026 = vmatpush1.msra.mxu0 %v1032
        %5027 = vmatprep.subr.mxu0 0.0
        %5028 = vmatpush1.msra.mxu0 %v1031
        %5029 = vmatprep.subr.mxu0 0.0
        %5030 = vmatpush2.msra.mxu0 0.0
        %5031 = vmatprep.subr.mxu0 0.0
        %5032 = vmatpush2.msra.mxu0 0.0
        %5033 = vmatprep.subr.mxu0 0.0
        %5034 = vmatpush2.msra.mxu0 0.0
        %5035 = vmatprep.subr.mxu0 0.0
        %5036 = vmatpush2.msra.mxu0 0.0
        %5037 = vmatprep.subr.mxu0 0.0
        %5038 = vmatpush2.msra.mxu0 0.0
        %5039 = vmatprep.subr.mxu0 0.0
        %5040 = vmatpush2.msra.mxu0 0.0
        %5041 = vmatprep.subr.mxu0 0.0
        %5042 = vmatpush2.msra.mxu0 0.0
        %5043 = vmatprep.subr.mxu0 0.0
        %5044 = vmatpush2.msra.mxu0 0.0
        %5045 = vmatprep.subr.mxu0 0.0
        %5046 = vmatpush2.msra.mxu0 0.0
        %5047 = vmatprep.subr.mxu0 0.0
        %5048 = vmatpush2.msra.mxu0 0.0
        %5049 = vmatprep.subr.mxu0 0.0
        %5050 = vmatpush2.msra.mxu0 0.0
        %5051 = vmatprep.subr.mxu0 0.0
        %5052 = vmatpush2.msra.mxu0 0.0
        %5053 = vmatprep.subr.mxu0 0.0
        %5054 = vmatpush2.msra.mxu0 0.0
        %5055 = vmatprep.subr.mxu0 0.0
        %5056 = vmatpush2.msra.mxu0 0.0
        %5057 = vmatprep.subr.mxu0 0.0
        %5058 = vmatpush2.msra.mxu0 0.0
        %5059 = vmatprep.subr.mxu0 0.0
        %5060 = vmatpush2.msra.mxu0 0.0
        %5061 = vmatprep.mubr.f32.mxu0 0.0
        %5062 = vmatmul.mubr.f32.gmra.mxu0 %v4853
        %v5063 = vpop.f32.mrf.mxu0
        %v5064 = vadd.f32 0.0, %v5063
        %v5065 = vpop.f32.mrf.mxu0
        %5066 = vdwg.mxu0
        %v5067 = vadd.f32 %v4996, %v5064
        %v5068 = vadd.f32 %v5067, %v4366
        %vm5069 = vcmp.gt.f32.partialorder %v5068, 0.0
        %v5070 = vmul.f32 %v5068, 0.01
        %v5071 = vsel %vm5069, %v5068, %v5070
        %v5073 = vsel %vm1067, %v5071, 0
        %5075 = vmatprep.subr.mxu0 0.0
        %5076 = vmatpush1.msra.mxu0 0.0
        %5077 = vmatprep.subr.mxu0 0.0
        %5078 = vmatpush1.msra.mxu0 0.0
        %5079 = vmatprep.subr.mxu0 0.0
        %5080 = vmatpush1.msra.mxu0 0.0
        %5081 = vmatprep.subr.mxu0 0.0
        %5082 = vmatpush1.msra.mxu0 0.0
        %5083 = vmatprep.subr.mxu0 0.0
        %5084 = vmatpush1.msra.mxu0 0.0
        %5085 = vmatprep.subr.mxu0 0.0
        %5086 = vmatpush1.msra.mxu0 0.0
        %5087 = vmatprep.subr.mxu0 0.0
        %5088 = vmatpush1.msra.mxu0 0.0
        %5089 = vmatprep.subr.mxu0 0.0
        %5090 = vmatpush1.msra.mxu0 0.0
        %5091 = vmatprep.subr.mxu0 0.0
        %5092 = vmatpush1.msra.mxu0 0.0
        %5093 = vmatprep.subr.mxu0 0.0
        %5094 = vmatpush1.msra.mxu0 0.0
        %5095 = vmatprep.subr.mxu0 0.0
        %5096 = vmatpush1.msra.mxu0 0.0
        %5097 = vmatprep.subr.mxu0 0.0
        %5098 = vmatpush1.msra.mxu0 0.0
        %5099 = vmatprep.subr.mxu0 0.0
        %5100 = vmatpush1.msra.mxu0 %v4375
        %5101 = vmatprep.subr.mxu0 0.0
        %5102 = vmatpush1.msra.mxu0 %v4374
        %5103 = vmatprep.subr.mxu0 0.0
        %5104 = vmatpush1.msra.mxu0 %v4373
        %5105 = vmatprep.subr.mxu0 0.0
        %5106 = vmatpush1.msra.mxu0 %v4372
        %5107 = vmatprep.subr.mxu0 0.0
        %5108 = vmatpush2.msra.mxu0 0.0
        %5109 = vmatprep.subr.mxu0 0.0
        %5110 = vmatpush2.msra.mxu0 0.0
        %5111 = vmatprep.subr.mxu0 0.0
        %5112 = vmatpush2.msra.mxu0 0.0
        %5113 = vmatprep.subr.mxu0 0.0
        %5114 = vmatpush2.msra.mxu0 0.0
        %5115 = vmatprep.subr.mxu0 0.0
        %5116 = vmatpush2.msra.mxu0 0.0
        %5117 = vmatprep.subr.mxu0 0.0
        %5118 = vmatpush2.msra.mxu0 0.0
        %5119 = vmatprep.subr.mxu0 0.0
        %5120 = vmatpush2.msra.mxu0 0.0
        %5121 = vmatprep.subr.mxu0 0.0
        %5122 = vmatpush2.msra.mxu0 0.0
        %5123 = vmatprep.subr.mxu0 0.0
        %5124 = vmatpush2.msra.mxu0 0.0
        %5125 = vmatprep.subr.mxu0 0.0
        %5126 = vmatpush2.msra.mxu0 0.0
        %5127 = vmatprep.subr.mxu0 0.0
        %5128 = vmatpush2.msra.mxu0 0.0
        %5129 = vmatprep.subr.mxu0 0.0
        %5130 = vmatpush2.msra.mxu0 0.0
        %5131 = vmatprep.subr.mxu0 0.0
        %5132 = vmatpush2.msra.mxu0 0.0
        %5133 = vmatprep.subr.mxu0 0.0
        %5134 = vmatpush2.msra.mxu0 0.0
        %5135 = vmatprep.subr.mxu0 0.0
        %5136 = vmatpush2.msra.mxu0 0.0
        %5137 = vmatprep.subr.mxu0 0.0
        %5138 = vmatpush2.msra.mxu0 0.0
        %5139 = vmatprep.mubr.f32.mxu0 0.0
        %5140 = vmatmul.mubr.f32.gmra.mxu0 %v5073
        %v5141 = vpop.f32.mrf.mxu0
        %v5142 = vadd.f32 %v4380, %v5141
        %v5143 = vpop.f32.mrf.mxu0
        %5144 = vdwg.mxu0
        %vm5145 = vcmp.gt.f32.partialorder %v5142, 0.0
        %v5146 = vmul.f32 %v5142, 0.01
        %v5147 = vsel %vm5145, %v5142, %v5146
        %v5148 = vmul.f32 %v5147, %v4462
        %v5149 = vsel %vm1067, %v5148, 0.0
        %5150 = vadd.xlane.f32.xlu0 %v5149
        %v5151 = vpop.xlane.xlu0 %5150
        %v5152 = vadd.f32 %v5151, %v4472
        %v5153 = vmul.f32 %v5152, 0.5
        %v5154 = vtanh.pop %v5153
        %v5155 = vadd.f32 %v5154, 1.0
        %v5156 = vmul.f32 %v5155, 0.5
        %5158 = vset.pattern.permute.xlu0 0
        %5159 = vperm.xlu0 %5158, %v5156
        %v5160 = vpop.permute.xlu0 %5159
        %v5162 = vmul.f32 %v5160, %v4704
        %v5163 = vld [vmem:[%s20] sm:$0xff]
        %v5164 = vld [vmem:[%s20 + $0x8] sm:$0xff]
        %v5165 = vld [vmem:[%s20 + $0x10] sm:$0xff]
        %v5166 = vld [vmem:[%s20 + $0x18] sm:$0xff]
        %v5168 = vlaneseq
        %v5169 = vshrl.u32 %v5168, 7
        %v5170 = vsub.s32 0, %v5169
        %v5171 = vrot.slane %v1003, %v5170
        %v5174 = vsel %vm1067, %v5162, 0
        %5176 = vmatprep.subr.mxu0 0.0
        %5177 = vmatpush1.msra.mxu0 0.0
        %5178 = vmatprep.subr.mxu0 0.0
        %5179 = vmatpush1.msra.mxu0 0.0
        %5180 = vmatprep.subr.mxu0 0.0
        %5181 = vmatpush1.msra.mxu0 0.0
        %5182 = vmatprep.subr.mxu0 0.0
        %5183 = vmatpush1.msra.mxu0 0.0
        %5184 = vmatprep.subr.mxu0 0.0
        %5185 = vmatpush1.msra.mxu0 0.0
        %5186 = vmatprep.subr.mxu0 0.0
        %5187 = vmatpush1.msra.mxu0 0.0
        %5188 = vmatprep.subr.mxu0 0.0
        %5189 = vmatpush1.msra.mxu0 0.0
        %5190 = vmatprep.subr.mxu0 0.0
        %5191 = vmatpush1.msra.mxu0 0.0
        %5192 = vmatprep.subr.mxu0 0.0
        %5193 = vmatpush1.msra.mxu0 0.0
        %5194 = vmatprep.subr.mxu0 0.0
        %5195 = vmatpush1.msra.mxu0 0.0
        %5196 = vmatprep.subr.mxu0 0.0
        %5197 = vmatpush1.msra.mxu0 0.0
        %5198 = vmatprep.subr.mxu0 0.0
        %5199 = vmatpush1.msra.mxu0 0.0
        %5200 = vmatprep.subr.mxu0 0.0
        %5201 = vmatpush1.msra.mxu0 %v5166
        %5202 = vmatprep.subr.mxu0 0.0
        %5203 = vmatpush1.msra.mxu0 %v5165
        %5204 = vmatprep.subr.mxu0 0.0
        %5205 = vmatpush1.msra.mxu0 %v5164
        %5206 = vmatprep.subr.mxu0 0.0
        %5207 = vmatpush1.msra.mxu0 %v5163
        %5208 = vmatprep.subr.mxu0 0.0
        %5209 = vmatpush2.msra.mxu0 0.0
        %5210 = vmatprep.subr.mxu0 0.0
        %5211 = vmatpush2.msra.mxu0 0.0
        %5212 = vmatprep.subr.mxu0 0.0
        %5213 = vmatpush2.msra.mxu0 0.0
        %5214 = vmatprep.subr.mxu0 0.0
        %5215 = vmatpush2.msra.mxu0 0.0
        %5216 = vmatprep.subr.mxu0 0.0
        %5217 = vmatpush2.msra.mxu0 0.0
        %5218 = vmatprep.subr.mxu0 0.0
        %5219 = vmatpush2.msra.mxu0 0.0
        %5220 = vmatprep.subr.mxu0 0.0
        %5221 = vmatpush2.msra.mxu0 0.0
        %5222 = vmatprep.subr.mxu0 0.0
        %5223 = vmatpush2.msra.mxu0 0.0
        %5224 = vmatprep.subr.mxu0 0.0
        %5225 = vmatpush2.msra.mxu0 0.0
        %5226 = vmatprep.subr.mxu0 0.0
        %5227 = vmatpush2.msra.mxu0 0.0
        %5228 = vmatprep.subr.mxu0 0.0
        %5229 = vmatpush2.msra.mxu0 0.0
        %5230 = vmatprep.subr.mxu0 0.0
        %5231 = vmatpush2.msra.mxu0 0.0
        %5232 = vmatprep.subr.mxu0 0.0
        %5233 = vmatpush2.msra.mxu0 0.0
        %5234 = vmatprep.subr.mxu0 0.0
        %5235 = vmatpush2.msra.mxu0 0.0
        %5236 = vmatprep.subr.mxu0 0.0
        %5237 = vmatpush2.msra.mxu0 0.0
        %5238 = vmatprep.subr.mxu0 0.0
        %5239 = vmatpush2.msra.mxu0 0.0
        %5240 = vmatprep.mubr.f32.mxu0 0.0
        %5241 = vmatmul.mubr.f32.gmra.mxu0 %v5174
        %v5242 = vpop.f32.mrf.mxu0
        %v5243 = vadd.f32 %v5171, %v5242
        %v5244 = vpop.f32.mrf.mxu0
        %5245 = vdwg.mxu0
        %vm5246 = vcmp.gt.f32.partialorder %v5243, 0.0
        %v5247 = vmul.f32 %v5243, 0.01
        %v5248 = vsel %vm5246, %v5243, %v5247
        %v5249 = vld [vmem:[%s22] sm:$0xff]
        %v5250 = vld [vmem:[%s22 + $0x8] sm:$0xff]
        %v5251 = vld [vmem:[%s22 + $0x10] sm:$0xff]
        %v5252 = vld [vmem:[%s22 + $0x18] sm:$0xff]
        %v5254 = vlaneseq
        %v5255 = vshrl.u32 %v5254, 7
        %v5256 = vsub.s32 0, %v5255
        %v5257 = vrot.slane %v1004, %v5256
        %v5260 = vsel %vm1067, %v5248, 0
        %5262 = vmatprep.subr.mxu0 0.0
        %5263 = vmatpush1.msra.mxu0 0.0
        %5264 = vmatprep.subr.mxu0 0.0
        %5265 = vmatpush1.msra.mxu0 0.0
        %5266 = vmatprep.subr.mxu0 0.0
        %5267 = vmatpush1.msra.mxu0 0.0
        %5268 = vmatprep.subr.mxu0 0.0
        %5269 = vmatpush1.msra.mxu0 0.0
        %5270 = vmatprep.subr.mxu0 0.0
        %5271 = vmatpush1.msra.mxu0 0.0
        %5272 = vmatprep.subr.mxu0 0.0
        %5273 = vmatpush1.msra.mxu0 0.0
        %5274 = vmatprep.subr.mxu0 0.0
        %5275 = vmatpush1.msra.mxu0 0.0
        %5276 = vmatprep.subr.mxu0 0.0
        %5277 = vmatpush1.msra.mxu0 0.0
        %5278 = vmatprep.subr.mxu0 0.0
        %5279 = vmatpush1.msra.mxu0 0.0
        %5280 = vmatprep.subr.mxu0 0.0
        %5281 = vmatpush1.msra.mxu0 0.0
        %5282 = vmatprep.subr.mxu0 0.0
        %5283 = vmatpush1.msra.mxu0 0.0
        %5284 = vmatprep.subr.mxu0 0.0
        %5285 = vmatpush1.msra.mxu0 0.0
        %5286 = vmatprep.subr.mxu0 0.0
        %5287 = vmatpush1.msra.mxu0 %v5252
        %5288 = vmatprep.subr.mxu0 0.0
        %5289 = vmatpush1.msra.mxu0 %v5251
        %5290 = vmatprep.subr.mxu0 0.0
        %5291 = vmatpush1.msra.mxu0 %v5250
        %5292 = vmatprep.subr.mxu0 0.0
        %5293 = vmatpush1.msra.mxu0 %v5249
        %5294 = vmatprep.subr.mxu0 0.0
        %5295 = vmatpush2.msra.mxu0 0.0
        %5296 = vmatprep.subr.mxu0 0.0
        %5297 = vmatpush2.msra.mxu0 0.0
        %5298 = vmatprep.subr.mxu0 0.0
        %5299 = vmatpush2.msra.mxu0 0.0
        %5300 = vmatprep.subr.mxu0 0.0
        %5301 = vmatpush2.msra.mxu0 0.0
        %5302 = vmatprep.subr.mxu0 0.0
        %5303 = vmatpush2.msra.mxu0 0.0
        %5304 = vmatprep.subr.mxu0 0.0
        %5305 = vmatpush2.msra.mxu0 0.0
        %5306 = vmatprep.subr.mxu0 0.0
        %5307 = vmatpush2.msra.mxu0 0.0
        %5308 = vmatprep.subr.mxu0 0.0
        %5309 = vmatpush2.msra.mxu0 0.0
        %5310 = vmatprep.subr.mxu0 0.0
        %5311 = vmatpush2.msra.mxu0 0.0
        %5312 = vmatprep.subr.mxu0 0.0
        %5313 = vmatpush2.msra.mxu0 0.0
        %5314 = vmatprep.subr.mxu0 0.0
        %5315 = vmatpush2.msra.mxu0 0.0
        %5316 = vmatprep.subr.mxu0 0.0
        %5317 = vmatpush2.msra.mxu0 0.0
        %5318 = vmatprep.subr.mxu0 0.0
        %5319 = vmatpush2.msra.mxu0 0.0
        %5320 = vmatprep.subr.mxu0 0.0
        %5321 = vmatpush2.msra.mxu0 0.0
        %5322 = vmatprep.subr.mxu0 0.0
        %5323 = vmatpush2.msra.mxu0 0.0
        %5324 = vmatprep.subr.mxu0 0.0
        %5325 = vmatpush2.msra.mxu0 0.0
        %5326 = vmatprep.mubr.f32.mxu0 0.0
        %5327 = vmatmul.mubr.f32.gmra.mxu0 %v5260
        %v5328 = vpop.f32.mrf.mxu0
        %v5329 = vadd.f32 %v5257, %v5328
        %v5330 = vpop.f32.mrf.mxu0
        %5331 = vdwg.mxu0
        %vm5332 = vcmp.gt.f32.partialorder %v5329, 0.0
        %v5333 = vmul.f32 %v5329, 0.01
        %v5334 = vsel %vm5332, %v5329, %v5333
        %v5335 = vadd.f32 %v3949, %v5334
        %v5336 = vadd.f32 %v5335, %v5334
        %v5337 = vmul.f32 %v3940, %v3403
        %v5338 = vmul.f32 %v3941, %v3410
        %v5339 = vmul.f32 %v3942, %v3417
        %v5340 = vmul.f32 %v3943, %v3424
        %v5341 = vmul.f32 %v3944, %v3431
        %v5342 = vmul.f32 %v3945, %v3438
        %v5343 = vmul.f32 %v3946, %v3445
        %v5344 = vmul.f32 %v3947, %v3452
        %v5353 = vsel %vm2309, %v3410, %v3403
        %v5354 = vsel %vm2311, %v3417, %v5353
        %v5355 = vsel %vm2313, %v3424, %v5354
        %v5356 = vsel %vm2315, %v3431, %v5355
        %v5357 = vsel %vm2317, %v3438, %v5356
        %v5358 = vsel %vm2319, %v3445, %v5357
        %v5359 = vsel %vm2321, %v3452, %v5358
        %v5361 = vmul.f32 %v4657, %v5359
        %v5362 = vsel %vm1067, %v4657, 0
        %5364 = vmatprep.subr.mxu0 0.0
        %5365 = vmatpush1.msra.mxu0 0.0
        %5366 = vmatprep.subr.mxu0 0.0
        %5367 = vmatpush1.msra.mxu0 0.0
        %5368 = vmatprep.subr.mxu0 0.0
        %5369 = vmatpush1.msra.mxu0 0.0
        %5370 = vmatprep.subr.mxu0 0.0
        %5371 = vmatpush1.msra.mxu0 0.0
        %5372 = vmatprep.subr.mxu0 0.0
        %5373 = vmatpush1.msra.mxu0 0.0
        %5374 = vmatprep.subr.mxu0 0.0
        %5375 = vmatpush1.msra.mxu0 0.0
        %5376 = vmatprep.subr.mxu0 0.0
        %5377 = vmatpush1.msra.mxu0 0.0
        %5378 = vmatprep.subr.mxu0 0.0
        %5379 = vmatpush1.msra.mxu0 0.0
        %5380 = vmatprep.subr.mxu0 0.0
        %5381 = vmatpush1.msra.mxu0 0.0
        %5382 = vmatprep.subr.mxu0 0.0
        %5383 = vmatpush1.msra.mxu0 0.0
        %5384 = vmatprep.subr.mxu0 0.0
        %5385 = vmatpush1.msra.mxu0 0.0
        %5386 = vmatprep.subr.mxu0 0.0
        %5387 = vmatpush1.msra.mxu0 0.0
        %5388 = vmatprep.subr.mxu0 0.0
        %5389 = vmatpush1.msra.mxu0 %v1022
        %5390 = vmatprep.subr.mxu0 0.0
        %5391 = vmatpush1.msra.mxu0 %v1021
        %5392 = vmatprep.subr.mxu0 0.0
        %5393 = vmatpush1.msra.mxu0 %v1020
        %5394 = vmatprep.subr.mxu0 0.0
        %5395 = vmatpush1.msra.mxu0 %v1019
        %5396 = vmatprep.subr.mxu0 0.0
        %5397 = vmatpush2.msra.mxu0 0.0
        %5398 = vmatprep.subr.mxu0 0.0
        %5399 = vmatpush2.msra.mxu0 0.0
        %5400 = vmatprep.subr.mxu0 0.0
        %5401 = vmatpush2.msra.mxu0 0.0
        %5402 = vmatprep.subr.mxu0 0.0
        %5403 = vmatpush2.msra.mxu0 0.0
        %5404 = vmatprep.subr.mxu0 0.0
        %5405 = vmatpush2.msra.mxu0 0.0
        %5406 = vmatprep.subr.mxu0 0.0
        %5407 = vmatpush2.msra.mxu0 0.0
        %5408 = vmatprep.subr.mxu0 0.0
        %5409 = vmatpush2.msra.mxu0 0.0
        %5410 = vmatprep.subr.mxu0 0.0
        %5411 = vmatpush2.msra.mxu0 0.0
        %5412 = vmatprep.subr.mxu0 0.0
        %5413 = vmatpush2.msra.mxu0 0.0
        %5414 = vmatprep.subr.mxu0 0.0
        %5415 = vmatpush2.msra.mxu0 0.0
        %5416 = vmatprep.subr.mxu0 0.0
        %5417 = vmatpush2.msra.mxu0 0.0
        %5418 = vmatprep.subr.mxu0 0.0
        %5419 = vmatpush2.msra.mxu0 0.0
        %5420 = vmatprep.subr.mxu0 0.0
        %5421 = vmatpush2.msra.mxu0 0.0
        %5422 = vmatprep.subr.mxu0 0.0
        %5423 = vmatpush2.msra.mxu0 0.0
        %5424 = vmatprep.subr.mxu0 0.0
        %5425 = vmatpush2.msra.mxu0 0.0
        %5426 = vmatprep.subr.mxu0 0.0
        %5427 = vmatpush2.msra.mxu0 0.0
        %5428 = vmatprep.mubr.f32.mxu0 0.0
        %5429 = vmatmul.mubr.f32.gmra.mxu0 %v5362
        %v5430 = vpop.f32.mrf.mxu0
        %v5431 = vadd.f32 0.0, %v5430
        %v5432 = vpop.f32.mrf.mxu0
        %5433 = vdwg.mxu0
        %v5434 = vsel %vm1067, %v5359, 0
        %5436 = vmatprep.subr.mxu0 0.0
        %5437 = vmatpush1.msra.mxu0 0.0
        %5438 = vmatprep.subr.mxu0 0.0
        %5439 = vmatpush1.msra.mxu0 0.0
        %5440 = vmatprep.subr.mxu0 0.0
        %5441 = vmatpush1.msra.mxu0 0.0
        %5442 = vmatprep.subr.mxu0 0.0
        %5443 = vmatpush1.msra.mxu0 0.0
        %5444 = vmatprep.subr.mxu0 0.0
        %5445 = vmatpush1.msra.mxu0 0.0
        %5446 = vmatprep.subr.mxu0 0.0
        %5447 = vmatpush1.msra.mxu0 0.0
        %5448 = vmatprep.subr.mxu0 0.0
        %5449 = vmatpush1.msra.mxu0 0.0
        %5450 = vmatprep.subr.mxu0 0.0
        %5451 = vmatpush1.msra.mxu0 0.0
        %5452 = vmatprep.subr.mxu0 0.0
        %5453 = vmatpush1.msra.mxu0 0.0
        %5454 = vmatprep.subr.mxu0 0.0
        %5455 = vmatpush1.msra.mxu0 0.0
        %5456 = vmatprep.subr.mxu0 0.0
        %5457 = vmatpush1.msra.mxu0 0.0
        %5458 = vmatprep.subr.mxu0 0.0
        %5459 = vmatpush1.msra.mxu0 0.0
        %5460 = vmatprep.subr.mxu0 0.0
        %5461 = vmatpush1.msra.mxu0 %v1018
        %5462 = vmatprep.subr.mxu0 0.0
        %5463 = vmatpush1.msra.mxu0 %v1017
        %5464 = vmatprep.subr.mxu0 0.0
        %5465 = vmatpush1.msra.mxu0 %v1016
        %5466 = vmatprep.subr.mxu0 0.0
        %5467 = vmatpush1.msra.mxu0 %v1015
        %5468 = vmatprep.subr.mxu0 0.0
        %5469 = vmatpush2.msra.mxu0 0.0
        %5470 = vmatprep.subr.mxu0 0.0
        %5471 = vmatpush2.msra.mxu0 0.0
        %5472 = vmatprep.subr.mxu0 0.0
        %5473 = vmatpush2.msra.mxu0 0.0
        %5474 = vmatprep.subr.mxu0 0.0
        %5475 = vmatpush2.msra.mxu0 0.0
        %5476 = vmatprep.subr.mxu0 0.0
        %5477 = vmatpush2.msra.mxu0 0.0
        %5478 = vmatprep.subr.mxu0 0.0
        %5479 = vmatpush2.msra.mxu0 0.0
        %5480 = vmatprep.subr.mxu0 0.0
        %5481 = vmatpush2.msra.mxu0 0.0
        %5482 = vmatprep.subr.mxu0 0.0
        %5483 = vmatpush2.msra.mxu0 0.0
        %5484 = vmatprep.subr.mxu0 0.0
        %5485 = vmatpush2.msra.mxu0 0.0
        %5486 = vmatprep.subr.mxu0 0.0
        %5487 = vmatpush2.msra.mxu0 0.0
        %5488 = vmatprep.subr.mxu0 0.0
        %5489 = vmatpush2.msra.mxu0 0.0
        %5490 = vmatprep.subr.mxu0 0.0
        %5491 = vmatpush2.msra.mxu0 0.0
        %5492 = vmatprep.subr.mxu0 0.0
        %5493 = vmatpush2.msra.mxu0 0.0
        %5494 = vmatprep.subr.mxu0 0.0
        %5495 = vmatpush2.msra.mxu0 0.0
        %5496 = vmatprep.subr.mxu0 0.0
        %5497 = vmatpush2.msra.mxu0 0.0
        %5498 = vmatprep.subr.mxu0 0.0
        %5499 = vmatpush2.msra.mxu0 0.0
        %5500 = vmatprep.mubr.f32.mxu0 0.0
        %5501 = vmatmul.mubr.f32.gmra.mxu0 %v5434
        %v5502 = vpop.f32.mrf.mxu0
        %v5503 = vadd.f32 %v5431, %v5502
        %v5504 = vpop.f32.mrf.mxu0
        %5505 = vdwg.mxu0
        %v5507 = vsel %vm1067, %v5361, 0
        %5509 = vmatprep.subr.mxu0 0.0
        %5510 = vmatpush1.msra.mxu0 0.0
        %5511 = vmatprep.subr.mxu0 0.0
        %5512 = vmatpush1.msra.mxu0 0.0
        %5513 = vmatprep.subr.mxu0 0.0
        %5514 = vmatpush1.msra.mxu0 0.0
        %5515 = vmatprep.subr.mxu0 0.0
        %5516 = vmatpush1.msra.mxu0 0.0
        %5517 = vmatprep.subr.mxu0 0.0
        %5518 = vmatpush1.msra.mxu0 0.0
        %5519 = vmatprep.subr.mxu0 0.0
        %5520 = vmatpush1.msra.mxu0 0.0
        %5521 = vmatprep.subr.mxu0 0.0
        %5522 = vmatpush1.msra.mxu0 0.0
        %5523 = vmatprep.subr.mxu0 0.0
        %5524 = vmatpush1.msra.mxu0 0.0
        %5525 = vmatprep.subr.mxu0 0.0
        %5526 = vmatpush1.msra.mxu0 0.0
        %5527 = vmatprep.subr.mxu0 0.0
        %5528 = vmatpush1.msra.mxu0 0.0
        %5529 = vmatprep.subr.mxu0 0.0
        %5530 = vmatpush1.msra.mxu0 0.0
        %5531 = vmatprep.subr.mxu0 0.0
        %5532 = vmatpush1.msra.mxu0 0.0
        %5533 = vmatprep.subr.mxu0 0.0
        %5534 = vmatpush1.msra.mxu0 %v1026
        %5535 = vmatprep.subr.mxu0 0.0
        %5536 = vmatpush1.msra.mxu0 %v1025
        %5537 = vmatprep.subr.mxu0 0.0
        %5538 = vmatpush1.msra.mxu0 %v1024
        %5539 = vmatprep.subr.mxu0 0.0
        %5540 = vmatpush1.msra.mxu0 %v1023
        %5541 = vmatprep.subr.mxu0 0.0
        %5542 = vmatpush2.msra.mxu0 0.0
        %5543 = vmatprep.subr.mxu0 0.0
        %5544 = vmatpush2.msra.mxu0 0.0
        %5545 = vmatprep.subr.mxu0 0.0
        %5546 = vmatpush2.msra.mxu0 0.0
        %5547 = vmatprep.subr.mxu0 0.0
        %5548 = vmatpush2.msra.mxu0 0.0
        %5549 = vmatprep.subr.mxu0 0.0
        %5550 = vmatpush2.msra.mxu0 0.0
        %5551 = vmatprep.subr.mxu0 0.0
        %5552 = vmatpush2.msra.mxu0 0.0
        %5553 = vmatprep.subr.mxu0 0.0
        %5554 = vmatpush2.msra.mxu0 0.0
        %5555 = vmatprep.subr.mxu0 0.0
        %5556 = vmatpush2.msra.mxu0 0.0
        %5557 = vmatprep.subr.mxu0 0.0
        %5558 = vmatpush2.msra.mxu0 0.0
        %5559 = vmatprep.subr.mxu0 0.0
        %5560 = vmatpush2.msra.mxu0 0.0
        %5561 = vmatprep.subr.mxu0 0.0
        %5562 = vmatpush2.msra.mxu0 0.0
        %5563 = vmatprep.subr.mxu0 0.0
        %5564 = vmatpush2.msra.mxu0 0.0
        %5565 = vmatprep.subr.mxu0 0.0
        %5566 = vmatpush2.msra.mxu0 0.0
        %5567 = vmatprep.subr.mxu0 0.0
        %5568 = vmatpush2.msra.mxu0 0.0
        %5569 = vmatprep.subr.mxu0 0.0
        %5570 = vmatpush2.msra.mxu0 0.0
        %5571 = vmatprep.subr.mxu0 0.0
        %5572 = vmatpush2.msra.mxu0 0.0
        %5573 = vmatprep.mubr.f32.mxu0 0.0
        %5574 = vmatmul.mubr.f32.gmra.mxu0 %v5507
        %v5575 = vpop.f32.mrf.mxu0
        %v5576 = vadd.f32 0.0, %v5575
        %v5577 = vpop.f32.mrf.mxu0
        %5578 = vdwg.mxu0
        %v5579 = vadd.f32 %v5503, %v5576
        %v5580 = vadd.f32 %v5579, %v4287
        %v5589 = vsel %vm2309, %v5338, %v5337
        %v5590 = vsel %vm2311, %v5339, %v5589
        %v5591 = vsel %vm2313, %v5340, %v5590
        %v5592 = vsel %vm2315, %v5341, %v5591
        %v5593 = vsel %vm2317, %v5342, %v5592
        %v5594 = vsel %vm2319, %v5343, %v5593
        %v5595 = vsel %vm2321, %v5344, %v5594
        %v5596 = vsel %vm1067, %v5595, 0
        %5598 = vmatprep.subr.mxu0 0.0
        %5599 = vmatpush1.msra.mxu0 0.0
        %5600 = vmatprep.subr.mxu0 0.0
        %5601 = vmatpush1.msra.mxu0 0.0
        %5602 = vmatprep.subr.mxu0 0.0
        %5603 = vmatpush1.msra.mxu0 0.0
        %5604 = vmatprep.subr.mxu0 0.0
        %5605 = vmatpush1.msra.mxu0 0.0
        %5606 = vmatprep.subr.mxu0 0.0
        %5607 = vmatpush1.msra.mxu0 0.0
        %5608 = vmatprep.subr.mxu0 0.0
        %5609 = vmatpush1.msra.mxu0 0.0
        %5610 = vmatprep.subr.mxu0 0.0
        %5611 = vmatpush1.msra.mxu0 0.0
        %5612 = vmatprep.subr.mxu0 0.0
        %5613 = vmatpush1.msra.mxu0 0.0
        %5614 = vmatprep.subr.mxu0 0.0
        %5615 = vmatpush1.msra.mxu0 0.0
        %5616 = vmatprep.subr.mxu0 0.0
        %5617 = vmatpush1.msra.mxu0 0.0
        %5618 = vmatprep.subr.mxu0 0.0
        %5619 = vmatpush1.msra.mxu0 0.0
        %5620 = vmatprep.subr.mxu0 0.0
        %5621 = vmatpush1.msra.mxu0 0.0
        %5622 = vmatprep.subr.mxu0 0.0
        %5623 = vmatpush1.msra.mxu0 %v1034
        %5624 = vmatprep.subr.mxu0 0.0
        %5625 = vmatpush1.msra.mxu0 %v1033
        %5626 = vmatprep.subr.mxu0 0.0
        %5627 = vmatpush1.msra.mxu0 %v1032
        %5628 = vmatprep.subr.mxu0 0.0
        %5629 = vmatpush1.msra.mxu0 %v1031
        %5630 = vmatprep.subr.mxu0 0.0
        %5631 = vmatpush2.msra.mxu0 0.0
        %5632 = vmatprep.subr.mxu0 0.0
        %5633 = vmatpush2.msra.mxu0 0.0
        %5634 = vmatprep.subr.mxu0 0.0
        %5635 = vmatpush2.msra.mxu0 0.0
        %5636 = vmatprep.subr.mxu0 0.0
        %5637 = vmatpush2.msra.mxu0 0.0
        %5638 = vmatprep.subr.mxu0 0.0
        %5639 = vmatpush2.msra.mxu0 0.0
        %5640 = vmatprep.subr.mxu0 0.0
        %5641 = vmatpush2.msra.mxu0 0.0
        %5642 = vmatprep.subr.mxu0 0.0
        %5643 = vmatpush2.msra.mxu0 0.0
        %5644 = vmatprep.subr.mxu0 0.0
        %5645 = vmatpush2.msra.mxu0 0.0
        %5646 = vmatprep.subr.mxu0 0.0
        %5647 = vmatpush2.msra.mxu0 0.0
        %5648 = vmatprep.subr.mxu0 0.0
        %5649 = vmatpush2.msra.mxu0 0.0
        %5650 = vmatprep.subr.mxu0 0.0
        %5651 = vmatpush2.msra.mxu0 0.0
        %5652 = vmatprep.subr.mxu0 0.0
        %5653 = vmatpush2.msra.mxu0 0.0
        %5654 = vmatprep.subr.mxu0 0.0
        %5655 = vmatpush2.msra.mxu0 0.0
        %5656 = vmatprep.subr.mxu0 0.0
        %5657 = vmatpush2.msra.mxu0 0.0
        %5658 = vmatprep.subr.mxu0 0.0
        %5659 = vmatpush2.msra.mxu0 0.0
        %5660 = vmatprep.subr.mxu0 0.0
        %5661 = vmatpush2.msra.mxu0 0.0
        %5662 = vmatprep.mubr.f32.mxu0 0.0
        %5663 = vmatmul.mubr.f32.gmra.mxu0 %v5596
        %v5664 = vpop.f32.mrf.mxu0
        %v5665 = vadd.f32 0.0, %v5664
        %v5666 = vpop.f32.mrf.mxu0
        %5667 = vdwg.mxu0
        %v5668 = vadd.f32 %v5580, %v5665
        %v5669 = vadd.f32 %v5668, %v4366
        %vm5670 = vcmp.gt.f32.partialorder %v5669, 0.0
        %v5671 = vmul.f32 %v5669, 0.01
        %v5672 = vsel %vm5670, %v5669, %v5671
        %v5674 = vsel %vm1067, %v5672, 0
        %5676 = vmatprep.subr.mxu0 0.0
        %5677 = vmatpush1.msra.mxu0 0.0
        %5678 = vmatprep.subr.mxu0 0.0
        %5679 = vmatpush1.msra.mxu0 0.0
        %5680 = vmatprep.subr.mxu0 0.0
        %5681 = vmatpush1.msra.mxu0 0.0
        %5682 = vmatprep.subr.mxu0 0.0
        %5683 = vmatpush1.msra.mxu0 0.0
        %5684 = vmatprep.subr.mxu0 0.0
        %5685 = vmatpush1.msra.mxu0 0.0
        %5686 = vmatprep.subr.mxu0 0.0
        %5687 = vmatpush1.msra.mxu0 0.0
        %5688 = vmatprep.subr.mxu0 0.0
        %5689 = vmatpush1.msra.mxu0 0.0
        %5690 = vmatprep.subr.mxu0 0.0
        %5691 = vmatpush1.msra.mxu0 0.0
        %5692 = vmatprep.subr.mxu0 0.0
        %5693 = vmatpush1.msra.mxu0 0.0
        %5694 = vmatprep.subr.mxu0 0.0
        %5695 = vmatpush1.msra.mxu0 0.0
        %5696 = vmatprep.subr.mxu0 0.0
        %5697 = vmatpush1.msra.mxu0 0.0
        %5698 = vmatprep.subr.mxu0 0.0
        %5699 = vmatpush1.msra.mxu0 0.0
        %5700 = vmatprep.subr.mxu0 0.0
        %5701 = vmatpush1.msra.mxu0 %v4375
        %5702 = vmatprep.subr.mxu0 0.0
        %5703 = vmatpush1.msra.mxu0 %v4374
        %5704 = vmatprep.subr.mxu0 0.0
        %5705 = vmatpush1.msra.mxu0 %v4373
        %5706 = vmatprep.subr.mxu0 0.0
        %5707 = vmatpush1.msra.mxu0 %v4372
        %5708 = vmatprep.subr.mxu0 0.0
        %5709 = vmatpush2.msra.mxu0 0.0
        %5710 = vmatprep.subr.mxu0 0.0
        %5711 = vmatpush2.msra.mxu0 0.0
        %5712 = vmatprep.subr.mxu0 0.0
        %5713 = vmatpush2.msra.mxu0 0.0
        %5714 = vmatprep.subr.mxu0 0.0
        %5715 = vmatpush2.msra.mxu0 0.0
        %5716 = vmatprep.subr.mxu0 0.0
        %5717 = vmatpush2.msra.mxu0 0.0
        %5718 = vmatprep.subr.mxu0 0.0
        %5719 = vmatpush2.msra.mxu0 0.0
        %5720 = vmatprep.subr.mxu0 0.0
        %5721 = vmatpush2.msra.mxu0 0.0
        %5722 = vmatprep.subr.mxu0 0.0
        %5723 = vmatpush2.msra.mxu0 0.0
        %5724 = vmatprep.subr.mxu0 0.0
        %5725 = vmatpush2.msra.mxu0 0.0
        %5726 = vmatprep.subr.mxu0 0.0
        %5727 = vmatpush2.msra.mxu0 0.0
        %5728 = vmatprep.subr.mxu0 0.0
        %5729 = vmatpush2.msra.mxu0 0.0
        %5730 = vmatprep.subr.mxu0 0.0
        %5731 = vmatpush2.msra.mxu0 0.0
        %5732 = vmatprep.subr.mxu0 0.0
        %5733 = vmatpush2.msra.mxu0 0.0
        %5734 = vmatprep.subr.mxu0 0.0
        %5735 = vmatpush2.msra.mxu0 0.0
        %5736 = vmatprep.subr.mxu0 0.0
        %5737 = vmatpush2.msra.mxu0 0.0
        %5738 = vmatprep.subr.mxu0 0.0
        %5739 = vmatpush2.msra.mxu0 0.0
        %5740 = vmatprep.mubr.f32.mxu0 0.0
        %5741 = vmatmul.mubr.f32.gmra.mxu0 %v5674
        %v5742 = vpop.f32.mrf.mxu0
        %v5743 = vadd.f32 %v4380, %v5742
        %v5744 = vpop.f32.mrf.mxu0
        %5745 = vdwg.mxu0
        %vm5746 = vcmp.gt.f32.partialorder %v5743, 0.0
        %v5747 = vmul.f32 %v5743, 0.01
        %v5748 = vsel %vm5746, %v5743, %v5747
        %v5749 = vmul.f32 %v5748, %v4462
        %v5750 = vsel %vm1067, %v5749, 0.0
        %5751 = vadd.xlane.f32.xlu0 %v5750
        %v5752 = vpop.xlane.xlu0 %5751
        %v5753 = vadd.f32 %v5752, %v4472
        %v5754 = vmul.f32 %v5753, 0.5
        %v5755 = vtanh.pop %v5754
        %v5756 = vadd.f32 %v5755, 1.0
        %v5757 = vmul.f32 %v5756, 0.5
        %5759 = vset.pattern.permute.xlu0 0
        %5760 = vperm.xlu0 %5759, %v5757
        %v5761 = vpop.permute.xlu0 %5760
        %v5763 = vmul.f32 %v5761, %v5359
        %v5765 = vsel %vm1067, %v5763, 0
        %5767 = vmatprep.subr.mxu0 0.0
        %5768 = vmatpush1.msra.mxu0 0.0
        %5769 = vmatprep.subr.mxu0 0.0
        %5770 = vmatpush1.msra.mxu0 0.0
        %5771 = vmatprep.subr.mxu0 0.0
        %5772 = vmatpush1.msra.mxu0 0.0
        %5773 = vmatprep.subr.mxu0 0.0
        %5774 = vmatpush1.msra.mxu0 0.0
        %5775 = vmatprep.subr.mxu0 0.0
        %5776 = vmatpush1.msra.mxu0 0.0
        %5777 = vmatprep.subr.mxu0 0.0
        %5778 = vmatpush1.msra.mxu0 0.0
        %5779 = vmatprep.subr.mxu0 0.0
        %5780 = vmatpush1.msra.mxu0 0.0
        %5781 = vmatprep.subr.mxu0 0.0
        %5782 = vmatpush1.msra.mxu0 0.0
        %5783 = vmatprep.subr.mxu0 0.0
        %5784 = vmatpush1.msra.mxu0 0.0
        %5785 = vmatprep.subr.mxu0 0.0
        %5786 = vmatpush1.msra.mxu0 0.0
        %5787 = vmatprep.subr.mxu0 0.0
        %5788 = vmatpush1.msra.mxu0 0.0
        %5789 = vmatprep.subr.mxu0 0.0
        %5790 = vmatpush1.msra.mxu0 0.0
        %5791 = vmatprep.subr.mxu0 0.0
        %5792 = vmatpush1.msra.mxu0 %v4489
        %5793 = vmatprep.subr.mxu0 0.0
        %5794 = vmatpush1.msra.mxu0 %v4488
        %5795 = vmatprep.subr.mxu0 0.0
        %5796 = vmatpush1.msra.mxu0 %v4487
        %5797 = vmatprep.subr.mxu0 0.0
        %5798 = vmatpush1.msra.mxu0 %v4486
        %5799 = vmatprep.subr.mxu0 0.0
        %5800 = vmatpush2.msra.mxu0 0.0
        %5801 = vmatprep.subr.mxu0 0.0
        %5802 = vmatpush2.msra.mxu0 0.0
        %5803 = vmatprep.subr.mxu0 0.0
        %5804 = vmatpush2.msra.mxu0 0.0
        %5805 = vmatprep.subr.mxu0 0.0
        %5806 = vmatpush2.msra.mxu0 0.0
        %5807 = vmatprep.subr.mxu0 0.0
        %5808 = vmatpush2.msra.mxu0 0.0
        %5809 = vmatprep.subr.mxu0 0.0
        %5810 = vmatpush2.msra.mxu0 0.0
        %5811 = vmatprep.subr.mxu0 0.0
        %5812 = vmatpush2.msra.mxu0 0.0
        %5813 = vmatprep.subr.mxu0 0.0
        %5814 = vmatpush2.msra.mxu0 0.0
        %5815 = vmatprep.subr.mxu0 0.0
        %5816 = vmatpush2.msra.mxu0 0.0
        %5817 = vmatprep.subr.mxu0 0.0
        %5818 = vmatpush2.msra.mxu0 0.0
        %5819 = vmatprep.subr.mxu0 0.0
        %5820 = vmatpush2.msra.mxu0 0.0
        %5821 = vmatprep.subr.mxu0 0.0
        %5822 = vmatpush2.msra.mxu0 0.0
        %5823 = vmatprep.subr.mxu0 0.0
        %5824 = vmatpush2.msra.mxu0 0.0
        %5825 = vmatprep.subr.mxu0 0.0
        %5826 = vmatpush2.msra.mxu0 0.0
        %5827 = vmatprep.subr.mxu0 0.0
        %5828 = vmatpush2.msra.mxu0 0.0
        %5829 = vmatprep.subr.mxu0 0.0
        %5830 = vmatpush2.msra.mxu0 0.0
        %5831 = vmatprep.mubr.f32.mxu0 0.0
        %5832 = vmatmul.mubr.f32.gmra.mxu0 %v5765
        %v5833 = vpop.f32.mrf.mxu0
        %v5834 = vadd.f32 %v4494, %v5833
        %v5835 = vpop.f32.mrf.mxu0
        %5836 = vdwg.mxu0
        %vm5837 = vcmp.gt.f32.partialorder %v5834, 0.0
        %v5838 = vmul.f32 %v5834, 0.01
        %v5839 = vsel %vm5837, %v5834, %v5838
        %v5841 = vsel %vm1067, %v5839, 0
        %5843 = vmatprep.subr.mxu0 0.0
        %5844 = vmatpush1.msra.mxu0 0.0
        %5845 = vmatprep.subr.mxu0 0.0
        %5846 = vmatpush1.msra.mxu0 0.0
        %5847 = vmatprep.subr.mxu0 0.0
        %5848 = vmatpush1.msra.mxu0 0.0
        %5849 = vmatprep.subr.mxu0 0.0
        %5850 = vmatpush1.msra.mxu0 0.0
        %5851 = vmatprep.subr.mxu0 0.0
        %5852 = vmatpush1.msra.mxu0 0.0
        %5853 = vmatprep.subr.mxu0 0.0
        %5854 = vmatpush1.msra.mxu0 0.0
        %5855 = vmatprep.subr.mxu0 0.0
        %5856 = vmatpush1.msra.mxu0 0.0
        %5857 = vmatprep.subr.mxu0 0.0
        %5858 = vmatpush1.msra.mxu0 0.0
        %5859 = vmatprep.subr.mxu0 0.0
        %5860 = vmatpush1.msra.mxu0 0.0
        %5861 = vmatprep.subr.mxu0 0.0
        %5862 = vmatpush1.msra.mxu0 0.0
        %5863 = vmatprep.subr.mxu0 0.0
        %5864 = vmatpush1.msra.mxu0 0.0
        %5865 = vmatprep.subr.mxu0 0.0
        %5866 = vmatpush1.msra.mxu0 0.0
        %5867 = vmatprep.subr.mxu0 0.0
        %5868 = vmatpush1.msra.mxu0 %v4575
        %5869 = vmatprep.subr.mxu0 0.0
        %5870 = vmatpush1.msra.mxu0 %v4574
        %5871 = vmatprep.subr.mxu0 0.0
        %5872 = vmatpush1.msra.mxu0 %v4573
        %5873 = vmatprep.subr.mxu0 0.0
        %5874 = vmatpush1.msra.mxu0 %v4572
        %5875 = vmatprep.subr.mxu0 0.0
        %5876 = vmatpush2.msra.mxu0 0.0
        %5877 = vmatprep.subr.mxu0 0.0
        %5878 = vmatpush2.msra.mxu0 0.0
        %5879 = vmatprep.subr.mxu0 0.0
        %5880 = vmatpush2.msra.mxu0 0.0
        %5881 = vmatprep.subr.mxu0 0.0
        %5882 = vmatpush2.msra.mxu0 0.0
        %5883 = vmatprep.subr.mxu0 0.0
        %5884 = vmatpush2.msra.mxu0 0.0
        %5885 = vmatprep.subr.mxu0 0.0
        %5886 = vmatpush2.msra.mxu0 0.0
        %5887 = vmatprep.subr.mxu0 0.0
        %5888 = vmatpush2.msra.mxu0 0.0
        %5889 = vmatprep.subr.mxu0 0.0
        %5890 = vmatpush2.msra.mxu0 0.0
        %5891 = vmatprep.subr.mxu0 0.0
        %5892 = vmatpush2.msra.mxu0 0.0
        %5893 = vmatprep.subr.mxu0 0.0
        %5894 = vmatpush2.msra.mxu0 0.0
        %5895 = vmatprep.subr.mxu0 0.0
        %5896 = vmatpush2.msra.mxu0 0.0
        %5897 = vmatprep.subr.mxu0 0.0
        %5898 = vmatpush2.msra.mxu0 0.0
        %5899 = vmatprep.subr.mxu0 0.0
        %5900 = vmatpush2.msra.mxu0 0.0
        %5901 = vmatprep.subr.mxu0 0.0
        %5902 = vmatpush2.msra.mxu0 0.0
        %5903 = vmatprep.subr.mxu0 0.0
        %5904 = vmatpush2.msra.mxu0 0.0
        %5905 = vmatprep.subr.mxu0 0.0
        %5906 = vmatpush2.msra.mxu0 0.0
        %5907 = vmatprep.mubr.f32.mxu0 0.0
        %5908 = vmatmul.mubr.f32.gmra.mxu0 %v5841
        %v5909 = vpop.f32.mrf.mxu0
        %v5910 = vadd.f32 %v4580, %v5909
        %v5911 = vpop.f32.mrf.mxu0
        %5912 = vdwg.mxu0
        %vm5913 = vcmp.gt.f32.partialorder %v5910, 0.0
        %v5914 = vmul.f32 %v5910, 0.01
        %v5915 = vsel %vm5913, %v5910, %v5914
        %v5917 = vrot.slane %v5915, 1
        %v5918 = vrot.slane %v5915, 2
        %v5919 = vrot.slane %v5915, 3
        %v5920 = vrot.slane %v5915, 4
        %v5921 = vrot.slane %v5915, 5
        %v5922 = vrot.slane %v5915, 6
        %v5923 = vrot.slane %v5915, 7
        %v5932 = vadd.f32 %v4682, %v5915
        %v5933 = vadd.f32 %v4683, %v5917
        %v5934 = vadd.f32 %v4684, %v5918
        %v5935 = vadd.f32 %v4685, %v5919
        %v5936 = vadd.f32 %v4686, %v5920
        %v5937 = vadd.f32 %v4687, %v5921
        %v5938 = vadd.f32 %v4688, %v5922
        %v5939 = vadd.f32 %v4689, %v5923
        %v5940 = vadd.f32 %v5932, %v5915
        %v5941 = vadd.f32 %v5933, %v5917
        %v5942 = vadd.f32 %v5934, %v5918
        %v5943 = vadd.f32 %v5935, %v5919
        %v5944 = vadd.f32 %v5936, %v5920
        %v5945 = vadd.f32 %v5937, %v5921
        %v5946 = vadd.f32 %v5938, %v5922
        %v5947 = vadd.f32 %v5939, %v5923
        %v5956 = vsel %vm2309, %v3522, %v3515
        %v5957 = vsel %vm2311, %v3529, %v5956
        %v5958 = vsel %vm2313, %v3536, %v5957
        %v5959 = vsel %vm2315, %v3543, %v5958
        %v5960 = vsel %vm2317, %v3550, %v5959
        %v5961 = vsel %vm2319, %v3557, %v5960
        %v5962 = vsel %vm2321, %v3564, %v5961
        %v5964 = vmul.f32 %v3949, %v5962
        %v5965 = vmul.f32 %v5334, %v5962
        %v5967 = vsel %vm1067, %v5334, 0
        %5969 = vmatprep.subr.mxu0 0.0
        %5970 = vmatpush1.msra.mxu0 0.0
        %5971 = vmatprep.subr.mxu0 0.0
        %5972 = vmatpush1.msra.mxu0 0.0
        %5973 = vmatprep.subr.mxu0 0.0
        %5974 = vmatpush1.msra.mxu0 0.0
        %5975 = vmatprep.subr.mxu0 0.0
        %5976 = vmatpush1.msra.mxu0 0.0
        %5977 = vmatprep.subr.mxu0 0.0
        %5978 = vmatpush1.msra.mxu0 0.0
        %5979 = vmatprep.subr.mxu0 0.0
        %5980 = vmatpush1.msra.mxu0 0.0
        %5981 = vmatprep.subr.mxu0 0.0
        %5982 = vmatpush1.msra.mxu0 0.0
        %5983 = vmatprep.subr.mxu0 0.0
        %5984 = vmatpush1.msra.mxu0 0.0
        %5985 = vmatprep.subr.mxu0 0.0
        %5986 = vmatpush1.msra.mxu0 0.0
        %5987 = vmatprep.subr.mxu0 0.0
        %5988 = vmatpush1.msra.mxu0 0.0
        %5989 = vmatprep.subr.mxu0 0.0
        %5990 = vmatpush1.msra.mxu0 0.0
        %5991 = vmatprep.subr.mxu0 0.0
        %5992 = vmatpush1.msra.mxu0 0.0
        %5993 = vmatprep.subr.mxu0 0.0
        %5994 = vmatpush1.msra.mxu0 %v1022
        %5995 = vmatprep.subr.mxu0 0.0
        %5996 = vmatpush1.msra.mxu0 %v1021
        %5997 = vmatprep.subr.mxu0 0.0
        %5998 = vmatpush1.msra.mxu0 %v1020
        %5999 = vmatprep.subr.mxu0 0.0
        %6000 = vmatpush1.msra.mxu0 %v1019
        %6001 = vmatprep.subr.mxu0 0.0
        %6002 = vmatpush2.msra.mxu0 0.0
        %6003 = vmatprep.subr.mxu0 0.0
        %6004 = vmatpush2.msra.mxu0 0.0
        %6005 = vmatprep.subr.mxu0 0.0
        %6006 = vmatpush2.msra.mxu0 0.0
        %6007 = vmatprep.subr.mxu0 0.0
        %6008 = vmatpush2.msra.mxu0 0.0
        %6009 = vmatprep.subr.mxu0 0.0
        %6010 = vmatpush2.msra.mxu0 0.0
        %6011 = vmatprep.subr.mxu0 0.0
        %6012 = vmatpush2.msra.mxu0 0.0
        %6013 = vmatprep.subr.mxu0 0.0
        %6014 = vmatpush2.msra.mxu0 0.0
        %6015 = vmatprep.subr.mxu0 0.0
        %6016 = vmatpush2.msra.mxu0 0.0
        %6017 = vmatprep.subr.mxu0 0.0
        %6018 = vmatpush2.msra.mxu0 0.0
        %6019 = vmatprep.subr.mxu0 0.0
        %6020 = vmatpush2.msra.mxu0 0.0
        %6021 = vmatprep.subr.mxu0 0.0
        %6022 = vmatpush2.msra.mxu0 0.0
        %6023 = vmatprep.subr.mxu0 0.0
        %6024 = vmatpush2.msra.mxu0 0.0
        %6025 = vmatprep.subr.mxu0 0.0
        %6026 = vmatpush2.msra.mxu0 0.0
        %6027 = vmatprep.subr.mxu0 0.0
        %6028 = vmatpush2.msra.mxu0 0.0
        %6029 = vmatprep.subr.mxu0 0.0
        %6030 = vmatpush2.msra.mxu0 0.0
        %6031 = vmatprep.subr.mxu0 0.0
        %6032 = vmatpush2.msra.mxu0 0.0
        %6033 = vmatprep.mubr.f32.mxu0 0.0
        %6034 = vmatmul.mubr.f32.gmra.mxu0 %v5967
        %v6035 = vpop.f32.mrf.mxu0
        %v6036 = vadd.f32 0.0, %v6035
        %v6037 = vpop.f32.mrf.mxu0
        %6038 = vdwg.mxu0
        %v6039 = vsel %vm1067, %v5962, 0
        %6041 = vmatprep.subr.mxu0 0.0
        %6042 = vmatpush1.msra.mxu0 0.0
        %6043 = vmatprep.subr.mxu0 0.0
        %6044 = vmatpush1.msra.mxu0 0.0
        %6045 = vmatprep.subr.mxu0 0.0
        %6046 = vmatpush1.msra.mxu0 0.0
        %6047 = vmatprep.subr.mxu0 0.0
        %6048 = vmatpush1.msra.mxu0 0.0
        %6049 = vmatprep.subr.mxu0 0.0
        %6050 = vmatpush1.msra.mxu0 0.0
        %6051 = vmatprep.subr.mxu0 0.0
        %6052 = vmatpush1.msra.mxu0 0.0
        %6053 = vmatprep.subr.mxu0 0.0
        %6054 = vmatpush1.msra.mxu0 0.0
        %6055 = vmatprep.subr.mxu0 0.0
        %6056 = vmatpush1.msra.mxu0 0.0
        %6057 = vmatprep.subr.mxu0 0.0
        %6058 = vmatpush1.msra.mxu0 0.0
        %6059 = vmatprep.subr.mxu0 0.0
        %6060 = vmatpush1.msra.mxu0 0.0
        %6061 = vmatprep.subr.mxu0 0.0
        %6062 = vmatpush1.msra.mxu0 0.0
        %6063 = vmatprep.subr.mxu0 0.0
        %6064 = vmatpush1.msra.mxu0 0.0
        %6065 = vmatprep.subr.mxu0 0.0
        %6066 = vmatpush1.msra.mxu0 %v1018
        %6067 = vmatprep.subr.mxu0 0.0
        %6068 = vmatpush1.msra.mxu0 %v1017
        %6069 = vmatprep.subr.mxu0 0.0
        %6070 = vmatpush1.msra.mxu0 %v1016
        %6071 = vmatprep.subr.mxu0 0.0
        %6072 = vmatpush1.msra.mxu0 %v1015
        %6073 = vmatprep.subr.mxu0 0.0
        %6074 = vmatpush2.msra.mxu0 0.0
        %6075 = vmatprep.subr.mxu0 0.0
        %6076 = vmatpush2.msra.mxu0 0.0
        %6077 = vmatprep.subr.mxu0 0.0
        %6078 = vmatpush2.msra.mxu0 0.0
        %6079 = vmatprep.subr.mxu0 0.0
        %6080 = vmatpush2.msra.mxu0 0.0
        %6081 = vmatprep.subr.mxu0 0.0
        %6082 = vmatpush2.msra.mxu0 0.0
        %6083 = vmatprep.subr.mxu0 0.0
        %6084 = vmatpush2.msra.mxu0 0.0
        %6085 = vmatprep.subr.mxu0 0.0
        %6086 = vmatpush2.msra.mxu0 0.0
        %6087 = vmatprep.subr.mxu0 0.0
        %6088 = vmatpush2.msra.mxu0 0.0
        %6089 = vmatprep.subr.mxu0 0.0
        %6090 = vmatpush2.msra.mxu0 0.0
        %6091 = vmatprep.subr.mxu0 0.0
        %6092 = vmatpush2.msra.mxu0 0.0
        %6093 = vmatprep.subr.mxu0 0.0
        %6094 = vmatpush2.msra.mxu0 0.0
        %6095 = vmatprep.subr.mxu0 0.0
        %6096 = vmatpush2.msra.mxu0 0.0
        %6097 = vmatprep.subr.mxu0 0.0
        %6098 = vmatpush2.msra.mxu0 0.0
        %6099 = vmatprep.subr.mxu0 0.0
        %6100 = vmatpush2.msra.mxu0 0.0
        %6101 = vmatprep.subr.mxu0 0.0
        %6102 = vmatpush2.msra.mxu0 0.0
        %6103 = vmatprep.subr.mxu0 0.0
        %6104 = vmatpush2.msra.mxu0 0.0
        %6105 = vmatprep.mubr.f32.mxu0 0.0
        %6106 = vmatmul.mubr.f32.gmra.mxu0 %v6039
        %v6107 = vpop.f32.mrf.mxu0
        %v6108 = vadd.f32 %v6036, %v6107
        %v6109 = vpop.f32.mrf.mxu0
        %6110 = vdwg.mxu0
        %v6112 = vsel %vm1067, %v5965, 0
        %6114 = vmatprep.subr.mxu0 0.0
        %6115 = vmatpush1.msra.mxu0 0.0
        %6116 = vmatprep.subr.mxu0 0.0
        %6117 = vmatpush1.msra.mxu0 0.0
        %6118 = vmatprep.subr.mxu0 0.0
        %6119 = vmatpush1.msra.mxu0 0.0
        %6120 = vmatprep.subr.mxu0 0.0
        %6121 = vmatpush1.msra.mxu0 0.0
        %6122 = vmatprep.subr.mxu0 0.0
        %6123 = vmatpush1.msra.mxu0 0.0
        %6124 = vmatprep.subr.mxu0 0.0
        %6125 = vmatpush1.msra.mxu0 0.0
        %6126 = vmatprep.subr.mxu0 0.0
        %6127 = vmatpush1.msra.mxu0 0.0
        %6128 = vmatprep.subr.mxu0 0.0
        %6129 = vmatpush1.msra.mxu0 0.0
        %6130 = vmatprep.subr.mxu0 0.0
        %6131 = vmatpush1.msra.mxu0 0.0
        %6132 = vmatprep.subr.mxu0 0.0
        %6133 = vmatpush1.msra.mxu0 0.0
        %6134 = vmatprep.subr.mxu0 0.0
        %6135 = vmatpush1.msra.mxu0 0.0
        %6136 = vmatprep.subr.mxu0 0.0
        %6137 = vmatpush1.msra.mxu0 0.0
        %6138 = vmatprep.subr.mxu0 0.0
        %6139 = vmatpush1.msra.mxu0 %v1026
        %6140 = vmatprep.subr.mxu0 0.0
        %6141 = vmatpush1.msra.mxu0 %v1025
        %6142 = vmatprep.subr.mxu0 0.0
        %6143 = vmatpush1.msra.mxu0 %v1024
        %6144 = vmatprep.subr.mxu0 0.0
        %6145 = vmatpush1.msra.mxu0 %v1023
        %6146 = vmatprep.subr.mxu0 0.0
        %6147 = vmatpush2.msra.mxu0 0.0
        %6148 = vmatprep.subr.mxu0 0.0
        %6149 = vmatpush2.msra.mxu0 0.0
        %6150 = vmatprep.subr.mxu0 0.0
        %6151 = vmatpush2.msra.mxu0 0.0
        %6152 = vmatprep.subr.mxu0 0.0
        %6153 = vmatpush2.msra.mxu0 0.0
        %6154 = vmatprep.subr.mxu0 0.0
        %6155 = vmatpush2.msra.mxu0 0.0
        %6156 = vmatprep.subr.mxu0 0.0
        %6157 = vmatpush2.msra.mxu0 0.0
        %6158 = vmatprep.subr.mxu0 0.0
        %6159 = vmatpush2.msra.mxu0 0.0
        %6160 = vmatprep.subr.mxu0 0.0
        %6161 = vmatpush2.msra.mxu0 0.0
        %6162 = vmatprep.subr.mxu0 0.0
        %6163 = vmatpush2.msra.mxu0 0.0
        %6164 = vmatprep.subr.mxu0 0.0
        %6165 = vmatpush2.msra.mxu0 0.0
        %6166 = vmatprep.subr.mxu0 0.0
        %6167 = vmatpush2.msra.mxu0 0.0
        %6168 = vmatprep.subr.mxu0 0.0
        %6169 = vmatpush2.msra.mxu0 0.0
        %6170 = vmatprep.subr.mxu0 0.0
        %6171 = vmatpush2.msra.mxu0 0.0
        %6172 = vmatprep.subr.mxu0 0.0
        %6173 = vmatpush2.msra.mxu0 0.0
        %6174 = vmatprep.subr.mxu0 0.0
        %6175 = vmatpush2.msra.mxu0 0.0
        %6176 = vmatprep.subr.mxu0 0.0
        %6177 = vmatpush2.msra.mxu0 0.0
        %6178 = vmatprep.mubr.f32.mxu0 0.0
        %6179 = vmatmul.mubr.f32.gmra.mxu0 %v6112
        %v6180 = vpop.f32.mrf.mxu0
        %v6181 = vadd.f32 0.0, %v6180
        %v6182 = vpop.f32.mrf.mxu0
        %6183 = vdwg.mxu0
        %v6184 = vadd.f32 %v6108, %v6181
        %v6185 = vadd.f32 %v6184, %v4993
        %v6187 = vsel %vm1067, %v5964, 0
        %6189 = vmatprep.subr.mxu0 0.0
        %6190 = vmatpush1.msra.mxu0 0.0
        %6191 = vmatprep.subr.mxu0 0.0
        %6192 = vmatpush1.msra.mxu0 0.0
        %6193 = vmatprep.subr.mxu0 0.0
        %6194 = vmatpush1.msra.mxu0 0.0
        %6195 = vmatprep.subr.mxu0 0.0
        %6196 = vmatpush1.msra.mxu0 0.0
        %6197 = vmatprep.subr.mxu0 0.0
        %6198 = vmatpush1.msra.mxu0 0.0
        %6199 = vmatprep.subr.mxu0 0.0
        %6200 = vmatpush1.msra.mxu0 0.0
        %6201 = vmatprep.subr.mxu0 0.0
        %6202 = vmatpush1.msra.mxu0 0.0
        %6203 = vmatprep.subr.mxu0 0.0
        %6204 = vmatpush1.msra.mxu0 0.0
        %6205 = vmatprep.subr.mxu0 0.0
        %6206 = vmatpush1.msra.mxu0 0.0
        %6207 = vmatprep.subr.mxu0 0.0
        %6208 = vmatpush1.msra.mxu0 0.0
        %6209 = vmatprep.subr.mxu0 0.0
        %6210 = vmatpush1.msra.mxu0 0.0
        %6211 = vmatprep.subr.mxu0 0.0
        %6212 = vmatpush1.msra.mxu0 0.0
        %6213 = vmatprep.subr.mxu0 0.0
        %6214 = vmatpush1.msra.mxu0 %v1034
        %6215 = vmatprep.subr.mxu0 0.0
        %6216 = vmatpush1.msra.mxu0 %v1033
        %6217 = vmatprep.subr.mxu0 0.0
        %6218 = vmatpush1.msra.mxu0 %v1032
        %6219 = vmatprep.subr.mxu0 0.0
        %6220 = vmatpush1.msra.mxu0 %v1031
        %6221 = vmatprep.subr.mxu0 0.0
        %6222 = vmatpush2.msra.mxu0 0.0
        %6223 = vmatprep.subr.mxu0 0.0
        %6224 = vmatpush2.msra.mxu0 0.0
        %6225 = vmatprep.subr.mxu0 0.0
        %6226 = vmatpush2.msra.mxu0 0.0
        %6227 = vmatprep.subr.mxu0 0.0
        %6228 = vmatpush2.msra.mxu0 0.0
        %6229 = vmatprep.subr.mxu0 0.0
        %6230 = vmatpush2.msra.mxu0 0.0
        %6231 = vmatprep.subr.mxu0 0.0
        %6232 = vmatpush2.msra.mxu0 0.0
        %6233 = vmatprep.subr.mxu0 0.0
        %6234 = vmatpush2.msra.mxu0 0.0
        %6235 = vmatprep.subr.mxu0 0.0
        %6236 = vmatpush2.msra.mxu0 0.0
        %6237 = vmatprep.subr.mxu0 0.0
        %6238 = vmatpush2.msra.mxu0 0.0
        %6239 = vmatprep.subr.mxu0 0.0
        %6240 = vmatpush2.msra.mxu0 0.0
        %6241 = vmatprep.subr.mxu0 0.0
        %6242 = vmatpush2.msra.mxu0 0.0
        %6243 = vmatprep.subr.mxu0 0.0
        %6244 = vmatpush2.msra.mxu0 0.0
        %6245 = vmatprep.subr.mxu0 0.0
        %6246 = vmatpush2.msra.mxu0 0.0
        %6247 = vmatprep.subr.mxu0 0.0
        %6248 = vmatpush2.msra.mxu0 0.0
        %6249 = vmatprep.subr.mxu0 0.0
        %6250 = vmatpush2.msra.mxu0 0.0
        %6251 = vmatprep.subr.mxu0 0.0
        %6252 = vmatpush2.msra.mxu0 0.0
        %6253 = vmatprep.mubr.f32.mxu0 0.0
        %6254 = vmatmul.mubr.f32.gmra.mxu0 %v6187
        %v6255 = vpop.f32.mrf.mxu0
        %v6256 = vadd.f32 0.0, %v6255
        %v6257 = vpop.f32.mrf.mxu0
        %6258 = vdwg.mxu0
        %v6259 = vadd.f32 %v6185, %v6256
        %v6260 = vadd.f32 %v6259, %v4366
        %vm6261 = vcmp.gt.f32.partialorder %v6260, 0.0
        %v6262 = vmul.f32 %v6260, 0.01
        %v6263 = vsel %vm6261, %v6260, %v6262
        %v6265 = vsel %vm1067, %v6263, 0
        %6267 = vmatprep.subr.mxu0 0.0
        %6268 = vmatpush1.msra.mxu0 0.0
        %6269 = vmatprep.subr.mxu0 0.0
        %6270 = vmatpush1.msra.mxu0 0.0
        %6271 = vmatprep.subr.mxu0 0.0
        %6272 = vmatpush1.msra.mxu0 0.0
        %6273 = vmatprep.subr.mxu0 0.0
        %6274 = vmatpush1.msra.mxu0 0.0
        %6275 = vmatprep.subr.mxu0 0.0
        %6276 = vmatpush1.msra.mxu0 0.0
        %6277 = vmatprep.subr.mxu0 0.0
        %6278 = vmatpush1.msra.mxu0 0.0
        %6279 = vmatprep.subr.mxu0 0.0
        %6280 = vmatpush1.msra.mxu0 0.0
        %6281 = vmatprep.subr.mxu0 0.0
        %6282 = vmatpush1.msra.mxu0 0.0
        %6283 = vmatprep.subr.mxu0 0.0
        %6284 = vmatpush1.msra.mxu0 0.0
        %6285 = vmatprep.subr.mxu0 0.0
        %6286 = vmatpush1.msra.mxu0 0.0
        %6287 = vmatprep.subr.mxu0 0.0
        %6288 = vmatpush1.msra.mxu0 0.0
        %6289 = vmatprep.subr.mxu0 0.0
        %6290 = vmatpush1.msra.mxu0 0.0
        %6291 = vmatprep.subr.mxu0 0.0
        %6292 = vmatpush1.msra.mxu0 %v4375
        %6293 = vmatprep.subr.mxu0 0.0
        %6294 = vmatpush1.msra.mxu0 %v4374
        %6295 = vmatprep.subr.mxu0 0.0
        %6296 = vmatpush1.msra.mxu0 %v4373
        %6297 = vmatprep.subr.mxu0 0.0
        %6298 = vmatpush1.msra.mxu0 %v4372
        %6299 = vmatprep.subr.mxu0 0.0
        %6300 = vmatpush2.msra.mxu0 0.0
        %6301 = vmatprep.subr.mxu0 0.0
        %6302 = vmatpush2.msra.mxu0 0.0
        %6303 = vmatprep.subr.mxu0 0.0
        %6304 = vmatpush2.msra.mxu0 0.0
        %6305 = vmatprep.subr.mxu0 0.0
        %6306 = vmatpush2.msra.mxu0 0.0
        %6307 = vmatprep.subr.mxu0 0.0
        %6308 = vmatpush2.msra.mxu0 0.0
        %6309 = vmatprep.subr.mxu0 0.0
        %6310 = vmatpush2.msra.mxu0 0.0
        %6311 = vmatprep.subr.mxu0 0.0
        %6312 = vmatpush2.msra.mxu0 0.0
        %6313 = vmatprep.subr.mxu0 0.0
        %6314 = vmatpush2.msra.mxu0 0.0
        %6315 = vmatprep.subr.mxu0 0.0
        %6316 = vmatpush2.msra.mxu0 0.0
        %6317 = vmatprep.subr.mxu0 0.0
        %6318 = vmatpush2.msra.mxu0 0.0
        %6319 = vmatprep.subr.mxu0 0.0
        %6320 = vmatpush2.msra.mxu0 0.0
        %6321 = vmatprep.subr.mxu0 0.0
        %6322 = vmatpush2.msra.mxu0 0.0
        %6323 = vmatprep.subr.mxu0 0.0
        %6324 = vmatpush2.msra.mxu0 0.0
        %6325 = vmatprep.subr.mxu0 0.0
        %6326 = vmatpush2.msra.mxu0 0.0
        %6327 = vmatprep.subr.mxu0 0.0
        %6328 = vmatpush2.msra.mxu0 0.0
        %6329 = vmatprep.subr.mxu0 0.0
        %6330 = vmatpush2.msra.mxu0 0.0
        %6331 = vmatprep.mubr.f32.mxu0 0.0
        %6332 = vmatmul.mubr.f32.gmra.mxu0 %v6265
        %v6333 = vpop.f32.mrf.mxu0
        %v6334 = vadd.f32 %v4380, %v6333
        %v6335 = vpop.f32.mrf.mxu0
        %6336 = vdwg.mxu0
        %vm6337 = vcmp.gt.f32.partialorder %v6334, 0.0
        %v6338 = vmul.f32 %v6334, 0.01
        %v6339 = vsel %vm6337, %v6334, %v6338
        %v6340 = vmul.f32 %v6339, %v4462
        %v6341 = vsel %vm1067, %v6340, 0.0
        %6342 = vadd.xlane.f32.xlu0 %v6341
        %v6343 = vpop.xlane.xlu0 %6342
        %v6344 = vadd.f32 %v6343, %v4472
        %v6345 = vmul.f32 %v6344, 0.5
        %v6346 = vtanh.pop %v6345
        %v6347 = vadd.f32 %v6346, 1.0
        %v6348 = vmul.f32 %v6347, 0.5
        %6350 = vset.pattern.permute.xlu0 0
        %6351 = vperm.xlu0 %6350, %v6348
        %v6352 = vpop.permute.xlu0 %6351
        %v6354 = vmul.f32 %v6352, %v5962
        %v6356 = vsel %vm1067, %v6354, 0
        %6358 = vmatprep.subr.mxu0 0.0
        %6359 = vmatpush1.msra.mxu0 0.0
        %6360 = vmatprep.subr.mxu0 0.0
        %6361 = vmatpush1.msra.mxu0 0.0
        %6362 = vmatprep.subr.mxu0 0.0
        %6363 = vmatpush1.msra.mxu0 0.0
        %6364 = vmatprep.subr.mxu0 0.0
        %6365 = vmatpush1.msra.mxu0 0.0
        %6366 = vmatprep.subr.mxu0 0.0
        %6367 = vmatpush1.msra.mxu0 0.0
        %6368 = vmatprep.subr.mxu0 0.0
        %6369 = vmatpush1.msra.mxu0 0.0
        %6370 = vmatprep.subr.mxu0 0.0
        %6371 = vmatpush1.msra.mxu0 0.0
        %6372 = vmatprep.subr.mxu0 0.0
        %6373 = vmatpush1.msra.mxu0 0.0
        %6374 = vmatprep.subr.mxu0 0.0
        %6375 = vmatpush1.msra.mxu0 0.0
        %6376 = vmatprep.subr.mxu0 0.0
        %6377 = vmatpush1.msra.mxu0 0.0
        %6378 = vmatprep.subr.mxu0 0.0
        %6379 = vmatpush1.msra.mxu0 0.0
        %6380 = vmatprep.subr.mxu0 0.0
        %6381 = vmatpush1.msra.mxu0 0.0
        %6382 = vmatprep.subr.mxu0 0.0
        %6383 = vmatpush1.msra.mxu0 %v5166
        %6384 = vmatprep.subr.mxu0 0.0
        %6385 = vmatpush1.msra.mxu0 %v5165
        %6386 = vmatprep.subr.mxu0 0.0
        %6387 = vmatpush1.msra.mxu0 %v5164
        %6388 = vmatprep.subr.mxu0 0.0
        %6389 = vmatpush1.msra.mxu0 %v5163
        %6390 = vmatprep.subr.mxu0 0.0
        %6391 = vmatpush2.msra.mxu0 0.0
        %6392 = vmatprep.subr.mxu0 0.0
        %6393 = vmatpush2.msra.mxu0 0.0
        %6394 = vmatprep.subr.mxu0 0.0
        %6395 = vmatpush2.msra.mxu0 0.0
        %6396 = vmatprep.subr.mxu0 0.0
        %6397 = vmatpush2.msra.mxu0 0.0
        %6398 = vmatprep.subr.mxu0 0.0
        %6399 = vmatpush2.msra.mxu0 0.0
        %6400 = vmatprep.subr.mxu0 0.0
        %6401 = vmatpush2.msra.mxu0 0.0
        %6402 = vmatprep.subr.mxu0 0.0
        %6403 = vmatpush2.msra.mxu0 0.0
        %6404 = vmatprep.subr.mxu0 0.0
        %6405 = vmatpush2.msra.mxu0 0.0
        %6406 = vmatprep.subr.mxu0 0.0
        %6407 = vmatpush2.msra.mxu0 0.0
        %6408 = vmatprep.subr.mxu0 0.0
        %6409 = vmatpush2.msra.mxu0 0.0
        %6410 = vmatprep.subr.mxu0 0.0
        %6411 = vmatpush2.msra.mxu0 0.0
        %6412 = vmatprep.subr.mxu0 0.0
        %6413 = vmatpush2.msra.mxu0 0.0
        %6414 = vmatprep.subr.mxu0 0.0
        %6415 = vmatpush2.msra.mxu0 0.0
        %6416 = vmatprep.subr.mxu0 0.0
        %6417 = vmatpush2.msra.mxu0 0.0
        %6418 = vmatprep.subr.mxu0 0.0
        %6419 = vmatpush2.msra.mxu0 0.0
        %6420 = vmatprep.subr.mxu0 0.0
        %6421 = vmatpush2.msra.mxu0 0.0
        %6422 = vmatprep.mubr.f32.mxu0 0.0
        %6423 = vmatmul.mubr.f32.gmra.mxu0 %v6356
        %v6424 = vpop.f32.mrf.mxu0
        %v6425 = vadd.f32 %v5171, %v6424
        %v6426 = vpop.f32.mrf.mxu0
        %6427 = vdwg.mxu0
        %vm6428 = vcmp.gt.f32.partialorder %v6425, 0.0
        %v6429 = vmul.f32 %v6425, 0.01
        %v6430 = vsel %vm6428, %v6425, %v6429
        %v6432 = vsel %vm1067, %v6430, 0
        %6434 = vmatprep.subr.mxu0 0.0
        %6435 = vmatpush1.msra.mxu0 0.0
        %6436 = vmatprep.subr.mxu0 0.0
        %6437 = vmatpush1.msra.mxu0 0.0
        %6438 = vmatprep.subr.mxu0 0.0
        %6439 = vmatpush1.msra.mxu0 0.0
        %6440 = vmatprep.subr.mxu0 0.0
        %6441 = vmatpush1.msra.mxu0 0.0
        %6442 = vmatprep.subr.mxu0 0.0
        %6443 = vmatpush1.msra.mxu0 0.0
        %6444 = vmatprep.subr.mxu0 0.0
        %6445 = vmatpush1.msra.mxu0 0.0
        %6446 = vmatprep.subr.mxu0 0.0
        %6447 = vmatpush1.msra.mxu0 0.0
        %6448 = vmatprep.subr.mxu0 0.0
        %6449 = vmatpush1.msra.mxu0 0.0
        %6450 = vmatprep.subr.mxu0 0.0
        %6451 = vmatpush1.msra.mxu0 0.0
        %6452 = vmatprep.subr.mxu0 0.0
        %6453 = vmatpush1.msra.mxu0 0.0
        %6454 = vmatprep.subr.mxu0 0.0
        %6455 = vmatpush1.msra.mxu0 0.0
        %6456 = vmatprep.subr.mxu0 0.0
        %6457 = vmatpush1.msra.mxu0 0.0
        %6458 = vmatprep.subr.mxu0 0.0
        %6459 = vmatpush1.msra.mxu0 %v5252
        %6460 = vmatprep.subr.mxu0 0.0
        %6461 = vmatpush1.msra.mxu0 %v5251
        %6462 = vmatprep.subr.mxu0 0.0
        %6463 = vmatpush1.msra.mxu0 %v5250
        %6464 = vmatprep.subr.mxu0 0.0
        %6465 = vmatpush1.msra.mxu0 %v5249
        %6466 = vmatprep.subr.mxu0 0.0
        %6467 = vmatpush2.msra.mxu0 0.0
        %6468 = vmatprep.subr.mxu0 0.0
        %6469 = vmatpush2.msra.mxu0 0.0
        %6470 = vmatprep.subr.mxu0 0.0
        %6471 = vmatpush2.msra.mxu0 0.0
        %6472 = vmatprep.subr.mxu0 0.0
        %6473 = vmatpush2.msra.mxu0 0.0
        %6474 = vmatprep.subr.mxu0 0.0
        %6475 = vmatpush2.msra.mxu0 0.0
        %6476 = vmatprep.subr.mxu0 0.0
        %6477 = vmatpush2.msra.mxu0 0.0
        %6478 = vmatprep.subr.mxu0 0.0
        %6479 = vmatpush2.msra.mxu0 0.0
        %6480 = vmatprep.subr.mxu0 0.0
        %6481 = vmatpush2.msra.mxu0 0.0
        %6482 = vmatprep.subr.mxu0 0.0
        %6483 = vmatpush2.msra.mxu0 0.0
        %6484 = vmatprep.subr.mxu0 0.0
        %6485 = vmatpush2.msra.mxu0 0.0
        %6486 = vmatprep.subr.mxu0 0.0
        %6487 = vmatpush2.msra.mxu0 0.0
        %6488 = vmatprep.subr.mxu0 0.0
        %6489 = vmatpush2.msra.mxu0 0.0
        %6490 = vmatprep.subr.mxu0 0.0
        %6491 = vmatpush2.msra.mxu0 0.0
        %6492 = vmatprep.subr.mxu0 0.0
        %6493 = vmatpush2.msra.mxu0 0.0
        %6494 = vmatprep.subr.mxu0 0.0
        %6495 = vmatpush2.msra.mxu0 0.0
        %6496 = vmatprep.subr.mxu0 0.0
        %6497 = vmatpush2.msra.mxu0 0.0
        %6498 = vmatprep.mubr.f32.mxu0 0.0
        %6499 = vmatmul.mubr.f32.gmra.mxu0 %v6432
        %v6500 = vpop.f32.mrf.mxu0
        %v6501 = vadd.f32 %v5257, %v6500
        %v6502 = vpop.f32.mrf.mxu0
        %6503 = vdwg.mxu0
        %vm6504 = vcmp.gt.f32.partialorder %v6501, 0.0
        %v6505 = vmul.f32 %v6501, 0.01
        %v6506 = vsel %vm6504, %v6501, %v6505
        %v6507 = vadd.f32 %v5336, %v6506
        %v6508 = vadd.f32 %v6507, %v6506
        %v6509 = vsel %vm1067, %v914, 0.0
        %v6510 = vrot.slane %v6509, 4
        %v6511 = vadd.f32 %v6509, %v6510
        %v6512 = vrot.slane %v6511, 2
        %v6513 = vadd.f32 %v6511, %v6512
        %v6514 = vrot.slane %v6513, 1
        %v6515 = vadd.f32 %v6513, %v6514
        %v6516 = vsel %vm1067, %v915, 0.0
        %v6517 = vrot.slane %v6516, 4
        %v6518 = vadd.f32 %v6516, %v6517
        %v6519 = vrot.slane %v6518, 2
        %v6520 = vadd.f32 %v6518, %v6519
        %v6521 = vrot.slane %v6520, 1
        %v6522 = vadd.f32 %v6520, %v6521
        %v6523 = vsel %vm1067, %v916, 0.0
        %v6524 = vrot.slane %v6523, 4
        %v6525 = vadd.f32 %v6523, %v6524
        %v6526 = vrot.slane %v6525, 2
        %v6527 = vadd.f32 %v6525, %v6526
        %v6528 = vrot.slane %v6527, 1
        %v6529 = vadd.f32 %v6527, %v6528
        %v6530 = vsel %vm1067, %v917, 0.0
        %v6531 = vrot.slane %v6530, 4
        %v6532 = vadd.f32 %v6530, %v6531
        %v6533 = vrot.slane %v6532, 2
        %v6534 = vadd.f32 %v6532, %v6533
        %v6535 = vrot.slane %v6534, 1
        %v6536 = vadd.f32 %v6534, %v6535
        %v6537 = vsel %vm1067, %v918, 0.0
        %v6538 = vrot.slane %v6537, 4
        %v6539 = vadd.f32 %v6537, %v6538
        %v6540 = vrot.slane %v6539, 2
        %v6541 = vadd.f32 %v6539, %v6540
        %v6542 = vrot.slane %v6541, 1
        %v6543 = vadd.f32 %v6541, %v6542
        %v6544 = vsel %vm1067, %v919, 0.0
        %v6545 = vrot.slane %v6544, 4
        %v6546 = vadd.f32 %v6544, %v6545
        %v6547 = vrot.slane %v6546, 2
        %v6548 = vadd.f32 %v6546, %v6547
        %v6549 = vrot.slane %v6548, 1
        %v6550 = vadd.f32 %v6548, %v6549
        %v6551 = vsel %vm1067, %v920, 0.0
        %v6552 = vrot.slane %v6551, 4
        %v6553 = vadd.f32 %v6551, %v6552
        %v6554 = vrot.slane %v6553, 2
        %v6555 = vadd.f32 %v6553, %v6554
        %v6556 = vrot.slane %v6555, 1
        %v6557 = vadd.f32 %v6555, %v6556
        %v6558 = vsel %vm1067, %v921, 0.0
        %v6559 = vrot.slane %v6558, 4
        %v6560 = vadd.f32 %v6558, %v6559
        %v6561 = vrot.slane %v6560, 2
        %v6562 = vadd.f32 %v6560, %v6561
        %v6563 = vrot.slane %v6562, 1
        %v6564 = vadd.f32 %v6562, %v6563
        %v6565 = vmul.f32 %v6515, %v3939
        %v6566 = vmul.f32 %v6522, %v3939
        %v6567 = vmul.f32 %v6529, %v3939
        %v6568 = vmul.f32 %v6536, %v3939
        %v6569 = vmul.f32 %v6543, %v3939
        %v6570 = vmul.f32 %v6550, %v3939
        %v6571 = vmul.f32 %v6557, %v3939
        %v6572 = vmul.f32 %v6564, %v3939
        %v6581 = vsel %vm2309, %v6566, %v6565
        %v6582 = vsel %vm2311, %v6567, %v6581
        %v6583 = vsel %vm2313, %v6568, %v6582
        %v6584 = vsel %vm2315, %v6569, %v6583
        %v6585 = vsel %vm2317, %v6570, %v6584
        %v6586 = vsel %vm2319, %v6571, %v6585
        %v6587 = vsel %vm2321, %v6572, %v6586
        %v6589 = vadd.f32 %v6508, %v6587
        %v6591 = vrot.slane %v6589, 1
        %v6592 = vrot.slane %v6589, 2
        %v6593 = vrot.slane %v6589, 3
        %v6594 = vrot.slane %v6589, 4
        %v6595 = vrot.slane %v6589, 5
        %v6596 = vrot.slane %v6589, 6
        %v6597 = vrot.slane %v6589, 7
        %v6606 = vmul.f32 %v5940, %v6589
        %v6607 = vmul.f32 %v5941, %v6591
        %v6608 = vmul.f32 %v5942, %v6592
        %v6609 = vmul.f32 %v5943, %v6593
        %v6610 = vmul.f32 %v5944, %v6594
        %v6611 = vmul.f32 %v5945, %v6595
        %v6612 = vmul.f32 %v5946, %v6596
        %v6613 = vmul.f32 %v5947, %v6597
        %v6622 = vrot.slane %v6607, 7
        %v6623 = vsel %vm2309, %v6622, %v6606
        %v6624 = vrot.slane %v6608, 6
        %v6625 = vsel %vm2311, %v6624, %v6623
        %v6626 = vrot.slane %v6609, 5
        %v6627 = vsel %vm2313, %v6626, %v6625
        %v6628 = vrot.slane %v6610, 4
        %v6629 = vsel %vm2315, %v6628, %v6627
        %v6630 = vrot.slane %v6611, 3
        %v6631 = vsel %vm2317, %v6630, %v6629
        %v6632 = vrot.slane %v6612, 2
        %v6633 = vsel %vm2319, %v6632, %v6631
        %v6634 = vrot.slane %v6613, 1
        %v6635 = vsel %vm2321, %v6634, %v6633
        %v6637 = vsel %vm1067, %v6635, 0.0
        %6638 = vadd.xlane.f32.xlu0 %v6637
        %v6639 = vpop.xlane.xlu0 %6638
        %v6640 = vmul.f32 %v6639, 0.5
        %v6641 = vtanh.pop %v6640
        %v6642 = vadd.f32 %v6641, 1.0
        %v6643 = vmul.f32 %v6642, 0.5
        %v6645 = vlaneseq
        %v6646 = vshrl.u32 %v6645, 7
        %v6647 = vsub.s32 %v2180, %v6646
        %v6648 = vrot.slane %v6643, %v6647
        %vm6650 = vcmask 57344
        %6651 = vst.msk [vmem:[%s796] sm:$0x1] %vm6650, %v6648
        %s6652 = sand.u32 %s567, 1
        %s6653 = scalar_lea.sflag [#allocation6], %s6652
        %s6654 = sand.u32 %s567, 1
        %s6655 = scalar_lea.vmem [#allocation7], %s6654
        // Predicated region
        $region121: #{tpu_custom_call.1} parent=115 // pred_check
          %p6656 = pneg %p577
        $region122: #{tpu_custom_call.1} parent=115 // pred_check_branch
          %6658 = sbr.rel (%p6656) target = $region124
        $region123: #{tpu_custom_call.1} parent=115 // pred_region
          %s6660 = ssub.s32 16, 16
          %6661 = vsyncadd %s6653, %s6660
          %s6662 = smul.addr %s45, 16
          %s6663 = scalar_lea.hbm %s24, %s6662
          %s6665 = sshll.u32 %s6655, 4
          %s6666 = int_to_ptr.vmem [resolvable:$true] %s6665
          %6668 = dma.vmem_to_hbm [thread:$0]  %s6666, 16, %s6663, %s6653
        $region124: #{tpu_custom_call.1} parent=115 // pred_fallthru
          _
      $region116: #{tpu_custom_call.1} parent=5 // pred_fallthru
        _
      %p6669 = scmp.le.s32.totalorder 2, %s40
      // Predicated region
      $region125: #{tpu_custom_call.1} parent=5 // pred_check
        %p6670 = pneg %p6669
      $region126: #{tpu_custom_call.1} parent=5 // pred_check_branch
        %6672 = sbr.rel (%p6670) target = $region128
      $region127: #{tpu_custom_call.1} parent=5 // pred_region
        %s6673 = ssub.s32 %s40, 2
        // Predicated region
        $region129: #{tpu_custom_call.1} parent=127 // pred_check
          %p6674 = pneg %p583
        $region130: #{tpu_custom_call.1} parent=127 // pred_check_branch
          %6676 = sbr.rel (%p6674) target = $region132
        $region131: #{tpu_custom_call.1} parent=127 // pred_region
          %s6677 = sand.u32 %s568, 1
          %s6678 = scalar_lea.sflag [#allocation6], %s6677
          %s6679 = sand.u32 %s568, 1
          %s6680 = scalar_lea.vmem [#allocation7], %s6679
          %6681 = dma.done %s6678, 16
        $region132: #{tpu_custom_call.1} parent=127 // pred_fallthru
          _
      $region128: #{tpu_custom_call.1} parent=5 // pred_fallthru
        _
    $region6: #{tpu_custom_call.1} parent=1 // loop_footer
      %s44 = sadd.s32 1, %s40
    $region7: #{tpu_custom_call.1} parent=1 // loop_footer_branch
      %39 = sbr.rel target = $region3
    $region8: #{tpu_custom_call.1} parent=1 // loop_exit
      _
    %6682 = vsyncpa [#allocation5], 1
    %s6683 = scalar_lea.sflag [#allocation5], 1
    %6684 = vsyncpa %s6683, 1
    %6685 = vsyncpa [#allocation6], 1
    %s6686 = scalar_lea.sflag [#allocation6], 1
    %6687 = vsyncpa %s6686, 1

</llo_original>
